<compile_context>
chip_gen: v7x
topology: tpu7x:2x2x1
jax: 0.10.0
libtpu: 0.0.40
codegen_flags: <defaults>
</compile_context>

<pallas_src>
import functools

import jax
import jax.numpy as jnp
from jax.experimental import pallas as pl
from jax.experimental.pallas import tpu as pltpu


# ----------------------------- in-kernel helpers -----------------------------

def _mlp_block(x, w1_ref, b1_ref, w2_ref, b2_ref):
    h = jnp.dot(x, w1_ref[...], preferred_element_type=jnp.float32) + b1_ref[...]
    h = jnp.maximum(h, 0.0)
    return jnp.dot(h, w2_ref[...], preferred_element_type=jnp.float32) + b2_ref[...]


def _glo_block(x, wt_ref, alpha, beta):
    # global_enhancev2 on one batch element: x (R, D)
    gmean = jnp.mean(x, axis=0, keepdims=True)                            # (1, D)
    gfeat = jnp.dot(gmean, wt_ref[...], preferred_element_type=jnp.float32)  # (1, D)
    atten = jnp.sum(x * gfeat, axis=1, keepdims=True)                     # (R, 1)
    mu = jnp.mean(atten, keepdims=True)                                   # (1, 1)
    sd = jnp.sqrt(jnp.mean((atten - mu) ** 2, keepdims=True))             # biased std
    atten = alpha * (atten - mu) / (sd + 1e-5) + beta
    return x + atten * gfeat


def _iam_aggregate_block(h_perm, data, w2s_ref, b2s_ref, alpha, fc_w, y_scr):
    # h_perm : (P, mid)  row-permuted MLP hidden of the "parameter" features
    # data   : (R, D)    features being aggregated
    # w2s_ref: (1, g, mid, D), b2s_ref: (1, g, 1, D)  gathered per-category weights
    # fc_w   : (g*D, D)  fc weight (value);  y_scr: (P, D) scratch for the fc output
    g = w2s_ref.shape[1]
    p_tot = h_perm.shape[0]
    d = data.shape[1]
    pg = p_tot // g
    a_clamped = jnp.maximum(alpha, 1e-5)
    for gg in range(g):
        sel = jnp.dot(h_perm, w2s_ref[0, gg],
                      preferred_element_type=jnp.float32) + b2s_ref[0, gg]      # (P, D)
        iam = jax.lax.dot_general(data, sel, (((1,), (1,)), ((), ())),
                                  preferred_element_type=jnp.float32)           # (R, P)
        prob = jax.nn.sigmoid(iam) / a_clamped
        norm = jnp.maximum(jnp.sum(prob, axis=0, keepdims=True), 1e-6)           # (1, P)
        probn = prob / norm
        aggre = jax.lax.dot_general(probn, data, (((0,), (0,)), ((), ())),
                                    preferred_element_type=jnp.float32)          # (P, D)
        yg = jnp.zeros((pg, fc_w.shape[1]), jnp.float32)
        for s in range(g):
            yg = yg + jnp.dot(aggre[s * pg:(s + 1) * pg, :],
                              fc_w[s * d:(s + 1) * d, :],
                              preferred_element_type=jnp.float32)
        y_scr[gg * pg:(gg + 1) * pg, :] = yg


# ------------------------------- fused kernel --------------------------------

def _decoder_kernel(
        prior_ref, inst_ref, enc_ref, w2s1_ref, b2s1_ref, w2s3_ref, b2s3_ref,
        scal_ref, p1_ref, p2_ref,
        ge1w_ref, ge2w_ref, ge3w_ref, ge4w_ref,
        m1w1_ref, m1b1_ref, m3w1_ref, m3b1_ref,
        fc1w_ref, fc1b_ref, fc2w_ref, fc2b_ref,
        m2w1_ref, m2b1_ref, m2w2_ref, m2b2_ref,
        m6w1_ref, m6b1_ref, m6w2_ref, m6b2_ref,
        cw1_ref, cb1_ref, cw2_ref, cb2_ref,
        m4w1_ref, m4b1_ref, m4w2_ref, m4b2_ref,
        m5w1_ref, m5b1_ref, m5w2_ref, m5b2_ref,
        out_ref, y1_scr, y2_scr, cat_scr):
    d = prior_ref.shape[2]

    # ---------------- glo_enhance1 / glo_enhance2 ----------------
    prior = _glo_block(prior_ref[0], ge1w_ref, scal_ref[0], scal_ref[1])     # (M, D)
    inst = _glo_block(inst_ref[0], ge2w_ref, scal_ref[2], scal_ref[3])       # (N, D)

    # -------- aggregate inst features into prior (mlp1 / iam1 / fc1) --------
    prior_perm = jnp.dot(p1_ref[...], prior, preferred_element_type=jnp.float32)
    h1 = jnp.maximum(jnp.dot(prior_perm, m1w1_ref[...],
                             preferred_element_type=jnp.float32) + m1b1_ref[...], 0.0)
    _iam_aggregate_block(h1, inst, w2s1_ref, b2s1_ref, scal_ref[8],
                         fc1w_ref[...], y1_scr)
    prior = prior + (y1_scr[...] + fc1b_ref[...])

    prior = prior + _mlp_block(prior, m2w1_ref, m2b1_ref, m2w2_ref, m2b2_ref)
    prior = _glo_block(prior, ge3w_ref, scal_ref[4], scal_ref[5])
    prior = prior + _mlp_block(prior, m6w1_ref, m6b1_ref, m6w2_ref, m6b2_ref)

    # -------- aggregate prior features into inst (mlp3 / iam2 / fc2) --------
    inst_perm = jnp.dot(p2_ref[...], inst, preferred_element_type=jnp.float32)
    h2 = jnp.maximum(jnp.dot(inst_perm, m3w1_ref[...],
                             preferred_element_type=jnp.float32) + m3b1_ref[...], 0.0)
    _iam_aggregate_block(h2, prior, w2s3_ref, b2s3_ref, scal_ref[9],
                         fc2w_ref[...], y2_scr)
    inst = inst + (y2_scr[...] + fc2b_ref[...])

    # ---------- coord branch, concat, mlp4, glo4, mlp5, mean pool ----------
    coord = _mlp_block(enc_ref[0], cw1_ref, cb1_ref, cw2_ref, cb2_ref)       # (N, 64)
    cat_scr[:, 0:d] = inst
    cat_scr[:, d:] = coord
    x = cat_scr[...]                                                          # (N, D+64)
    x = x + _mlp_block(x, m4w1_ref, m4b1_ref, m4w2_ref, m4b2_ref)
    x = _glo_block(x, ge4w_ref, scal_ref[6], scal_ref[7])
    x = _mlp_block(x, m5w1_ref, m5b1_ref, m5w2_ref, m5b2_ref)                # (N, 2D)
    out_ref[0] = jnp.mean(x, axis=0, keepdims=True)                          # (1, 2D)


# ------------------------------- Pallas wrapper -------------------------------

def _batched_spec(x):
    tail = tuple(int(s) for s in x.shape[1:])
    zeros = (0,) * len(tail)
    return pl.BlockSpec((1,) + tail, lambda b, _z=zeros: (b,) + _z)


def _const_spec(x):
    shape = tuple(int(s) for s in x.shape)
    zeros = (0,) * len(shape)
    return pl.BlockSpec(shape, lambda b, _z=zeros: _z)


def _perm_matrix(p_tot, group):
    pg = p_tot // group
    p = jnp.arange(p_tot)
    m = (p % pg) * group + (p // pg)
    return jax.nn.one_hot(m, p_tot, dtype=jnp.float32)


def _gather_w2(w2, b2, cats, cat_num, d, group):
    mid = w2.shape[0]
    w2r = w2.reshape(mid, cat_num, d, group)
    w2sel = jnp.transpose(jnp.take(w2r, cats, axis=1), (1, 3, 0, 2))          # (B, g, mid, D)
    b2r = b2.reshape(cat_num, d, group)
    b2sel = jnp.transpose(jnp.take(b2r, cats, axis=0), (0, 2, 1))[:, :, None, :]  # (B, g, 1, D)
    return w2sel, b2sel


def _cost_estimate(B, M, N, D, mid, group, arrays, out_nbytes):
    def mm(a, k, b):
        return 2 * a * k * b
    f = 0
    f += mm(M, D, D) + mm(N, D, D) + mm(N, D + 64, D + 64)          # glo convs
    f += mm(M, M, D) + mm(N, N, D)                                  # row permutations
    f += mm(M, D, mid) + mm(N, D, mid)                              # mlp1 / mlp3 first layer
    f += group * (mm(M, mid, D) + mm(N, D, M) + mm(M, N, D) + group * mm(M // group, D, D))
    f += group * (mm(N, mid, D) + mm(M, D, N) + mm(N, M, D) + group * mm(N // group, D, D))
    f += 2 * (mm(M, D, mid) + mm(M, mid, D))                        # mlp2, mlp6
    f += mm(N, 3, 32) + mm(N, 32, 64)                               # coord_mlp
    f += 2 * (mm(N, D + 64, mid) + mm(N, mid, D + 64))              # mlp4, mlp5 (approx)
    flops = B * f
    trans = B * 2 * group * M * N
    bytes_accessed = int(sum(int(a.size) * 4 for a in arrays)) + int(out_nbytes)
    return pl.CostEstimate(flops=int(flops), transcendentals=int(trans),
                           bytes_accessed=bytes_accessed)


def decoder_forward_fused(params, prior_feat, inst_feat, index, encoder_input, *,
                          group, cat_num):
    B, N, D = inst_feat.shape
    M = prior_feat.shape[1]
    assert M % group == 0 and N % group == 0
    mid = params["mlp1"][0].shape[1]

    cats = (index % cat_num).astype(jnp.int32)

    w2s1, b2s1 = _gather_w2(params["mlp1"][2], params["mlp1"][3], cats, cat_num, D, group)
    w2s3, b2s3 = _gather_w2(params["mlp3"][2], params["mlp3"][3], cats, cat_num, D, group)

    p1 = _perm_matrix(M, group)
    p2 = _perm_matrix(N, group)

    scal = jnp.concatenate([
        params["ge1"][1].reshape(1), params["ge1"][2].reshape(1),
        params["ge2"][1].reshape(1), params["ge2"][2].reshape(1),
        params["ge3"][1].reshape(1), params["ge3"][2].reshape(1),
        params["ge4"][1].reshape(1), params["ge4"][2].reshape(1),
        params["alpha1"].reshape(1), params["alpha2"].reshape(1),
        jnp.zeros((6,), jnp.float32),
    ]).astype(jnp.float32)                                            # (16,) in SMEM

    batched = [prior_feat, inst_feat, encoder_input, w2s1, b2s1, w2s3, b2s3]
    consts = [p1, p2,
              params["ge1"][0], params["ge2"][0], params["ge3"][0], params["ge4"][0],
              params["mlp1"][0], params["mlp1"][1], params["mlp3"][0], params["mlp3"][1],
              params["fc1"][0], params["fc1"][1], params["fc2"][0], params["fc2"][1],
              *params["mlp2"], *params["mlp6"], *params["coord_mlp"],
              *params["mlp4"], *params["mlp5"]]

    in_specs = ([_batched_spec(x) for x in batched]
                + [pl.BlockSpec(memory_space=pltpu.MemorySpace.SMEM)]
                + [_const_spec(x) for x in consts])

    out_nbytes = B * 1 * 2 * D * 4
    cost = _cost_estimate(B, M, N, D, mid, group,
                          batched + [scal] + consts, out_nbytes)

    return pl.pallas_call(
        _decoder_kernel,
        out_shape=jax.ShapeDtypeStruct((B, 1, 2 * D), jnp.float32),
        grid=(B,),
        in_specs=in_specs,
        out_specs=pl.BlockSpec((1, 1, 2 * D), lambda b: (b, 0, 0)),
        scratch_shapes=[pltpu.VMEM((M, D), jnp.float32),
                        pltpu.VMEM((N, D), jnp.float32),
                        pltpu.VMEM((N, D + 64), jnp.float32)],
        compiler_params=pltpu.CompilerParams(dimension_semantics=("parallel",)),
        cost_estimate=cost,
    )(*batched, scal, *consts)


# --------------------------- reference (plain JAX) ----------------------------

def decoder_forward_ref(params, prior_feat, inst_feat, index, encoder_input, *,
                        group, cat_num):
    HI = jax.lax.Precision.HIGHEST

    def mlp(x, p):
        w1, b1, w2, b2 = p
        h = jnp.maximum(jnp.matmul(x, w1, precision=HI) + b1, 0.0)
        return jnp.matmul(h, w2, precision=HI) + b2

    def linear(x, p):
        w, b = p
        return jnp.matmul(x, w, precision=HI) + b

    def glo(feat, wt, alpha, beta):
        g = jnp.mean(feat, axis=1, keepdims=True)
        g = jnp.matmul(g, wt, precision=HI)
        atten = jnp.sum(feat * g, axis=-1, keepdims=True)
        mean = jnp.mean(atten, axis=1, keepdims=True)
        std = jnp.sqrt(jnp.mean((atten - mean) ** 2, axis=1, keepdims=True))
        atten = alpha.reshape(()) * (atten - mean) / (std + 1e-5) + beta.reshape(())
        return feat + atten * g

    def iam_agg(feat, conv_para, alpha):
        iam = jnp.matmul(feat, conv_para, precision=HI)
        prob = jax.nn.sigmoid(iam) / jnp.maximum(alpha.reshape(()), 1e-5)
        aggre = jnp.matmul(jnp.swapaxes(prob, 1, 2), feat, precision=HI)
        norm = jnp.maximum(jnp.sum(prob, axis=1)[..., None], 1e-6)
        return aggre / norm

    B, N, D = inst_feat.shape
    M = prior_feat.shape[1]

    prior_feat = glo(prior_feat, *params["ge1"])
    inst_feat = glo(inst_feat, *params["ge2"])

    cp1 = mlp(prior_feat, params["mlp1"])
    cp1 = jnp.swapaxes(cp1, 1, 2).reshape(B * cat_num, group * D, M)
    cp1 = jnp.take(cp1, index, axis=0).reshape(B, D, group * M)
    aggre_inst = iam_agg(inst_feat, cp1, params["alpha1"]).reshape(B, M, group * D)
    prior_feat = prior_feat + linear(aggre_inst, params["fc1"])

    prior_feat = prior_feat + mlp(prior_feat, params["mlp2"])
    prior_feat = glo(prior_feat, *params["ge3"])
    prior_feat = prior_feat + mlp(prior_feat, params["mlp6"])

    cp2 = mlp(inst_feat, params["mlp3"])
    cp2 = jnp.swapaxes(cp2, 1, 2).reshape(B * cat_num, group * D, N)
    cp2 = jnp.take(cp2, index, axis=0).reshape(B, D, group * N)
    aggre_prior = iam_agg(prior_feat, cp2, params["alpha2"]).reshape(B, N, group * D)
    inst_feat = inst_feat + linear(aggre_prior, params["fc2"])

    coord_feat = mlp(encoder_input, params["coord_mlp"])
    inst_feat = jnp.concatenate([inst_feat, coord_feat], axis=-1)
    inst_feat = inst_feat + mlp(inst_feat, params["mlp4"])
    inst_feat = glo(inst_feat, *params["ge4"])
    inst_feat = mlp(inst_feat, params["mlp5"])
    return jnp.mean(inst_feat, axis=1, keepdims=True)


# -------------------------------- parameters ----------------------------------

def _init_linear(key, din, dout, scale=0.05):
    kw, kb = jax.random.split(key)
    w = scale * jax.random.normal(kw, (din, dout), jnp.float32)
    b = scale * jax.random.normal(kb, (1, dout), jnp.float32)
    return w, b


def _init_mlp(key, din, dh, dout):
    k1, k2 = jax.random.split(key)
    w1, b1 = _init_linear(k1, din, dh)
    w2, b2 = _init_linear(k2, dh, dout)
    return (w1, b1, w2, b2)


def _init_glo_enhance(key, dim):
    wt = 0.05 * jax.random.normal(key, (dim, dim), jnp.float32)   # conv1d weight, pre-transposed
    alpha = jnp.ones((1,), jnp.float32)
    beta = jnp.zeros((1,), jnp.float32)
    return (wt, alpha, beta)


def make_params(key, input_dim, group, cat_num, middle_dim):
    keys = jax.random.split(key, 16)
    D = input_dim
    return {
        "mlp1": _init_mlp(keys[0], D, middle_dim, group * D * cat_num),
        "fc1": _init_linear(keys[1], group * D, D),
        "fc2": _init_linear(keys[2], group * D, D),
        "mlp2": _init_mlp(keys[3], D, middle_dim, D),
        "mlp3": _init_mlp(keys[4], D, middle_dim, group * D * cat_num),
        "mlp4": _init_mlp(keys[5], D + 64, middle_dim, D + 64),
        "mlp5": _init_mlp(keys[6], D + 64, middle_dim, D * 2),
        "mlp6": _init_mlp(keys[7], D, middle_dim, D),
        "coord_mlp": _init_mlp(keys[8], 3, 32, 64),
        "ge1": _init_glo_enhance(keys[9], D),
        "ge2": _init_glo_enhance(keys[10], D),
        "ge3": _init_glo_enhance(keys[11], D),
        "ge4": _init_glo_enhance(keys[12], D + 64),
        "alpha1": jnp.ones((1,), jnp.float32),
        "alpha2": jnp.ones((1,), jnp.float32),
    }


# ----------------------------------- main --------------------------------------

if __name__ == "__main__":
    B, N, M = 2, 16, 8
    D, GROUP, CAT_NUM, MID = 32, 4, 6, 64

    key = jax.random.PRNGKey(0)
    kp, k1, k2, k3 = jax.random.split(key, 4)
    params = make_params(kp, D, GROUP, CAT_NUM, MID)

    prior_feat = jax.random.normal(k1, (B, M, D), jnp.float32)
    inst_feat = jax.random.normal(k2, (B, N, D), jnp.float32)
    encoder_input = jax.random.normal(k3, (B, N, 3), jnp.float32)
    # index_select indices: batch b with category c_b -> b * cat_num + c_b
    cats = jnp.array([1, 3], dtype=jnp.int32)
    index = jnp.arange(B, dtype=jnp.int32) * CAT_NUM + cats

    fwd_fused = jax.jit(functools.partial(
        decoder_forward_fused, group=GROUP, cat_num=CAT_NUM))
    fwd_ref = jax.jit(functools.partial(
        decoder_forward_ref, group=GROUP, cat_num=CAT_NUM))

    out = jax.block_until_ready(
        fwd_fused(params, prior_feat, inst_feat, index, encoder_input))
    ref = jax.block_until_ready(
        fwd_ref(params, prior_feat, inst_feat, index, encoder_input))

    assert out.shape == (B, 1, 2 * D), out.shape
    assert jnp.all(jnp.isfinite(out))
    assert jnp.allclose(out, ref, rtol=1e-2, atol=1e-2), (
        float(jnp.max(jnp.abs(out - ref))))

    print("KERNEL_OK")
</pallas_src>

<mosaic_0001>
module attributes {stable_mosaic.version = 11 : i64} {
  func.func @_decoder_kernel(%arg0: i32, %arg1: memref<1x8x32xf32, #tpu.memory_space<vmem>>, %arg2: memref<1x16x32xf32, #tpu.memory_space<vmem>>, %arg3: memref<1x16x3xf32, #tpu.memory_space<vmem>>, %arg4: memref<1x4x64x32xf32, #tpu.memory_space<vmem>>, %arg5: memref<1x4x1x32xf32, #tpu.memory_space<vmem>>, %arg6: memref<1x4x64x32xf32, #tpu.memory_space<vmem>>, %arg7: memref<1x4x1x32xf32, #tpu.memory_space<vmem>>, %arg8: memref<16xf32, #tpu.memory_space<smem>>, %arg9: memref<8x8xf32, #tpu.memory_space<vmem>>, %arg10: memref<16x16xf32, #tpu.memory_space<vmem>>, %arg11: memref<32x32xf32, #tpu.memory_space<vmem>>, %arg12: memref<32x32xf32, #tpu.memory_space<vmem>>, %arg13: memref<32x32xf32, #tpu.memory_space<vmem>>, %arg14: memref<96x96xf32, #tpu.memory_space<vmem>>, %arg15: memref<32x64xf32, #tpu.memory_space<vmem>>, %arg16: memref<1x64xf32, #tpu.memory_space<vmem>>, %arg17: memref<32x64xf32, #tpu.memory_space<vmem>>, %arg18: memref<1x64xf32, #tpu.memory_space<vmem>>, %arg19: memref<128x32xf32, #tpu.memory_space<vmem>>, %arg20: memref<1x32xf32, #tpu.memory_space<vmem>>, %arg21: memref<128x32xf32, #tpu.memory_space<vmem>>, %arg22: memref<1x32xf32, #tpu.memory_space<vmem>>, %arg23: memref<32x64xf32, #tpu.memory_space<vmem>>, %arg24: memref<1x64xf32, #tpu.memory_space<vmem>>, %arg25: memref<64x32xf32, #tpu.memory_space<vmem>>, %arg26: memref<1x32xf32, #tpu.memory_space<vmem>>, %arg27: memref<32x64xf32, #tpu.memory_space<vmem>>, %arg28: memref<1x64xf32, #tpu.memory_space<vmem>>, %arg29: memref<64x32xf32, #tpu.memory_space<vmem>>, %arg30: memref<1x32xf32, #tpu.memory_space<vmem>>, %arg31: memref<3x32xf32, #tpu.memory_space<vmem>>, %arg32: memref<1x32xf32, #tpu.memory_space<vmem>>, %arg33: memref<32x64xf32, #tpu.memory_space<vmem>>, %arg34: memref<1x64xf32, #tpu.memory_space<vmem>>, %arg35: memref<96x64xf32, #tpu.memory_space<vmem>>, %arg36: memref<1x64xf32, #tpu.memory_space<vmem>>, %arg37: memref<64x96xf32, #tpu.memory_space<vmem>>, %arg38: memref<1x96xf32, #tpu.memory_space<vmem>>, %arg39: memref<96x64xf32, #tpu.memory_space<vmem>>, %arg40: memref<1x64xf32, #tpu.memory_space<vmem>>, %arg41: memref<64x64xf32, #tpu.memory_space<vmem>>, %arg42: memref<1x64xf32, #tpu.memory_space<vmem>>, %arg43: memref<1x1x64xf32, #tpu.memory_space<vmem>>, %arg44: memref<8x32xf32, #tpu.memory_space<vmem>>, %arg45: memref<16x32xf32, #tpu.memory_space<vmem>>, %arg46: memref<16x96xf32, #tpu.memory_space<vmem>>) attributes {dimension_semantics = [#tpu.dimension_semantics<parallel>], iteration_bounds = array<i64: 2>, scalar_prefetch = 0 : i64, scratch_operands = 3 : i64, tpu.core_type = #tpu.core_type<tc>, window_params = [{transform_indices = @transform_0, window_bounds = array<i64: 1, 8, 32>}, {transform_indices = @transform_1, window_bounds = array<i64: 1, 16, 32>}, {transform_indices = @transform_2, window_bounds = array<i64: 1, 16, 3>}, {transform_indices = @transform_3, window_bounds = array<i64: 1, 4, 64, 32>}, {transform_indices = @transform_4, window_bounds = array<i64: 1, 4, 1, 32>}, {transform_indices = @transform_5, window_bounds = array<i64: 1, 4, 64, 32>}, {transform_indices = @transform_6, window_bounds = array<i64: 1, 4, 1, 32>}, {transform_indices = @transform_7, window_bounds = array<i64: 16>}, {pipeline_mode = #tpu.pipeline_mode<synchronous>, transform_indices = @transform_8, window_bounds = array<i64: 8, 8>}, {pipeline_mode = #tpu.pipeline_mode<synchronous>, transform_indices = @transform_9, window_bounds = array<i64: 16, 16>}, {pipeline_mode = #tpu.pipeline_mode<synchronous>, transform_indices = @transform_10, window_bounds = array<i64: 32, 32>}, {pipeline_mode = #tpu.pipeline_mode<synchronous>, transform_indices = @transform_11, window_bounds = array<i64: 32, 32>}, {pipeline_mode = #tpu.pipeline_mode<synchronous>, transform_indices = @transform_12, window_bounds = array<i64: 32, 32>}, {pipeline_mode = #tpu.pipeline_mode<synchronous>, transform_indices = @transform_13, window_bounds = array<i64: 96, 96>}, {pipeline_mode = #tpu.pipeline_mode<synchronous>, transform_indices = @transform_14, window_bounds = array<i64: 32, 64>}, {pipeline_mode = #tpu.pipeline_mode<synchronous>, transform_indices = @transform_15, window_bounds = array<i64: 1, 64>}, {pipeline_mode = #tpu.pipeline_mode<synchronous>, transform_indices = @transform_16, window_bounds = array<i64: 32, 64>}, {pipeline_mode = #tpu.pipeline_mode<synchronous>, transform_indices = @transform_17, window_bounds = array<i64: 1, 64>}, {pipeline_mode = #tpu.pipeline_mode<synchronous>, transform_indices = @transform_18, window_bounds = array<i64: 128, 32>}, {pipeline_mode = #tpu.pipeline_mode<synchronous>, transform_indices = @transform_19, window_bounds = array<i64: 1, 32>}, {pipeline_mode = #tpu.pipeline_mode<synchronous>, transform_indices = @transform_20, window_bounds = array<i64: 128, 32>}, {pipeline_mode = #tpu.pipeline_mode<synchronous>, transform_indices = @transform_21, window_bounds = array<i64: 1, 32>}, {pipeline_mode = #tpu.pipeline_mode<synchronous>, transform_indices = @transform_22, window_bounds = array<i64: 32, 64>}, {pipeline_mode = #tpu.pipeline_mode<synchronous>, transform_indices = @transform_23, window_bounds = array<i64: 1, 64>}, {pipeline_mode = #tpu.pipeline_mode<synchronous>, transform_indices = @transform_24, window_bounds = array<i64: 64, 32>}, {pipeline_mode = #tpu.pipeline_mode<synchronous>, transform_indices = @transform_25, window_bounds = array<i64: 1, 32>}, {pipeline_mode = #tpu.pipeline_mode<synchronous>, transform_indices = @transform_26, window_bounds = array<i64: 32, 64>}, {pipeline_mode = #tpu.pipeline_mode<synchronous>, transform_indices = @transform_27, window_bounds = array<i64: 1, 64>}, {pipeline_mode = #tpu.pipeline_mode<synchronous>, transform_indices = @transform_28, window_bounds = array<i64: 64, 32>}, {pipeline_mode = #tpu.pipeline_mode<synchronous>, transform_indices = @transform_29, window_bounds = array<i64: 1, 32>}, {pipeline_mode = #tpu.pipeline_mode<synchronous>, transform_indices = @transform_30, window_bounds = array<i64: 3, 32>}, {pipeline_mode = #tpu.pipeline_mode<synchronous>, transform_indices = @transform_31, window_bounds = array<i64: 1, 32>}, {pipeline_mode = #tpu.pipeline_mode<synchronous>, transform_indices = @transform_32, window_bounds = array<i64: 32, 64>}, {pipeline_mode = #tpu.pipeline_mode<synchronous>, transform_indices = @transform_33, window_bounds = array<i64: 1, 64>}, {pipeline_mode = #tpu.pipeline_mode<synchronous>, transform_indices = @transform_34, window_bounds = array<i64: 96, 64>}, {pipeline_mode = #tpu.pipeline_mode<synchronous>, transform_indices = @transform_35, window_bounds = array<i64: 1, 64>}, {pipeline_mode = #tpu.pipeline_mode<synchronous>, transform_indices = @transform_36, window_bounds = array<i64: 64, 96>}, {pipeline_mode = #tpu.pipeline_mode<synchronous>, transform_indices = @transform_37, window_bounds = array<i64: 1, 96>}, {pipeline_mode = #tpu.pipeline_mode<synchronous>, transform_indices = @transform_38, window_bounds = array<i64: 96, 64>}, {pipeline_mode = #tpu.pipeline_mode<synchronous>, transform_indices = @transform_39, window_bounds = array<i64: 1, 64>}, {pipeline_mode = #tpu.pipeline_mode<synchronous>, transform_indices = @transform_40, window_bounds = array<i64: 64, 64>}, {pipeline_mode = #tpu.pipeline_mode<synchronous>, transform_indices = @transform_41, window_bounds = array<i64: 1, 64>}, {transform_indices = @transform_42, window_bounds = array<i64: 1, 1, 64>}]} {
    %c0 = arith.constant 0 : index
    %c0_0 = arith.constant 0 : index
    %c0_1 = arith.constant 0 : index
    %0 = vector.load %arg1[%c0, %c0_0, %c0_1] : memref<1x8x32xf32, #tpu.memory_space<vmem>>, vector<1x8x32xf32>
    %1 = vector.shape_cast %0 : vector<1x8x32xf32> to vector<8x32xf32>
    %c0_2 = arith.constant 0 : index
    %2 = memref.load %arg8[%c0_2] : memref<16xf32, #tpu.memory_space<smem>>
    %c1 = arith.constant 1 : index
    %3 = memref.load %arg8[%c1] : memref<16xf32, #tpu.memory_space<smem>>
    %cst = arith.constant dense<0.000000e+00> : vector<32xf32>
    %4 = vector.multi_reduction <add>, %1, %cst [0] : vector<8x32xf32> to vector<32xf32>
    %5 = vector.shape_cast %4 : vector<32xf32> to vector<1x32xf32>
    %cst_3 = arith.constant 8.000000e+00 : f32
    %6 = vector.broadcast %cst_3 : f32 to vector<1x32xf32>
    %7 = arith.divf %5, %6 : vector<1x32xf32>
    %c0_4 = arith.constant 0 : index
    %c0_5 = arith.constant 0 : index
    %8 = vector.load %arg11[%c0_4, %c0_5] : memref<32x32xf32, #tpu.memory_space<vmem>>, vector<32x32xf32>
    %cst_6 = arith.constant dense<0.000000e+00> : vector<1x32xf32>
    %9 = tpu.matmul %7, %8, %cst_6 {dimension_numbers = #tpu.dot_dimension_numbers<[1], [0], [0], [1], [0, 0, 1, 1], [], []>} : vector<1x32xf32>, vector<32x32xf32>, vector<1x32xf32> -> vector<1x32xf32>
    %10 = vector.broadcast %9 : vector<1x32xf32> to vector<8x32xf32>
    %11 = arith.mulf %1, %10 : vector<8x32xf32>
    %cst_7 = arith.constant dense<0.000000e+00> : vector<8xf32>
    %12 = vector.multi_reduction <add>, %11, %cst_7 [1] : vector<8x32xf32> to vector<8xf32>
    %13 = vector.shape_cast %12 : vector<8xf32> to vector<8x1xf32>
    %14 = vector.shape_cast %13 : vector<8x1xf32> to vector<1x8x1xf32>
    %cst_8 = arith.constant dense<0.000000e+00> : vector<1xf32>
    %15 = vector.multi_reduction <add>, %14, %cst_8 [1, 2] : vector<1x8x1xf32> to vector<1xf32>
    %16 = vector.shape_cast %15 : vector<1xf32> to vector<1x1x1xf32>
    %17 = vector.extract %16[0, 0, 0] : f32 from vector<1x1x1xf32>
    %18 = vector.broadcast %17 : f32 to vector<1x1xf32>
    %cst_9 = arith.constant 8.000000e+00 : f32
    %19 = vector.broadcast %cst_9 : f32 to vector<1x1xf32>
    %20 = arith.divf %18, %19 : vector<1x1xf32>
    %21 = vector.broadcast %20 : vector<1x1xf32> to vector<8x1xf32>
    %22 = arith.subf %13, %21 : vector<8x1xf32>
    %23 = arith.mulf %22, %22 : vector<8x1xf32>
    %24 = vector.shape_cast %23 : vector<8x1xf32> to vector<1x8x1xf32>
    %cst_10 = arith.constant dense<0.000000e+00> : vector<1xf32>
    %25 = vector.multi_reduction <add>, %24, %cst_10 [1, 2] : vector<1x8x1xf32> to vector<1xf32>
    %26 = vector.shape_cast %25 : vector<1xf32> to vector<1x1x1xf32>
    %27 = vector.extract %26[0, 0, 0] : f32 from vector<1x1x1xf32>
    %28 = vector.broadcast %27 : f32 to vector<1x1xf32>
    %cst_11 = arith.constant 8.000000e+00 : f32
    %29 = vector.broadcast %cst_11 : f32 to vector<1x1xf32>
    %30 = arith.divf %28, %29 : vector<1x1xf32>
    %31 = math.sqrt %30 : vector<1x1xf32>
    %32 = vector.broadcast %20 : vector<1x1xf32> to vector<8x1xf32>
    %33 = arith.subf %13, %32 : vector<8x1xf32>
    %34 = vector.broadcast %2 : f32 to vector<8x1xf32>
    %35 = arith.mulf %34, %33 : vector<8x1xf32>
    %cst_12 = arith.constant 9.99999974E-6 : f32
    %36 = vector.broadcast %cst_12 : f32 to vector<1x1xf32>
    %37 = arith.addf %31, %36 : vector<1x1xf32>
    %38 = vector.broadcast %37 : vector<1x1xf32> to vector<8x1xf32>
    %39 = arith.divf %35, %38 : vector<8x1xf32>
    %40 = vector.broadcast %3 : f32 to vector<8x1xf32>
    %41 = arith.addf %39, %40 : vector<8x1xf32>
    %42 = vector.broadcast %41 : vector<8x1xf32> to vector<8x32xf32>
    %43 = vector.broadcast %9 : vector<1x32xf32> to vector<8x32xf32>
    %44 = arith.mulf %42, %43 : vector<8x32xf32>
    %45 = arith.addf %1, %44 : vector<8x32xf32>
    %c0_13 = arith.constant 0 : index
    %c0_14 = arith.constant 0 : index
    %c0_15 = arith.constant 0 : index
    %46 = vector.load %arg2[%c0_13, %c0_14, %c0_15] : memref<1x16x32xf32, #tpu.memory_space<vmem>>, vector<1x16x32xf32>
    %47 = vector.shape_cast %46 : vector<1x16x32xf32> to vector<16x32xf32>
    %c2 = arith.constant 2 : index
    %48 = memref.load %arg8[%c2] : memref<16xf32, #tpu.memory_space<smem>>
    %c3 = arith.constant 3 : index
    %49 = memref.load %arg8[%c3] : memref<16xf32, #tpu.memory_space<smem>>
    %cst_16 = arith.constant dense<0.000000e+00> : vector<32xf32>
    %50 = vector.multi_reduction <add>, %47, %cst_16 [0] : vector<16x32xf32> to vector<32xf32>
    %51 = vector.shape_cast %50 : vector<32xf32> to vector<1x32xf32>
    %cst_17 = arith.constant 1.600000e+01 : f32
    %52 = vector.broadcast %cst_17 : f32 to vector<1x32xf32>
    %53 = arith.divf %51, %52 : vector<1x32xf32>
    %c0_18 = arith.constant 0 : index
    %c0_19 = arith.constant 0 : index
    %54 = vector.load %arg12[%c0_18, %c0_19] : memref<32x32xf32, #tpu.memory_space<vmem>>, vector<32x32xf32>
    %cst_20 = arith.constant dense<0.000000e+00> : vector<1x32xf32>
    %55 = tpu.matmul %53, %54, %cst_20 {dimension_numbers = #tpu.dot_dimension_numbers<[1], [0], [0], [1], [0, 0, 1, 1], [], []>} : vector<1x32xf32>, vector<32x32xf32>, vector<1x32xf32> -> vector<1x32xf32>
    %56 = vector.broadcast %55 : vector<1x32xf32> to vector<16x32xf32>
    %57 = arith.mulf %47, %56 : vector<16x32xf32>
    %cst_21 = arith.constant dense<0.000000e+00> : vector<16xf32>
    %58 = vector.multi_reduction <add>, %57, %cst_21 [1] : vector<16x32xf32> to vector<16xf32>
    %59 = vector.shape_cast %58 : vector<16xf32> to vector<16x1xf32>
    %60 = vector.shape_cast %59 : vector<16x1xf32> to vector<1x16x1xf32>
    %cst_22 = arith.constant dense<0.000000e+00> : vector<1xf32>
    %61 = vector.multi_reduction <add>, %60, %cst_22 [1, 2] : vector<1x16x1xf32> to vector<1xf32>
    %62 = vector.shape_cast %61 : vector<1xf32> to vector<1x1x1xf32>
    %63 = vector.extract %62[0, 0, 0] : f32 from vector<1x1x1xf32>
    %64 = vector.broadcast %63 : f32 to vector<1x1xf32>
    %cst_23 = arith.constant 1.600000e+01 : f32
    %65 = vector.broadcast %cst_23 : f32 to vector<1x1xf32>
    %66 = arith.divf %64, %65 : vector<1x1xf32>
    %67 = vector.broadcast %66 : vector<1x1xf32> to vector<16x1xf32>
    %68 = arith.subf %59, %67 : vector<16x1xf32>
    %69 = arith.mulf %68, %68 : vector<16x1xf32>
    %70 = vector.shape_cast %69 : vector<16x1xf32> to vector<1x16x1xf32>
    %cst_24 = arith.constant dense<0.000000e+00> : vector<1xf32>
    %71 = vector.multi_reduction <add>, %70, %cst_24 [1, 2] : vector<1x16x1xf32> to vector<1xf32>
    %72 = vector.shape_cast %71 : vector<1xf32> to vector<1x1x1xf32>
    %73 = vector.extract %72[0, 0, 0] : f32 from vector<1x1x1xf32>
    %74 = vector.broadcast %73 : f32 to vector<1x1xf32>
    %cst_25 = arith.constant 1.600000e+01 : f32
    %75 = vector.broadcast %cst_25 : f32 to vector<1x1xf32>
    %76 = arith.divf %74, %75 : vector<1x1xf32>
    %77 = math.sqrt %76 : vector<1x1xf32>
    %78 = vector.broadcast %66 : vector<1x1xf32> to vector<16x1xf32>
    %79 = arith.subf %59, %78 : vector<16x1xf32>
    %80 = vector.broadcast %48 : f32 to vector<16x1xf32>
    %81 = arith.mulf %80, %79 : vector<16x1xf32>
    %cst_26 = arith.constant 9.99999974E-6 : f32
    %82 = vector.broadcast %cst_26 : f32 to vector<1x1xf32>
    %83 = arith.addf %77, %82 : vector<1x1xf32>
    %84 = vector.broadcast %83 : vector<1x1xf32> to vector<16x1xf32>
    %85 = arith.divf %81, %84 : vector<16x1xf32>
    %86 = vector.broadcast %49 : f32 to vector<16x1xf32>
    %87 = arith.addf %85, %86 : vector<16x1xf32>
    %88 = vector.broadcast %87 : vector<16x1xf32> to vector<16x32xf32>
    %89 = vector.broadcast %55 : vector<1x32xf32> to vector<16x32xf32>
    %90 = arith.mulf %88, %89 : vector<16x32xf32>
    %91 = arith.addf %47, %90 : vector<16x32xf32>
    %c0_27 = arith.constant 0 : index
    %c0_28 = arith.constant 0 : index
    %92 = vector.load %arg9[%c0_27, %c0_28] : memref<8x8xf32, #tpu.memory_space<vmem>>, vector<8x8xf32>
    %cst_29 = arith.constant dense<0.000000e+00> : vector<8x32xf32>
    %93 = tpu.matmul %92, %45, %cst_29 {dimension_numbers = #tpu.dot_dimension_numbers<[1], [0], [0], [1], [0, 0, 1, 1], [], []>} : vector<8x8xf32>, vector<8x32xf32>, vector<8x32xf32> -> vector<8x32xf32>
    %c0_30 = arith.constant 0 : index
    %c0_31 = arith.constant 0 : index
    %94 = vector.load %arg15[%c0_30, %c0_31] : memref<32x64xf32, #tpu.memory_space<vmem>>, vector<32x64xf32>
    %cst_32 = arith.constant dense<0.000000e+00> : vector<8x64xf32>
    %95 = tpu.matmul %93, %94, %cst_32 {dimension_numbers = #tpu.dot_dimension_numbers<[1], [0], [0], [1], [0, 0, 1, 1], [], []>} : vector<8x32xf32>, vector<32x64xf32>, vector<8x64xf32> -> vector<8x64xf32>
    %c0_33 = arith.constant 0 : index
    %c0_34 = arith.constant 0 : index
    %96 = vector.load %arg16[%c0_33, %c0_34] : memref<1x64xf32, #tpu.memory_space<vmem>>, vector<1x64xf32>
    %97 = vector.broadcast %96 : vector<1x64xf32> to vector<8x64xf32>
    %98 = arith.addf %95, %97 : vector<8x64xf32>
    %cst_35 = arith.constant 0.000000e+00 : f32
    %99 = vector.broadcast %cst_35 : f32 to vector<8x64xf32>
    %100 = arith.maximumf %98, %99 : vector<8x64xf32>
    %c8 = arith.constant 8 : index
    %101 = memref.load %arg8[%c8] : memref<16xf32, #tpu.memory_space<smem>>
    %c0_36 = arith.constant 0 : index
    %c0_37 = arith.constant 0 : index
    %102 = vector.load %arg19[%c0_36, %c0_37] : memref<128x32xf32, #tpu.memory_space<vmem>>, vector<128x32xf32>
    %cst_38 = arith.constant 9.99999974E-6 : f32
    %103 = arith.maximumf %101, %cst_38 : f32
    %c0_39 = arith.constant 0 : index
    %c0_40 = arith.constant 0 : index
    %c0_41 = arith.constant 0 : index
    %c0_42 = arith.constant 0 : index
    %104 = vector.load %arg4[%c0_39, %c0_40, %c0_41, %c0_42] : memref<1x4x64x32xf32, #tpu.memory_space<vmem>>, vector<1x1x64x32xf32>
    %105 = vector.shape_cast %104 : vector<1x1x64x32xf32> to vector<64x32xf32>
    %cst_43 = arith.constant dense<0.000000e+00> : vector<8x32xf32>
    %106 = tpu.matmul %100, %105, %cst_43 {dimension_numbers = #tpu.dot_dimension_numbers<[1], [0], [0], [1], [0, 0, 1, 1], [], []>} : vector<8x64xf32>, vector<64x32xf32>, vector<8x32xf32> -> vector<8x32xf32>
    %c0_44 = arith.constant 0 : index
    %c0_45 = arith.constant 0 : index
    %c0_46 = arith.constant 0 : index
    %c0_47 = arith.constant 0 : index
    %107 = vector.load %arg5[%c0_44, %c0_45, %c0_46, %c0_47] : memref<1x4x1x32xf32, #tpu.memory_space<vmem>>, vector<1x1x1x32xf32>
    %108 = vector.shape_cast %107 : vector<1x1x1x32xf32> to vector<1x32xf32>
    %109 = vector.broadcast %108 : vector<1x32xf32> to vector<8x32xf32>
    %110 = arith.addf %106, %109 : vector<8x32xf32>
    %cst_48 = arith.constant dense<0.000000e+00> : vector<16x8xf32>
    %111 = tpu.matmul %91, %110, %cst_48 {dimension_numbers = #tpu.dot_dimension_numbers<[1], [1], [0], [0], [0, 0, 1, 0], [], []>} : vector<16x32xf32>, vector<8x32xf32>, vector<16x8xf32> -> vector<16x8xf32>
    %112 = arith.negf %111 : vector<16x8xf32>
    %113 = math.exp %112 : vector<16x8xf32>
    %cst_49 = arith.constant 1.000000e+00 : f32
    %114 = vector.broadcast %cst_49 : f32 to vector<16x8xf32>
    %115 = arith.addf %114, %113 : vector<16x8xf32>
    %116 = arith.divf %114, %115 : vector<16x8xf32>
    %117 = vector.broadcast %103 : f32 to vector<16x8xf32>
    %118 = arith.divf %116, %117 : vector<16x8xf32>
    %cst_50 = arith.constant dense<0.000000e+00> : vector<8xf32>
    %119 = vector.multi_reduction <add>, %118, %cst_50 [0] : vector<16x8xf32> to vector<8xf32>
    %120 = vector.shape_cast %119 : vector<8xf32> to vector<1x8xf32>
    %cst_51 = arith.constant 9.99999997E-7 : f32
    %121 = vector.broadcast %cst_51 : f32 to vector<1x8xf32>
    %122 = arith.maximumf %120, %121 : vector<1x8xf32>
    %123 = vector.broadcast %122 : vector<1x8xf32> to vector<16x8xf32>
    %124 = arith.divf %118, %123 : vector<16x8xf32>
    %cst_52 = arith.constant dense<0.000000e+00> : vector<8x32xf32>
    %125 = tpu.matmul %124, %91, %cst_52 {dimension_numbers = #tpu.dot_dimension_numbers<[0], [0], [1], [1], [0, 1, 1, 1], [], []>} : vector<16x8xf32>, vector<16x32xf32>, vector<8x32xf32> -> vector<8x32xf32>
    %cst_53 = arith.constant 0.000000e+00 : f32
    %126 = vector.broadcast %cst_53 : f32 to vector<2x32xf32>
    %127 = vector.extract_strided_slice %125 {offsets = [0, 0], sizes = [2, 32], strides = [1, 1]} : vector<8x32xf32> to vector<2x32xf32>
    %128 = vector.extract_strided_slice %102 {offsets = [0, 0], sizes = [32, 32], strides = [1, 1]} : vector<128x32xf32> to vector<32x32xf32>
    %cst_54 = arith.constant dense<0.000000e+00> : vector<2x32xf32>
    %129 = tpu.matmul %127, %128, %cst_54 {dimension_numbers = #tpu.dot_dimension_numbers<[1], [0], [0], [1], [0, 0, 1, 1], [], []>} : vector<2x32xf32>, vector<32x32xf32>, vector<2x32xf32> -> vector<2x32xf32>
    %130 = arith.addf %126, %129 : vector<2x32xf32>
    %131 = vector.extract_strided_slice %125 {offsets = [2, 0], sizes = [2, 32], strides = [1, 1]} : vector<8x32xf32> to vector<2x32xf32>
    %132 = vector.extract_strided_slice %102 {offsets = [32, 0], sizes = [32, 32], strides = [1, 1]} : vector<128x32xf32> to vector<32x32xf32>
    %cst_55 = arith.constant dense<0.000000e+00> : vector<2x32xf32>
    %133 = tpu.matmul %131, %132, %cst_55 {dimension_numbers = #tpu.dot_dimension_numbers<[1], [0], [0], [1], [0, 0, 1, 1], [], []>} : vector<2x32xf32>, vector<32x32xf32>, vector<2x32xf32> -> vector<2x32xf32>
    %134 = arith.addf %130, %133 : vector<2x32xf32>
    %135 = vector.extract_strided_slice %125 {offsets = [4, 0], sizes = [2, 32], strides = [1, 1]} : vector<8x32xf32> to vector<2x32xf32>
    %136 = vector.extract_strided_slice %102 {offsets = [64, 0], sizes = [32, 32], strides = [1, 1]} : vector<128x32xf32> to vector<32x32xf32>
    %cst_56 = arith.constant dense<0.000000e+00> : vector<2x32xf32>
    %137 = tpu.matmul %135, %136, %cst_56 {dimension_numbers = #tpu.dot_dimension_numbers<[1], [0], [0], [1], [0, 0, 1, 1], [], []>} : vector<2x32xf32>, vector<32x32xf32>, vector<2x32xf32> -> vector<2x32xf32>
    %138 = arith.addf %134, %137 : vector<2x32xf32>
    %139 = vector.extract_strided_slice %125 {offsets = [6, 0], sizes = [2, 32], strides = [1, 1]} : vector<8x32xf32> to vector<2x32xf32>
    %140 = vector.extract_strided_slice %102 {offsets = [96, 0], sizes = [32, 32], strides = [1, 1]} : vector<128x32xf32> to vector<32x32xf32>
    %cst_57 = arith.constant dense<0.000000e+00> : vector<2x32xf32>
    %141 = tpu.matmul %139, %140, %cst_57 {dimension_numbers = #tpu.dot_dimension_numbers<[1], [0], [0], [1], [0, 0, 1, 1], [], []>} : vector<2x32xf32>, vector<32x32xf32>, vector<2x32xf32> -> vector<2x32xf32>
    %142 = arith.addf %138, %141 : vector<2x32xf32>
    %c0_58 = arith.constant 0 : index
    %c0_59 = arith.constant 0 : index
    %143 = vector.load %arg44[%c0_58, %c0_59] : memref<8x32xf32, #tpu.memory_space<vmem>>, vector<2x32xf32>
    tpu.vector_store %arg44[%c0_58, %c0_59], %142 {strides = array<i32>} : memref<8x32xf32, #tpu.memory_space<vmem>>, vector<2x32xf32>,
    %c0_60 = arith.constant 0 : index
    %c1_61 = arith.constant 1 : index
    %c0_62 = arith.constant 0 : index
    %c0_63 = arith.constant 0 : index
    %144 = vector.load %arg4[%c0_60, %c1_61, %c0_62, %c0_63] : memref<1x4x64x32xf32, #tpu.memory_space<vmem>>, vector<1x1x64x32xf32>
    %145 = vector.shape_cast %144 : vector<1x1x64x32xf32> to vector<64x32xf32>
    %cst_64 = arith.constant dense<0.000000e+00> : vector<8x32xf32>
    %146 = tpu.matmul %100, %145, %cst_64 {dimension_numbers = #tpu.dot_dimension_numbers<[1], [0], [0], [1], [0, 0, 1, 1], [], []>} : vector<8x64xf32>, vector<64x32xf32>, vector<8x32xf32> -> vector<8x32xf32>
    %c0_65 = arith.constant 0 : index
    %c1_66 = arith.constant 1 : index
    %c0_67 = arith.constant 0 : index
    %c0_68 = arith.constant 0 : index
    %147 = vector.load %arg5[%c0_65, %c1_66, %c0_67, %c0_68] : memref<1x4x1x32xf32, #tpu.memory_space<vmem>>, vector<1x1x1x32xf32>
    %148 = vector.shape_cast %147 : vector<1x1x1x32xf32> to vector<1x32xf32>
    %149 = vector.broadcast %148 : vector<1x32xf32> to vector<8x32xf32>
    %150 = arith.addf %146, %149 : vector<8x32xf32>
    %cst_69 = arith.constant dense<0.000000e+00> : vector<16x8xf32>
    %151 = tpu.matmul %91, %150, %cst_69 {dimension_numbers = #tpu.dot_dimension_numbers<[1], [1], [0], [0], [0, 0, 1, 0], [], []>} : vector<16x32xf32>, vector<8x32xf32>, vector<16x8xf32> -> vector<16x8xf32>
    %152 = arith.negf %151 : vector<16x8xf32>
    %153 = math.exp %152 : vector<16x8xf32>
    %cst_70 = arith.constant 1.000000e+00 : f32
    %154 = vector.broadcast %cst_70 : f32 to vector<16x8xf32>
    %155 = arith.addf %154, %153 : vector<16x8xf32>
    %156 = arith.divf %154, %155 : vector<16x8xf32>
    %157 = vector.broadcast %103 : f32 to vector<16x8xf32>
    %158 = arith.divf %156, %157 : vector<16x8xf32>
    %cst_71 = arith.constant dense<0.000000e+00> : vector<8xf32>
    %159 = vector.multi_reduction <add>, %158, %cst_71 [0] : vector<16x8xf32> to vector<8xf32>
    %160 = vector.shape_cast %159 : vector<8xf32> to vector<1x8xf32>
    %cst_72 = arith.constant 9.99999997E-7 : f32
    %161 = vector.broadcast %cst_72 : f32 to vector<1x8xf32>
    %162 = arith.maximumf %160, %161 : vector<1x8xf32>
    %163 = vector.broadcast %162 : vector<1x8xf32> to vector<16x8xf32>
    %164 = arith.divf %158, %163 : vector<16x8xf32>
    %cst_73 = arith.constant dense<0.000000e+00> : vector<8x32xf32>
    %165 = tpu.matmul %164, %91, %cst_73 {dimension_numbers = #tpu.dot_dimension_numbers<[0], [0], [1], [1], [0, 1, 1, 1], [], []>} : vector<16x8xf32>, vector<16x32xf32>, vector<8x32xf32> -> vector<8x32xf32>
    %cst_74 = arith.constant 0.000000e+00 : f32
    %166 = vector.broadcast %cst_74 : f32 to vector<2x32xf32>
    %167 = vector.extract_strided_slice %165 {offsets = [0, 0], sizes = [2, 32], strides = [1, 1]} : vector<8x32xf32> to vector<2x32xf32>
    %168 = vector.extract_strided_slice %102 {offsets = [0, 0], sizes = [32, 32], strides = [1, 1]} : vector<128x32xf32> to vector<32x32xf32>
    %cst_75 = arith.constant dense<0.000000e+00> : vector<2x32xf32>
    %169 = tpu.matmul %167, %168, %cst_75 {dimension_numbers = #tpu.dot_dimension_numbers<[1], [0], [0], [1], [0, 0, 1, 1], [], []>} : vector<2x32xf32>, vector<32x32xf32>, vector<2x32xf32> -> vector<2x32xf32>
    %170 = arith.addf %166, %169 : vector<2x32xf32>
    %171 = vector.extract_strided_slice %165 {offsets = [2, 0], sizes = [2, 32], strides = [1, 1]} : vector<8x32xf32> to vector<2x32xf32>
    %172 = vector.extract_strided_slice %102 {offsets = [32, 0], sizes = [32, 32], strides = [1, 1]} : vector<128x32xf32> to vector<32x32xf32>
    %cst_76 = arith.constant dense<0.000000e+00> : vector<2x32xf32>
    %173 = tpu.matmul %171, %172, %cst_76 {dimension_numbers = #tpu.dot_dimension_numbers<[1], [0], [0], [1], [0, 0, 1, 1], [], []>} : vector<2x32xf32>, vector<32x32xf32>, vector<2x32xf32> -> vector<2x32xf32>
    %174 = arith.addf %170, %173 : vector<2x32xf32>
    %175 = vector.extract_strided_slice %165 {offsets = [4, 0], sizes = [2, 32], strides = [1, 1]} : vector<8x32xf32> to vector<2x32xf32>
    %176 = vector.extract_strided_slice %102 {offsets = [64, 0], sizes = [32, 32], strides = [1, 1]} : vector<128x32xf32> to vector<32x32xf32>
    %cst_77 = arith.constant dense<0.000000e+00> : vector<2x32xf32>
    %177 = tpu.matmul %175, %176, %cst_77 {dimension_numbers = #tpu.dot_dimension_numbers<[1], [0], [0], [1], [0, 0, 1, 1], [], []>} : vector<2x32xf32>, vector<32x32xf32>, vector<2x32xf32> -> vector<2x32xf32>
    %178 = arith.addf %174, %177 : vector<2x32xf32>
    %179 = vector.extract_strided_slice %165 {offsets = [6, 0], sizes = [2, 32], strides = [1, 1]} : vector<8x32xf32> to vector<2x32xf32>
    %180 = vector.extract_strided_slice %102 {offsets = [96, 0], sizes = [32, 32], strides = [1, 1]} : vector<128x32xf32> to vector<32x32xf32>
    %cst_78 = arith.constant dense<0.000000e+00> : vector<2x32xf32>
    %181 = tpu.matmul %179, %180, %cst_78 {dimension_numbers = #tpu.dot_dimension_numbers<[1], [0], [0], [1], [0, 0, 1, 1], [], []>} : vector<2x32xf32>, vector<32x32xf32>, vector<2x32xf32> -> vector<2x32xf32>
    %182 = arith.addf %178, %181 : vector<2x32xf32>
    %c2_79 = arith.constant 2 : index
    %c0_80 = arith.constant 0 : index
    %183 = vector.load %arg44[%c2_79, %c0_80] : memref<8x32xf32, #tpu.memory_space<vmem>>, vector<2x32xf32>
    tpu.vector_store %arg44[%c2_79, %c0_80], %182 {strides = array<i32>} : memref<8x32xf32, #tpu.memory_space<vmem>>, vector<2x32xf32>,
    %c0_81 = arith.constant 0 : index
    %c2_82 = arith.constant 2 : index
    %c0_83 = arith.constant 0 : index
    %c0_84 = arith.constant 0 : index
    %184 = vector.load %arg4[%c0_81, %c2_82, %c0_83, %c0_84] : memref<1x4x64x32xf32, #tpu.memory_space<vmem>>, vector<1x1x64x32xf32>
    %185 = vector.shape_cast %184 : vector<1x1x64x32xf32> to vector<64x32xf32>
    %cst_85 = arith.constant dense<0.000000e+00> : vector<8x32xf32>
    %186 = tpu.matmul %100, %185, %cst_85 {dimension_numbers = #tpu.dot_dimension_numbers<[1], [0], [0], [1], [0, 0, 1, 1], [], []>} : vector<8x64xf32>, vector<64x32xf32>, vector<8x32xf32> -> vector<8x32xf32>
    %c0_86 = arith.constant 0 : index
    %c2_87 = arith.constant 2 : index
    %c0_88 = arith.constant 0 : index
    %c0_89 = arith.constant 0 : index
    %187 = vector.load %arg5[%c0_86, %c2_87, %c0_88, %c0_89] : memref<1x4x1x32xf32, #tpu.memory_space<vmem>>, vector<1x1x1x32xf32>
    %188 = vector.shape_cast %187 : vector<1x1x1x32xf32> to vector<1x32xf32>
    %189 = vector.broadcast %188 : vector<1x32xf32> to vector<8x32xf32>
    %190 = arith.addf %186, %189 : vector<8x32xf32>
    %cst_90 = arith.constant dense<0.000000e+00> : vector<16x8xf32>
    %191 = tpu.matmul %91, %190, %cst_90 {dimension_numbers = #tpu.dot_dimension_numbers<[1], [1], [0], [0], [0, 0, 1, 0], [], []>} : vector<16x32xf32>, vector<8x32xf32>, vector<16x8xf32> -> vector<16x8xf32>
    %192 = arith.negf %191 : vector<16x8xf32>
    %193 = math.exp %192 : vector<16x8xf32>
    %cst_91 = arith.constant 1.000000e+00 : f32
    %194 = vector.broadcast %cst_91 : f32 to vector<16x8xf32>
    %195 = arith.addf %194, %193 : vector<16x8xf32>
    %196 = arith.divf %194, %195 : vector<16x8xf32>
    %197 = vector.broadcast %103 : f32 to vector<16x8xf32>
    %198 = arith.divf %196, %197 : vector<16x8xf32>
    %cst_92 = arith.constant dense<0.000000e+00> : vector<8xf32>
    %199 = vector.multi_reduction <add>, %198, %cst_92 [0] : vector<16x8xf32> to vector<8xf32>
    %200 = vector.shape_cast %199 : vector<8xf32> to vector<1x8xf32>
    %cst_93 = arith.constant 9.99999997E-7 : f32
    %201 = vector.broadcast %cst_93 : f32 to vector<1x8xf32>
    %202 = arith.maximumf %200, %201 : vector<1x8xf32>
    %203 = vector.broadcast %202 : vector<1x8xf32> to vector<16x8xf32>
    %204 = arith.divf %198, %203 : vector<16x8xf32>
    %cst_94 = arith.constant dense<0.000000e+00> : vector<8x32xf32>
    %205 = tpu.matmul %204, %91, %cst_94 {dimension_numbers = #tpu.dot_dimension_numbers<[0], [0], [1], [1], [0, 1, 1, 1], [], []>} : vector<16x8xf32>, vector<16x32xf32>, vector<8x32xf32> -> vector<8x32xf32>
    %cst_95 = arith.constant 0.000000e+00 : f32
    %206 = vector.broadcast %cst_95 : f32 to vector<2x32xf32>
    %207 = vector.extract_strided_slice %205 {offsets = [0, 0], sizes = [2, 32], strides = [1, 1]} : vector<8x32xf32> to vector<2x32xf32>
    %208 = vector.extract_strided_slice %102 {offsets = [0, 0], sizes = [32, 32], strides = [1, 1]} : vector<128x32xf32> to vector<32x32xf32>
    %cst_96 = arith.constant dense<0.000000e+00> : vector<2x32xf32>
    %209 = tpu.matmul %207, %208, %cst_96 {dimension_numbers = #tpu.dot_dimension_numbers<[1], [0], [0], [1], [0, 0, 1, 1], [], []>} : vector<2x32xf32>, vector<32x32xf32>, vector<2x32xf32> -> vector<2x32xf32>
    %210 = arith.addf %206, %209 : vector<2x32xf32>
    %211 = vector.extract_strided_slice %205 {offsets = [2, 0], sizes = [2, 32], strides = [1, 1]} : vector<8x32xf32> to vector<2x32xf32>
    %212 = vector.extract_strided_slice %102 {offsets = [32, 0], sizes = [32, 32], strides = [1, 1]} : vector<128x32xf32> to vector<32x32xf32>
    %cst_97 = arith.constant dense<0.000000e+00> : vector<2x32xf32>
    %213 = tpu.matmul %211, %212, %cst_97 {dimension_numbers = #tpu.dot_dimension_numbers<[1], [0], [0], [1], [0, 0, 1, 1], [], []>} : vector<2x32xf32>, vector<32x32xf32>, vector<2x32xf32> -> vector<2x32xf32>
    %214 = arith.addf %210, %213 : vector<2x32xf32>
    %215 = vector.extract_strided_slice %205 {offsets = [4, 0], sizes = [2, 32], strides = [1, 1]} : vector<8x32xf32> to vector<2x32xf32>
    %216 = vector.extract_strided_slice %102 {offsets = [64, 0], sizes = [32, 32], strides = [1, 1]} : vector<128x32xf32> to vector<32x32xf32>
    %cst_98 = arith.constant dense<0.000000e+00> : vector<2x32xf32>
    %217 = tpu.matmul %215, %216, %cst_98 {dimension_numbers = #tpu.dot_dimension_numbers<[1], [0], [0], [1], [0, 0, 1, 1], [], []>} : vector<2x32xf32>, vector<32x32xf32>, vector<2x32xf32> -> vector<2x32xf32>
    %218 = arith.addf %214, %217 : vector<2x32xf32>
    %219 = vector.extract_strided_slice %205 {offsets = [6, 0], sizes = [2, 32], strides = [1, 1]} : vector<8x32xf32> to vector<2x32xf32>
    %220 = vector.extract_strided_slice %102 {offsets = [96, 0], sizes = [32, 32], strides = [1, 1]} : vector<128x32xf32> to vector<32x32xf32>
    %cst_99 = arith.constant dense<0.000000e+00> : vector<2x32xf32>
    %221 = tpu.matmul %219, %220, %cst_99 {dimension_numbers = #tpu.dot_dimension_numbers<[1], [0], [0], [1], [0, 0, 1, 1], [], []>} : vector<2x32xf32>, vector<32x32xf32>, vector<2x32xf32> -> vector<2x32xf32>
    %222 = arith.addf %218, %221 : vector<2x32xf32>
    %c4 = arith.constant 4 : index
    %c0_100 = arith.constant 0 : index
    %223 = vector.load %arg44[%c4, %c0_100] : memref<8x32xf32, #tpu.memory_space<vmem>>, vector<2x32xf32>
    tpu.vector_store %arg44[%c4, %c0_100], %222 {strides = array<i32>} : memref<8x32xf32, #tpu.memory_space<vmem>>, vector<2x32xf32>,
    %c0_101 = arith.constant 0 : index
    %c3_102 = arith.constant 3 : index
    %c0_103 = arith.constant 0 : index
    %c0_104 = arith.constant 0 : index
    %224 = vector.load %arg4[%c0_101, %c3_102, %c0_103, %c0_104] : memref<1x4x64x32xf32, #tpu.memory_space<vmem>>, vector<1x1x64x32xf32>
    %225 = vector.shape_cast %224 : vector<1x1x64x32xf32> to vector<64x32xf32>
    %cst_105 = arith.constant dense<0.000000e+00> : vector<8x32xf32>
    %226 = tpu.matmul %100, %225, %cst_105 {dimension_numbers = #tpu.dot_dimension_numbers<[1], [0], [0], [1], [0, 0, 1, 1], [], []>} : vector<8x64xf32>, vector<64x32xf32>, vector<8x32xf32> -> vector<8x32xf32>
    %c0_106 = arith.constant 0 : index
    %c3_107 = arith.constant 3 : index
    %c0_108 = arith.constant 0 : index
    %c0_109 = arith.constant 0 : index
    %227 = vector.load %arg5[%c0_106, %c3_107, %c0_108, %c0_109] : memref<1x4x1x32xf32, #tpu.memory_space<vmem>>, vector<1x1x1x32xf32>
    %228 = vector.shape_cast %227 : vector<1x1x1x32xf32> to vector<1x32xf32>
    %229 = vector.broadcast %228 : vector<1x32xf32> to vector<8x32xf32>
    %230 = arith.addf %226, %229 : vector<8x32xf32>
    %cst_110 = arith.constant dense<0.000000e+00> : vector<16x8xf32>
    %231 = tpu.matmul %91, %230, %cst_110 {dimension_numbers = #tpu.dot_dimension_numbers<[1], [1], [0], [0], [0, 0, 1, 0], [], []>} : vector<16x32xf32>, vector<8x32xf32>, vector<16x8xf32> -> vector<16x8xf32>
    %232 = arith.negf %231 : vector<16x8xf32>
    %233 = math.exp %232 : vector<16x8xf32>
    %cst_111 = arith.constant 1.000000e+00 : f32
    %234 = vector.broadcast %cst_111 : f32 to vector<16x8xf32>
    %235 = arith.addf %234, %233 : vector<16x8xf32>
    %236 = arith.divf %234, %235 : vector<16x8xf32>
    %237 = vector.broadcast %103 : f32 to vector<16x8xf32>
    %238 = arith.divf %236, %237 : vector<16x8xf32>
    %cst_112 = arith.constant dense<0.000000e+00> : vector<8xf32>
    %239 = vector.multi_reduction <add>, %238, %cst_112 [0] : vector<16x8xf32> to vector<8xf32>
    %240 = vector.shape_cast %239 : vector<8xf32> to vector<1x8xf32>
    %cst_113 = arith.constant 9.99999997E-7 : f32
    %241 = vector.broadcast %cst_113 : f32 to vector<1x8xf32>
    %242 = arith.maximumf %240, %241 : vector<1x8xf32>
    %243 = vector.broadcast %242 : vector<1x8xf32> to vector<16x8xf32>
    %244 = arith.divf %238, %243 : vector<16x8xf32>
    %cst_114 = arith.constant dense<0.000000e+00> : vector<8x32xf32>
    %245 = tpu.matmul %244, %91, %cst_114 {dimension_numbers = #tpu.dot_dimension_numbers<[0], [0], [1], [1], [0, 1, 1, 1], [], []>} : vector<16x8xf32>, vector<16x32xf32>, vector<8x32xf32> -> vector<8x32xf32>
    %cst_115 = arith.constant 0.000000e+00 : f32
    %246 = vector.broadcast %cst_115 : f32 to vector<2x32xf32>
    %247 = vector.extract_strided_slice %245 {offsets = [0, 0], sizes = [2, 32], strides = [1, 1]} : vector<8x32xf32> to vector<2x32xf32>
    %248 = vector.extract_strided_slice %102 {offsets = [0, 0], sizes = [32, 32], strides = [1, 1]} : vector<128x32xf32> to vector<32x32xf32>
    %cst_116 = arith.constant dense<0.000000e+00> : vector<2x32xf32>
    %249 = tpu.matmul %247, %248, %cst_116 {dimension_numbers = #tpu.dot_dimension_numbers<[1], [0], [0], [1], [0, 0, 1, 1], [], []>} : vector<2x32xf32>, vector<32x32xf32>, vector<2x32xf32> -> vector<2x32xf32>
    %250 = arith.addf %246, %249 : vector<2x32xf32>
    %251 = vector.extract_strided_slice %245 {offsets = [2, 0], sizes = [2, 32], strides = [1, 1]} : vector<8x32xf32> to vector<2x32xf32>
    %252 = vector.extract_strided_slice %102 {offsets = [32, 0], sizes = [32, 32], strides = [1, 1]} : vector<128x32xf32> to vector<32x32xf32>
    %cst_117 = arith.constant dense<0.000000e+00> : vector<2x32xf32>
    %253 = tpu.matmul %251, %252, %cst_117 {dimension_numbers = #tpu.dot_dimension_numbers<[1], [0], [0], [1], [0, 0, 1, 1], [], []>} : vector<2x32xf32>, vector<32x32xf32>, vector<2x32xf32> -> vector<2x32xf32>
    %254 = arith.addf %250, %253 : vector<2x32xf32>
    %255 = vector.extract_strided_slice %245 {offsets = [4, 0], sizes = [2, 32], strides = [1, 1]} : vector<8x32xf32> to vector<2x32xf32>
    %256 = vector.extract_strided_slice %102 {offsets = [64, 0], sizes = [32, 32], strides = [1, 1]} : vector<128x32xf32> to vector<32x32xf32>
    %cst_118 = arith.constant dense<0.000000e+00> : vector<2x32xf32>
    %257 = tpu.matmul %255, %256, %cst_118 {dimension_numbers = #tpu.dot_dimension_numbers<[1], [0], [0], [1], [0, 0, 1, 1], [], []>} : vector<2x32xf32>, vector<32x32xf32>, vector<2x32xf32> -> vector<2x32xf32>
    %258 = arith.addf %254, %257 : vector<2x32xf32>
    %259 = vector.extract_strided_slice %245 {offsets = [6, 0], sizes = [2, 32], strides = [1, 1]} : vector<8x32xf32> to vector<2x32xf32>
    %260 = vector.extract_strided_slice %102 {offsets = [96, 0], sizes = [32, 32], strides = [1, 1]} : vector<128x32xf32> to vector<32x32xf32>
    %cst_119 = arith.constant dense<0.000000e+00> : vector<2x32xf32>
    %261 = tpu.matmul %259, %260, %cst_119 {dimension_numbers = #tpu.dot_dimension_numbers<[1], [0], [0], [1], [0, 0, 1, 1], [], []>} : vector<2x32xf32>, vector<32x32xf32>, vector<2x32xf32> -> vector<2x32xf32>
    %262 = arith.addf %258, %261 : vector<2x32xf32>
    %c6 = arith.constant 6 : index
    %c0_120 = arith.constant 0 : index
    %263 = vector.load %arg44[%c6, %c0_120] : memref<8x32xf32, #tpu.memory_space<vmem>>, vector<2x32xf32>
    tpu.vector_store %arg44[%c6, %c0_120], %262 {strides = array<i32>} : memref<8x32xf32, #tpu.memory_space<vmem>>, vector<2x32xf32>,
    %c0_121 = arith.constant 0 : index
    %c0_122 = arith.constant 0 : index
    %264 = vector.load %arg44[%c0_121, %c0_122] : memref<8x32xf32, #tpu.memory_space<vmem>>, vector<8x32xf32>
    %c0_123 = arith.constant 0 : index
    %c0_124 = arith.constant 0 : index
    %265 = vector.load %arg20[%c0_123, %c0_124] : memref<1x32xf32, #tpu.memory_space<vmem>>, vector<1x32xf32>
    %266 = vector.broadcast %265 : vector<1x32xf32> to vector<8x32xf32>
    %267 = arith.addf %264, %266 : vector<8x32xf32>
    %268 = arith.addf %45, %267 : vector<8x32xf32>
    %c0_125 = arith.constant 0 : index
    %c0_126 = arith.constant 0 : index
    %269 = vector.load %arg23[%c0_125, %c0_126] : memref<32x64xf32, #tpu.memory_space<vmem>>, vector<32x64xf32>
    %cst_127 = arith.constant dense<0.000000e+00> : vector<8x64xf32>
    %270 = tpu.matmul %268, %269, %cst_127 {dimension_numbers = #tpu.dot_dimension_numbers<[1], [0], [0], [1], [0, 0, 1, 1], [], []>} : vector<8x32xf32>, vector<32x64xf32>, vector<8x64xf32> -> vector<8x64xf32>
    %c0_128 = arith.constant 0 : index
    %c0_129 = arith.constant 0 : index
    %271 = vector.load %arg24[%c0_128, %c0_129] : memref<1x64xf32, #tpu.memory_space<vmem>>, vector<1x64xf32>
    %272 = vector.broadcast %271 : vector<1x64xf32> to vector<8x64xf32>
    %273 = arith.addf %270, %272 : vector<8x64xf32>
    %cst_130 = arith.constant 0.000000e+00 : f32
    %274 = vector.broadcast %cst_130 : f32 to vector<8x64xf32>
    %275 = arith.maximumf %273, %274 : vector<8x64xf32>
    %c0_131 = arith.constant 0 : index
    %c0_132 = arith.constant 0 : index
    %276 = vector.load %arg25[%c0_131, %c0_132] : memref<64x32xf32, #tpu.memory_space<vmem>>, vector<64x32xf32>
    %cst_133 = arith.constant dense<0.000000e+00> : vector<8x32xf32>
    %277 = tpu.matmul %275, %276, %cst_133 {dimension_numbers = #tpu.dot_dimension_numbers<[1], [0], [0], [1], [0, 0, 1, 1], [], []>} : vector<8x64xf32>, vector<64x32xf32>, vector<8x32xf32> -> vector<8x32xf32>
    %c0_134 = arith.constant 0 : index
    %c0_135 = arith.constant 0 : index
    %278 = vector.load %arg26[%c0_134, %c0_135] : memref<1x32xf32, #tpu.memory_space<vmem>>, vector<1x32xf32>
    %279 = vector.broadcast %278 : vector<1x32xf32> to vector<8x32xf32>
    %280 = arith.addf %277, %279 : vector<8x32xf32>
    %281 = arith.addf %268, %280 : vector<8x32xf32>
    %c4_136 = arith.constant 4 : index
    %282 = memref.load %arg8[%c4_136] : memref<16xf32, #tpu.memory_space<smem>>
    %c5 = arith.constant 5 : index
    %283 = memref.load %arg8[%c5] : memref<16xf32, #tpu.memory_space<smem>>
    %cst_137 = arith.constant dense<0.000000e+00> : vector<32xf32>
    %284 = vector.multi_reduction <add>, %281, %cst_137 [0] : vector<8x32xf32> to vector<32xf32>
    %285 = vector.shape_cast %284 : vector<32xf32> to vector<1x32xf32>
    %cst_138 = arith.constant 8.000000e+00 : f32
    %286 = vector.broadcast %cst_138 : f32 to vector<1x32xf32>
    %287 = arith.divf %285, %286 : vector<1x32xf32>
    %c0_139 = arith.constant 0 : index
    %c0_140 = arith.constant 0 : index
    %288 = vector.load %arg13[%c0_139, %c0_140] : memref<32x32xf32, #tpu.memory_space<vmem>>, vector<32x32xf32>
    %cst_141 = arith.constant dense<0.000000e+00> : vector<1x32xf32>
    %289 = tpu.matmul %287, %288, %cst_141 {dimension_numbers = #tpu.dot_dimension_numbers<[1], [0], [0], [1], [0, 0, 1, 1], [], []>} : vector<1x32xf32>, vector<32x32xf32>, vector<1x32xf32> -> vector<1x32xf32>
    %290 = vector.broadcast %289 : vector<1x32xf32> to vector<8x32xf32>
    %291 = arith.mulf %281, %290 : vector<8x32xf32>
    %cst_142 = arith.constant dense<0.000000e+00> : vector<8xf32>
    %292 = vector.multi_reduction <add>, %291, %cst_142 [1] : vector<8x32xf32> to vector<8xf32>
    %293 = vector.shape_cast %292 : vector<8xf32> to vector<8x1xf32>
    %294 = vector.shape_cast %293 : vector<8x1xf32> to vector<1x8x1xf32>
    %cst_143 = arith.constant dense<0.000000e+00> : vector<1xf32>
    %295 = vector.multi_reduction <add>, %294, %cst_143 [1, 2] : vector<1x8x1xf32> to vector<1xf32>
    %296 = vector.shape_cast %295 : vector<1xf32> to vector<1x1x1xf32>
    %297 = vector.extract %296[0, 0, 0] : f32 from vector<1x1x1xf32>
    %298 = vector.broadcast %297 : f32 to vector<1x1xf32>
    %cst_144 = arith.constant 8.000000e+00 : f32
    %299 = vector.broadcast %cst_144 : f32 to vector<1x1xf32>
    %300 = arith.divf %298, %299 : vector<1x1xf32>
    %301 = vector.broadcast %300 : vector<1x1xf32> to vector<8x1xf32>
    %302 = arith.subf %293, %301 : vector<8x1xf32>
    %303 = arith.mulf %302, %302 : vector<8x1xf32>
    %304 = vector.shape_cast %303 : vector<8x1xf32> to vector<1x8x1xf32>
    %cst_145 = arith.constant dense<0.000000e+00> : vector<1xf32>
    %305 = vector.multi_reduction <add>, %304, %cst_145 [1, 2] : vector<1x8x1xf32> to vector<1xf32>
    %306 = vector.shape_cast %305 : vector<1xf32> to vector<1x1x1xf32>
    %307 = vector.extract %306[0, 0, 0] : f32 from vector<1x1x1xf32>
    %308 = vector.broadcast %307 : f32 to vector<1x1xf32>
    %cst_146 = arith.constant 8.000000e+00 : f32
    %309 = vector.broadcast %cst_146 : f32 to vector<1x1xf32>
    %310 = arith.divf %308, %309 : vector<1x1xf32>
    %311 = math.sqrt %310 : vector<1x1xf32>
    %312 = vector.broadcast %300 : vector<1x1xf32> to vector<8x1xf32>
    %313 = arith.subf %293, %312 : vector<8x1xf32>
    %314 = vector.broadcast %282 : f32 to vector<8x1xf32>
    %315 = arith.mulf %314, %313 : vector<8x1xf32>
    %cst_147 = arith.constant 9.99999974E-6 : f32
    %316 = vector.broadcast %cst_147 : f32 to vector<1x1xf32>
    %317 = arith.addf %311, %316 : vector<1x1xf32>
    %318 = vector.broadcast %317 : vector<1x1xf32> to vector<8x1xf32>
    %319 = arith.divf %315, %318 : vector<8x1xf32>
    %320 = vector.broadcast %283 : f32 to vector<8x1xf32>
    %321 = arith.addf %319, %320 : vector<8x1xf32>
    %322 = vector.broadcast %321 : vector<8x1xf32> to vector<8x32xf32>
    %323 = vector.broadcast %289 : vector<1x32xf32> to vector<8x32xf32>
    %324 = arith.mulf %322, %323 : vector<8x32xf32>
    %325 = arith.addf %281, %324 : vector<8x32xf32>
    %c0_148 = arith.constant 0 : index
    %c0_149 = arith.constant 0 : index
    %326 = vector.load %arg27[%c0_148, %c0_149] : memref<32x64xf32, #tpu.memory_space<vmem>>, vector<32x64xf32>
    %cst_150 = arith.constant dense<0.000000e+00> : vector<8x64xf32>
    %327 = tpu.matmul %325, %326, %cst_150 {dimension_numbers = #tpu.dot_dimension_numbers<[1], [0], [0], [1], [0, 0, 1, 1], [], []>} : vector<8x32xf32>, vector<32x64xf32>, vector<8x64xf32> -> vector<8x64xf32>
    %c0_151 = arith.constant 0 : index
    %c0_152 = arith.constant 0 : index
    %328 = vector.load %arg28[%c0_151, %c0_152] : memref<1x64xf32, #tpu.memory_space<vmem>>, vector<1x64xf32>
    %329 = vector.broadcast %328 : vector<1x64xf32> to vector<8x64xf32>
    %330 = arith.addf %327, %329 : vector<8x64xf32>
    %cst_153 = arith.constant 0.000000e+00 : f32
    %331 = vector.broadcast %cst_153 : f32 to vector<8x64xf32>
    %332 = arith.maximumf %330, %331 : vector<8x64xf32>
    %c0_154 = arith.constant 0 : index
    %c0_155 = arith.constant 0 : index
    %333 = vector.load %arg29[%c0_154, %c0_155] : memref<64x32xf32, #tpu.memory_space<vmem>>, vector<64x32xf32>
    %cst_156 = arith.constant dense<0.000000e+00> : vector<8x32xf32>
    %334 = tpu.matmul %332, %333, %cst_156 {dimension_numbers = #tpu.dot_dimension_numbers<[1], [0], [0], [1], [0, 0, 1, 1], [], []>} : vector<8x64xf32>, vector<64x32xf32>, vector<8x32xf32> -> vector<8x32xf32>
    %c0_157 = arith.constant 0 : index
    %c0_158 = arith.constant 0 : index
    %335 = vector.load %arg30[%c0_157, %c0_158] : memref<1x32xf32, #tpu.memory_space<vmem>>, vector<1x32xf32>
    %336 = vector.broadcast %335 : vector<1x32xf32> to vector<8x32xf32>
    %337 = arith.addf %334, %336 : vector<8x32xf32>
    %338 = arith.addf %325, %337 : vector<8x32xf32>
    %c0_159 = arith.constant 0 : index
    %c0_160 = arith.constant 0 : index
    %339 = vector.load %arg10[%c0_159, %c0_160] : memref<16x16xf32, #tpu.memory_space<vmem>>, vector<16x16xf32>
    %cst_161 = arith.constant dense<0.000000e+00> : vector<16x32xf32>
    %340 = tpu.matmul %339, %91, %cst_161 {dimension_numbers = #tpu.dot_dimension_numbers<[1], [0], [0], [1], [0, 0, 1, 1], [], []>} : vector<16x16xf32>, vector<16x32xf32>, vector<16x32xf32> -> vector<16x32xf32>
    %c0_162 = arith.constant 0 : index
    %c0_163 = arith.constant 0 : index
    %341 = vector.load %arg17[%c0_162, %c0_163] : memref<32x64xf32, #tpu.memory_space<vmem>>, vector<32x64xf32>
    %cst_164 = arith.constant dense<0.000000e+00> : vector<16x64xf32>
    %342 = tpu.matmul %340, %341, %cst_164 {dimension_numbers = #tpu.dot_dimension_numbers<[1], [0], [0], [1], [0, 0, 1, 1], [], []>} : vector<16x32xf32>, vector<32x64xf32>, vector<16x64xf32> -> vector<16x64xf32>
    %c0_165 = arith.constant 0 : index
    %c0_166 = arith.constant 0 : index
    %343 = vector.load %arg18[%c0_165, %c0_166] : memref<1x64xf32, #tpu.memory_space<vmem>>, vector<1x64xf32>
    %344 = vector.broadcast %343 : vector<1x64xf32> to vector<16x64xf32>
    %345 = arith.addf %342, %344 : vector<16x64xf32>
    %cst_167 = arith.constant 0.000000e+00 : f32
    %346 = vector.broadcast %cst_167 : f32 to vector<16x64xf32>
    %347 = arith.maximumf %345, %346 : vector<16x64xf32>
    %c9 = arith.constant 9 : index
    %348 = memref.load %arg8[%c9] : memref<16xf32, #tpu.memory_space<smem>>
    %c0_168 = arith.constant 0 : index
    %c0_169 = arith.constant 0 : index
    %349 = vector.load %arg21[%c0_168, %c0_169] : memref<128x32xf32, #tpu.memory_space<vmem>>, vector<128x32xf32>
    %cst_170 = arith.constant 9.99999974E-6 : f32
    %350 = arith.maximumf %348, %cst_170 : f32
    %c0_171 = arith.constant 0 : index
    %c0_172 = arith.constant 0 : index
    %c0_173 = arith.constant 0 : index
    %c0_174 = arith.constant 0 : index
    %351 = vector.load %arg6[%c0_171, %c0_172, %c0_173, %c0_174] : memref<1x4x64x32xf32, #tpu.memory_space<vmem>>, vector<1x1x64x32xf32>
    %352 = vector.shape_cast %351 : vector<1x1x64x32xf32> to vector<64x32xf32>
    %cst_175 = arith.constant dense<0.000000e+00> : vector<16x32xf32>
    %353 = tpu.matmul %347, %352, %cst_175 {dimension_numbers = #tpu.dot_dimension_numbers<[1], [0], [0], [1], [0, 0, 1, 1], [], []>} : vector<16x64xf32>, vector<64x32xf32>, vector<16x32xf32> -> vector<16x32xf32>
    %c0_176 = arith.constant 0 : index
    %c0_177 = arith.constant 0 : index
    %c0_178 = arith.constant 0 : index
    %c0_179 = arith.constant 0 : index
    %354 = vector.load %arg7[%c0_176, %c0_177, %c0_178, %c0_179] : memref<1x4x1x32xf32, #tpu.memory_space<vmem>>, vector<1x1x1x32xf32>
    %355 = vector.shape_cast %354 : vector<1x1x1x32xf32> to vector<1x32xf32>
    %356 = vector.broadcast %355 : vector<1x32xf32> to vector<16x32xf32>
    %357 = arith.addf %353, %356 : vector<16x32xf32>
    %cst_180 = arith.constant dense<0.000000e+00> : vector<8x16xf32>
    %358 = tpu.matmul %338, %357, %cst_180 {dimension_numbers = #tpu.dot_dimension_numbers<[1], [1], [0], [0], [0, 0, 1, 0], [], []>} : vector<8x32xf32>, vector<16x32xf32>, vector<8x16xf32> -> vector<8x16xf32>
    %359 = arith.negf %358 : vector<8x16xf32>
    %360 = math.exp %359 : vector<8x16xf32>
    %cst_181 = arith.constant 1.000000e+00 : f32
    %361 = vector.broadcast %cst_181 : f32 to vector<8x16xf32>
    %362 = arith.addf %361, %360 : vector<8x16xf32>
    %363 = arith.divf %361, %362 : vector<8x16xf32>
    %364 = vector.broadcast %350 : f32 to vector<8x16xf32>
    %365 = arith.divf %363, %364 : vector<8x16xf32>
    %cst_182 = arith.constant dense<0.000000e+00> : vector<16xf32>
    %366 = vector.multi_reduction <add>, %365, %cst_182 [0] : vector<8x16xf32> to vector<16xf32>
    %367 = vector.shape_cast %366 : vector<16xf32> to vector<1x16xf32>
    %cst_183 = arith.constant 9.99999997E-7 : f32
    %368 = vector.broadcast %cst_183 : f32 to vector<1x16xf32>
    %369 = arith.maximumf %367, %368 : vector<1x16xf32>
    %370 = vector.broadcast %369 : vector<1x16xf32> to vector<8x16xf32>
    %371 = arith.divf %365, %370 : vector<8x16xf32>
    %cst_184 = arith.constant dense<0.000000e+00> : vector<16x32xf32>
    %372 = tpu.matmul %371, %338, %cst_184 {dimension_numbers = #tpu.dot_dimension_numbers<[0], [0], [1], [1], [0, 1, 1, 1], [], []>} : vector<8x16xf32>, vector<8x32xf32>, vector<16x32xf32> -> vector<16x32xf32>
    %cst_185 = arith.constant 0.000000e+00 : f32
    %373 = vector.broadcast %cst_185 : f32 to vector<4x32xf32>
    %374 = vector.extract_strided_slice %372 {offsets = [0, 0], sizes = [4, 32], strides = [1, 1]} : vector<16x32xf32> to vector<4x32xf32>
    %375 = vector.extract_strided_slice %349 {offsets = [0, 0], sizes = [32, 32], strides = [1, 1]} : vector<128x32xf32> to vector<32x32xf32>
    %cst_186 = arith.constant dense<0.000000e+00> : vector<4x32xf32>
    %376 = tpu.matmul %374, %375, %cst_186 {dimension_numbers = #tpu.dot_dimension_numbers<[1], [0], [0], [1], [0, 0, 1, 1], [], []>} : vector<4x32xf32>, vector<32x32xf32>, vector<4x32xf32> -> vector<4x32xf32>
    %377 = arith.addf %373, %376 : vector<4x32xf32>
    %378 = vector.extract_strided_slice %372 {offsets = [4, 0], sizes = [4, 32], strides = [1, 1]} : vector<16x32xf32> to vector<4x32xf32>
    %379 = vector.extract_strided_slice %349 {offsets = [32, 0], sizes = [32, 32], strides = [1, 1]} : vector<128x32xf32> to vector<32x32xf32>
    %cst_187 = arith.constant dense<0.000000e+00> : vector<4x32xf32>
    %380 = tpu.matmul %378, %379, %cst_187 {dimension_numbers = #tpu.dot_dimension_numbers<[1], [0], [0], [1], [0, 0, 1, 1], [], []>} : vector<4x32xf32>, vector<32x32xf32>, vector<4x32xf32> -> vector<4x32xf32>
    %381 = arith.addf %377, %380 : vector<4x32xf32>
    %382 = vector.extract_strided_slice %372 {offsets = [8, 0], sizes = [4, 32], strides = [1, 1]} : vector<16x32xf32> to vector<4x32xf32>
    %383 = vector.extract_strided_slice %349 {offsets = [64, 0], sizes = [32, 32], strides = [1, 1]} : vector<128x32xf32> to vector<32x32xf32>
    %cst_188 = arith.constant dense<0.000000e+00> : vector<4x32xf32>
    %384 = tpu.matmul %382, %383, %cst_188 {dimension_numbers = #tpu.dot_dimension_numbers<[1], [0], [0], [1], [0, 0, 1, 1], [], []>} : vector<4x32xf32>, vector<32x32xf32>, vector<4x32xf32> -> vector<4x32xf32>
    %385 = arith.addf %381, %384 : vector<4x32xf32>
    %386 = vector.extract_strided_slice %372 {offsets = [12, 0], sizes = [4, 32], strides = [1, 1]} : vector<16x32xf32> to vector<4x32xf32>
    %387 = vector.extract_strided_slice %349 {offsets = [96, 0], sizes = [32, 32], strides = [1, 1]} : vector<128x32xf32> to vector<32x32xf32>
    %cst_189 = arith.constant dense<0.000000e+00> : vector<4x32xf32>
    %388 = tpu.matmul %386, %387, %cst_189 {dimension_numbers = #tpu.dot_dimension_numbers<[1], [0], [0], [1], [0, 0, 1, 1], [], []>} : vector<4x32xf32>, vector<32x32xf32>, vector<4x32xf32> -> vector<4x32xf32>
    %389 = arith.addf %385, %388 : vector<4x32xf32>
    %c0_190 = arith.constant 0 : index
    %c0_191 = arith.constant 0 : index
    %390 = vector.load %arg45[%c0_190, %c0_191] : memref<16x32xf32, #tpu.memory_space<vmem>>, vector<4x32xf32>
    tpu.vector_store %arg45[%c0_190, %c0_191], %389 {strides = array<i32>} : memref<16x32xf32, #tpu.memory_space<vmem>>, vector<4x32xf32>,
    %c0_192 = arith.constant 0 : index
    %c1_193 = arith.constant 1 : index
    %c0_194 = arith.constant 0 : index
    %c0_195 = arith.constant 0 : index
    %391 = vector.load %arg6[%c0_192, %c1_193, %c0_194, %c0_195] : memref<1x4x64x32xf32, #tpu.memory_space<vmem>>, vector<1x1x64x32xf32>
    %392 = vector.shape_cast %391 : vector<1x1x64x32xf32> to vector<64x32xf32>
    %cst_196 = arith.constant dense<0.000000e+00> : vector<16x32xf32>
    %393 = tpu.matmul %347, %392, %cst_196 {dimension_numbers = #tpu.dot_dimension_numbers<[1], [0], [0], [1], [0, 0, 1, 1], [], []>} : vector<16x64xf32>, vector<64x32xf32>, vector<16x32xf32> -> vector<16x32xf32>
    %c0_197 = arith.constant 0 : index
    %c1_198 = arith.constant 1 : index
    %c0_199 = arith.constant 0 : index
    %c0_200 = arith.constant 0 : index
    %394 = vector.load %arg7[%c0_197, %c1_198, %c0_199, %c0_200] : memref<1x4x1x32xf32, #tpu.memory_space<vmem>>, vector<1x1x1x32xf32>
    %395 = vector.shape_cast %394 : vector<1x1x1x32xf32> to vector<1x32xf32>
    %396 = vector.broadcast %395 : vector<1x32xf32> to vector<16x32xf32>
    %397 = arith.addf %393, %396 : vector<16x32xf32>
    %cst_201 = arith.constant dense<0.000000e+00> : vector<8x16xf32>
    %398 = tpu.matmul %338, %397, %cst_201 {dimension_numbers = #tpu.dot_dimension_numbers<[1], [1], [0], [0], [0, 0, 1, 0], [], []>} : vector<8x32xf32>, vector<16x32xf32>, vector<8x16xf32> -> vector<8x16xf32>
    %399 = arith.negf %398 : vector<8x16xf32>
    %400 = math.exp %399 : vector<8x16xf32>
    %cst_202 = arith.constant 1.000000e+00 : f32
    %401 = vector.broadcast %cst_202 : f32 to vector<8x16xf32>
    %402 = arith.addf %401, %400 : vector<8x16xf32>
    %403 = arith.divf %401, %402 : vector<8x16xf32>
    %404 = vector.broadcast %350 : f32 to vector<8x16xf32>
    %405 = arith.divf %403, %404 : vector<8x16xf32>
    %cst_203 = arith.constant dense<0.000000e+00> : vector<16xf32>
    %406 = vector.multi_reduction <add>, %405, %cst_203 [0] : vector<8x16xf32> to vector<16xf32>
    %407 = vector.shape_cast %406 : vector<16xf32> to vector<1x16xf32>
    %cst_204 = arith.constant 9.99999997E-7 : f32
    %408 = vector.broadcast %cst_204 : f32 to vector<1x16xf32>
    %409 = arith.maximumf %407, %408 : vector<1x16xf32>
    %410 = vector.broadcast %409 : vector<1x16xf32> to vector<8x16xf32>
    %411 = arith.divf %405, %410 : vector<8x16xf32>
    %cst_205 = arith.constant dense<0.000000e+00> : vector<16x32xf32>
    %412 = tpu.matmul %411, %338, %cst_205 {dimension_numbers = #tpu.dot_dimension_numbers<[0], [0], [1], [1], [0, 1, 1, 1], [], []>} : vector<8x16xf32>, vector<8x32xf32>, vector<16x32xf32> -> vector<16x32xf32>
    %cst_206 = arith.constant 0.000000e+00 : f32
    %413 = vector.broadcast %cst_206 : f32 to vector<4x32xf32>
    %414 = vector.extract_strided_slice %412 {offsets = [0, 0], sizes = [4, 32], strides = [1, 1]} : vector<16x32xf32> to vector<4x32xf32>
    %415 = vector.extract_strided_slice %349 {offsets = [0, 0], sizes = [32, 32], strides = [1, 1]} : vector<128x32xf32> to vector<32x32xf32>
    %cst_207 = arith.constant dense<0.000000e+00> : vector<4x32xf32>
    %416 = tpu.matmul %414, %415, %cst_207 {dimension_numbers = #tpu.dot_dimension_numbers<[1], [0], [0], [1], [0, 0, 1, 1], [], []>} : vector<4x32xf32>, vector<32x32xf32>, vector<4x32xf32> -> vector<4x32xf32>
    %417 = arith.addf %413, %416 : vector<4x32xf32>
    %418 = vector.extract_strided_slice %412 {offsets = [4, 0], sizes = [4, 32], strides = [1, 1]} : vector<16x32xf32> to vector<4x32xf32>
    %419 = vector.extract_strided_slice %349 {offsets = [32, 0], sizes = [32, 32], strides = [1, 1]} : vector<128x32xf32> to vector<32x32xf32>
    %cst_208 = arith.constant dense<0.000000e+00> : vector<4x32xf32>
    %420 = tpu.matmul %418, %419, %cst_208 {dimension_numbers = #tpu.dot_dimension_numbers<[1], [0], [0], [1], [0, 0, 1, 1], [], []>} : vector<4x32xf32>, vector<32x32xf32>, vector<4x32xf32> -> vector<4x32xf32>
    %421 = arith.addf %417, %420 : vector<4x32xf32>
    %422 = vector.extract_strided_slice %412 {offsets = [8, 0], sizes = [4, 32], strides = [1, 1]} : vector<16x32xf32> to vector<4x32xf32>
    %423 = vector.extract_strided_slice %349 {offsets = [64, 0], sizes = [32, 32], strides = [1, 1]} : vector<128x32xf32> to vector<32x32xf32>
    %cst_209 = arith.constant dense<0.000000e+00> : vector<4x32xf32>
    %424 = tpu.matmul %422, %423, %cst_209 {dimension_numbers = #tpu.dot_dimension_numbers<[1], [0], [0], [1], [0, 0, 1, 1], [], []>} : vector<4x32xf32>, vector<32x32xf32>, vector<4x32xf32> -> vector<4x32xf32>
    %425 = arith.addf %421, %424 : vector<4x32xf32>
    %426 = vector.extract_strided_slice %412 {offsets = [12, 0], sizes = [4, 32], strides = [1, 1]} : vector<16x32xf32> to vector<4x32xf32>
    %427 = vector.extract_strided_slice %349 {offsets = [96, 0], sizes = [32, 32], strides = [1, 1]} : vector<128x32xf32> to vector<32x32xf32>
    %cst_210 = arith.constant dense<0.000000e+00> : vector<4x32xf32>
    %428 = tpu.matmul %426, %427, %cst_210 {dimension_numbers = #tpu.dot_dimension_numbers<[1], [0], [0], [1], [0, 0, 1, 1], [], []>} : vector<4x32xf32>, vector<32x32xf32>, vector<4x32xf32> -> vector<4x32xf32>
    %429 = arith.addf %425, %428 : vector<4x32xf32>
    %c4_211 = arith.constant 4 : index
    %c0_212 = arith.constant 0 : index
    %430 = vector.load %arg45[%c4_211, %c0_212] : memref<16x32xf32, #tpu.memory_space<vmem>>, vector<4x32xf32>
    tpu.vector_store %arg45[%c4_211, %c0_212], %429 {strides = array<i32>} : memref<16x32xf32, #tpu.memory_space<vmem>>, vector<4x32xf32>,
    %c0_213 = arith.constant 0 : index
    %c2_214 = arith.constant 2 : index
    %c0_215 = arith.constant 0 : index
    %c0_216 = arith.constant 0 : index
    %431 = vector.load %arg6[%c0_213, %c2_214, %c0_215, %c0_216] : memref<1x4x64x32xf32, #tpu.memory_space<vmem>>, vector<1x1x64x32xf32>
    %432 = vector.shape_cast %431 : vector<1x1x64x32xf32> to vector<64x32xf32>
    %cst_217 = arith.constant dense<0.000000e+00> : vector<16x32xf32>
    %433 = tpu.matmul %347, %432, %cst_217 {dimension_numbers = #tpu.dot_dimension_numbers<[1], [0], [0], [1], [0, 0, 1, 1], [], []>} : vector<16x64xf32>, vector<64x32xf32>, vector<16x32xf32> -> vector<16x32xf32>
    %c0_218 = arith.constant 0 : index
    %c2_219 = arith.constant 2 : index
    %c0_220 = arith.constant 0 : index
    %c0_221 = arith.constant 0 : index
    %434 = vector.load %arg7[%c0_218, %c2_219, %c0_220, %c0_221] : memref<1x4x1x32xf32, #tpu.memory_space<vmem>>, vector<1x1x1x32xf32>
    %435 = vector.shape_cast %434 : vector<1x1x1x32xf32> to vector<1x32xf32>
    %436 = vector.broadcast %435 : vector<1x32xf32> to vector<16x32xf32>
    %437 = arith.addf %433, %436 : vector<16x32xf32>
    %cst_222 = arith.constant dense<0.000000e+00> : vector<8x16xf32>
    %438 = tpu.matmul %338, %437, %cst_222 {dimension_numbers = #tpu.dot_dimension_numbers<[1], [1], [0], [0], [0, 0, 1, 0], [], []>} : vector<8x32xf32>, vector<16x32xf32>, vector<8x16xf32> -> vector<8x16xf32>
    %439 = arith.negf %438 : vector<8x16xf32>
    %440 = math.exp %439 : vector<8x16xf32>
    %cst_223 = arith.constant 1.000000e+00 : f32
    %441 = vector.broadcast %cst_223 : f32 to vector<8x16xf32>
    %442 = arith.addf %441, %440 : vector<8x16xf32>
    %443 = arith.divf %441, %442 : vector<8x16xf32>
    %444 = vector.broadcast %350 : f32 to vector<8x16xf32>
    %445 = arith.divf %443, %444 : vector<8x16xf32>
    %cst_224 = arith.constant dense<0.000000e+00> : vector<16xf32>
    %446 = vector.multi_reduction <add>, %445, %cst_224 [0] : vector<8x16xf32> to vector<16xf32>
    %447 = vector.shape_cast %446 : vector<16xf32> to vector<1x16xf32>
    %cst_225 = arith.constant 9.99999997E-7 : f32
    %448 = vector.broadcast %cst_225 : f32 to vector<1x16xf32>
    %449 = arith.maximumf %447, %448 : vector<1x16xf32>
    %450 = vector.broadcast %449 : vector<1x16xf32> to vector<8x16xf32>
    %451 = arith.divf %445, %450 : vector<8x16xf32>
    %cst_226 = arith.constant dense<0.000000e+00> : vector<16x32xf32>
    %452 = tpu.matmul %451, %338, %cst_226 {dimension_numbers = #tpu.dot_dimension_numbers<[0], [0], [1], [1], [0, 1, 1, 1], [], []>} : vector<8x16xf32>, vector<8x32xf32>, vector<16x32xf32> -> vector<16x32xf32>
    %cst_227 = arith.constant 0.000000e+00 : f32
    %453 = vector.broadcast %cst_227 : f32 to vector<4x32xf32>
    %454 = vector.extract_strided_slice %452 {offsets = [0, 0], sizes = [4, 32], strides = [1, 1]} : vector<16x32xf32> to vector<4x32xf32>
    %455 = vector.extract_strided_slice %349 {offsets = [0, 0], sizes = [32, 32], strides = [1, 1]} : vector<128x32xf32> to vector<32x32xf32>
    %cst_228 = arith.constant dense<0.000000e+00> : vector<4x32xf32>
    %456 = tpu.matmul %454, %455, %cst_228 {dimension_numbers = #tpu.dot_dimension_numbers<[1], [0], [0], [1], [0, 0, 1, 1], [], []>} : vector<4x32xf32>, vector<32x32xf32>, vector<4x32xf32> -> vector<4x32xf32>
    %457 = arith.addf %453, %456 : vector<4x32xf32>
    %458 = vector.extract_strided_slice %452 {offsets = [4, 0], sizes = [4, 32], strides = [1, 1]} : vector<16x32xf32> to vector<4x32xf32>
    %459 = vector.extract_strided_slice %349 {offsets = [32, 0], sizes = [32, 32], strides = [1, 1]} : vector<128x32xf32> to vector<32x32xf32>
    %cst_229 = arith.constant dense<0.000000e+00> : vector<4x32xf32>
    %460 = tpu.matmul %458, %459, %cst_229 {dimension_numbers = #tpu.dot_dimension_numbers<[1], [0], [0], [1], [0, 0, 1, 1], [], []>} : vector<4x32xf32>, vector<32x32xf32>, vector<4x32xf32> -> vector<4x32xf32>
    %461 = arith.addf %457, %460 : vector<4x32xf32>
    %462 = vector.extract_strided_slice %452 {offsets = [8, 0], sizes = [4, 32], strides = [1, 1]} : vector<16x32xf32> to vector<4x32xf32>
    %463 = vector.extract_strided_slice %349 {offsets = [64, 0], sizes = [32, 32], strides = [1, 1]} : vector<128x32xf32> to vector<32x32xf32>
    %cst_230 = arith.constant dense<0.000000e+00> : vector<4x32xf32>
    %464 = tpu.matmul %462, %463, %cst_230 {dimension_numbers = #tpu.dot_dimension_numbers<[1], [0], [0], [1], [0, 0, 1, 1], [], []>} : vector<4x32xf32>, vector<32x32xf32>, vector<4x32xf32> -> vector<4x32xf32>
    %465 = arith.addf %461, %464 : vector<4x32xf32>
    %466 = vector.extract_strided_slice %452 {offsets = [12, 0], sizes = [4, 32], strides = [1, 1]} : vector<16x32xf32> to vector<4x32xf32>
    %467 = vector.extract_strided_slice %349 {offsets = [96, 0], sizes = [32, 32], strides = [1, 1]} : vector<128x32xf32> to vector<32x32xf32>
    %cst_231 = arith.constant dense<0.000000e+00> : vector<4x32xf32>
    %468 = tpu.matmul %466, %467, %cst_231 {dimension_numbers = #tpu.dot_dimension_numbers<[1], [0], [0], [1], [0, 0, 1, 1], [], []>} : vector<4x32xf32>, vector<32x32xf32>, vector<4x32xf32> -> vector<4x32xf32>
    %469 = arith.addf %465, %468 : vector<4x32xf32>
    %c8_232 = arith.constant 8 : index
    %c0_233 = arith.constant 0 : index
    %470 = vector.load %arg45[%c8_232, %c0_233] : memref<16x32xf32, #tpu.memory_space<vmem>>, vector<4x32xf32>
    tpu.vector_store %arg45[%c8_232, %c0_233], %469 {strides = array<i32>} : memref<16x32xf32, #tpu.memory_space<vmem>>, vector<4x32xf32>,
    %c0_234 = arith.constant 0 : index
    %c3_235 = arith.constant 3 : index
    %c0_236 = arith.constant 0 : index
    %c0_237 = arith.constant 0 : index
    %471 = vector.load %arg6[%c0_234, %c3_235, %c0_236, %c0_237] : memref<1x4x64x32xf32, #tpu.memory_space<vmem>>, vector<1x1x64x32xf32>
    %472 = vector.shape_cast %471 : vector<1x1x64x32xf32> to vector<64x32xf32>
    %cst_238 = arith.constant dense<0.000000e+00> : vector<16x32xf32>
    %473 = tpu.matmul %347, %472, %cst_238 {dimension_numbers = #tpu.dot_dimension_numbers<[1], [0], [0], [1], [0, 0, 1, 1], [], []>} : vector<16x64xf32>, vector<64x32xf32>, vector<16x32xf32> -> vector<16x32xf32>
    %c0_239 = arith.constant 0 : index
    %c3_240 = arith.constant 3 : index
    %c0_241 = arith.constant 0 : index
    %c0_242 = arith.constant 0 : index
    %474 = vector.load %arg7[%c0_239, %c3_240, %c0_241, %c0_242] : memref<1x4x1x32xf32, #tpu.memory_space<vmem>>, vector<1x1x1x32xf32>
    %475 = vector.shape_cast %474 : vector<1x1x1x32xf32> to vector<1x32xf32>
    %476 = vector.broadcast %475 : vector<1x32xf32> to vector<16x32xf32>
    %477 = arith.addf %473, %476 : vector<16x32xf32>
    %cst_243 = arith.constant dense<0.000000e+00> : vector<8x16xf32>
    %478 = tpu.matmul %338, %477, %cst_243 {dimension_numbers = #tpu.dot_dimension_numbers<[1], [1], [0], [0], [0, 0, 1, 0], [], []>} : vector<8x32xf32>, vector<16x32xf32>, vector<8x16xf32> -> vector<8x16xf32>
    %479 = arith.negf %478 : vector<8x16xf32>
    %480 = math.exp %479 : vector<8x16xf32>
    %cst_244 = arith.constant 1.000000e+00 : f32
    %481 = vector.broadcast %cst_244 : f32 to vector<8x16xf32>
    %482 = arith.addf %481, %480 : vector<8x16xf32>
    %483 = arith.divf %481, %482 : vector<8x16xf32>
    %484 = vector.broadcast %350 : f32 to vector<8x16xf32>
    %485 = arith.divf %483, %484 : vector<8x16xf32>
    %cst_245 = arith.constant dense<0.000000e+00> : vector<16xf32>
    %486 = vector.multi_reduction <add>, %485, %cst_245 [0] : vector<8x16xf32> to vector<16xf32>
    %487 = vector.shape_cast %486 : vector<16xf32> to vector<1x16xf32>
    %cst_246 = arith.constant 9.99999997E-7 : f32
    %488 = vector.broadcast %cst_246 : f32 to vector<1x16xf32>
    %489 = arith.maximumf %487, %488 : vector<1x16xf32>
    %490 = vector.broadcast %489 : vector<1x16xf32> to vector<8x16xf32>
    %491 = arith.divf %485, %490 : vector<8x16xf32>
    %cst_247 = arith.constant dense<0.000000e+00> : vector<16x32xf32>
    %492 = tpu.matmul %491, %338, %cst_247 {dimension_numbers = #tpu.dot_dimension_numbers<[0], [0], [1], [1], [0, 1, 1, 1], [], []>} : vector<8x16xf32>, vector<8x32xf32>, vector<16x32xf32> -> vector<16x32xf32>
    %cst_248 = arith.constant 0.000000e+00 : f32
    %493 = vector.broadcast %cst_248 : f32 to vector<4x32xf32>
    %494 = vector.extract_strided_slice %492 {offsets = [0, 0], sizes = [4, 32], strides = [1, 1]} : vector<16x32xf32> to vector<4x32xf32>
    %495 = vector.extract_strided_slice %349 {offsets = [0, 0], sizes = [32, 32], strides = [1, 1]} : vector<128x32xf32> to vector<32x32xf32>
    %cst_249 = arith.constant dense<0.000000e+00> : vector<4x32xf32>
    %496 = tpu.matmul %494, %495, %cst_249 {dimension_numbers = #tpu.dot_dimension_numbers<[1], [0], [0], [1], [0, 0, 1, 1], [], []>} : vector<4x32xf32>, vector<32x32xf32>, vector<4x32xf32> -> vector<4x32xf32>
    %497 = arith.addf %493, %496 : vector<4x32xf32>
    %498 = vector.extract_strided_slice %492 {offsets = [4, 0], sizes = [4, 32], strides = [1, 1]} : vector<16x32xf32> to vector<4x32xf32>
    %499 = vector.extract_strided_slice %349 {offsets = [32, 0], sizes = [32, 32], strides = [1, 1]} : vector<128x32xf32> to vector<32x32xf32>
    %cst_250 = arith.constant dense<0.000000e+00> : vector<4x32xf32>
    %500 = tpu.matmul %498, %499, %cst_250 {dimension_numbers = #tpu.dot_dimension_numbers<[1], [0], [0], [1], [0, 0, 1, 1], [], []>} : vector<4x32xf32>, vector<32x32xf32>, vector<4x32xf32> -> vector<4x32xf32>
    %501 = arith.addf %497, %500 : vector<4x32xf32>
    %502 = vector.extract_strided_slice %492 {offsets = [8, 0], sizes = [4, 32], strides = [1, 1]} : vector<16x32xf32> to vector<4x32xf32>
    %503 = vector.extract_strided_slice %349 {offsets = [64, 0], sizes = [32, 32], strides = [1, 1]} : vector<128x32xf32> to vector<32x32xf32>
    %cst_251 = arith.constant dense<0.000000e+00> : vector<4x32xf32>
    %504 = tpu.matmul %502, %503, %cst_251 {dimension_numbers = #tpu.dot_dimension_numbers<[1], [0], [0], [1], [0, 0, 1, 1], [], []>} : vector<4x32xf32>, vector<32x32xf32>, vector<4x32xf32> -> vector<4x32xf32>
    %505 = arith.addf %501, %504 : vector<4x32xf32>
    %506 = vector.extract_strided_slice %492 {offsets = [12, 0], sizes = [4, 32], strides = [1, 1]} : vector<16x32xf32> to vector<4x32xf32>
    %507 = vector.extract_strided_slice %349 {offsets = [96, 0], sizes = [32, 32], strides = [1, 1]} : vector<128x32xf32> to vector<32x32xf32>
    %cst_252 = arith.constant dense<0.000000e+00> : vector<4x32xf32>
    %508 = tpu.matmul %506, %507, %cst_252 {dimension_numbers = #tpu.dot_dimension_numbers<[1], [0], [0], [1], [0, 0, 1, 1], [], []>} : vector<4x32xf32>, vector<32x32xf32>, vector<4x32xf32> -> vector<4x32xf32>
    %509 = arith.addf %505, %508 : vector<4x32xf32>
    %c12 = arith.constant 12 : index
    %c0_253 = arith.constant 0 : index
    %510 = vector.load %arg45[%c12, %c0_253] : memref<16x32xf32, #tpu.memory_space<vmem>>, vector<4x32xf32>
    tpu.vector_store %arg45[%c12, %c0_253], %509 {strides = array<i32>} : memref<16x32xf32, #tpu.memory_space<vmem>>, vector<4x32xf32>,
    %c0_254 = arith.constant 0 : index
    %c0_255 = arith.constant 0 : index
    %511 = vector.load %arg45[%c0_254, %c0_255] : memref<16x32xf32, #tpu.memory_space<vmem>>, vector<16x32xf32>
    %c0_256 = arith.constant 0 : index
    %c0_257 = arith.constant 0 : index
    %512 = vector.load %arg22[%c0_256, %c0_257] : memref<1x32xf32, #tpu.memory_space<vmem>>, vector<1x32xf32>
    %513 = vector.broadcast %512 : vector<1x32xf32> to vector<16x32xf32>
    %514 = arith.addf %511, %513 : vector<16x32xf32>
    %515 = arith.addf %91, %514 : vector<16x32xf32>
    %c0_258 = arith.constant 0 : index
    %c0_259 = arith.constant 0 : index
    %c0_260 = arith.constant 0 : index
    %516 = vector.load %arg3[%c0_258, %c0_259, %c0_260] : memref<1x16x3xf32, #tpu.memory_space<vmem>>, vector<1x16x3xf32>
    %517 = vector.shape_cast %516 : vector<1x16x3xf32> to vector<16x3xf32>
    %c0_261 = arith.constant 0 : index
    %c0_262 = arith.constant 0 : index
    %518 = vector.load %arg31[%c0_261, %c0_262] : memref<3x32xf32, #tpu.memory_space<vmem>>, vector<3x32xf32>
    %cst_263 = arith.constant dense<0.000000e+00> : vector<16x32xf32>
    %519 = tpu.matmul %517, %518, %cst_263 {dimension_numbers = #tpu.dot_dimension_numbers<[1], [0], [0], [1], [0, 0, 1, 1], [], []>} : vector<16x3xf32>, vector<3x32xf32>, vector<16x32xf32> -> vector<16x32xf32>
    %c0_264 = arith.constant 0 : index
    %c0_265 = arith.constant 0 : index
    %520 = vector.load %arg32[%c0_264, %c0_265] : memref<1x32xf32, #tpu.memory_space<vmem>>, vector<1x32xf32>
    %521 = vector.broadcast %520 : vector<1x32xf32> to vector<16x32xf32>
    %522 = arith.addf %519, %521 : vector<16x32xf32>
    %cst_266 = arith.constant 0.000000e+00 : f32
    %523 = vector.broadcast %cst_266 : f32 to vector<16x32xf32>
    %524 = arith.maximumf %522, %523 : vector<16x32xf32>
    %c0_267 = arith.constant 0 : index
    %c0_268 = arith.constant 0 : index
    %525 = vector.load %arg33[%c0_267, %c0_268] : memref<32x64xf32, #tpu.memory_space<vmem>>, vector<32x64xf32>
    %cst_269 = arith.constant dense<0.000000e+00> : vector<16x64xf32>
    %526 = tpu.matmul %524, %525, %cst_269 {dimension_numbers = #tpu.dot_dimension_numbers<[1], [0], [0], [1], [0, 0, 1, 1], [], []>} : vector<16x32xf32>, vector<32x64xf32>, vector<16x64xf32> -> vector<16x64xf32>
    %c0_270 = arith.constant 0 : index
    %c0_271 = arith.constant 0 : index
    %527 = vector.load %arg34[%c0_270, %c0_271] : memref<1x64xf32, #tpu.memory_space<vmem>>, vector<1x64xf32>
    %528 = vector.broadcast %527 : vector<1x64xf32> to vector<16x64xf32>
    %529 = arith.addf %526, %528 : vector<16x64xf32>
    %c0_272 = arith.constant 0 : index
    %c0_273 = arith.constant 0 : index
    %530 = vector.load %arg46[%c0_272, %c0_273] : memref<16x96xf32, #tpu.memory_space<vmem>>, vector<16x32xf32>
    tpu.vector_store %arg46[%c0_272, %c0_273], %515 {strides = array<i32>} : memref<16x96xf32, #tpu.memory_space<vmem>>, vector<16x32xf32>,
    %c0_274 = arith.constant 0 : index
    %c32 = arith.constant 32 : index
    %531 = vector.load %arg46[%c0_274, %c32] : memref<16x96xf32, #tpu.memory_space<vmem>>, vector<16x64xf32>
    tpu.vector_store %arg46[%c0_274, %c32], %529 {strides = array<i32>} : memref<16x96xf32, #tpu.memory_space<vmem>>, vector<16x64xf32>,
    %c0_275 = arith.constant 0 : index
    %c0_276 = arith.constant 0 : index
    %532 = vector.load %arg46[%c0_275, %c0_276] : memref<16x96xf32, #tpu.memory_space<vmem>>, vector<16x96xf32>
    %c0_277 = arith.constant 0 : index
    %c0_278 = arith.constant 0 : index
    %533 = vector.load %arg35[%c0_277, %c0_278] : memref<96x64xf32, #tpu.memory_space<vmem>>, vector<96x64xf32>
    %cst_279 = arith.constant dense<0.000000e+00> : vector<16x64xf32>
    %534 = tpu.matmul %532, %533, %cst_279 {dimension_numbers = #tpu.dot_dimension_numbers<[1], [0], [0], [1], [0, 0, 1, 1], [], []>} : vector<16x96xf32>, vector<96x64xf32>, vector<16x64xf32> -> vector<16x64xf32>
    %c0_280 = arith.constant 0 : index
    %c0_281 = arith.constant 0 : index
    %535 = vector.load %arg36[%c0_280, %c0_281] : memref<1x64xf32, #tpu.memory_space<vmem>>, vector<1x64xf32>
    %536 = vector.broadcast %535 : vector<1x64xf32> to vector<16x64xf32>
    %537 = arith.addf %534, %536 : vector<16x64xf32>
    %cst_282 = arith.constant 0.000000e+00 : f32
    %538 = vector.broadcast %cst_282 : f32 to vector<16x64xf32>
    %539 = arith.maximumf %537, %538 : vector<16x64xf32>
    %c0_283 = arith.constant 0 : index
    %c0_284 = arith.constant 0 : index
    %540 = vector.load %arg37[%c0_283, %c0_284] : memref<64x96xf32, #tpu.memory_space<vmem>>, vector<64x96xf32>
    %cst_285 = arith.constant dense<0.000000e+00> : vector<16x96xf32>
    %541 = tpu.matmul %539, %540, %cst_285 {dimension_numbers = #tpu.dot_dimension_numbers<[1], [0], [0], [1], [0, 0, 1, 1], [], []>} : vector<16x64xf32>, vector<64x96xf32>, vector<16x96xf32> -> vector<16x96xf32>
    %c0_286 = arith.constant 0 : index
    %c0_287 = arith.constant 0 : index
    %542 = vector.load %arg38[%c0_286, %c0_287] : memref<1x96xf32, #tpu.memory_space<vmem>>, vector<1x96xf32>
    %543 = vector.broadcast %542 : vector<1x96xf32> to vector<16x96xf32>
    %544 = arith.addf %541, %543 : vector<16x96xf32>
    %545 = arith.addf %532, %544 : vector<16x96xf32>
    %c6_288 = arith.constant 6 : index
    %546 = memref.load %arg8[%c6_288] : memref<16xf32, #tpu.memory_space<smem>>
    %c7 = arith.constant 7 : index
    %547 = memref.load %arg8[%c7] : memref<16xf32, #tpu.memory_space<smem>>
    %cst_289 = arith.constant dense<0.000000e+00> : vector<96xf32>
    %548 = vector.multi_reduction <add>, %545, %cst_289 [0] : vector<16x96xf32> to vector<96xf32>
    %549 = vector.shape_cast %548 : vector<96xf32> to vector<1x96xf32>
    %cst_290 = arith.constant 1.600000e+01 : f32
    %550 = vector.broadcast %cst_290 : f32 to vector<1x96xf32>
    %551 = arith.divf %549, %550 : vector<1x96xf32>
    %c0_291 = arith.constant 0 : index
    %c0_292 = arith.constant 0 : index
    %552 = vector.load %arg14[%c0_291, %c0_292] : memref<96x96xf32, #tpu.memory_space<vmem>>, vector<96x96xf32>
    %cst_293 = arith.constant dense<0.000000e+00> : vector<1x96xf32>
    %553 = tpu.matmul %551, %552, %cst_293 {dimension_numbers = #tpu.dot_dimension_numbers<[1], [0], [0], [1], [0, 0, 1, 1], [], []>} : vector<1x96xf32>, vector<96x96xf32>, vector<1x96xf32> -> vector<1x96xf32>
    %554 = vector.broadcast %553 : vector<1x96xf32> to vector<16x96xf32>
    %555 = arith.mulf %545, %554 : vector<16x96xf32>
    %cst_294 = arith.constant dense<0.000000e+00> : vector<16xf32>
    %556 = vector.multi_reduction <add>, %555, %cst_294 [1] : vector<16x96xf32> to vector<16xf32>
    %557 = vector.shape_cast %556 : vector<16xf32> to vector<16x1xf32>
    %558 = vector.shape_cast %557 : vector<16x1xf32> to vector<1x16x1xf32>
    %cst_295 = arith.constant dense<0.000000e+00> : vector<1xf32>
    %559 = vector.multi_reduction <add>, %558, %cst_295 [1, 2] : vector<1x16x1xf32> to vector<1xf32>
    %560 = vector.shape_cast %559 : vector<1xf32> to vector<1x1x1xf32>
    %561 = vector.extract %560[0, 0, 0] : f32 from vector<1x1x1xf32>
    %562 = vector.broadcast %561 : f32 to vector<1x1xf32>
    %cst_296 = arith.constant 1.600000e+01 : f32
    %563 = vector.broadcast %cst_296 : f32 to vector<1x1xf32>
    %564 = arith.divf %562, %563 : vector<1x1xf32>
    %565 = vector.broadcast %564 : vector<1x1xf32> to vector<16x1xf32>
    %566 = arith.subf %557, %565 : vector<16x1xf32>
    %567 = arith.mulf %566, %566 : vector<16x1xf32>
    %568 = vector.shape_cast %567 : vector<16x1xf32> to vector<1x16x1xf32>
    %cst_297 = arith.constant dense<0.000000e+00> : vector<1xf32>
    %569 = vector.multi_reduction <add>, %568, %cst_297 [1, 2] : vector<1x16x1xf32> to vector<1xf32>
    %570 = vector.shape_cast %569 : vector<1xf32> to vector<1x1x1xf32>
    %571 = vector.extract %570[0, 0, 0] : f32 from vector<1x1x1xf32>
    %572 = vector.broadcast %571 : f32 to vector<1x1xf32>
    %cst_298 = arith.constant 1.600000e+01 : f32
    %573 = vector.broadcast %cst_298 : f32 to vector<1x1xf32>
    %574 = arith.divf %572, %573 : vector<1x1xf32>
    %575 = math.sqrt %574 : vector<1x1xf32>
    %576 = vector.broadcast %564 : vector<1x1xf32> to vector<16x1xf32>
    %577 = arith.subf %557, %576 : vector<16x1xf32>
    %578 = vector.broadcast %546 : f32 to vector<16x1xf32>
    %579 = arith.mulf %578, %577 : vector<16x1xf32>
    %cst_299 = arith.constant 9.99999974E-6 : f32
    %580 = vector.broadcast %cst_299 : f32 to vector<1x1xf32>
    %581 = arith.addf %575, %580 : vector<1x1xf32>
    %582 = vector.broadcast %581 : vector<1x1xf32> to vector<16x1xf32>
    %583 = arith.divf %579, %582 : vector<16x1xf32>
    %584 = vector.broadcast %547 : f32 to vector<16x1xf32>
    %585 = arith.addf %583, %584 : vector<16x1xf32>
    %586 = vector.broadcast %585 : vector<16x1xf32> to vector<16x96xf32>
    %587 = vector.broadcast %553 : vector<1x96xf32> to vector<16x96xf32>
    %588 = arith.mulf %586, %587 : vector<16x96xf32>
    %589 = arith.addf %545, %588 : vector<16x96xf32>
    %c0_300 = arith.constant 0 : index
    %c0_301 = arith.constant 0 : index
    %590 = vector.load %arg39[%c0_300, %c0_301] : memref<96x64xf32, #tpu.memory_space<vmem>>, vector<96x64xf32>
    %cst_302 = arith.constant dense<0.000000e+00> : vector<16x64xf32>
    %591 = tpu.matmul %589, %590, %cst_302 {dimension_numbers = #tpu.dot_dimension_numbers<[1], [0], [0], [1], [0, 0, 1, 1], [], []>} : vector<16x96xf32>, vector<96x64xf32>, vector<16x64xf32> -> vector<16x64xf32>
    %c0_303 = arith.constant 0 : index
    %c0_304 = arith.constant 0 : index
    %592 = vector.load %arg40[%c0_303, %c0_304] : memref<1x64xf32, #tpu.memory_space<vmem>>, vector<1x64xf32>
    %593 = vector.broadcast %592 : vector<1x64xf32> to vector<16x64xf32>
    %594 = arith.addf %591, %593 : vector<16x64xf32>
    %cst_305 = arith.constant 0.000000e+00 : f32
    %595 = vector.broadcast %cst_305 : f32 to vector<16x64xf32>
    %596 = arith.maximumf %594, %595 : vector<16x64xf32>
    %c0_306 = arith.constant 0 : index
    %c0_307 = arith.constant 0 : index
    %597 = vector.load %arg41[%c0_306, %c0_307] : memref<64x64xf32, #tpu.memory_space<vmem>>, vector<64x64xf32>
    %cst_308 = arith.constant dense<0.000000e+00> : vector<16x64xf32>
    %598 = tpu.matmul %596, %597, %cst_308 {dimension_numbers = #tpu.dot_dimension_numbers<[1], [0], [0], [1], [0, 0, 1, 1], [], []>} : vector<16x64xf32>, vector<64x64xf32>, vector<16x64xf32> -> vector<16x64xf32>
    %c0_309 = arith.constant 0 : index
    %c0_310 = arith.constant 0 : index
    %599 = vector.load %arg42[%c0_309, %c0_310] : memref<1x64xf32, #tpu.memory_space<vmem>>, vector<1x64xf32>
    %600 = vector.broadcast %599 : vector<1x64xf32> to vector<16x64xf32>
    %601 = arith.addf %598, %600 : vector<16x64xf32>
    %cst_311 = arith.constant dense<0.000000e+00> : vector<64xf32>
    %602 = vector.multi_reduction <add>, %601, %cst_311 [0] : vector<16x64xf32> to vector<64xf32>
    %603 = vector.shape_cast %602 : vector<64xf32> to vector<1x64xf32>
    %cst_312 = arith.constant 1.600000e+01 : f32
    %604 = vector.broadcast %cst_312 : f32 to vector<1x64xf32>
    %605 = arith.divf %603, %604 : vector<1x64xf32>
    %c0_313 = arith.constant 0 : index
    %c0_314 = arith.constant 0 : index
    %c0_315 = arith.constant 0 : index
    %606 = vector.load %arg43[%c0_313, %c0_314, %c0_315] : memref<1x1x64xf32, #tpu.memory_space<vmem>>, vector<1x1x64xf32>
    %607 = vector.shape_cast %606 : vector<1x1x64xf32> to vector<1x64xf32>
    %608 = vector.shape_cast %605 : vector<1x64xf32> to vector<1x1x64xf32>
    tpu.vector_store %arg43[%c0_313, %c0_314, %c0_315], %608 {strides = array<i32>} : memref<1x1x64xf32, #tpu.memory_space<vmem>>, vector<1x1x64xf32>,
    return
  }
  func.func @transform_0(%arg0: i32) -> (i32, i32, i32) {
    %c0_i32 = arith.constant 0 : i32
    %c0_i32_0 = arith.constant 0 : i32
    %c0_i32_1 = arith.constant 0 : i32
    return %arg0, %c0_i32, %c0_i32_0 : i32, i32, i32
  }
  func.func @transform_1(%arg0: i32) -> (i32, i32, i32) {
    %c0_i32 = arith.constant 0 : i32
    %c0_i32_0 = arith.constant 0 : i32
    %c0_i32_1 = arith.constant 0 : i32
    return %arg0, %c0_i32, %c0_i32_0 : i32, i32, i32
  }
  func.func @transform_2(%arg0: i32) -> (i32, i32, i32) {
    %c0_i32 = arith.constant 0 : i32
    %c0_i32_0 = arith.constant 0 : i32
    %c0_i32_1 = arith.constant 0 : i32
    return %arg0, %c0_i32, %c0_i32_0 : i32, i32, i32
  }
  func.func @transform_3(%arg0: i32) -> (i32, i32, i32, i32) {
    %c0_i32 = arith.constant 0 : i32
    %c0_i32_0 = arith.constant 0 : i32
    %c0_i32_1 = arith.constant 0 : i32
    %c0_i32_2 = arith.constant 0 : i32
    return %arg0, %c0_i32, %c0_i32_0, %c0_i32_1 : i32, i32, i32, i32
  }
  func.func @transform_4(%arg0: i32) -> (i32, i32, i32, i32) {
    %c0_i32 = arith.constant 0 : i32
    %c0_i32_0 = arith.constant 0 : i32
    %c0_i32_1 = arith.constant 0 : i32
    %c0_i32_2 = arith.constant 0 : i32
    return %arg0, %c0_i32, %c0_i32_0, %c0_i32_1 : i32, i32, i32, i32
  }
  func.func @transform_5(%arg0: i32) -> (i32, i32, i32, i32) {
    %c0_i32 = arith.constant 0 : i32
    %c0_i32_0 = arith.constant 0 : i32
    %c0_i32_1 = arith.constant 0 : i32
    %c0_i32_2 = arith.constant 0 : i32
    return %arg0, %c0_i32, %c0_i32_0, %c0_i32_1 : i32, i32, i32, i32
  }
  func.func @transform_6(%arg0: i32) -> (i32, i32, i32, i32) {
    %c0_i32 = arith.constant 0 : i32
    %c0_i32_0 = arith.constant 0 : i32
    %c0_i32_1 = arith.constant 0 : i32
    %c0_i32_2 = arith.constant 0 : i32
    return %arg0, %c0_i32, %c0_i32_0, %c0_i32_1 : i32, i32, i32, i32
  }
  func.func @transform_7(%arg0: i32) -> i32 {
    %c0_i32 = arith.constant 0 : i32
    %c0_i32_0 = arith.constant 0 : i32
    return %c0_i32 : i32
  }
  func.func @transform_8(%arg0: i32) -> (i32, i32) {
    %c0_i32 = arith.constant 0 : i32
    %c0_i32_0 = arith.constant 0 : i32
    %c0_i32_1 = arith.constant 0 : i32
    return %c0_i32, %c0_i32_0 : i32, i32
  }
  func.func @transform_9(%arg0: i32) -> (i32, i32) {
    %c0_i32 = arith.constant 0 : i32
    %c0_i32_0 = arith.constant 0 : i32
    %c0_i32_1 = arith.constant 0 : i32
    return %c0_i32, %c0_i32_0 : i32, i32
  }
  func.func @transform_10(%arg0: i32) -> (i32, i32) {
    %c0_i32 = arith.constant 0 : i32
    %c0_i32_0 = arith.constant 0 : i32
    %c0_i32_1 = arith.constant 0 : i32
    return %c0_i32, %c0_i32_0 : i32, i32
  }
  func.func @transform_11(%arg0: i32) -> (i32, i32) {
    %c0_i32 = arith.constant 0 : i32
    %c0_i32_0 = arith.constant 0 : i32
    %c0_i32_1 = arith.constant 0 : i32
    return %c0_i32, %c0_i32_0 : i32, i32
  }
  func.func @transform_12(%arg0: i32) -> (i32, i32) {
    %c0_i32 = arith.constant 0 : i32
    %c0_i32_0 = arith.constant 0 : i32
    %c0_i32_1 = arith.constant 0 : i32
    return %c0_i32, %c0_i32_0 : i32, i32
  }
  func.func @transform_13(%arg0: i32) -> (i32, i32) {
    %c0_i32 = arith.constant 0 : i32
    %c0_i32_0 = arith.constant 0 : i32
    %c0_i32_1 = arith.constant 0 : i32
    return %c0_i32, %c0_i32_0 : i32, i32
  }
  func.func @transform_14(%arg0: i32) -> (i32, i32) {
    %c0_i32 = arith.constant 0 : i32
    %c0_i32_0 = arith.constant 0 : i32
    %c0_i32_1 = arith.constant 0 : i32
    return %c0_i32, %c0_i32_0 : i32, i32
  }
  func.func @transform_15(%arg0: i32) -> (i32, i32) {
    %c0_i32 = arith.constant 0 : i32
    %c0_i32_0 = arith.constant 0 : i32
    %c0_i32_1 = arith.constant 0 : i32
    return %c0_i32, %c0_i32_0 : i32, i32
  }
  func.func @transform_16(%arg0: i32) -> (i32, i32) {
    %c0_i32 = arith.constant 0 : i32
    %c0_i32_0 = arith.constant 0 : i32
    %c0_i32_1 = arith.constant 0 : i32
    return %c0_i32, %c0_i32_0 : i32, i32
  }
  func.func @transform_17(%arg0: i32) -> (i32, i32) {
    %c0_i32 = arith.constant 0 : i32
    %c0_i32_0 = arith.constant 0 : i32
    %c0_i32_1 = arith.constant 0 : i32
    return %c0_i32, %c0_i32_0 : i32, i32
  }
  func.func @transform_18(%arg0: i32) -> (i32, i32) {
    %c0_i32 = arith.constant 0 : i32
    %c0_i32_0 = arith.constant 0 : i32
    %c0_i32_1 = arith.constant 0 : i32
    return %c0_i32, %c0_i32_0 : i32, i32
  }
  func.func @transform_19(%arg0: i32) -> (i32, i32) {
    %c0_i32 = arith.constant 0 : i32
    %c0_i32_0 = arith.constant 0 : i32
    %c0_i32_1 = arith.constant 0 : i32
    return %c0_i32, %c0_i32_0 : i32, i32
  }
  func.func @transform_20(%arg0: i32) -> (i32, i32) {
    %c0_i32 = arith.constant 0 : i32
    %c0_i32_0 = arith.constant 0 : i32
    %c0_i32_1 = arith.constant 0 : i32
    return %c0_i32, %c0_i32_0 : i32, i32
  }
  func.func @transform_21(%arg0: i32) -> (i32, i32) {
    %c0_i32 = arith.constant 0 : i32
    %c0_i32_0 = arith.constant 0 : i32
    %c0_i32_1 = arith.constant 0 : i32
    return %c0_i32, %c0_i32_0 : i32, i32
  }
  func.func @transform_22(%arg0: i32) -> (i32, i32) {
    %c0_i32 = arith.constant 0 : i32
    %c0_i32_0 = arith.constant 0 : i32
    %c0_i32_1 = arith.constant 0 : i32
    return %c0_i32, %c0_i32_0 : i32, i32
  }
  func.func @transform_23(%arg0: i32) -> (i32, i32) {
    %c0_i32 = arith.constant 0 : i32
    %c0_i32_0 = arith.constant 0 : i32
    %c0_i32_1 = arith.constant 0 : i32
    return %c0_i32, %c0_i32_0 : i32, i32
  }
  func.func @transform_24(%arg0: i32) -> (i32, i32) {
    %c0_i32 = arith.constant 0 : i32
    %c0_i32_0 = arith.constant 0 : i32
    %c0_i32_1 = arith.constant 0 : i32
    return %c0_i32, %c0_i32_0 : i32, i32
  }
  func.func @transform_25(%arg0: i32) -> (i32, i32) {
    %c0_i32 = arith.constant 0 : i32
    %c0_i32_0 = arith.constant 0 : i32
    %c0_i32_1 = arith.constant 0 : i32
    return %c0_i32, %c0_i32_0 : i32, i32
  }
  func.func @transform_26(%arg0: i32) -> (i32, i32) {
    %c0_i32 = arith.constant 0 : i32
    %c0_i32_0 = arith.constant 0 : i32
    %c0_i32_1 = arith.constant 0 : i32
    return %c0_i32, %c0_i32_0 : i32, i32
  }
  func.func @transform_27(%arg0: i32) -> (i32, i32) {
    %c0_i32 = arith.constant 0 : i32
    %c0_i32_0 = arith.constant 0 : i32
    %c0_i32_1 = arith.constant 0 : i32
    return %c0_i32, %c0_i32_0 : i32, i32
  }
  func.func @transform_28(%arg0: i32) -> (i32, i32) {
    %c0_i32 = arith.constant 0 : i32
    %c0_i32_0 = arith.constant 0 : i32
    %c0_i32_1 = arith.constant 0 : i32
    return %c0_i32, %c0_i32_0 : i32, i32
  }
  func.func @transform_29(%arg0: i32) -> (i32, i32) {
    %c0_i32 = arith.constant 0 : i32
    %c0_i32_0 = arith.constant 0 : i32
    %c0_i32_1 = arith.constant 0 : i32
    return %c0_i32, %c0_i32_0 : i32, i32
  }
  func.func @transform_30(%arg0: i32) -> (i32, i32) {
    %c0_i32 = arith.constant 0 : i32
    %c0_i32_0 = arith.constant 0 : i32
    %c0_i32_1 = arith.constant 0 : i32
    return %c0_i32, %c0_i32_0 : i32, i32
  }
  func.func @transform_31(%arg0: i32) -> (i32, i32) {
    %c0_i32 = arith.constant 0 : i32
    %c0_i32_0 = arith.constant 0 : i32
    %c0_i32_1 = arith.constant 0 : i32
    return %c0_i32, %c0_i32_0 : i32, i32
  }
  func.func @transform_32(%arg0: i32) -> (i32, i32) {
    %c0_i32 = arith.constant 0 : i32
    %c0_i32_0 = arith.constant 0 : i32
    %c0_i32_1 = arith.constant 0 : i32
    return %c0_i32, %c0_i32_0 : i32, i32
  }
  func.func @transform_33(%arg0: i32) -> (i32, i32) {
    %c0_i32 = arith.constant 0 : i32
    %c0_i32_0 = arith.constant 0 : i32
    %c0_i32_1 = arith.constant 0 : i32
    return %c0_i32, %c0_i32_0 : i32, i32
  }
  func.func @transform_34(%arg0: i32) -> (i32, i32) {
    %c0_i32 = arith.constant 0 : i32
    %c0_i32_0 = arith.constant 0 : i32
    %c0_i32_1 = arith.constant 0 : i32
    return %c0_i32, %c0_i32_0 : i32, i32
  }
  func.func @transform_35(%arg0: i32) -> (i32, i32) {
    %c0_i32 = arith.constant 0 : i32
    %c0_i32_0 = arith.constant 0 : i32
    %c0_i32_1 = arith.constant 0 : i32
    return %c0_i32, %c0_i32_0 : i32, i32
  }
  func.func @transform_36(%arg0: i32) -> (i32, i32) {
    %c0_i32 = arith.constant 0 : i32
    %c0_i32_0 = arith.constant 0 : i32
    %c0_i32_1 = arith.constant 0 : i32
    return %c0_i32, %c0_i32_0 : i32, i32
  }
  func.func @transform_37(%arg0: i32) -> (i32, i32) {
    %c0_i32 = arith.constant 0 : i32
    %c0_i32_0 = arith.constant 0 : i32
    %c0_i32_1 = arith.constant 0 : i32
    return %c0_i32, %c0_i32_0 : i32, i32
  }
  func.func @transform_38(%arg0: i32) -> (i32, i32) {
    %c0_i32 = arith.constant 0 : i32
    %c0_i32_0 = arith.constant 0 : i32
    %c0_i32_1 = arith.constant 0 : i32
    return %c0_i32, %c0_i32_0 : i32, i32
  }
  func.func @transform_39(%arg0: i32) -> (i32, i32) {
    %c0_i32 = arith.constant 0 : i32
    %c0_i32_0 = arith.constant 0 : i32
    %c0_i32_1 = arith.constant 0 : i32
    return %c0_i32, %c0_i32_0 : i32, i32
  }
  func.func @transform_40(%arg0: i32) -> (i32, i32) {
    %c0_i32 = arith.constant 0 : i32
    %c0_i32_0 = arith.constant 0 : i32
    %c0_i32_1 = arith.constant 0 : i32
    return %c0_i32, %c0_i32_0 : i32, i32
  }
  func.func @transform_41(%arg0: i32) -> (i32, i32) {
    %c0_i32 = arith.constant 0 : i32
    %c0_i32_0 = arith.constant 0 : i32
    %c0_i32_1 = arith.constant 0 : i32
    return %c0_i32, %c0_i32_0 : i32, i32
  }
  func.func @transform_42(%arg0: i32) -> (i32, i32, i32) {
    %c0_i32 = arith.constant 0 : i32
    %c0_i32_0 = arith.constant 0 : i32
    %c0_i32_1 = arith.constant 0 : i32
    return %arg0, %c0_i32, %c0_i32_0 : i32, i32, i32
  }
}

</mosaic_0001>

<llo_original>
// kernel: decoder_forward_fused.1
$region0: #{decoder_forward_fused.1}
  #allocation0 [shape = 'u32[]', space=smem, size = 0x4, offset = 0x4, fixed_abs, tag = 'smem constant byte address 0x4 - core index']
  #allocation1 [shape = 'u32[144,128]{1,0:T(1,128)}', space=vmem, size = 0x12000, scoped, tag = 'internal scratch']
  #allocation2 [shape = 'f32[8,32]{1,0:T(8,128)}', space=vmem, size = 0x1000, scoped, tag = 'scratch operand']
  #allocation3 [shape = 'f32[16,32]{1,0:T(8,128)}', space=vmem, size = 0x2000, scoped, tag = 'scratch operand']
  #allocation4 [shape = 'f32[16,96]{1,0:T(8,128)}', space=vmem, size = 0x2000, scoped, tag = 'scratch operand']
  %s0 = inlined_call_operand.smem [shape: u32[43], index: -1, kind: input, shape index: {}]
  %s1 = sld [smem:[%s0]]
  %s2 = scalar_lea.smem %s0, 1
  %s3 = sld [smem:[%s2]]
  %s4 = scalar_lea.smem %s0, 2
  %s5 = sld [smem:[%s4]]
  %s6 = scalar_lea.smem %s0, 3
  %s7 = sld [smem:[%s6]]
  %s8 = scalar_lea.smem %s0, 4
  %s9 = sld [smem:[%s8]]
  %s10 = scalar_lea.smem %s0, 5
  %s11 = sld [smem:[%s10]]
  %s12 = scalar_lea.smem %s0, 6
  %s13 = sld [smem:[%s12]]
  %s14 = scalar_lea.smem %s0, 7
  %s15 = sld [smem:[%s14]]
  %s16 = scalar_lea.smem %s0, 8
  %s17 = sld [smem:[%s16]]
  %s18 = scalar_lea.smem %s0, 9
  %s19 = sld [smem:[%s18]]
  %s20 = scalar_lea.smem %s0, 10
  %s21 = sld [smem:[%s20]]
  %s22 = scalar_lea.smem %s0, 11
  %s23 = sld [smem:[%s22]]
  %s24 = scalar_lea.smem %s0, 12
  %s25 = sld [smem:[%s24]]
  %s26 = scalar_lea.smem %s0, 13
  %s27 = sld [smem:[%s26]]
  %s28 = scalar_lea.smem %s0, 14
  %s29 = sld [smem:[%s28]]
  %s30 = scalar_lea.smem %s0, 15
  %s31 = sld [smem:[%s30]]
  %s32 = scalar_lea.smem %s0, 16
  %s33 = sld [smem:[%s32]]
  %s34 = scalar_lea.smem %s0, 17
  %s35 = sld [smem:[%s34]]
  %s36 = scalar_lea.smem %s0, 18
  %s37 = sld [smem:[%s36]]
  %s38 = scalar_lea.smem %s0, 19
  %s39 = sld [smem:[%s38]]
  %s40 = scalar_lea.smem %s0, 20
  %s41 = sld [smem:[%s40]]
  %s42 = scalar_lea.smem %s0, 21
  %s43 = sld [smem:[%s42]]
  %s44 = scalar_lea.smem %s0, 22
  %s45 = sld [smem:[%s44]]
  %s46 = scalar_lea.smem %s0, 23
  %s47 = sld [smem:[%s46]]
  %s48 = scalar_lea.smem %s0, 24
  %s49 = sld [smem:[%s48]]
  %s50 = scalar_lea.smem %s0, 25
  %s51 = sld [smem:[%s50]]
  %s52 = scalar_lea.smem %s0, 26
  %s53 = sld [smem:[%s52]]
  %s54 = scalar_lea.smem %s0, 27
  %s55 = sld [smem:[%s54]]
  %s56 = scalar_lea.smem %s0, 28
  %s57 = sld [smem:[%s56]]
  %s58 = scalar_lea.smem %s0, 29
  %s59 = sld [smem:[%s58]]
  %s60 = scalar_lea.smem %s0, 30
  %s61 = sld [smem:[%s60]]
  %s62 = scalar_lea.smem %s0, 31
  %s63 = sld [smem:[%s62]]
  %s64 = scalar_lea.smem %s0, 32
  %s65 = sld [smem:[%s64]]
  %s66 = scalar_lea.smem %s0, 33
  %s67 = sld [smem:[%s66]]
  %s68 = scalar_lea.smem %s0, 34
  %s69 = sld [smem:[%s68]]
  %s70 = scalar_lea.smem %s0, 35
  %s71 = sld [smem:[%s70]]
  %s72 = scalar_lea.smem %s0, 36
  %s73 = sld [smem:[%s72]]
  %s74 = scalar_lea.smem %s0, 37
  %s75 = sld [smem:[%s74]]
  %s76 = scalar_lea.smem %s0, 38
  %s77 = sld [smem:[%s76]]
  %s78 = scalar_lea.smem %s0, 39
  %s79 = sld [smem:[%s78]]
  %s80 = scalar_lea.smem %s0, 40
  %s81 = sld [smem:[%s80]]
  %s82 = scalar_lea.smem %s0, 41
  %s83 = sld [smem:[%s82]]
  %s84 = scalar_lea.smem %s0, 42
  %s85 = sld [smem:[%s84]]
  %s86 = sld [smem:[#allocation0]]
  $region205: #{decoder_forward_fused.1} parent=0
    _
  %s88 = ssub.s32 1, %s86
  %s89 = scalar_select 0, %s88, %s86
  $region1: #{decoder_forward_fused.1} parent=0
    #allocation5 [shape = 'u8[512]{0}', space=smem, size = 0x200, scoped, tag = 'input window, operand 7, single buffered']
    #allocation6 [shape = 's32[2]{0}', space=sflag, size = 0x8, scoped, tag = 'scoped memory for decoder_forward_fused.1']
    #allocation7 [shape = 's32[2]{0}', space=sflag, size = 0x8, scoped, tag = 'scoped memory for decoder_forward_fused.1']
    #allocation8 [shape = 'u8[1024]{0}', space=vmem, size = 0x400, scoped, tag = 'output window, operand 0']
    %90 = vsyncpa [#allocation7], 0
    %91 = vsyncpa [#allocation6], 0
    %s92 = scalar_lea.sflag [#allocation6], 1
    %93 = vsyncpa %s92, 0
    loop: start=0, step=1, limit=4
    $region2: #{decoder_forward_fused.1} parent=1 // loop_pre_header
      _
    $region3: #{decoder_forward_fused.1} parent=1 // loop_header
      %s95 = sphi 0, %s99
      %p96 = scmp.ge.s32.totalorder %s95, 4
      %s105 = sphi 0, %s107
      %s108 = sphi 0, %s105
      %s109 = sphi 0, %s108
      %s125 = sphi 0, %s109
      %s131 = sphi 0, %s133
      %s134 = sphi 0, %s131
      %s135 = sphi 0, %s134
      %s151 = sphi 0, %s135
      %s157 = sphi 0, %s159
      %s160 = sphi 0, %s157
      %s161 = sphi 0, %s160
      %s177 = sphi 0, %s161
      %s183 = sphi 0, %s185
      %s186 = sphi 0, %s183
      %s187 = sphi 0, %s186
      %s203 = sphi 0, %s187
      %s209 = sphi 0, %s211
      %s212 = sphi 0, %s209
      %s213 = sphi 0, %s212
      %s229 = sphi 0, %s213
      %s235 = sphi 0, %s237
      %s238 = sphi 0, %s235
      %s239 = sphi 0, %s238
      %s255 = sphi 0, %s239
      %s261 = sphi 0, %s263
      %s264 = sphi 0, %s261
      %s265 = sphi 0, %s264
      %s281 = sphi 0, %s265
      %s285 = sphi 0, %s285
      %s287 = sphi 0, %s285
      %s288 = sphi 0, %s287
      %s302 = sphi 0, %s288
      %s306 = sphi 0, %s306
      %s308 = sphi 0, %s306
      %s309 = sphi 0, %s308
      %s323 = sphi 0, %s309
      %s327 = sphi 0, %s327
      %s329 = sphi 0, %s327
      %s330 = sphi 0, %s329
      %s344 = sphi 0, %s330
      %s348 = sphi 0, %s348
      %s350 = sphi 0, %s348
      %s351 = sphi 0, %s350
      %s365 = sphi 0, %s351
      %s369 = sphi 0, %s369
      %s371 = sphi 0, %s369
      %s372 = sphi 0, %s371
      %s386 = sphi 0, %s372
      %s390 = sphi 0, %s390
      %s392 = sphi 0, %s390
      %s393 = sphi 0, %s392
      %s407 = sphi 0, %s393
      %s411 = sphi 0, %s411
      %s413 = sphi 0, %s411
      %s414 = sphi 0, %s413
      %s428 = sphi 0, %s414
      %s432 = sphi 0, %s432
      %s434 = sphi 0, %s432
      %s435 = sphi 0, %s434
      %s449 = sphi 0, %s435
      %s453 = sphi 0, %s453
      %s455 = sphi 0, %s453
      %s456 = sphi 0, %s455
      %s470 = sphi 0, %s456
      %s474 = sphi 0, %s474
      %s476 = sphi 0, %s474
      %s477 = sphi 0, %s476
      %s491 = sphi 0, %s477
      %s495 = sphi 0, %s495
      %s497 = sphi 0, %s495
      %s498 = sphi 0, %s497
      %s512 = sphi 0, %s498
      %s516 = sphi 0, %s516
      %s518 = sphi 0, %s516
      %s519 = sphi 0, %s518
      %s533 = sphi 0, %s519
      %s537 = sphi 0, %s537
      %s539 = sphi 0, %s537
      %s540 = sphi 0, %s539
      %s554 = sphi 0, %s540
      %s558 = sphi 0, %s558
      %s560 = sphi 0, %s558
      %s561 = sphi 0, %s560
      %s575 = sphi 0, %s561
      %s579 = sphi 0, %s579
      %s581 = sphi 0, %s579
      %s582 = sphi 0, %s581
      %s596 = sphi 0, %s582
      %s600 = sphi 0, %s600
      %s602 = sphi 0, %s600
      %s603 = sphi 0, %s602
      %s617 = sphi 0, %s603
      %s621 = sphi 0, %s621
      %s623 = sphi 0, %s621
      %s624 = sphi 0, %s623
      %s638 = sphi 0, %s624
      %s642 = sphi 0, %s642
      %s644 = sphi 0, %s642
      %s645 = sphi 0, %s644
      %s659 = sphi 0, %s645
      %s663 = sphi 0, %s663
      %s665 = sphi 0, %s663
      %s666 = sphi 0, %s665
      %s680 = sphi 0, %s666
      %s684 = sphi 0, %s684
      %s686 = sphi 0, %s684
      %s687 = sphi 0, %s686
      %s701 = sphi 0, %s687
      %s705 = sphi 0, %s705
      %s707 = sphi 0, %s705
      %s708 = sphi 0, %s707
      %s722 = sphi 0, %s708
      %s726 = sphi 0, %s726
      %s728 = sphi 0, %s726
      %s729 = sphi 0, %s728
      %s743 = sphi 0, %s729
      %s747 = sphi 0, %s747
      %s749 = sphi 0, %s747
      %s750 = sphi 0, %s749
      %s764 = sphi 0, %s750
      %s768 = sphi 0, %s768
      %s770 = sphi 0, %s768
      %s771 = sphi 0, %s770
      %s785 = sphi 0, %s771
      %s789 = sphi 0, %s789
      %s791 = sphi 0, %s789
      %s792 = sphi 0, %s791
      %s806 = sphi 0, %s792
      %s810 = sphi 0, %s810
      %s812 = sphi 0, %s810
      %s813 = sphi 0, %s812
      %s827 = sphi 0, %s813
      %s831 = sphi 0, %s831
      %s833 = sphi 0, %s831
      %s834 = sphi 0, %s833
      %s848 = sphi 0, %s834
      %s852 = sphi 0, %s852
      %s854 = sphi 0, %s852
      %s855 = sphi 0, %s854
      %s869 = sphi 0, %s855
      %s873 = sphi 0, %s873
      %s875 = sphi 0, %s873
      %s876 = sphi 0, %s875
      %s890 = sphi 0, %s876
      %s894 = sphi 0, %s894
      %s896 = sphi 0, %s894
      %s897 = sphi 0, %s896
      %s911 = sphi 0, %s897
      %s915 = sphi 0, %s915
      %s917 = sphi 0, %s915
      %s918 = sphi 0, %s917
      %s932 = sphi 0, %s918
      %s936 = sphi 0, %s936
      %s938 = sphi 0, %s936
      %s939 = sphi 0, %s938
      %s953 = sphi 0, %s939
      %s957 = sphi 0, %s957
      %s959 = sphi 0, %s957
      %s960 = sphi 0, %s959
      %s974 = sphi 0, %s960
      %s978 = sphi 0, %s978
      %s980 = sphi 0, %s978
      %s981 = sphi 0, %s980
      %s995 = sphi 0, %s981
      %s999 = sphi 0, %s999
      %s1001 = sphi 0, %s999
      %s1002 = sphi 0, %s1001
      %s1016 = sphi 0, %s1002
      %s1022 = sphi 0, %s1024
      %s1025 = sphi 0, %s1022
      %s1026 = sphi 0, %s1025
      %s1042 = sphi 0, %s1026
    $region4: #{decoder_forward_fused.1} parent=1 // loop_header_branch
      %98 = sbr.rel (%p96) target = $region8
    $region5: #{decoder_forward_fused.1} parent=1 // loop_body
      %s100 = ssub.s32 %s95, 1
      %s101 = ssub.s32 %s95, 2
      %s102 = sadd.s32 %s95, 1
      %s103 = ssub.s32 %s95, %s102
      %p104 = scmp.eq.s32.totalorder %s103, 0
      %s106 = sadd.s32 %s105, 1
      %s107 = scalar_select %p104, %s105, %s106
      %p110 = pneg %p104
      %p111 = scmp.eq.s32.totalorder %s95, 1
      %p112 = por %p110, %p111
      %p113 = scmp.ne.s32.totalorder %s105, %s108
      %p114 = scmp.eq.s32.totalorder %s95, 0
      %p115 = por %p113, %p114
      %p116 = scmp.ne.s32.totalorder %s105, %s108
      %p117 = scmp.eq.s32.totalorder %s100, 1
      %p118 = por %p116, %p117
      %p119 = scmp.ne.s32.totalorder %s108, %s109
      %p120 = scmp.eq.s32.totalorder %s100, 0
      %p121 = por %p119, %p120
      %p122 = scmp.ne.s32.totalorder %s108, %s109
      %p123 = scmp.eq.s32.totalorder %s101, 1
      %p124 = por %p122, %p123
      %p126 = scmp.ne.s32.totalorder %s109, %s125
      %p127 = scmp.eq.s32.totalorder %s101, 0
      %p128 = por %p126, %p127
      %s129 = ssub.s32 %s95, %s102
      %p130 = scmp.eq.s32.totalorder %s129, 0
      %s132 = sadd.s32 %s131, 1
      %s133 = scalar_select %p130, %s131, %s132
      %p136 = pneg %p130
      %p137 = scmp.eq.s32.totalorder %s95, 1
      %p138 = por %p136, %p137
      %p139 = scmp.ne.s32.totalorder %s131, %s134
      %p140 = scmp.eq.s32.totalorder %s95, 0
      %p141 = por %p139, %p140
      %p142 = scmp.ne.s32.totalorder %s131, %s134
      %p143 = scmp.eq.s32.totalorder %s100, 1
      %p144 = por %p142, %p143
      %p145 = scmp.ne.s32.totalorder %s134, %s135
      %p146 = scmp.eq.s32.totalorder %s100, 0
      %p147 = por %p145, %p146
      %p148 = scmp.ne.s32.totalorder %s134, %s135
      %p149 = scmp.eq.s32.totalorder %s101, 1
      %p150 = por %p148, %p149
      %p152 = scmp.ne.s32.totalorder %s135, %s151
      %p153 = scmp.eq.s32.totalorder %s101, 0
      %p154 = por %p152, %p153
      %s155 = ssub.s32 %s95, %s102
      %p156 = scmp.eq.s32.totalorder %s155, 0
      %s158 = sadd.s32 %s157, 1
      %s159 = scalar_select %p156, %s157, %s158
      %p162 = pneg %p156
      %p163 = scmp.eq.s32.totalorder %s95, 1
      %p164 = por %p162, %p163
      %p165 = scmp.ne.s32.totalorder %s157, %s160
      %p166 = scmp.eq.s32.totalorder %s95, 0
      %p167 = por %p165, %p166
      %p168 = scmp.ne.s32.totalorder %s157, %s160
      %p169 = scmp.eq.s32.totalorder %s100, 1
      %p170 = por %p168, %p169
      %p171 = scmp.ne.s32.totalorder %s160, %s161
      %p172 = scmp.eq.s32.totalorder %s100, 0
      %p173 = por %p171, %p172
      %p174 = scmp.ne.s32.totalorder %s160, %s161
      %p175 = scmp.eq.s32.totalorder %s101, 1
      %p176 = por %p174, %p175
      %p178 = scmp.ne.s32.totalorder %s161, %s177
      %p179 = scmp.eq.s32.totalorder %s101, 0
      %p180 = por %p178, %p179
      %s181 = ssub.s32 %s95, %s102
      %p182 = scmp.eq.s32.totalorder %s181, 0
      %s184 = sadd.s32 %s183, 1
      %s185 = scalar_select %p182, %s183, %s184
      %p188 = pneg %p182
      %p189 = scmp.eq.s32.totalorder %s95, 1
      %p190 = por %p188, %p189
      %p191 = scmp.ne.s32.totalorder %s183, %s186
      %p192 = scmp.eq.s32.totalorder %s95, 0
      %p193 = por %p191, %p192
      %p194 = scmp.ne.s32.totalorder %s183, %s186
      %p195 = scmp.eq.s32.totalorder %s100, 1
      %p196 = por %p194, %p195
      %p197 = scmp.ne.s32.totalorder %s186, %s187
      %p198 = scmp.eq.s32.totalorder %s100, 0
      %p199 = por %p197, %p198
      %p200 = scmp.ne.s32.totalorder %s186, %s187
      %p201 = scmp.eq.s32.totalorder %s101, 1
      %p202 = por %p200, %p201
      %p204 = scmp.ne.s32.totalorder %s187, %s203
      %p205 = scmp.eq.s32.totalorder %s101, 0
      %p206 = por %p204, %p205
      %s207 = ssub.s32 %s95, %s102
      %p208 = scmp.eq.s32.totalorder %s207, 0
      %s210 = sadd.s32 %s209, 1
      %s211 = scalar_select %p208, %s209, %s210
      %p214 = pneg %p208
      %p215 = scmp.eq.s32.totalorder %s95, 1
      %p216 = por %p214, %p215
      %p217 = scmp.ne.s32.totalorder %s209, %s212
      %p218 = scmp.eq.s32.totalorder %s95, 0
      %p219 = por %p217, %p218
      %p220 = scmp.ne.s32.totalorder %s209, %s212
      %p221 = scmp.eq.s32.totalorder %s100, 1
      %p222 = por %p220, %p221
      %p223 = scmp.ne.s32.totalorder %s212, %s213
      %p224 = scmp.eq.s32.totalorder %s100, 0
      %p225 = por %p223, %p224
      %p226 = scmp.ne.s32.totalorder %s212, %s213
      %p227 = scmp.eq.s32.totalorder %s101, 1
      %p228 = por %p226, %p227
      %p230 = scmp.ne.s32.totalorder %s213, %s229
      %p231 = scmp.eq.s32.totalorder %s101, 0
      %p232 = por %p230, %p231
      %s233 = ssub.s32 %s95, %s102
      %p234 = scmp.eq.s32.totalorder %s233, 0
      %s236 = sadd.s32 %s235, 1
      %s237 = scalar_select %p234, %s235, %s236
      %p240 = pneg %p234
      %p241 = scmp.eq.s32.totalorder %s95, 1
      %p242 = por %p240, %p241
      %p243 = scmp.ne.s32.totalorder %s235, %s238
      %p244 = scmp.eq.s32.totalorder %s95, 0
      %p245 = por %p243, %p244
      %p246 = scmp.ne.s32.totalorder %s235, %s238
      %p247 = scmp.eq.s32.totalorder %s100, 1
      %p248 = por %p246, %p247
      %p249 = scmp.ne.s32.totalorder %s238, %s239
      %p250 = scmp.eq.s32.totalorder %s100, 0
      %p251 = por %p249, %p250
      %p252 = scmp.ne.s32.totalorder %s238, %s239
      %p253 = scmp.eq.s32.totalorder %s101, 1
      %p254 = por %p252, %p253
      %p256 = scmp.ne.s32.totalorder %s239, %s255
      %p257 = scmp.eq.s32.totalorder %s101, 0
      %p258 = por %p256, %p257
      %s259 = ssub.s32 %s95, %s102
      %p260 = scmp.eq.s32.totalorder %s259, 0
      %s262 = sadd.s32 %s261, 1
      %s263 = scalar_select %p260, %s261, %s262
      %p266 = pneg %p260
      %p267 = scmp.eq.s32.totalorder %s95, 1
      %p268 = por %p266, %p267
      %p269 = scmp.ne.s32.totalorder %s261, %s264
      %p270 = scmp.eq.s32.totalorder %s95, 0
      %p271 = por %p269, %p270
      %p272 = scmp.ne.s32.totalorder %s261, %s264
      %p273 = scmp.eq.s32.totalorder %s100, 1
      %p274 = por %p272, %p273
      %p275 = scmp.ne.s32.totalorder %s264, %s265
      %p276 = scmp.eq.s32.totalorder %s100, 0
      %p277 = por %p275, %p276
      %p278 = scmp.ne.s32.totalorder %s264, %s265
      %p279 = scmp.eq.s32.totalorder %s101, 1
      %p280 = por %p278, %p279
      %p282 = scmp.ne.s32.totalorder %s265, %s281
      %p283 = scmp.eq.s32.totalorder %s101, 0
      %p284 = por %p282, %p283
      %s286 = sadd.s32 %s285, 1
      %p289 = scmp.eq.s32.totalorder %s95, 1
      %p290 = scmp.ne.s32.totalorder %s285, %s287
      %p291 = scmp.eq.s32.totalorder %s95, 0
      %p292 = por %p290, %p291
      %p293 = scmp.ne.s32.totalorder %s285, %s287
      %p294 = scmp.eq.s32.totalorder %s100, 1
      %p295 = por %p293, %p294
      %p296 = scmp.ne.s32.totalorder %s287, %s288
      %p297 = scmp.eq.s32.totalorder %s100, 0
      %p298 = por %p296, %p297
      %p299 = scmp.ne.s32.totalorder %s287, %s288
      %p300 = scmp.eq.s32.totalorder %s101, 1
      %p301 = por %p299, %p300
      %p303 = scmp.ne.s32.totalorder %s288, %s302
      %p304 = scmp.eq.s32.totalorder %s101, 0
      %p305 = por %p303, %p304
      %s307 = sadd.s32 %s306, 1
      %p310 = scmp.eq.s32.totalorder %s95, 1
      %p311 = scmp.ne.s32.totalorder %s306, %s308
      %p312 = scmp.eq.s32.totalorder %s95, 0
      %p313 = por %p311, %p312
      %p314 = scmp.ne.s32.totalorder %s306, %s308
      %p315 = scmp.eq.s32.totalorder %s100, 1
      %p316 = por %p314, %p315
      %p317 = scmp.ne.s32.totalorder %s308, %s309
      %p318 = scmp.eq.s32.totalorder %s100, 0
      %p319 = por %p317, %p318
      %p320 = scmp.ne.s32.totalorder %s308, %s309
      %p321 = scmp.eq.s32.totalorder %s101, 1
      %p322 = por %p320, %p321
      %p324 = scmp.ne.s32.totalorder %s309, %s323
      %p325 = scmp.eq.s32.totalorder %s101, 0
      %p326 = por %p324, %p325
      %s328 = sadd.s32 %s327, 1
      %p331 = scmp.eq.s32.totalorder %s95, 1
      %p332 = scmp.ne.s32.totalorder %s327, %s329
      %p333 = scmp.eq.s32.totalorder %s95, 0
      %p334 = por %p332, %p333
      %p335 = scmp.ne.s32.totalorder %s327, %s329
      %p336 = scmp.eq.s32.totalorder %s100, 1
      %p337 = por %p335, %p336
      %p338 = scmp.ne.s32.totalorder %s329, %s330
      %p339 = scmp.eq.s32.totalorder %s100, 0
      %p340 = por %p338, %p339
      %p341 = scmp.ne.s32.totalorder %s329, %s330
      %p342 = scmp.eq.s32.totalorder %s101, 1
      %p343 = por %p341, %p342
      %p345 = scmp.ne.s32.totalorder %s330, %s344
      %p346 = scmp.eq.s32.totalorder %s101, 0
      %p347 = por %p345, %p346
      %s349 = sadd.s32 %s348, 1
      %p352 = scmp.eq.s32.totalorder %s95, 1
      %p353 = scmp.ne.s32.totalorder %s348, %s350
      %p354 = scmp.eq.s32.totalorder %s95, 0
      %p355 = por %p353, %p354
      %p356 = scmp.ne.s32.totalorder %s348, %s350
      %p357 = scmp.eq.s32.totalorder %s100, 1
      %p358 = por %p356, %p357
      %p359 = scmp.ne.s32.totalorder %s350, %s351
      %p360 = scmp.eq.s32.totalorder %s100, 0
      %p361 = por %p359, %p360
      %p362 = scmp.ne.s32.totalorder %s350, %s351
      %p363 = scmp.eq.s32.totalorder %s101, 1
      %p364 = por %p362, %p363
      %p366 = scmp.ne.s32.totalorder %s351, %s365
      %p367 = scmp.eq.s32.totalorder %s101, 0
      %p368 = por %p366, %p367
      %s370 = sadd.s32 %s369, 1
      %p373 = scmp.eq.s32.totalorder %s95, 1
      %p374 = scmp.ne.s32.totalorder %s369, %s371
      %p375 = scmp.eq.s32.totalorder %s95, 0
      %p376 = por %p374, %p375
      %p377 = scmp.ne.s32.totalorder %s369, %s371
      %p378 = scmp.eq.s32.totalorder %s100, 1
      %p379 = por %p377, %p378
      %p380 = scmp.ne.s32.totalorder %s371, %s372
      %p381 = scmp.eq.s32.totalorder %s100, 0
      %p382 = por %p380, %p381
      %p383 = scmp.ne.s32.totalorder %s371, %s372
      %p384 = scmp.eq.s32.totalorder %s101, 1
      %p385 = por %p383, %p384
      %p387 = scmp.ne.s32.totalorder %s372, %s386
      %p388 = scmp.eq.s32.totalorder %s101, 0
      %p389 = por %p387, %p388
      %s391 = sadd.s32 %s390, 1
      %p394 = scmp.eq.s32.totalorder %s95, 1
      %p395 = scmp.ne.s32.totalorder %s390, %s392
      %p396 = scmp.eq.s32.totalorder %s95, 0
      %p397 = por %p395, %p396
      %p398 = scmp.ne.s32.totalorder %s390, %s392
      %p399 = scmp.eq.s32.totalorder %s100, 1
      %p400 = por %p398, %p399
      %p401 = scmp.ne.s32.totalorder %s392, %s393
      %p402 = scmp.eq.s32.totalorder %s100, 0
      %p403 = por %p401, %p402
      %p404 = scmp.ne.s32.totalorder %s392, %s393
      %p405 = scmp.eq.s32.totalorder %s101, 1
      %p406 = por %p404, %p405
      %p408 = scmp.ne.s32.totalorder %s393, %s407
      %p409 = scmp.eq.s32.totalorder %s101, 0
      %p410 = por %p408, %p409
      %s412 = sadd.s32 %s411, 1
      %p415 = scmp.eq.s32.totalorder %s95, 1
      %p416 = scmp.ne.s32.totalorder %s411, %s413
      %p417 = scmp.eq.s32.totalorder %s95, 0
      %p418 = por %p416, %p417
      %p419 = scmp.ne.s32.totalorder %s411, %s413
      %p420 = scmp.eq.s32.totalorder %s100, 1
      %p421 = por %p419, %p420
      %p422 = scmp.ne.s32.totalorder %s413, %s414
      %p423 = scmp.eq.s32.totalorder %s100, 0
      %p424 = por %p422, %p423
      %p425 = scmp.ne.s32.totalorder %s413, %s414
      %p426 = scmp.eq.s32.totalorder %s101, 1
      %p427 = por %p425, %p426
      %p429 = scmp.ne.s32.totalorder %s414, %s428
      %p430 = scmp.eq.s32.totalorder %s101, 0
      %p431 = por %p429, %p430
      %s433 = sadd.s32 %s432, 1
      %p436 = scmp.eq.s32.totalorder %s95, 1
      %p437 = scmp.ne.s32.totalorder %s432, %s434
      %p438 = scmp.eq.s32.totalorder %s95, 0
      %p439 = por %p437, %p438
      %p440 = scmp.ne.s32.totalorder %s432, %s434
      %p441 = scmp.eq.s32.totalorder %s100, 1
      %p442 = por %p440, %p441
      %p443 = scmp.ne.s32.totalorder %s434, %s435
      %p444 = scmp.eq.s32.totalorder %s100, 0
      %p445 = por %p443, %p444
      %p446 = scmp.ne.s32.totalorder %s434, %s435
      %p447 = scmp.eq.s32.totalorder %s101, 1
      %p448 = por %p446, %p447
      %p450 = scmp.ne.s32.totalorder %s435, %s449
      %p451 = scmp.eq.s32.totalorder %s101, 0
      %p452 = por %p450, %p451
      %s454 = sadd.s32 %s453, 1
      %p457 = scmp.eq.s32.totalorder %s95, 1
      %p458 = scmp.ne.s32.totalorder %s453, %s455
      %p459 = scmp.eq.s32.totalorder %s95, 0
      %p460 = por %p458, %p459
      %p461 = scmp.ne.s32.totalorder %s453, %s455
      %p462 = scmp.eq.s32.totalorder %s100, 1
      %p463 = por %p461, %p462
      %p464 = scmp.ne.s32.totalorder %s455, %s456
      %p465 = scmp.eq.s32.totalorder %s100, 0
      %p466 = por %p464, %p465
      %p467 = scmp.ne.s32.totalorder %s455, %s456
      %p468 = scmp.eq.s32.totalorder %s101, 1
      %p469 = por %p467, %p468
      %p471 = scmp.ne.s32.totalorder %s456, %s470
      %p472 = scmp.eq.s32.totalorder %s101, 0
      %p473 = por %p471, %p472
      %s475 = sadd.s32 %s474, 1
      %p478 = scmp.eq.s32.totalorder %s95, 1
      %p479 = scmp.ne.s32.totalorder %s474, %s476
      %p480 = scmp.eq.s32.totalorder %s95, 0
      %p481 = por %p479, %p480
      %p482 = scmp.ne.s32.totalorder %s474, %s476
      %p483 = scmp.eq.s32.totalorder %s100, 1
      %p484 = por %p482, %p483
      %p485 = scmp.ne.s32.totalorder %s476, %s477
      %p486 = scmp.eq.s32.totalorder %s100, 0
      %p487 = por %p485, %p486
      %p488 = scmp.ne.s32.totalorder %s476, %s477
      %p489 = scmp.eq.s32.totalorder %s101, 1
      %p490 = por %p488, %p489
      %p492 = scmp.ne.s32.totalorder %s477, %s491
      %p493 = scmp.eq.s32.totalorder %s101, 0
      %p494 = por %p492, %p493
      %s496 = sadd.s32 %s495, 1
      %p499 = scmp.eq.s32.totalorder %s95, 1
      %p500 = scmp.ne.s32.totalorder %s495, %s497
      %p501 = scmp.eq.s32.totalorder %s95, 0
      %p502 = por %p500, %p501
      %p503 = scmp.ne.s32.totalorder %s495, %s497
      %p504 = scmp.eq.s32.totalorder %s100, 1
      %p505 = por %p503, %p504
      %p506 = scmp.ne.s32.totalorder %s497, %s498
      %p507 = scmp.eq.s32.totalorder %s100, 0
      %p508 = por %p506, %p507
      %p509 = scmp.ne.s32.totalorder %s497, %s498
      %p510 = scmp.eq.s32.totalorder %s101, 1
      %p511 = por %p509, %p510
      %p513 = scmp.ne.s32.totalorder %s498, %s512
      %p514 = scmp.eq.s32.totalorder %s101, 0
      %p515 = por %p513, %p514
      %s517 = sadd.s32 %s516, 1
      %p520 = scmp.eq.s32.totalorder %s95, 1
      %p521 = scmp.ne.s32.totalorder %s516, %s518
      %p522 = scmp.eq.s32.totalorder %s95, 0
      %p523 = por %p521, %p522
      %p524 = scmp.ne.s32.totalorder %s516, %s518
      %p525 = scmp.eq.s32.totalorder %s100, 1
      %p526 = por %p524, %p525
      %p527 = scmp.ne.s32.totalorder %s518, %s519
      %p528 = scmp.eq.s32.totalorder %s100, 0
      %p529 = por %p527, %p528
      %p530 = scmp.ne.s32.totalorder %s518, %s519
      %p531 = scmp.eq.s32.totalorder %s101, 1
      %p532 = por %p530, %p531
      %p534 = scmp.ne.s32.totalorder %s519, %s533
      %p535 = scmp.eq.s32.totalorder %s101, 0
      %p536 = por %p534, %p535
      %s538 = sadd.s32 %s537, 1
      %p541 = scmp.eq.s32.totalorder %s95, 1
      %p542 = scmp.ne.s32.totalorder %s537, %s539
      %p543 = scmp.eq.s32.totalorder %s95, 0
      %p544 = por %p542, %p543
      %p545 = scmp.ne.s32.totalorder %s537, %s539
      %p546 = scmp.eq.s32.totalorder %s100, 1
      %p547 = por %p545, %p546
      %p548 = scmp.ne.s32.totalorder %s539, %s540
      %p549 = scmp.eq.s32.totalorder %s100, 0
      %p550 = por %p548, %p549
      %p551 = scmp.ne.s32.totalorder %s539, %s540
      %p552 = scmp.eq.s32.totalorder %s101, 1
      %p553 = por %p551, %p552
      %p555 = scmp.ne.s32.totalorder %s540, %s554
      %p556 = scmp.eq.s32.totalorder %s101, 0
      %p557 = por %p555, %p556
      %s559 = sadd.s32 %s558, 1
      %p562 = scmp.eq.s32.totalorder %s95, 1
      %p563 = scmp.ne.s32.totalorder %s558, %s560
      %p564 = scmp.eq.s32.totalorder %s95, 0
      %p565 = por %p563, %p564
      %p566 = scmp.ne.s32.totalorder %s558, %s560
      %p567 = scmp.eq.s32.totalorder %s100, 1
      %p568 = por %p566, %p567
      %p569 = scmp.ne.s32.totalorder %s560, %s561
      %p570 = scmp.eq.s32.totalorder %s100, 0
      %p571 = por %p569, %p570
      %p572 = scmp.ne.s32.totalorder %s560, %s561
      %p573 = scmp.eq.s32.totalorder %s101, 1
      %p574 = por %p572, %p573
      %p576 = scmp.ne.s32.totalorder %s561, %s575
      %p577 = scmp.eq.s32.totalorder %s101, 0
      %p578 = por %p576, %p577
      %s580 = sadd.s32 %s579, 1
      %p583 = scmp.eq.s32.totalorder %s95, 1
      %p584 = scmp.ne.s32.totalorder %s579, %s581
      %p585 = scmp.eq.s32.totalorder %s95, 0
      %p586 = por %p584, %p585
      %p587 = scmp.ne.s32.totalorder %s579, %s581
      %p588 = scmp.eq.s32.totalorder %s100, 1
      %p589 = por %p587, %p588
      %p590 = scmp.ne.s32.totalorder %s581, %s582
      %p591 = scmp.eq.s32.totalorder %s100, 0
      %p592 = por %p590, %p591
      %p593 = scmp.ne.s32.totalorder %s581, %s582
      %p594 = scmp.eq.s32.totalorder %s101, 1
      %p595 = por %p593, %p594
      %p597 = scmp.ne.s32.totalorder %s582, %s596
      %p598 = scmp.eq.s32.totalorder %s101, 0
      %p599 = por %p597, %p598
      %s601 = sadd.s32 %s600, 1
      %p604 = scmp.eq.s32.totalorder %s95, 1
      %p605 = scmp.ne.s32.totalorder %s600, %s602
      %p606 = scmp.eq.s32.totalorder %s95, 0
      %p607 = por %p605, %p606
      %p608 = scmp.ne.s32.totalorder %s600, %s602
      %p609 = scmp.eq.s32.totalorder %s100, 1
      %p610 = por %p608, %p609
      %p611 = scmp.ne.s32.totalorder %s602, %s603
      %p612 = scmp.eq.s32.totalorder %s100, 0
      %p613 = por %p611, %p612
      %p614 = scmp.ne.s32.totalorder %s602, %s603
      %p615 = scmp.eq.s32.totalorder %s101, 1
      %p616 = por %p614, %p615
      %p618 = scmp.ne.s32.totalorder %s603, %s617
      %p619 = scmp.eq.s32.totalorder %s101, 0
      %p620 = por %p618, %p619
      %s622 = sadd.s32 %s621, 1
      %p625 = scmp.eq.s32.totalorder %s95, 1
      %p626 = scmp.ne.s32.totalorder %s621, %s623
      %p627 = scmp.eq.s32.totalorder %s95, 0
      %p628 = por %p626, %p627
      %p629 = scmp.ne.s32.totalorder %s621, %s623
      %p630 = scmp.eq.s32.totalorder %s100, 1
      %p631 = por %p629, %p630
      %p632 = scmp.ne.s32.totalorder %s623, %s624
      %p633 = scmp.eq.s32.totalorder %s100, 0
      %p634 = por %p632, %p633
      %p635 = scmp.ne.s32.totalorder %s623, %s624
      %p636 = scmp.eq.s32.totalorder %s101, 1
      %p637 = por %p635, %p636
      %p639 = scmp.ne.s32.totalorder %s624, %s638
      %p640 = scmp.eq.s32.totalorder %s101, 0
      %p641 = por %p639, %p640
      %s643 = sadd.s32 %s642, 1
      %p646 = scmp.eq.s32.totalorder %s95, 1
      %p647 = scmp.ne.s32.totalorder %s642, %s644
      %p648 = scmp.eq.s32.totalorder %s95, 0
      %p649 = por %p647, %p648
      %p650 = scmp.ne.s32.totalorder %s642, %s644
      %p651 = scmp.eq.s32.totalorder %s100, 1
      %p652 = por %p650, %p651
      %p653 = scmp.ne.s32.totalorder %s644, %s645
      %p654 = scmp.eq.s32.totalorder %s100, 0
      %p655 = por %p653, %p654
      %p656 = scmp.ne.s32.totalorder %s644, %s645
      %p657 = scmp.eq.s32.totalorder %s101, 1
      %p658 = por %p656, %p657
      %p660 = scmp.ne.s32.totalorder %s645, %s659
      %p661 = scmp.eq.s32.totalorder %s101, 0
      %p662 = por %p660, %p661
      %s664 = sadd.s32 %s663, 1
      %p667 = scmp.eq.s32.totalorder %s95, 1
      %p668 = scmp.ne.s32.totalorder %s663, %s665
      %p669 = scmp.eq.s32.totalorder %s95, 0
      %p670 = por %p668, %p669
      %p671 = scmp.ne.s32.totalorder %s663, %s665
      %p672 = scmp.eq.s32.totalorder %s100, 1
      %p673 = por %p671, %p672
      %p674 = scmp.ne.s32.totalorder %s665, %s666
      %p675 = scmp.eq.s32.totalorder %s100, 0
      %p676 = por %p674, %p675
      %p677 = scmp.ne.s32.totalorder %s665, %s666
      %p678 = scmp.eq.s32.totalorder %s101, 1
      %p679 = por %p677, %p678
      %p681 = scmp.ne.s32.totalorder %s666, %s680
      %p682 = scmp.eq.s32.totalorder %s101, 0
      %p683 = por %p681, %p682
      %s685 = sadd.s32 %s684, 1
      %p688 = scmp.eq.s32.totalorder %s95, 1
      %p689 = scmp.ne.s32.totalorder %s684, %s686
      %p690 = scmp.eq.s32.totalorder %s95, 0
      %p691 = por %p689, %p690
      %p692 = scmp.ne.s32.totalorder %s684, %s686
      %p693 = scmp.eq.s32.totalorder %s100, 1
      %p694 = por %p692, %p693
      %p695 = scmp.ne.s32.totalorder %s686, %s687
      %p696 = scmp.eq.s32.totalorder %s100, 0
      %p697 = por %p695, %p696
      %p698 = scmp.ne.s32.totalorder %s686, %s687
      %p699 = scmp.eq.s32.totalorder %s101, 1
      %p700 = por %p698, %p699
      %p702 = scmp.ne.s32.totalorder %s687, %s701
      %p703 = scmp.eq.s32.totalorder %s101, 0
      %p704 = por %p702, %p703
      %s706 = sadd.s32 %s705, 1
      %p709 = scmp.eq.s32.totalorder %s95, 1
      %p710 = scmp.ne.s32.totalorder %s705, %s707
      %p711 = scmp.eq.s32.totalorder %s95, 0
      %p712 = por %p710, %p711
      %p713 = scmp.ne.s32.totalorder %s705, %s707
      %p714 = scmp.eq.s32.totalorder %s100, 1
      %p715 = por %p713, %p714
      %p716 = scmp.ne.s32.totalorder %s707, %s708
      %p717 = scmp.eq.s32.totalorder %s100, 0
      %p718 = por %p716, %p717
      %p719 = scmp.ne.s32.totalorder %s707, %s708
      %p720 = scmp.eq.s32.totalorder %s101, 1
      %p721 = por %p719, %p720
      %p723 = scmp.ne.s32.totalorder %s708, %s722
      %p724 = scmp.eq.s32.totalorder %s101, 0
      %p725 = por %p723, %p724
      %s727 = sadd.s32 %s726, 1
      %p730 = scmp.eq.s32.totalorder %s95, 1
      %p731 = scmp.ne.s32.totalorder %s726, %s728
      %p732 = scmp.eq.s32.totalorder %s95, 0
      %p733 = por %p731, %p732
      %p734 = scmp.ne.s32.totalorder %s726, %s728
      %p735 = scmp.eq.s32.totalorder %s100, 1
      %p736 = por %p734, %p735
      %p737 = scmp.ne.s32.totalorder %s728, %s729
      %p738 = scmp.eq.s32.totalorder %s100, 0
      %p739 = por %p737, %p738
      %p740 = scmp.ne.s32.totalorder %s728, %s729
      %p741 = scmp.eq.s32.totalorder %s101, 1
      %p742 = por %p740, %p741
      %p744 = scmp.ne.s32.totalorder %s729, %s743
      %p745 = scmp.eq.s32.totalorder %s101, 0
      %p746 = por %p744, %p745
      %s748 = sadd.s32 %s747, 1
      %p751 = scmp.eq.s32.totalorder %s95, 1
      %p752 = scmp.ne.s32.totalorder %s747, %s749
      %p753 = scmp.eq.s32.totalorder %s95, 0
      %p754 = por %p752, %p753
      %p755 = scmp.ne.s32.totalorder %s747, %s749
      %p756 = scmp.eq.s32.totalorder %s100, 1
      %p757 = por %p755, %p756
      %p758 = scmp.ne.s32.totalorder %s749, %s750
      %p759 = scmp.eq.s32.totalorder %s100, 0
      %p760 = por %p758, %p759
      %p761 = scmp.ne.s32.totalorder %s749, %s750
      %p762 = scmp.eq.s32.totalorder %s101, 1
      %p763 = por %p761, %p762
      %p765 = scmp.ne.s32.totalorder %s750, %s764
      %p766 = scmp.eq.s32.totalorder %s101, 0
      %p767 = por %p765, %p766
      %s769 = sadd.s32 %s768, 1
      %p772 = scmp.eq.s32.totalorder %s95, 1
      %p773 = scmp.ne.s32.totalorder %s768, %s770
      %p774 = scmp.eq.s32.totalorder %s95, 0
      %p775 = por %p773, %p774
      %p776 = scmp.ne.s32.totalorder %s768, %s770
      %p777 = scmp.eq.s32.totalorder %s100, 1
      %p778 = por %p776, %p777
      %p779 = scmp.ne.s32.totalorder %s770, %s771
      %p780 = scmp.eq.s32.totalorder %s100, 0
      %p781 = por %p779, %p780
      %p782 = scmp.ne.s32.totalorder %s770, %s771
      %p783 = scmp.eq.s32.totalorder %s101, 1
      %p784 = por %p782, %p783
      %p786 = scmp.ne.s32.totalorder %s771, %s785
      %p787 = scmp.eq.s32.totalorder %s101, 0
      %p788 = por %p786, %p787
      %s790 = sadd.s32 %s789, 1
      %p793 = scmp.eq.s32.totalorder %s95, 1
      %p794 = scmp.ne.s32.totalorder %s789, %s791
      %p795 = scmp.eq.s32.totalorder %s95, 0
      %p796 = por %p794, %p795
      %p797 = scmp.ne.s32.totalorder %s789, %s791
      %p798 = scmp.eq.s32.totalorder %s100, 1
      %p799 = por %p797, %p798
      %p800 = scmp.ne.s32.totalorder %s791, %s792
      %p801 = scmp.eq.s32.totalorder %s100, 0
      %p802 = por %p800, %p801
      %p803 = scmp.ne.s32.totalorder %s791, %s792
      %p804 = scmp.eq.s32.totalorder %s101, 1
      %p805 = por %p803, %p804
      %p807 = scmp.ne.s32.totalorder %s792, %s806
      %p808 = scmp.eq.s32.totalorder %s101, 0
      %p809 = por %p807, %p808
      %s811 = sadd.s32 %s810, 1
      %p814 = scmp.eq.s32.totalorder %s95, 1
      %p815 = scmp.ne.s32.totalorder %s810, %s812
      %p816 = scmp.eq.s32.totalorder %s95, 0
      %p817 = por %p815, %p816
      %p818 = scmp.ne.s32.totalorder %s810, %s812
      %p819 = scmp.eq.s32.totalorder %s100, 1
      %p820 = por %p818, %p819
      %p821 = scmp.ne.s32.totalorder %s812, %s813
      %p822 = scmp.eq.s32.totalorder %s100, 0
      %p823 = por %p821, %p822
      %p824 = scmp.ne.s32.totalorder %s812, %s813
      %p825 = scmp.eq.s32.totalorder %s101, 1
      %p826 = por %p824, %p825
      %p828 = scmp.ne.s32.totalorder %s813, %s827
      %p829 = scmp.eq.s32.totalorder %s101, 0
      %p830 = por %p828, %p829
      %s832 = sadd.s32 %s831, 1
      %p835 = scmp.eq.s32.totalorder %s95, 1
      %p836 = scmp.ne.s32.totalorder %s831, %s833
      %p837 = scmp.eq.s32.totalorder %s95, 0
      %p838 = por %p836, %p837
      %p839 = scmp.ne.s32.totalorder %s831, %s833
      %p840 = scmp.eq.s32.totalorder %s100, 1
      %p841 = por %p839, %p840
      %p842 = scmp.ne.s32.totalorder %s833, %s834
      %p843 = scmp.eq.s32.totalorder %s100, 0
      %p844 = por %p842, %p843
      %p845 = scmp.ne.s32.totalorder %s833, %s834
      %p846 = scmp.eq.s32.totalorder %s101, 1
      %p847 = por %p845, %p846
      %p849 = scmp.ne.s32.totalorder %s834, %s848
      %p850 = scmp.eq.s32.totalorder %s101, 0
      %p851 = por %p849, %p850
      %s853 = sadd.s32 %s852, 1
      %p856 = scmp.eq.s32.totalorder %s95, 1
      %p857 = scmp.ne.s32.totalorder %s852, %s854
      %p858 = scmp.eq.s32.totalorder %s95, 0
      %p859 = por %p857, %p858
      %p860 = scmp.ne.s32.totalorder %s852, %s854
      %p861 = scmp.eq.s32.totalorder %s100, 1
      %p862 = por %p860, %p861
      %p863 = scmp.ne.s32.totalorder %s854, %s855
      %p864 = scmp.eq.s32.totalorder %s100, 0
      %p865 = por %p863, %p864
      %p866 = scmp.ne.s32.totalorder %s854, %s855
      %p867 = scmp.eq.s32.totalorder %s101, 1
      %p868 = por %p866, %p867
      %p870 = scmp.ne.s32.totalorder %s855, %s869
      %p871 = scmp.eq.s32.totalorder %s101, 0
      %p872 = por %p870, %p871
      %s874 = sadd.s32 %s873, 1
      %p877 = scmp.eq.s32.totalorder %s95, 1
      %p878 = scmp.ne.s32.totalorder %s873, %s875
      %p879 = scmp.eq.s32.totalorder %s95, 0
      %p880 = por %p878, %p879
      %p881 = scmp.ne.s32.totalorder %s873, %s875
      %p882 = scmp.eq.s32.totalorder %s100, 1
      %p883 = por %p881, %p882
      %p884 = scmp.ne.s32.totalorder %s875, %s876
      %p885 = scmp.eq.s32.totalorder %s100, 0
      %p886 = por %p884, %p885
      %p887 = scmp.ne.s32.totalorder %s875, %s876
      %p888 = scmp.eq.s32.totalorder %s101, 1
      %p889 = por %p887, %p888
      %p891 = scmp.ne.s32.totalorder %s876, %s890
      %p892 = scmp.eq.s32.totalorder %s101, 0
      %p893 = por %p891, %p892
      %s895 = sadd.s32 %s894, 1
      %p898 = scmp.eq.s32.totalorder %s95, 1
      %p899 = scmp.ne.s32.totalorder %s894, %s896
      %p900 = scmp.eq.s32.totalorder %s95, 0
      %p901 = por %p899, %p900
      %p902 = scmp.ne.s32.totalorder %s894, %s896
      %p903 = scmp.eq.s32.totalorder %s100, 1
      %p904 = por %p902, %p903
      %p905 = scmp.ne.s32.totalorder %s896, %s897
      %p906 = scmp.eq.s32.totalorder %s100, 0
      %p907 = por %p905, %p906
      %p908 = scmp.ne.s32.totalorder %s896, %s897
      %p909 = scmp.eq.s32.totalorder %s101, 1
      %p910 = por %p908, %p909
      %p912 = scmp.ne.s32.totalorder %s897, %s911
      %p913 = scmp.eq.s32.totalorder %s101, 0
      %p914 = por %p912, %p913
      %s916 = sadd.s32 %s915, 1
      %p919 = scmp.eq.s32.totalorder %s95, 1
      %p920 = scmp.ne.s32.totalorder %s915, %s917
      %p921 = scmp.eq.s32.totalorder %s95, 0
      %p922 = por %p920, %p921
      %p923 = scmp.ne.s32.totalorder %s915, %s917
      %p924 = scmp.eq.s32.totalorder %s100, 1
      %p925 = por %p923, %p924
      %p926 = scmp.ne.s32.totalorder %s917, %s918
      %p927 = scmp.eq.s32.totalorder %s100, 0
      %p928 = por %p926, %p927
      %p929 = scmp.ne.s32.totalorder %s917, %s918
      %p930 = scmp.eq.s32.totalorder %s101, 1
      %p931 = por %p929, %p930
      %p933 = scmp.ne.s32.totalorder %s918, %s932
      %p934 = scmp.eq.s32.totalorder %s101, 0
      %p935 = por %p933, %p934
      %s937 = sadd.s32 %s936, 1
      %p940 = scmp.eq.s32.totalorder %s95, 1
      %p941 = scmp.ne.s32.totalorder %s936, %s938
      %p942 = scmp.eq.s32.totalorder %s95, 0
      %p943 = por %p941, %p942
      %p944 = scmp.ne.s32.totalorder %s936, %s938
      %p945 = scmp.eq.s32.totalorder %s100, 1
      %p946 = por %p944, %p945
      %p947 = scmp.ne.s32.totalorder %s938, %s939
      %p948 = scmp.eq.s32.totalorder %s100, 0
      %p949 = por %p947, %p948
      %p950 = scmp.ne.s32.totalorder %s938, %s939
      %p951 = scmp.eq.s32.totalorder %s101, 1
      %p952 = por %p950, %p951
      %p954 = scmp.ne.s32.totalorder %s939, %s953
      %p955 = scmp.eq.s32.totalorder %s101, 0
      %p956 = por %p954, %p955
      %s958 = sadd.s32 %s957, 1
      %p961 = scmp.eq.s32.totalorder %s95, 1
      %p962 = scmp.ne.s32.totalorder %s957, %s959
      %p963 = scmp.eq.s32.totalorder %s95, 0
      %p964 = por %p962, %p963
      %p965 = scmp.ne.s32.totalorder %s957, %s959
      %p966 = scmp.eq.s32.totalorder %s100, 1
      %p967 = por %p965, %p966
      %p968 = scmp.ne.s32.totalorder %s959, %s960
      %p969 = scmp.eq.s32.totalorder %s100, 0
      %p970 = por %p968, %p969
      %p971 = scmp.ne.s32.totalorder %s959, %s960
      %p972 = scmp.eq.s32.totalorder %s101, 1
      %p973 = por %p971, %p972
      %p975 = scmp.ne.s32.totalorder %s960, %s974
      %p976 = scmp.eq.s32.totalorder %s101, 0
      %p977 = por %p975, %p976
      %s979 = sadd.s32 %s978, 1
      %p982 = scmp.eq.s32.totalorder %s95, 1
      %p983 = scmp.ne.s32.totalorder %s978, %s980
      %p984 = scmp.eq.s32.totalorder %s95, 0
      %p985 = por %p983, %p984
      %p986 = scmp.ne.s32.totalorder %s978, %s980
      %p987 = scmp.eq.s32.totalorder %s100, 1
      %p988 = por %p986, %p987
      %p989 = scmp.ne.s32.totalorder %s980, %s981
      %p990 = scmp.eq.s32.totalorder %s100, 0
      %p991 = por %p989, %p990
      %p992 = scmp.ne.s32.totalorder %s980, %s981
      %p993 = scmp.eq.s32.totalorder %s101, 1
      %p994 = por %p992, %p993
      %p996 = scmp.ne.s32.totalorder %s981, %s995
      %p997 = scmp.eq.s32.totalorder %s101, 0
      %p998 = por %p996, %p997
      %s1000 = sadd.s32 %s999, 1
      %p1003 = scmp.eq.s32.totalorder %s95, 1
      %p1004 = scmp.ne.s32.totalorder %s999, %s1001
      %p1005 = scmp.eq.s32.totalorder %s95, 0
      %p1006 = por %p1004, %p1005
      %p1007 = scmp.ne.s32.totalorder %s999, %s1001
      %p1008 = scmp.eq.s32.totalorder %s100, 1
      %p1009 = por %p1007, %p1008
      %p1010 = scmp.ne.s32.totalorder %s1001, %s1002
      %p1011 = scmp.eq.s32.totalorder %s100, 0
      %p1012 = por %p1010, %p1011
      %p1013 = scmp.ne.s32.totalorder %s1001, %s1002
      %p1014 = scmp.eq.s32.totalorder %s101, 1
      %p1015 = por %p1013, %p1014
      %p1017 = scmp.ne.s32.totalorder %s1002, %s1016
      %p1018 = scmp.eq.s32.totalorder %s101, 0
      %p1019 = por %p1017, %p1018
      %s1020 = ssub.s32 %s95, %s102
      %p1021 = scmp.eq.s32.totalorder %s1020, 0
      %s1023 = sadd.s32 %s1022, 1
      %s1024 = scalar_select %p1021, %s1022, %s1023
      %p1027 = pneg %p1021
      %p1028 = scmp.eq.s32.totalorder %s95, 1
      %p1029 = por %p1027, %p1028
      %p1030 = scmp.ne.s32.totalorder %s1022, %s1025
      %p1031 = scmp.eq.s32.totalorder %s95, 0
      %p1032 = por %p1030, %p1031
      %p1033 = scmp.ne.s32.totalorder %s1022, %s1025
      %p1034 = scmp.eq.s32.totalorder %s100, 1
      %p1035 = por %p1033, %p1034
      %p1036 = scmp.ne.s32.totalorder %s1025, %s1026
      %p1037 = scmp.eq.s32.totalorder %s100, 0
      %p1038 = por %p1036, %p1037
      %p1039 = scmp.ne.s32.totalorder %s1025, %s1026
      %p1040 = scmp.eq.s32.totalorder %s101, 1
      %p1041 = por %p1039, %p1040
      %p1043 = scmp.ne.s32.totalorder %s1026, %s1042
      %p1044 = scmp.eq.s32.totalorder %s101, 0
      %p1045 = por %p1043, %p1044
      %p1046 = scmp.le.s32.totalorder 1, %s95
      %p1047 = scmp.lt.s32.totalorder %s95, 3
      %p1048 = pnand %p1046, %p1047
      %p1049 = pneg %p1048
      // Predicated region
      $region9: #{decoder_forward_fused.1} parent=5 // pred_check
        _
      $region10: #{decoder_forward_fused.1} parent=5 // pred_check_branch
        %1051 = sbr.rel (%p1048) target = $region12
      $region11: #{decoder_forward_fused.1} parent=5 // pred_region
        %s1052 = ssub.s32 %s95, 1
        // Predicated region
        $region13: #{decoder_forward_fused.1} parent=11 // pred_check
          %p1053 = pneg %p298
        $region14: #{decoder_forward_fused.1} parent=11 // pred_check_branch
          %1055 = sbr.rel (%p1053) target = $region16
        $region15: #{decoder_forward_fused.1} parent=11 // pred_region
          %s1057 = ssub.s32 16, 16
          %1058 = vsyncadd [#allocation7], %s1057
          %s1060 = sshll.u32 %s15, 4
          %s1061 = int_to_ptr.vmem [resolvable:$true] %s1060
          %1063 = dma.vmem_to_smem %s1061, 16, [#allocation5], [#allocation7]
        $region16: #{decoder_forward_fused.1} parent=11 // pred_fallthru
          _
        // Predicated region
        $region17: #{decoder_forward_fused.1} parent=11 // pred_check
          %p1064 = pneg %p319
        $region18: #{decoder_forward_fused.1} parent=11 // pred_check_branch
          %1066 = sbr.rel (%p1064) target = $region20
        $region19: #{decoder_forward_fused.1} parent=11 // pred_region
          _
        $region20: #{decoder_forward_fused.1} parent=11 // pred_fallthru
          _
        // Predicated region
        $region21: #{decoder_forward_fused.1} parent=11 // pred_check
          %p1067 = pneg %p340
        $region22: #{decoder_forward_fused.1} parent=11 // pred_check_branch
          %1069 = sbr.rel (%p1067) target = $region24
        $region23: #{decoder_forward_fused.1} parent=11 // pred_region
          _
        $region24: #{decoder_forward_fused.1} parent=11 // pred_fallthru
          _
        // Predicated region
        $region25: #{decoder_forward_fused.1} parent=11 // pred_check
          %p1070 = pneg %p361
        $region26: #{decoder_forward_fused.1} parent=11 // pred_check_branch
          %1072 = sbr.rel (%p1070) target = $region28
        $region27: #{decoder_forward_fused.1} parent=11 // pred_region
          _
        $region28: #{decoder_forward_fused.1} parent=11 // pred_fallthru
          _
        // Predicated region
        $region29: #{decoder_forward_fused.1} parent=11 // pred_check
          %p1073 = pneg %p382
        $region30: #{decoder_forward_fused.1} parent=11 // pred_check_branch
          %1075 = sbr.rel (%p1073) target = $region32
        $region31: #{decoder_forward_fused.1} parent=11 // pred_region
          _
        $region32: #{decoder_forward_fused.1} parent=11 // pred_fallthru
          _
        // Predicated region
        $region33: #{decoder_forward_fused.1} parent=11 // pred_check
          %p1076 = pneg %p403
        $region34: #{decoder_forward_fused.1} parent=11 // pred_check_branch
          %1078 = sbr.rel (%p1076) target = $region36
        $region35: #{decoder_forward_fused.1} parent=11 // pred_region
          _
        $region36: #{decoder_forward_fused.1} parent=11 // pred_fallthru
          _
        // Predicated region
        $region37: #{decoder_forward_fused.1} parent=11 // pred_check
          %p1079 = pneg %p424
        $region38: #{decoder_forward_fused.1} parent=11 // pred_check_branch
          %1081 = sbr.rel (%p1079) target = $region40
        $region39: #{decoder_forward_fused.1} parent=11 // pred_region
          _
        $region40: #{decoder_forward_fused.1} parent=11 // pred_fallthru
          _
        // Predicated region
        $region41: #{decoder_forward_fused.1} parent=11 // pred_check
          %p1082 = pneg %p445
        $region42: #{decoder_forward_fused.1} parent=11 // pred_check_branch
          %1084 = sbr.rel (%p1082) target = $region44
        $region43: #{decoder_forward_fused.1} parent=11 // pred_region
          _
        $region44: #{decoder_forward_fused.1} parent=11 // pred_fallthru
          _
        // Predicated region
        $region45: #{decoder_forward_fused.1} parent=11 // pred_check
          %p1085 = pneg %p466
        $region46: #{decoder_forward_fused.1} parent=11 // pred_check_branch
          %1087 = sbr.rel (%p1085) target = $region48
        $region47: #{decoder_forward_fused.1} parent=11 // pred_region
          _
        $region48: #{decoder_forward_fused.1} parent=11 // pred_fallthru
          _
        // Predicated region
        $region49: #{decoder_forward_fused.1} parent=11 // pred_check
          %p1088 = pneg %p487
        $region50: #{decoder_forward_fused.1} parent=11 // pred_check_branch
          %1090 = sbr.rel (%p1088) target = $region52
        $region51: #{decoder_forward_fused.1} parent=11 // pred_region
          _
        $region52: #{decoder_forward_fused.1} parent=11 // pred_fallthru
          _
        // Predicated region
        $region53: #{decoder_forward_fused.1} parent=11 // pred_check
          %p1091 = pneg %p508
        $region54: #{decoder_forward_fused.1} parent=11 // pred_check_branch
          %1093 = sbr.rel (%p1091) target = $region56
        $region55: #{decoder_forward_fused.1} parent=11 // pred_region
          _
        $region56: #{decoder_forward_fused.1} parent=11 // pred_fallthru
          _
        // Predicated region
        $region57: #{decoder_forward_fused.1} parent=11 // pred_check
          %p1094 = pneg %p529
        $region58: #{decoder_forward_fused.1} parent=11 // pred_check_branch
          %1096 = sbr.rel (%p1094) target = $region60
        $region59: #{decoder_forward_fused.1} parent=11 // pred_region
          _
        $region60: #{decoder_forward_fused.1} parent=11 // pred_fallthru
          _
        // Predicated region
        $region61: #{decoder_forward_fused.1} parent=11 // pred_check
          %p1097 = pneg %p550
        $region62: #{decoder_forward_fused.1} parent=11 // pred_check_branch
          %1099 = sbr.rel (%p1097) target = $region64
        $region63: #{decoder_forward_fused.1} parent=11 // pred_region
          _
        $region64: #{decoder_forward_fused.1} parent=11 // pred_fallthru
          _
        // Predicated region
        $region65: #{decoder_forward_fused.1} parent=11 // pred_check
          %p1100 = pneg %p571
        $region66: #{decoder_forward_fused.1} parent=11 // pred_check_branch
          %1102 = sbr.rel (%p1100) target = $region68
        $region67: #{decoder_forward_fused.1} parent=11 // pred_region
          _
        $region68: #{decoder_forward_fused.1} parent=11 // pred_fallthru
          _
        // Predicated region
        $region69: #{decoder_forward_fused.1} parent=11 // pred_check
          %p1103 = pneg %p592
        $region70: #{decoder_forward_fused.1} parent=11 // pred_check_branch
          %1105 = sbr.rel (%p1103) target = $region72
        $region71: #{decoder_forward_fused.1} parent=11 // pred_region
          _
        $region72: #{decoder_forward_fused.1} parent=11 // pred_fallthru
          _
        // Predicated region
        $region73: #{decoder_forward_fused.1} parent=11 // pred_check
          %p1106 = pneg %p613
        $region74: #{decoder_forward_fused.1} parent=11 // pred_check_branch
          %1108 = sbr.rel (%p1106) target = $region76
        $region75: #{decoder_forward_fused.1} parent=11 // pred_region
          _
        $region76: #{decoder_forward_fused.1} parent=11 // pred_fallthru
          _
        // Predicated region
        $region77: #{decoder_forward_fused.1} parent=11 // pred_check
          %p1109 = pneg %p634
        $region78: #{decoder_forward_fused.1} parent=11 // pred_check_branch
          %1111 = sbr.rel (%p1109) target = $region80
        $region79: #{decoder_forward_fused.1} parent=11 // pred_region
          _
        $region80: #{decoder_forward_fused.1} parent=11 // pred_fallthru
          _
        // Predicated region
        $region81: #{decoder_forward_fused.1} parent=11 // pred_check
          %p1112 = pneg %p655
        $region82: #{decoder_forward_fused.1} parent=11 // pred_check_branch
          %1114 = sbr.rel (%p1112) target = $region84
        $region83: #{decoder_forward_fused.1} parent=11 // pred_region
          _
        $region84: #{decoder_forward_fused.1} parent=11 // pred_fallthru
          _
        // Predicated region
        $region85: #{decoder_forward_fused.1} parent=11 // pred_check
          %p1115 = pneg %p676
        $region86: #{decoder_forward_fused.1} parent=11 // pred_check_branch
          %1117 = sbr.rel (%p1115) target = $region88
        $region87: #{decoder_forward_fused.1} parent=11 // pred_region
          _
        $region88: #{decoder_forward_fused.1} parent=11 // pred_fallthru
          _
        // Predicated region
        $region89: #{decoder_forward_fused.1} parent=11 // pred_check
          %p1118 = pneg %p697
        $region90: #{decoder_forward_fused.1} parent=11 // pred_check_branch
          %1120 = sbr.rel (%p1118) target = $region92
        $region91: #{decoder_forward_fused.1} parent=11 // pred_region
          _
        $region92: #{decoder_forward_fused.1} parent=11 // pred_fallthru
          _
        // Predicated region
        $region93: #{decoder_forward_fused.1} parent=11 // pred_check
          %p1121 = pneg %p718
        $region94: #{decoder_forward_fused.1} parent=11 // pred_check_branch
          %1123 = sbr.rel (%p1121) target = $region96
        $region95: #{decoder_forward_fused.1} parent=11 // pred_region
          _
        $region96: #{decoder_forward_fused.1} parent=11 // pred_fallthru
          _
        // Predicated region
        $region97: #{decoder_forward_fused.1} parent=11 // pred_check
          %p1124 = pneg %p739
        $region98: #{decoder_forward_fused.1} parent=11 // pred_check_branch
          %1126 = sbr.rel (%p1124) target = $region100
        $region99: #{decoder_forward_fused.1} parent=11 // pred_region
          _
        $region100: #{decoder_forward_fused.1} parent=11 // pred_fallthru
          _
        // Predicated region
        $region101: #{decoder_forward_fused.1} parent=11 // pred_check
          %p1127 = pneg %p760
        $region102: #{decoder_forward_fused.1} parent=11 // pred_check_branch
          %1129 = sbr.rel (%p1127) target = $region104
        $region103: #{decoder_forward_fused.1} parent=11 // pred_region
          _
        $region104: #{decoder_forward_fused.1} parent=11 // pred_fallthru
          _
        // Predicated region
        $region105: #{decoder_forward_fused.1} parent=11 // pred_check
          %p1130 = pneg %p781
        $region106: #{decoder_forward_fused.1} parent=11 // pred_check_branch
          %1132 = sbr.rel (%p1130) target = $region108
        $region107: #{decoder_forward_fused.1} parent=11 // pred_region
          _
        $region108: #{decoder_forward_fused.1} parent=11 // pred_fallthru
          _
        // Predicated region
        $region109: #{decoder_forward_fused.1} parent=11 // pred_check
          %p1133 = pneg %p802
        $region110: #{decoder_forward_fused.1} parent=11 // pred_check_branch
          %1135 = sbr.rel (%p1133) target = $region112
        $region111: #{decoder_forward_fused.1} parent=11 // pred_region
          _
        $region112: #{decoder_forward_fused.1} parent=11 // pred_fallthru
          _
        // Predicated region
        $region113: #{decoder_forward_fused.1} parent=11 // pred_check
          %p1136 = pneg %p823
        $region114: #{decoder_forward_fused.1} parent=11 // pred_check_branch
          %1138 = sbr.rel (%p1136) target = $region116
        $region115: #{decoder_forward_fused.1} parent=11 // pred_region
          _
        $region116: #{decoder_forward_fused.1} parent=11 // pred_fallthru
          _
        // Predicated region
        $region117: #{decoder_forward_fused.1} parent=11 // pred_check
          %p1139 = pneg %p844
        $region118: #{decoder_forward_fused.1} parent=11 // pred_check_branch
          %1141 = sbr.rel (%p1139) target = $region120
        $region119: #{decoder_forward_fused.1} parent=11 // pred_region
          _
        $region120: #{decoder_forward_fused.1} parent=11 // pred_fallthru
          _
        // Predicated region
        $region121: #{decoder_forward_fused.1} parent=11 // pred_check
          %p1142 = pneg %p865
        $region122: #{decoder_forward_fused.1} parent=11 // pred_check_branch
          %1144 = sbr.rel (%p1142) target = $region124
        $region123: #{decoder_forward_fused.1} parent=11 // pred_region
          _
        $region124: #{decoder_forward_fused.1} parent=11 // pred_fallthru
          _
        // Predicated region
        $region125: #{decoder_forward_fused.1} parent=11 // pred_check
          %p1145 = pneg %p886
        $region126: #{decoder_forward_fused.1} parent=11 // pred_check_branch
          %1147 = sbr.rel (%p1145) target = $region128
        $region127: #{decoder_forward_fused.1} parent=11 // pred_region
          _
        $region128: #{decoder_forward_fused.1} parent=11 // pred_fallthru
          _
        // Predicated region
        $region129: #{decoder_forward_fused.1} parent=11 // pred_check
          %p1148 = pneg %p907
        $region130: #{decoder_forward_fused.1} parent=11 // pred_check_branch
          %1150 = sbr.rel (%p1148) target = $region132
        $region131: #{decoder_forward_fused.1} parent=11 // pred_region
          _
        $region132: #{decoder_forward_fused.1} parent=11 // pred_fallthru
          _
        // Predicated region
        $region133: #{decoder_forward_fused.1} parent=11 // pred_check
          %p1151 = pneg %p928
        $region134: #{decoder_forward_fused.1} parent=11 // pred_check_branch
          %1153 = sbr.rel (%p1151) target = $region136
        $region135: #{decoder_forward_fused.1} parent=11 // pred_region
          _
        $region136: #{decoder_forward_fused.1} parent=11 // pred_fallthru
          _
        // Predicated region
        $region137: #{decoder_forward_fused.1} parent=11 // pred_check
          %p1154 = pneg %p949
        $region138: #{decoder_forward_fused.1} parent=11 // pred_check_branch
          %1156 = sbr.rel (%p1154) target = $region140
        $region139: #{decoder_forward_fused.1} parent=11 // pred_region
          _
        $region140: #{decoder_forward_fused.1} parent=11 // pred_fallthru
          _
        // Predicated region
        $region141: #{decoder_forward_fused.1} parent=11 // pred_check
          %p1157 = pneg %p970
        $region142: #{decoder_forward_fused.1} parent=11 // pred_check_branch
          %1159 = sbr.rel (%p1157) target = $region144
        $region143: #{decoder_forward_fused.1} parent=11 // pred_region
          _
        $region144: #{decoder_forward_fused.1} parent=11 // pred_fallthru
          _
        // Predicated region
        $region145: #{decoder_forward_fused.1} parent=11 // pred_check
          %p1160 = pneg %p991
        $region146: #{decoder_forward_fused.1} parent=11 // pred_check_branch
          %1162 = sbr.rel (%p1160) target = $region148
        $region147: #{decoder_forward_fused.1} parent=11 // pred_region
          _
        $region148: #{decoder_forward_fused.1} parent=11 // pred_fallthru
          _
        // Predicated region
        $region149: #{decoder_forward_fused.1} parent=11 // pred_check
          %p1163 = pneg %p1012
        $region150: #{decoder_forward_fused.1} parent=11 // pred_check_branch
          %1165 = sbr.rel (%p1163) target = $region152
        $region151: #{decoder_forward_fused.1} parent=11 // pred_region
          _
        $region152: #{decoder_forward_fused.1} parent=11 // pred_fallthru
          _
      $region12: #{decoder_forward_fused.1} parent=5 // pred_fallthru
        _
      %p1166 = scmp.lt.s32.totalorder %s95, 2
      // Predicated region
      $region153: #{decoder_forward_fused.1} parent=5 // pred_check
        %p1167 = pneg %p1166
      $region154: #{decoder_forward_fused.1} parent=5 // pred_check_branch
        %1169 = sbr.rel (%p1167) target = $region156
      $region155: #{decoder_forward_fused.1} parent=5 // pred_region
        // Predicated region
        $region157: #{decoder_forward_fused.1} parent=155 // pred_check
          %p1170 = pneg %p115
        $region158: #{decoder_forward_fused.1} parent=155 // pred_check_branch
          %1172 = sbr.rel (%p1170) target = $region160
        $region159: #{decoder_forward_fused.1} parent=155 // pred_region
          %p1173 = scmp.lt.s32.totalorder %s95, 1
          %s1174 = scalar_select %p1173, %s95, 1
          %s1175 = smul.addr %s1174, 8
          %s1176 = scalar_lea.vmem %s1, %s1175
        $region160: #{decoder_forward_fused.1} parent=155 // pred_fallthru
          _
        // Predicated region
        $region161: #{decoder_forward_fused.1} parent=155 // pred_check
          %p1177 = pneg %p141
        $region162: #{decoder_forward_fused.1} parent=155 // pred_check_branch
          %1179 = sbr.rel (%p1177) target = $region164
        $region163: #{decoder_forward_fused.1} parent=155 // pred_region
          %p1180 = scmp.lt.s32.totalorder %s95, 1
          %s1181 = scalar_select %p1180, %s95, 1
          %s1182 = smul.addr %s1181, 2
          %s1183 = smul.addr %s1182, 8
          %s1184 = scalar_lea.vmem %s3, %s1183
        $region164: #{decoder_forward_fused.1} parent=155 // pred_fallthru
          _
        // Predicated region
        $region165: #{decoder_forward_fused.1} parent=155 // pred_check
          %p1185 = pneg %p167
        $region166: #{decoder_forward_fused.1} parent=155 // pred_check_branch
          %1187 = sbr.rel (%p1185) target = $region168
        $region167: #{decoder_forward_fused.1} parent=155 // pred_region
          %p1188 = scmp.lt.s32.totalorder %s95, 1
          %s1189 = scalar_select %p1188, %s95, 1
          %s1190 = smul.addr %s1189, 2
          %s1191 = smul.addr %s1190, 8
          %s1192 = scalar_lea.vmem %s5, %s1191
        $region168: #{decoder_forward_fused.1} parent=155 // pred_fallthru
          _
        // Predicated region
        $region169: #{decoder_forward_fused.1} parent=155 // pred_check
          %p1193 = pneg %p193
        $region170: #{decoder_forward_fused.1} parent=155 // pred_check_branch
          %1195 = sbr.rel (%p1193) target = $region172
        $region171: #{decoder_forward_fused.1} parent=155 // pred_region
          %p1196 = scmp.lt.s32.totalorder %s95, 1
          %s1197 = scalar_select %p1196, %s95, 1
          %s1198 = smul.addr %s1197, 32
          %s1199 = smul.addr %s1198, 8
          %s1200 = scalar_lea.vmem %s7, %s1199
        $region172: #{decoder_forward_fused.1} parent=155 // pred_fallthru
          _
        // Predicated region
        $region173: #{decoder_forward_fused.1} parent=155 // pred_check
          %p1201 = pneg %p219
        $region174: #{decoder_forward_fused.1} parent=155 // pred_check_branch
          %1203 = sbr.rel (%p1201) target = $region176
        $region175: #{decoder_forward_fused.1} parent=155 // pred_region
          %p1204 = scmp.lt.s32.totalorder %s95, 1
          %s1205 = scalar_select %p1204, %s95, 1
          %s1206 = smul.addr %s1205, 4
          %s1207 = scalar_lea.vmem %s9, %s1206
        $region176: #{decoder_forward_fused.1} parent=155 // pred_fallthru
          _
        // Predicated region
        $region177: #{decoder_forward_fused.1} parent=155 // pred_check
          %p1208 = pneg %p245
        $region178: #{decoder_forward_fused.1} parent=155 // pred_check_branch
          %1210 = sbr.rel (%p1208) target = $region180
        $region179: #{decoder_forward_fused.1} parent=155 // pred_region
          %p1211 = scmp.lt.s32.totalorder %s95, 1
          %s1212 = scalar_select %p1211, %s95, 1
          %s1213 = smul.addr %s1212, 32
          %s1214 = smul.addr %s1213, 8
          %s1215 = scalar_lea.vmem %s11, %s1214
        $region180: #{decoder_forward_fused.1} parent=155 // pred_fallthru
          _
        // Predicated region
        $region181: #{decoder_forward_fused.1} parent=155 // pred_check
          %p1216 = pneg %p271
        $region182: #{decoder_forward_fused.1} parent=155 // pred_check_branch
          %1218 = sbr.rel (%p1216) target = $region184
        $region183: #{decoder_forward_fused.1} parent=155 // pred_region
          %p1219 = scmp.lt.s32.totalorder %s95, 1
          %s1220 = scalar_select %p1219, %s95, 1
          %s1221 = smul.addr %s1220, 4
          %s1222 = scalar_lea.vmem %s13, %s1221
        $region184: #{decoder_forward_fused.1} parent=155 // pred_fallthru
          _
      $region156: #{decoder_forward_fused.1} parent=5 // pred_fallthru
        _
      %p1223 = scmp.le.s32.totalorder 1, %s95
      %p1224 = scmp.lt.s32.totalorder %s95, 3
      %p1225 = pnand %p1223, %p1224
      %p1226 = pneg %p1225
      // Predicated region
      $region185: #{decoder_forward_fused.1} parent=5 // pred_check
        _
      $region186: #{decoder_forward_fused.1} parent=5 // pred_check_branch
        %1228 = sbr.rel (%p1225) target = $region188
      $region187: #{decoder_forward_fused.1} parent=5 // pred_region
        %s1229 = ssub.s32 %s95, 1
        // Predicated region
        $region189: #{decoder_forward_fused.1} parent=187 // pred_check
          %p1230 = pneg %p298
        $region190: #{decoder_forward_fused.1} parent=187 // pred_check_branch
          %1232 = sbr.rel (%p1230) target = $region192
        $region191: #{decoder_forward_fused.1} parent=187 // pred_region
          %1233 = dma.done [#allocation7], 16
        $region192: #{decoder_forward_fused.1} parent=187 // pred_fallthru
          _
        %1234 = sfence
        %p1235 = scmp.lt.s32.totalorder %s100, 1
        %s1236 = scalar_select %p1235, %s100, 1
        %s1237 = smul.addr %s1236, 8
        %s1238 = scalar_lea.vmem %s1, %s1237
        %p1239 = pneg %p121
        %p1240 = pneg %p118
        %p1241 = scmp.lt.s32.totalorder %s100, 1
        %s1242 = scalar_select %p1241, %s100, 1
        %s1243 = smul.addr %s1242, 2
        %s1244 = smul.addr %s1243, 8
        %s1245 = scalar_lea.vmem %s3, %s1244
        %p1246 = pneg %p147
        %p1247 = pneg %p144
        %p1248 = scmp.lt.s32.totalorder %s100, 1
        %s1249 = scalar_select %p1248, %s100, 1
        %s1250 = smul.addr %s1249, 2
        %s1251 = smul.addr %s1250, 8
        %s1252 = scalar_lea.vmem %s5, %s1251
        %p1253 = pneg %p173
        %p1254 = pneg %p170
        %p1255 = scmp.lt.s32.totalorder %s100, 1
        %s1256 = scalar_select %p1255, %s100, 1
        %s1257 = smul.addr %s1256, 32
        %s1258 = smul.addr %s1257, 8
        %s1259 = scalar_lea.vmem %s7, %s1258
        %p1260 = pneg %p199
        %p1261 = pneg %p196
        %p1262 = scmp.lt.s32.totalorder %s100, 1
        %s1263 = scalar_select %p1262, %s100, 1
        %s1264 = smul.addr %s1263, 4
        %s1265 = scalar_lea.vmem %s9, %s1264
        %p1266 = pneg %p225
        %p1267 = pneg %p222
        %p1268 = scmp.lt.s32.totalorder %s100, 1
        %s1269 = scalar_select %p1268, %s100, 1
        %s1270 = smul.addr %s1269, 32
        %s1271 = smul.addr %s1270, 8
        %s1272 = scalar_lea.vmem %s11, %s1271
        %p1273 = pneg %p251
        %p1274 = pneg %p248
        %p1275 = scmp.lt.s32.totalorder %s100, 1
        %s1276 = scalar_select %p1275, %s100, 1
        %s1277 = smul.addr %s1276, 4
        %s1278 = scalar_lea.vmem %s13, %s1277
        %p1279 = pneg %p277
        %p1280 = pneg %p274
        %p1281 = pneg %p298
        %p1282 = pneg %p295
        %p1283 = pneg %p319
        %p1284 = pneg %p316
        %p1285 = pneg %p340
        %p1286 = pneg %p337
        %p1287 = pneg %p361
        %p1288 = pneg %p358
        %p1289 = pneg %p382
        %p1290 = pneg %p379
        %p1291 = pneg %p403
        %p1292 = pneg %p400
        %p1293 = pneg %p424
        %p1294 = pneg %p421
        %p1295 = pneg %p445
        %p1296 = pneg %p442
        %p1297 = pneg %p466
        %p1298 = pneg %p463
        %p1299 = pneg %p487
        %p1300 = pneg %p484
        %p1301 = pneg %p508
        %p1302 = pneg %p505
        %p1303 = pneg %p529
        %p1304 = pneg %p526
        %p1305 = pneg %p550
        %p1306 = pneg %p547
        %p1307 = pneg %p571
        %p1308 = pneg %p568
        %p1309 = pneg %p592
        %p1310 = pneg %p589
        %p1311 = pneg %p613
        %p1312 = pneg %p610
        %p1313 = pneg %p634
        %p1314 = pneg %p631
        %p1315 = pneg %p655
        %p1316 = pneg %p652
        %p1317 = pneg %p676
        %p1318 = pneg %p673
        %p1319 = pneg %p697
        %p1320 = pneg %p694
        %p1321 = pneg %p718
        %p1322 = pneg %p715
        %p1323 = pneg %p739
        %p1324 = pneg %p736
        %p1325 = pneg %p760
        %p1326 = pneg %p757
        %p1327 = pneg %p781
        %p1328 = pneg %p778
        %p1329 = pneg %p802
        %p1330 = pneg %p799
        %p1331 = pneg %p823
        %p1332 = pneg %p820
        %p1333 = pneg %p844
        %p1334 = pneg %p841
        %p1335 = pneg %p865
        %p1336 = pneg %p862
        %p1337 = pneg %p886
        %p1338 = pneg %p883
        %p1339 = pneg %p907
        %p1340 = pneg %p904
        %p1341 = pneg %p928
        %p1342 = pneg %p925
        %p1343 = pneg %p949
        %p1344 = pneg %p946
        %p1345 = pneg %p970
        %p1346 = pneg %p967
        %p1347 = pneg %p991
        %p1348 = pneg %p988
        %p1349 = pneg %p1012
        %p1350 = pneg %p1009
        %p1351 = pneg %p1038
        %p1352 = pneg %p1035
        %s1353 = sand.u32 %s1025, 1
        %s1354 = scalar_lea.sflag [#allocation6], %s1353
        %s1355 = sand.u32 %s1025, 1
        %s1356 = scalar_lea.vmem [#allocation8], %s1355
        %p1357 = scmp.lt.s32.totalorder %s100, 1
        %s1358 = scalar_select %p1357, %s100, 1
        %s1359 = smul.addr %s1358, 8
        %s1360 = scalar_lea.vmem %s1, %s1359
        %p1361 = scmp.lt.s32.totalorder %s100, 1
        %s1362 = scalar_select %p1361, %s100, 1
        %s1363 = smul.addr %s1362, 2
        %s1364 = smul.addr %s1363, 8
        %s1365 = scalar_lea.vmem %s3, %s1364
        %p1366 = scmp.lt.s32.totalorder %s100, 1
        %s1367 = scalar_select %p1366, %s100, 1
        %s1368 = smul.addr %s1367, 2
        %s1369 = smul.addr %s1368, 8
        %s1370 = scalar_lea.vmem %s5, %s1369
        %p1371 = scmp.lt.s32.totalorder %s100, 1
        %s1372 = scalar_select %p1371, %s100, 1
        %s1373 = smul.addr %s1372, 32
        %s1374 = smul.addr %s1373, 8
        %s1375 = scalar_lea.vmem %s7, %s1374
        %p1376 = scmp.lt.s32.totalorder %s100, 1
        %s1377 = scalar_select %p1376, %s100, 1
        %s1378 = smul.addr %s1377, 4
        %s1379 = scalar_lea.vmem %s9, %s1378
        %p1380 = scmp.lt.s32.totalorder %s100, 1
        %s1381 = scalar_select %p1380, %s100, 1
        %s1382 = smul.addr %s1381, 32
        %s1383 = smul.addr %s1382, 8
        %s1384 = scalar_lea.vmem %s11, %s1383
        %p1385 = scmp.lt.s32.totalorder %s100, 1
        %s1386 = scalar_select %p1385, %s100, 1
        %s1387 = smul.addr %s1386, 4
        %s1388 = scalar_lea.vmem %s13, %s1387
        %v1389 = vld [vmem:[%s1360] sm:$0xff]
        %s1390 = sld [smem:[#allocation5]]
        %s1391 = sld [smem:[#allocation5 + $0x1]]
        %vm1392 = vcmask 261120
        %v1393 = vsel %vm1392, %v1389, 0.0
        %v1394 = vrot.slane %v1393, 4
        %v1395 = vadd.f32 %v1393, %v1394
        %v1396 = vrot.slane %v1395, 2
        %v1397 = vadd.f32 %v1395, %v1396
        %v1398 = vrot.slane %v1397, 1
        %v1399 = vadd.f32 %v1397, %v1398
        %v1400 = vrcp.pop 8.0
        %v1401 = vmul.f32 %v1399, %v1400
        %v1402 = vld [vmem:[%s21] sm:$0xff]
        %v1403 = vld [vmem:[%s21 + $0x8] sm:$0xff]
        %v1404 = vld [vmem:[%s21 + $0x10] sm:$0xff]
        %v1405 = vld [vmem:[%s21 + $0x18] sm:$0xff]
        %v1407 = vsel %vm1392, %v1401, 0
        %1409 = vmatprep.subr.mxu0 0.0
        %1410 = vmatpush1.msra.mxu0 %v1402
        %1411 = vmatprep.subr.mxu0 0.0
        %1412 = vmatpush1.msra.mxu0 %v1403
        %1413 = vmatprep.subr.mxu0 0.0
        %1414 = vmatpush1.msra.mxu0 %v1404
        %1415 = vmatprep.subr.mxu0 0.0
        %1416 = vmatpush1.msra.mxu0 %v1405
        %1417 = vmatprep.subr.mxu0 0.0
        %1418 = vmatpush1.msra.mxu0 0.0
        %1419 = vmatprep.subr.mxu0 0.0
        %1420 = vmatpush1.msra.mxu0 0.0
        %1421 = vmatprep.subr.mxu0 0.0
        %1422 = vmatpush1.msra.mxu0 0.0
        %1423 = vmatprep.subr.mxu0 0.0
        %1424 = vmatpush1.msra.mxu0 0.0
        %1425 = vmatprep.subr.mxu0 0.0
        %1426 = vmatpush1.msra.mxu0 0.0
        %1427 = vmatprep.subr.mxu0 0.0
        %1428 = vmatpush1.msra.mxu0 0.0
        %1429 = vmatprep.subr.mxu0 0.0
        %1430 = vmatpush1.msra.mxu0 0.0
        %1431 = vmatprep.subr.mxu0 0.0
        %1432 = vmatpush1.msra.mxu0 0.0
        %1433 = vmatprep.subr.mxu0 0.0
        %1434 = vmatpush1.msra.mxu0 0.0
        %1435 = vmatprep.subr.mxu0 0.0
        %1436 = vmatpush1.msra.mxu0 0.0
        %1437 = vmatprep.subr.mxu0 0.0
        %1438 = vmatpush1.msra.mxu0 0.0
        %1439 = vmatprep.subr.mxu0 0.0
        %1440 = vmatpush1.msra.mxu0 0.0
        %1441 = vmatprep.subr.mxu0 0.0
        %1442 = vmatpush1.msra.mxu0 0.0
        %1443 = vmatprep.subr.mxu0 0.0
        %1444 = vmatpush1.msra.mxu0 0.0
        %1445 = vmatprep.subr.mxu0 0.0
        %1446 = vmatpush1.msra.mxu0 0.0
        %1447 = vmatprep.subr.mxu0 0.0
        %1448 = vmatpush1.msra.mxu0 0.0
        %1449 = vmatprep.subr.mxu0 0.0
        %1450 = vmatpush1.msra.mxu0 0.0
        %1451 = vmatprep.subr.mxu0 0.0
        %1452 = vmatpush1.msra.mxu0 0.0
        %1453 = vmatprep.subr.mxu0 0.0
        %1454 = vmatpush1.msra.mxu0 0.0
        %1455 = vmatprep.subr.mxu0 0.0
        %1456 = vmatpush1.msra.mxu0 0.0
        %1457 = vmatprep.subr.mxu0 0.0
        %1458 = vmatpush1.msra.mxu0 0.0
        %1459 = vmatprep.subr.mxu0 0.0
        %1460 = vmatpush1.msra.mxu0 0.0
        %1461 = vmatprep.subr.mxu0 0.0
        %1462 = vmatpush1.msra.mxu0 0.0
        %1463 = vmatprep.subr.mxu0 0.0
        %1464 = vmatpush1.msra.mxu0 0.0
        %1465 = vmatprep.subr.mxu0 0.0
        %1466 = vmatpush1.msra.mxu0 0.0
        %1467 = vmatprep.subr.mxu0 0.0
        %1468 = vmatpush1.msra.mxu0 0.0
        %1469 = vmatprep.subr.mxu0 0.0
        %1470 = vmatpush1.msra.mxu0 0.0
        %1471 = vmatprep.subr.mxu0 0.0
        %1472 = vmatpush1.msra.mxu0 0.0
        %1473 = vmatprep.mubr.f32.mxu0 0.0
        %1474 = vmatmul.mubr.f32.gmra.mrb[0].mxu0 %v1407
        %v1475 = vpop.f32.mrb[0].mxu0
        %v1476 = vadd.f32 0.0, %v1475
        %v1477 = vpop.f32.mrb[0].mxu0
        %1478 = vdwg.mxu0
        %v1479 = vlaneseq
        %v1480 = vshrl.u32 %v1479, 7
        %v1481 = vsub.s32 0, %v1480
        %v1482 = vrot.slane %v1476, %v1481
        %v1483 = vmul.f32 %v1389, %v1482
        %v1484 = vsel %vm1392, %v1483, 0.0
        %1485 = vadd.xlane.f32.xlu0 %v1484
        %v1486 = vpop.xlane.xlu0 %1485
        %vm1487 = vcmask 7168
        %v1488 = vsel %vm1487, %v1486, 0.0
        %1489 = vadd.xlane.f32.xlu0 %v1488
        %v1490 = vpop.xlane.xlu0 %1489
        %v1491 = vrot.slane %v1490, 4
        %v1492 = vadd.f32 %v1490, %v1491
        %v1493 = vrot.slane %v1492, 2
        %v1494 = vadd.f32 %v1492, %v1493
        %v1495 = vrot.slane %v1494, 1
        %v1496 = vadd.f32 %v1494, %v1495
        %s1497 = vtos %v1496
        %v1498 = vstv %s1497
        %v1499 = vmul.f32 %v1498, %v1400
        %v1500 = vsub.f32 %v1486, %v1499
        %v1501 = vmul.f32 %v1500, %v1500
        %v1502 = vsel %vm1487, %v1501, 0.0
        %1503 = vadd.xlane.f32.xlu0 %v1502
        %v1504 = vpop.xlane.xlu0 %1503
        %v1505 = vrot.slane %v1504, 4
        %v1506 = vadd.f32 %v1504, %v1505
        %v1507 = vrot.slane %v1506, 2
        %v1508 = vadd.f32 %v1506, %v1507
        %v1509 = vrot.slane %v1508, 1
        %v1510 = vadd.f32 %v1508, %v1509
        %s1511 = vtos %v1510
        %v1512 = vstv %s1511
        %v1513 = vmul.f32 %v1512, %v1400
        %v1514 = vrsqrt.pop %v1513
        %v1515 = vmul.f32 %v1513, %v1514
        %vm1516 = vcmp.eq.f32.partialorder %v1513, inf
        %v1517 = vsel %vm1516, %v1513, %v1515
        %vm1518 = vcmp.eq.f32.partialorder %v1513, 0.0
        %v1519 = vand.u32 %v1513, 2147483648
        %v1520 = vsel %vm1518, %v1519, %v1517
        %v1521 = vstv %s1390
        %v1522 = vmul.f32 %v1521, %v1500
        %v1523 = vadd.f32 %v1520, 1e-05
        %v1524 = vrcp.pop %v1523
        %v1525 = vmul.f32 %v1522, %v1524
        %v1526 = vstv %s1391
        %v1527 = vadd.f32 %v1525, %v1526
        %v1528 = vmul.f32 %v1527, %v1482
        %v1529 = vadd.f32 %v1389, %v1528
        %v1530 = vld [vmem:[%s1365] sm:$0xff]
        %v1531 = vld [vmem:[%s1365 + $0x8] sm:$0xff]
        %s1532 = sld [smem:[#allocation5 + $0x2]]
        %s1533 = sld [smem:[#allocation5 + $0x3]]
        %v1534 = vsel %vm1392, %v1530, 0.0
        %v1535 = vsel %vm1392, %v1531, 0.0
        %v1536 = vadd.f32 %v1534, %v1535
        %v1537 = vrot.slane %v1536, 4
        %v1538 = vadd.f32 %v1536, %v1537
        %v1539 = vrot.slane %v1538, 2
        %v1540 = vadd.f32 %v1538, %v1539
        %v1541 = vrot.slane %v1540, 1
        %v1542 = vadd.f32 %v1540, %v1541
        %v1543 = vrcp.pop 16.0
        %v1544 = vmul.f32 %v1542, %v1543
        %v1545 = vld [vmem:[%s23] sm:$0xff]
        %v1546 = vld [vmem:[%s23 + $0x8] sm:$0xff]
        %v1547 = vld [vmem:[%s23 + $0x10] sm:$0xff]
        %v1548 = vld [vmem:[%s23 + $0x18] sm:$0xff]
        %v1550 = vsel %vm1392, %v1544, 0
        %1552 = vmatprep.subr.mxu0 0.0
        %1553 = vmatpush1.msra.mxu0 %v1545
        %1554 = vmatprep.subr.mxu0 0.0
        %1555 = vmatpush1.msra.mxu0 %v1546
        %1556 = vmatprep.subr.mxu0 0.0
        %1557 = vmatpush1.msra.mxu0 %v1547
        %1558 = vmatprep.subr.mxu0 0.0
        %1559 = vmatpush1.msra.mxu0 %v1548
        %1560 = vmatprep.subr.mxu0 0.0
        %1561 = vmatpush1.msra.mxu0 0.0
        %1562 = vmatprep.subr.mxu0 0.0
        %1563 = vmatpush1.msra.mxu0 0.0
        %1564 = vmatprep.subr.mxu0 0.0
        %1565 = vmatpush1.msra.mxu0 0.0
        %1566 = vmatprep.subr.mxu0 0.0
        %1567 = vmatpush1.msra.mxu0 0.0
        %1568 = vmatprep.subr.mxu0 0.0
        %1569 = vmatpush1.msra.mxu0 0.0
        %1570 = vmatprep.subr.mxu0 0.0
        %1571 = vmatpush1.msra.mxu0 0.0
        %1572 = vmatprep.subr.mxu0 0.0
        %1573 = vmatpush1.msra.mxu0 0.0
        %1574 = vmatprep.subr.mxu0 0.0
        %1575 = vmatpush1.msra.mxu0 0.0
        %1576 = vmatprep.subr.mxu0 0.0
        %1577 = vmatpush1.msra.mxu0 0.0
        %1578 = vmatprep.subr.mxu0 0.0
        %1579 = vmatpush1.msra.mxu0 0.0
        %1580 = vmatprep.subr.mxu0 0.0
        %1581 = vmatpush1.msra.mxu0 0.0
        %1582 = vmatprep.subr.mxu0 0.0
        %1583 = vmatpush1.msra.mxu0 0.0
        %1584 = vmatprep.subr.mxu0 0.0
        %1585 = vmatpush1.msra.mxu0 0.0
        %1586 = vmatprep.subr.mxu0 0.0
        %1587 = vmatpush1.msra.mxu0 0.0
        %1588 = vmatprep.subr.mxu0 0.0
        %1589 = vmatpush1.msra.mxu0 0.0
        %1590 = vmatprep.subr.mxu0 0.0
        %1591 = vmatpush1.msra.mxu0 0.0
        %1592 = vmatprep.subr.mxu0 0.0
        %1593 = vmatpush1.msra.mxu0 0.0
        %1594 = vmatprep.subr.mxu0 0.0
        %1595 = vmatpush1.msra.mxu0 0.0
        %1596 = vmatprep.subr.mxu0 0.0
        %1597 = vmatpush1.msra.mxu0 0.0
        %1598 = vmatprep.subr.mxu0 0.0
        %1599 = vmatpush1.msra.mxu0 0.0
        %1600 = vmatprep.subr.mxu0 0.0
        %1601 = vmatpush1.msra.mxu0 0.0
        %1602 = vmatprep.subr.mxu0 0.0
        %1603 = vmatpush1.msra.mxu0 0.0
        %1604 = vmatprep.subr.mxu0 0.0
        %1605 = vmatpush1.msra.mxu0 0.0
        %1606 = vmatprep.subr.mxu0 0.0
        %1607 = vmatpush1.msra.mxu0 0.0
        %1608 = vmatprep.subr.mxu0 0.0
        %1609 = vmatpush1.msra.mxu0 0.0
        %1610 = vmatprep.subr.mxu0 0.0
        %1611 = vmatpush1.msra.mxu0 0.0
        %1612 = vmatprep.subr.mxu0 0.0
        %1613 = vmatpush1.msra.mxu0 0.0
        %1614 = vmatprep.subr.mxu0 0.0
        %1615 = vmatpush1.msra.mxu0 0.0
        %1616 = vmatprep.mubr.f32.mxu0 0.0
        %1617 = vmatmul.mubr.f32.gmra.mrb[0].mxu0 %v1550
        %v1618 = vpop.f32.mrb[0].mxu0
        %v1619 = vadd.f32 0.0, %v1618
        %v1620 = vpop.f32.mrb[0].mxu0
        %1621 = vdwg.mxu0
        %v1622 = vlaneseq
        %v1623 = vshrl.u32 %v1622, 7
        %v1624 = vsub.s32 0, %v1623
        %v1625 = vrot.slane %v1619, %v1624
        %v1626 = vmul.f32 %v1530, %v1625
        %v1627 = vmul.f32 %v1531, %v1625
        %v1628 = vsel %vm1392, %v1626, 0.0
        %1629 = vadd.xlane.f32.xlu0 %v1628
        %v1630 = vpop.xlane.xlu0 %1629
        %v1631 = vsel %vm1392, %v1627, 0.0
        %1632 = vadd.xlane.f32.xlu0 %v1631
        %v1633 = vpop.xlane.xlu0 %1632
        %v1634 = vsel %vm1487, %v1630, 0.0
        %v1635 = vsel %vm1487, %v1633, 0.0
        %v1636 = vadd.f32 %v1634, %v1635
        %1637 = vadd.xlane.f32.xlu0 %v1636
        %v1638 = vpop.xlane.xlu0 %1637
        %v1639 = vrot.slane %v1638, 4
        %v1640 = vadd.f32 %v1638, %v1639
        %v1641 = vrot.slane %v1640, 2
        %v1642 = vadd.f32 %v1640, %v1641
        %v1643 = vrot.slane %v1642, 1
        %v1644 = vadd.f32 %v1642, %v1643
        %s1645 = vtos %v1644
        %v1646 = vstv %s1645
        %v1647 = vmul.f32 %v1646, %v1543
        %v1648 = vsub.f32 %v1630, %v1647
        %v1649 = vsub.f32 %v1633, %v1647
        %v1650 = vmul.f32 %v1648, %v1648
        %v1651 = vmul.f32 %v1649, %v1649
        %v1652 = vsel %vm1487, %v1650, 0.0
        %v1653 = vsel %vm1487, %v1651, 0.0
        %v1654 = vadd.f32 %v1652, %v1653
        %1655 = vadd.xlane.f32.xlu0 %v1654
        %v1656 = vpop.xlane.xlu0 %1655
        %v1657 = vrot.slane %v1656, 4
        %v1658 = vadd.f32 %v1656, %v1657
        %v1659 = vrot.slane %v1658, 2
        %v1660 = vadd.f32 %v1658, %v1659
        %v1661 = vrot.slane %v1660, 1
        %v1662 = vadd.f32 %v1660, %v1661
        %s1663 = vtos %v1662
        %v1664 = vstv %s1663
        %v1665 = vmul.f32 %v1664, %v1543
        %v1666 = vrsqrt.pop %v1665
        %v1667 = vmul.f32 %v1665, %v1666
        %vm1668 = vcmp.eq.f32.partialorder %v1665, inf
        %v1669 = vsel %vm1668, %v1665, %v1667
        %vm1670 = vcmp.eq.f32.partialorder %v1665, 0.0
        %v1671 = vand.u32 %v1665, 2147483648
        %v1672 = vsel %vm1670, %v1671, %v1669
        %v1673 = vstv %s1532
        %v1674 = vmul.f32 %v1673, %v1648
        %v1675 = vmul.f32 %v1673, %v1649
        %v1676 = vadd.f32 %v1672, 1e-05
        %v1677 = vrcp.pop %v1676
        %v1678 = vmul.f32 %v1674, %v1677
        %v1679 = vmul.f32 %v1675, %v1677
        %v1680 = vstv %s1533
        %v1681 = vadd.f32 %v1678, %v1680
        %v1682 = vadd.f32 %v1679, %v1680
        %v1683 = vmul.f32 %v1681, %v1625
        %v1684 = vmul.f32 %v1682, %v1625
        %v1685 = vadd.f32 %v1530, %v1683
        %v1686 = vadd.f32 %v1531, %v1684
        %v1687 = vld [vmem:[%s17] sm:$0xff]
        %vm1688 = vcmask 64512
        %v1690 = vsel %vm1688, %v1687, 0
        %1692 = vmatprep.subr.mxu0 0.0
        %1693 = vmatpush1.msra.mxu0 %v1529
        %1694 = vmatprep.subr.mxu0 0.0
        %1695 = vmatpush1.msra.mxu0 0.0
        %1696 = vmatprep.subr.mxu0 0.0
        %1697 = vmatpush1.msra.mxu0 0.0
        %1698 = vmatprep.subr.mxu0 0.0
        %1699 = vmatpush1.msra.mxu0 0.0
        %1700 = vmatprep.subr.mxu0 0.0
        %1701 = vmatpush1.msra.mxu0 0.0
        %1702 = vmatprep.subr.mxu0 0.0
        %1703 = vmatpush1.msra.mxu0 0.0
        %1704 = vmatprep.subr.mxu0 0.0
        %1705 = vmatpush1.msra.mxu0 0.0
        %1706 = vmatprep.subr.mxu0 0.0
        %1707 = vmatpush1.msra.mxu0 0.0
        %1708 = vmatprep.subr.mxu0 0.0
        %1709 = vmatpush1.msra.mxu0 0.0
        %1710 = vmatprep.subr.mxu0 0.0
        %1711 = vmatpush1.msra.mxu0 0.0
        %1712 = vmatprep.subr.mxu0 0.0
        %1713 = vmatpush1.msra.mxu0 0.0
        %1714 = vmatprep.subr.mxu0 0.0
        %1715 = vmatpush1.msra.mxu0 0.0
        %1716 = vmatprep.subr.mxu0 0.0
        %1717 = vmatpush1.msra.mxu0 0.0
        %1718 = vmatprep.subr.mxu0 0.0
        %1719 = vmatpush1.msra.mxu0 0.0
        %1720 = vmatprep.subr.mxu0 0.0
        %1721 = vmatpush1.msra.mxu0 0.0
        %1722 = vmatprep.subr.mxu0 0.0
        %1723 = vmatpush1.msra.mxu0 0.0
        %1724 = vmatprep.subr.mxu0 0.0
        %1725 = vmatpush1.msra.mxu0 0.0
        %1726 = vmatprep.subr.mxu0 0.0
        %1727 = vmatpush1.msra.mxu0 0.0
        %1728 = vmatprep.subr.mxu0 0.0
        %1729 = vmatpush1.msra.mxu0 0.0
        %1730 = vmatprep.subr.mxu0 0.0
        %1731 = vmatpush1.msra.mxu0 0.0
        %1732 = vmatprep.subr.mxu0 0.0
        %1733 = vmatpush1.msra.mxu0 0.0
        %1734 = vmatprep.subr.mxu0 0.0
        %1735 = vmatpush1.msra.mxu0 0.0
        %1736 = vmatprep.subr.mxu0 0.0
        %1737 = vmatpush1.msra.mxu0 0.0
        %1738 = vmatprep.subr.mxu0 0.0
        %1739 = vmatpush1.msra.mxu0 0.0
        %1740 = vmatprep.subr.mxu0 0.0
        %1741 = vmatpush1.msra.mxu0 0.0
        %1742 = vmatprep.subr.mxu0 0.0
        %1743 = vmatpush1.msra.mxu0 0.0
        %1744 = vmatprep.subr.mxu0 0.0
        %1745 = vmatpush1.msra.mxu0 0.0
        %1746 = vmatprep.subr.mxu0 0.0
        %1747 = vmatpush1.msra.mxu0 0.0
        %1748 = vmatprep.subr.mxu0 0.0
        %1749 = vmatpush1.msra.mxu0 0.0
        %1750 = vmatprep.subr.mxu0 0.0
        %1751 = vmatpush1.msra.mxu0 0.0
        %1752 = vmatprep.subr.mxu0 0.0
        %1753 = vmatpush1.msra.mxu0 0.0
        %1754 = vmatprep.subr.mxu0 0.0
        %1755 = vmatpush1.msra.mxu0 0.0
        %1756 = vmatprep.mubr.f32.mxu0 0.0
        %1757 = vmatmul.mubr.f32.gmra.mrb[0].mxu0 %v1690
        %v1758 = vpop.f32.mrb[0].mxu0
        %v1759 = vadd.f32 0.0, %v1758
        %v1760 = vpop.f32.mrb[0].mxu0
        %1761 = vdwg.mxu0
        %v1762 = vld [vmem:[%s29] sm:$0xff]
        %v1763 = vld [vmem:[%s29 + $0x8] sm:$0xff]
        %v1764 = vld [vmem:[%s29 + $0x10] sm:$0xff]
        %v1765 = vld [vmem:[%s29 + $0x18] sm:$0xff]
        %v1766 = vld [vmem:[%s31] sm:$0x1]
        %v1768 = vlaneseq
        %v1769 = vshrl.u32 %v1768, 7
        %v1770 = vsub.s32 0, %v1769
        %v1771 = vrot.slane %v1766, %v1770
        %v1774 = vsel %vm1392, %v1759, 0
        %1776 = vmatprep.subr.mxu0 0.0
        %1777 = vmatpush1.msra.mxu0 %v1762
        %1778 = vmatprep.subr.mxu0 0.0
        %1779 = vmatpush1.msra.mxu0 %v1763
        %1780 = vmatprep.subr.mxu0 0.0
        %1781 = vmatpush1.msra.mxu0 %v1764
        %1782 = vmatprep.subr.mxu0 0.0
        %1783 = vmatpush1.msra.mxu0 %v1765
        %1784 = vmatprep.subr.mxu0 0.0
        %1785 = vmatpush1.msra.mxu0 0.0
        %1786 = vmatprep.subr.mxu0 0.0
        %1787 = vmatpush1.msra.mxu0 0.0
        %1788 = vmatprep.subr.mxu0 0.0
        %1789 = vmatpush1.msra.mxu0 0.0
        %1790 = vmatprep.subr.mxu0 0.0
        %1791 = vmatpush1.msra.mxu0 0.0
        %1792 = vmatprep.subr.mxu0 0.0
        %1793 = vmatpush1.msra.mxu0 0.0
        %1794 = vmatprep.subr.mxu0 0.0
        %1795 = vmatpush1.msra.mxu0 0.0
        %1796 = vmatprep.subr.mxu0 0.0
        %1797 = vmatpush1.msra.mxu0 0.0
        %1798 = vmatprep.subr.mxu0 0.0
        %1799 = vmatpush1.msra.mxu0 0.0
        %1800 = vmatprep.subr.mxu0 0.0
        %1801 = vmatpush1.msra.mxu0 0.0
        %1802 = vmatprep.subr.mxu0 0.0
        %1803 = vmatpush1.msra.mxu0 0.0
        %1804 = vmatprep.subr.mxu0 0.0
        %1805 = vmatpush1.msra.mxu0 0.0
        %1806 = vmatprep.subr.mxu0 0.0
        %1807 = vmatpush1.msra.mxu0 0.0
        %1808 = vmatprep.subr.mxu0 0.0
        %1809 = vmatpush1.msra.mxu0 0.0
        %1810 = vmatprep.subr.mxu0 0.0
        %1811 = vmatpush1.msra.mxu0 0.0
        %1812 = vmatprep.subr.mxu0 0.0
        %1813 = vmatpush1.msra.mxu0 0.0
        %1814 = vmatprep.subr.mxu0 0.0
        %1815 = vmatpush1.msra.mxu0 0.0
        %1816 = vmatprep.subr.mxu0 0.0
        %1817 = vmatpush1.msra.mxu0 0.0
        %1818 = vmatprep.subr.mxu0 0.0
        %1819 = vmatpush1.msra.mxu0 0.0
        %1820 = vmatprep.subr.mxu0 0.0
        %1821 = vmatpush1.msra.mxu0 0.0
        %1822 = vmatprep.subr.mxu0 0.0
        %1823 = vmatpush1.msra.mxu0 0.0
        %1824 = vmatprep.subr.mxu0 0.0
        %1825 = vmatpush1.msra.mxu0 0.0
        %1826 = vmatprep.subr.mxu0 0.0
        %1827 = vmatpush1.msra.mxu0 0.0
        %1828 = vmatprep.subr.mxu0 0.0
        %1829 = vmatpush1.msra.mxu0 0.0
        %1830 = vmatprep.subr.mxu0 0.0
        %1831 = vmatpush1.msra.mxu0 0.0
        %1832 = vmatprep.subr.mxu0 0.0
        %1833 = vmatpush1.msra.mxu0 0.0
        %1834 = vmatprep.subr.mxu0 0.0
        %1835 = vmatpush1.msra.mxu0 0.0
        %1836 = vmatprep.subr.mxu0 0.0
        %1837 = vmatpush1.msra.mxu0 0.0
        %1838 = vmatprep.subr.mxu0 0.0
        %1839 = vmatpush1.msra.mxu0 0.0
        %1840 = vmatprep.mubr.f32.mxu0 0.0
        %1841 = vmatmul.mubr.f32.gmra.mrb[0].mxu0 %v1774
        %v1842 = vpop.f32.mrb[0].mxu0
        %v1843 = vadd.f32 %v1771, %v1842
        %v1844 = vpop.f32.mrb[0].mxu0
        %1845 = vdwg.mxu0
        %v1846 = vmax.f32 %v1843, 0.0
        %s1847 = sld [smem:[#allocation5 + $0x8]]
        %v1848 = vld [vmem:[%s37] sm:$0xff]
        %v1849 = vld [vmem:[%s37 + $0x8] sm:$0xff]
        %v1850 = vld [vmem:[%s37 + $0x10] sm:$0xff]
        %v1851 = vld [vmem:[%s37 + $0x18] sm:$0xff]
        %v1852 = vld [vmem:[%s37 + $0x20] sm:$0xff]
        %v1853 = vld [vmem:[%s37 + $0x28] sm:$0xff]
        %v1854 = vld [vmem:[%s37 + $0x30] sm:$0xff]
        %v1855 = vld [vmem:[%s37 + $0x38] sm:$0xff]
        %v1856 = vld [vmem:[%s37 + $0x40] sm:$0xff]
        %v1857 = vld [vmem:[%s37 + $0x48] sm:$0xff]
        %v1858 = vld [vmem:[%s37 + $0x50] sm:$0xff]
        %v1859 = vld [vmem:[%s37 + $0x58] sm:$0xff]
        %v1860 = vld [vmem:[%s37 + $0x60] sm:$0xff]
        %v1861 = vld [vmem:[%s37 + $0x68] sm:$0xff]
        %v1862 = vld [vmem:[%s37 + $0x70] sm:$0xff]
        %v1863 = vld [vmem:[%s37 + $0x78] sm:$0xff]
        %s1864 = smax.f32 %s1847, 1e-05
        %v1865 = vld [vmem:[%s1375] sm:$0xff]
        %v1866 = vld [vmem:[%s1375 + $0x8] sm:$0xff]
        %v1867 = vld [vmem:[%s1375 + $0x10] sm:$0xff]
        %v1868 = vld [vmem:[%s1375 + $0x18] sm:$0xff]
        %v1869 = vld [vmem:[%s1375 + $0x20] sm:$0xff]
        %v1870 = vld [vmem:[%s1375 + $0x28] sm:$0xff]
        %v1871 = vld [vmem:[%s1375 + $0x30] sm:$0xff]
        %v1872 = vld [vmem:[%s1375 + $0x38] sm:$0xff]
        %v1873 = vld [vmem:[%s1379] sm:$0x1]
        %v1875 = vlaneseq
        %v1876 = vshrl.u32 %v1875, 7
        %v1877 = vsub.s32 0, %v1876
        %v1878 = vrot.slane %v1873, %v1877
        %vm1880 = vcmask 523264
        %v1882 = vsel %vm1880, %v1846, 0
        %1884 = vmatprep.subr.mxu0 0.0
        %1885 = vmatpush1.msra.mxu0 %v1865
        %1886 = vmatprep.subr.mxu0 0.0
        %1887 = vmatpush1.msra.mxu0 %v1866
        %1888 = vmatprep.subr.mxu0 0.0
        %1889 = vmatpush1.msra.mxu0 %v1867
        %1890 = vmatprep.subr.mxu0 0.0
        %1891 = vmatpush1.msra.mxu0 %v1868
        %1892 = vmatprep.subr.mxu0 0.0
        %1893 = vmatpush1.msra.mxu0 %v1869
        %1894 = vmatprep.subr.mxu0 0.0
        %1895 = vmatpush1.msra.mxu0 %v1870
        %1896 = vmatprep.subr.mxu0 0.0
        %1897 = vmatpush1.msra.mxu0 %v1871
        %1898 = vmatprep.subr.mxu0 0.0
        %1899 = vmatpush1.msra.mxu0 %v1872
        %1900 = vmatprep.subr.mxu0 0.0
        %1901 = vmatpush1.msra.mxu0 0.0
        %1902 = vmatprep.subr.mxu0 0.0
        %1903 = vmatpush1.msra.mxu0 0.0
        %1904 = vmatprep.subr.mxu0 0.0
        %1905 = vmatpush1.msra.mxu0 0.0
        %1906 = vmatprep.subr.mxu0 0.0
        %1907 = vmatpush1.msra.mxu0 0.0
        %1908 = vmatprep.subr.mxu0 0.0
        %1909 = vmatpush1.msra.mxu0 0.0
        %1910 = vmatprep.subr.mxu0 0.0
        %1911 = vmatpush1.msra.mxu0 0.0
        %1912 = vmatprep.subr.mxu0 0.0
        %1913 = vmatpush1.msra.mxu0 0.0
        %1914 = vmatprep.subr.mxu0 0.0
        %1915 = vmatpush1.msra.mxu0 0.0
        %1916 = vmatprep.subr.mxu0 0.0
        %1917 = vmatpush1.msra.mxu0 0.0
        %1918 = vmatprep.subr.mxu0 0.0
        %1919 = vmatpush1.msra.mxu0 0.0
        %1920 = vmatprep.subr.mxu0 0.0
        %1921 = vmatpush1.msra.mxu0 0.0
        %1922 = vmatprep.subr.mxu0 0.0
        %1923 = vmatpush1.msra.mxu0 0.0
        %1924 = vmatprep.subr.mxu0 0.0
        %1925 = vmatpush1.msra.mxu0 0.0
        %1926 = vmatprep.subr.mxu0 0.0
        %1927 = vmatpush1.msra.mxu0 0.0
        %1928 = vmatprep.subr.mxu0 0.0
        %1929 = vmatpush1.msra.mxu0 0.0
        %1930 = vmatprep.subr.mxu0 0.0
        %1931 = vmatpush1.msra.mxu0 0.0
        %1932 = vmatprep.subr.mxu0 0.0
        %1933 = vmatpush1.msra.mxu0 0.0
        %1934 = vmatprep.subr.mxu0 0.0
        %1935 = vmatpush1.msra.mxu0 0.0
        %1936 = vmatprep.subr.mxu0 0.0
        %1937 = vmatpush1.msra.mxu0 0.0
        %1938 = vmatprep.subr.mxu0 0.0
        %1939 = vmatpush1.msra.mxu0 0.0
        %1940 = vmatprep.subr.mxu0 0.0
        %1941 = vmatpush1.msra.mxu0 0.0
        %1942 = vmatprep.subr.mxu0 0.0
        %1943 = vmatpush1.msra.mxu0 0.0
        %1944 = vmatprep.subr.mxu0 0.0
        %1945 = vmatpush1.msra.mxu0 0.0
        %1946 = vmatprep.subr.mxu0 0.0
        %1947 = vmatpush1.msra.mxu0 0.0
        %1948 = vmatprep.mubr.f32.mxu0 0.0
        %1949 = vmatmul.mubr.f32.gmra.mrb[0].mxu0 %v1882
        %v1950 = vpop.f32.mrb[0].mxu0
        %v1951 = vadd.f32 %v1878, %v1950
        %v1952 = vpop.f32.mrb[0].mxu0
        %1953 = vdwg.mxu0
        %v1955 = vsel %vm1392, %v1685, 0
        %v1958 = vsel %vm1392, %v1686, 0
        %v1961 = vsel %vm1392, %v1951, 0
        %1963 = vmatprep.subr.mxu0 0.0
        %1964 = vmatpush1.xpose.msra.mxu0 %v1961
        %1965 = vmatprep.subr.mxu0 0.0
        %1966 = vmatpush1.xpose.msra.mxu0 0.0
        %1967 = vmatprep.subr.mxu0 0.0
        %1968 = vmatpush1.xpose.msra.mxu0 0.0
        %1969 = vmatprep.subr.mxu0 0.0
        %1970 = vmatpush1.xpose.msra.mxu0 0.0
        %1971 = vmatprep.subr.mxu0 0.0
        %1972 = vmatpush1.xpose.msra.mxu0 0.0
        %1973 = vmatprep.subr.mxu0 0.0
        %1974 = vmatpush1.xpose.msra.mxu0 0.0
        %1975 = vmatprep.subr.mxu0 0.0
        %1976 = vmatpush1.xpose.msra.mxu0 0.0
        %1977 = vmatprep.subr.mxu0 0.0
        %1978 = vmatpush1.xpose.msra.mxu0 0.0
        %1979 = vmatprep.subr.mxu0 0.0
        %1980 = vmatpush1.xpose.msra.mxu0 0.0
        %1981 = vmatprep.subr.mxu0 0.0
        %1982 = vmatpush1.xpose.msra.mxu0 0.0
        %1983 = vmatprep.subr.mxu0 0.0
        %1984 = vmatpush1.xpose.msra.mxu0 0.0
        %1985 = vmatprep.subr.mxu0 0.0
        %1986 = vmatpush1.xpose.msra.mxu0 0.0
        %1987 = vmatprep.subr.mxu0 0.0
        %1988 = vmatpush1.xpose.msra.mxu0 0.0
        %1989 = vmatprep.subr.mxu0 0.0
        %1990 = vmatpush1.xpose.msra.mxu0 0.0
        %1991 = vmatprep.subr.mxu0 0.0
        %1992 = vmatpush1.xpose.msra.mxu0 0.0
        %1993 = vmatprep.subr.mxu0 0.0
        %1994 = vmatpush1.xpose.msra.mxu0 0.0
        %1995 = vmatprep.subr.mxu0 0.0
        %1996 = vmatpush1.xpose.msra.mxu0 0.0
        %1997 = vmatprep.subr.mxu0 0.0
        %1998 = vmatpush1.xpose.msra.mxu0 0.0
        %1999 = vmatprep.subr.mxu0 0.0
        %2000 = vmatpush1.xpose.msra.mxu0 0.0
        %2001 = vmatprep.subr.mxu0 0.0
        %2002 = vmatpush1.xpose.msra.mxu0 0.0
        %2003 = vmatprep.subr.mxu0 0.0
        %2004 = vmatpush1.xpose.msra.mxu0 0.0
        %2005 = vmatprep.subr.mxu0 0.0
        %2006 = vmatpush1.xpose.msra.mxu0 0.0
        %2007 = vmatprep.subr.mxu0 0.0
        %2008 = vmatpush1.xpose.msra.mxu0 0.0
        %2009 = vmatprep.subr.mxu0 0.0
        %2010 = vmatpush1.xpose.msra.mxu0 0.0
        %2011 = vmatprep.subr.mxu0 0.0
        %2012 = vmatpush1.xpose.msra.mxu0 0.0
        %2013 = vmatprep.subr.mxu0 0.0
        %2014 = vmatpush1.xpose.msra.mxu0 0.0
        %2015 = vmatprep.subr.mxu0 0.0
        %2016 = vmatpush1.xpose.msra.mxu0 0.0
        %2017 = vmatprep.subr.mxu0 0.0
        %2018 = vmatpush1.xpose.msra.mxu0 0.0
        %2019 = vmatprep.subr.mxu0 0.0
        %2020 = vmatpush1.xpose.msra.mxu0 0.0
        %2021 = vmatprep.subr.mxu0 0.0
        %2022 = vmatpush1.xpose.msra.mxu0 0.0
        %2023 = vmatprep.subr.mxu0 0.0
        %2024 = vmatpush1.xpose.msra.mxu0 0.0
        %2025 = vmatprep.subr.mxu0 0.0
        %2026 = vmatpush1.xpose.msra.mxu0 0.0
        %2027 = vmatprep.mubr.f32.mxu0 0.0
        %2028 = vmatmul.mubr.f32.gmra.mrb[0].mxu0 %v1955
        %v2029 = vpop.f32.mrb[0].mxu0
        %v2030 = vadd.f32 0.0, %v2029
        %v2031 = vpop.f32.mrb[0].mxu0
        %2032 = vmatprep.mubr.f32.mxu0 0.0
        %2033 = vmatmul.mubr.f32.gmra.mrb[0].mxu0 %v1958
        %v2034 = vpop.f32.mrb[0].mxu0
        %v2035 = vadd.f32 0.0, %v2034
        %v2036 = vpop.f32.mrb[0].mxu0
        %2037 = vdwg.mxu0
        %v2038 = vxor.u32 %v2030, 2147483648
        %v2039 = vxor.u32 %v2035, 2147483648
        %v2040 = vmul.f32 %v2038, 1.442695
        %v2041 = vpow.pop %v2040
        %v2042 = vmul.f32 %v2039, 1.442695
        %v2043 = vpow.pop %v2042
        %v2044 = vadd.f32 %v2041, 1.0
        %v2045 = vadd.f32 %v2043, 1.0
        %v2046 = vrcp.pop %v2044
        %v2047 = vmul.f32 1.0, %v2046
        %v2048 = vrcp.pop %v2045
        %v2049 = vmul.f32 1.0, %v2048
        %v2050 = vstv %s1864
        %v2051 = vrcp.pop %v2050
        %v2052 = vmul.f32 %v2047, %v2051
        %v2053 = vmul.f32 %v2049, %v2051
        %v2054 = vsel %vm1688, %v2052, 0.0
        %v2055 = vsel %vm1688, %v2053, 0.0
        %v2056 = vadd.f32 %v2054, %v2055
        %v2057 = vrot.slane %v2056, 4
        %v2058 = vadd.f32 %v2056, %v2057
        %v2059 = vrot.slane %v2058, 2
        %v2060 = vadd.f32 %v2058, %v2059
        %v2061 = vrot.slane %v2060, 1
        %v2062 = vadd.f32 %v2060, %v2061
        %v2063 = vmax.f32 %v2062, 1e-06
        %v2064 = vrcp.pop %v2063
        %v2065 = vmul.f32 %v2052, %v2064
        %v2066 = vmul.f32 %v2053, %v2064
        %2067 = vxpose.xlu0.b32.start [1/16] %v2065, 128
        %2068 = vxpose.xlu0.b32.cont [2/16] %v2066, 128
        %2069 = vxpose.xlu0.b32.cont [3/16] 0.0, 128
        %2070 = vxpose.xlu0.b32.cont [4/16] 0.0, 128
        %2071 = vxpose.xlu0.b32.cont [5/16] 0.0, 128
        %2072 = vxpose.xlu0.b32.cont [6/16] 0.0, 128
        %2073 = vxpose.xlu0.b32.cont [7/16] 0.0, 128
        %2074 = vxpose.xlu0.b32.cont [8/16] 0.0, 128
        %2075 = vxpose.xlu0.b32.cont [9/16] 0.0, 128
        %2076 = vxpose.xlu0.b32.cont [10/16] 0.0, 128
        %2077 = vxpose.xlu0.b32.cont [11/16] 0.0, 128
        %2078 = vxpose.xlu0.b32.cont [12/16] 0.0, 128
        %2079 = vxpose.xlu0.b32.cont [13/16] 0.0, 128
        %2080 = vxpose.xlu0.b32.cont [14/16] 0.0, 128
        %2081 = vxpose.xlu0.b32.cont [15/16] 0.0, 128
        %2082 = vxpose.xlu0.b32.end [16/16] 0.0, 128
        %v2083 = vpop.trf.xlu0
        %v2084 = vpop.trf.xlu0
        %v2085 = vpop.trf.xlu0
        %v2086 = vpop.trf.xlu0
        %v2087 = vpop.trf.xlu0
        %v2088 = vpop.trf.xlu0
        %v2089 = vpop.trf.xlu0
        %v2090 = vpop.trf.xlu0
        %v2091 = vpop.trf.xlu0
        %v2092 = vpop.trf.xlu0
        %v2093 = vpop.trf.xlu0
        %v2094 = vpop.trf.xlu0
        %v2095 = vpop.trf.xlu0
        %v2096 = vpop.trf.xlu0
        %v2097 = vpop.trf.xlu0
        %v2098 = vpop.trf.xlu0
        %vm2099 = vcmask 130048
        %v2101 = vsel %vm2099, %v2083, 0
        %2103 = vmatprep.subr.mxu0 0.0
        %2104 = vmatpush1.msra.mxu0 %v1685
        %2105 = vmatprep.subr.mxu0 0.0
        %2106 = vmatpush1.msra.mxu0 %v1686
        %2107 = vmatprep.subr.mxu0 0.0
        %2108 = vmatpush1.msra.mxu0 0.0
        %2109 = vmatprep.subr.mxu0 0.0
        %2110 = vmatpush1.msra.mxu0 0.0
        %2111 = vmatprep.subr.mxu0 0.0
        %2112 = vmatpush1.msra.mxu0 0.0
        %2113 = vmatprep.subr.mxu0 0.0
        %2114 = vmatpush1.msra.mxu0 0.0
        %2115 = vmatprep.subr.mxu0 0.0
        %2116 = vmatpush1.msra.mxu0 0.0
        %2117 = vmatprep.subr.mxu0 0.0
        %2118 = vmatpush1.msra.mxu0 0.0
        %2119 = vmatprep.subr.mxu0 0.0
        %2120 = vmatpush1.msra.mxu0 0.0
        %2121 = vmatprep.subr.mxu0 0.0
        %2122 = vmatpush1.msra.mxu0 0.0
        %2123 = vmatprep.subr.mxu0 0.0
        %2124 = vmatpush1.msra.mxu0 0.0
        %2125 = vmatprep.subr.mxu0 0.0
        %2126 = vmatpush1.msra.mxu0 0.0
        %2127 = vmatprep.subr.mxu0 0.0
        %2128 = vmatpush1.msra.mxu0 0.0
        %2129 = vmatprep.subr.mxu0 0.0
        %2130 = vmatpush1.msra.mxu0 0.0
        %2131 = vmatprep.subr.mxu0 0.0
        %2132 = vmatpush1.msra.mxu0 0.0
        %2133 = vmatprep.subr.mxu0 0.0
        %2134 = vmatpush1.msra.mxu0 0.0
        %2135 = vmatprep.subr.mxu0 0.0
        %2136 = vmatpush1.msra.mxu0 0.0
        %2137 = vmatprep.subr.mxu0 0.0
        %2138 = vmatpush1.msra.mxu0 0.0
        %2139 = vmatprep.subr.mxu0 0.0
        %2140 = vmatpush1.msra.mxu0 0.0
        %2141 = vmatprep.subr.mxu0 0.0
        %2142 = vmatpush1.msra.mxu0 0.0
        %2143 = vmatprep.subr.mxu0 0.0
        %2144 = vmatpush1.msra.mxu0 0.0
        %2145 = vmatprep.subr.mxu0 0.0
        %2146 = vmatpush1.msra.mxu0 0.0
        %2147 = vmatprep.subr.mxu0 0.0
        %2148 = vmatpush1.msra.mxu0 0.0
        %2149 = vmatprep.subr.mxu0 0.0
        %2150 = vmatpush1.msra.mxu0 0.0
        %2151 = vmatprep.subr.mxu0 0.0
        %2152 = vmatpush1.msra.mxu0 0.0
        %2153 = vmatprep.subr.mxu0 0.0
        %2154 = vmatpush1.msra.mxu0 0.0
        %2155 = vmatprep.subr.mxu0 0.0
        %2156 = vmatpush1.msra.mxu0 0.0
        %2157 = vmatprep.subr.mxu0 0.0
        %2158 = vmatpush1.msra.mxu0 0.0
        %2159 = vmatprep.subr.mxu0 0.0
        %2160 = vmatpush1.msra.mxu0 0.0
        %2161 = vmatprep.subr.mxu0 0.0
        %2162 = vmatpush1.msra.mxu0 0.0
        %2163 = vmatprep.subr.mxu0 0.0
        %2164 = vmatpush1.msra.mxu0 0.0
        %2165 = vmatprep.subr.mxu0 0.0
        %2166 = vmatpush1.msra.mxu0 0.0
        %2167 = vmatprep.mubr.f32.mxu0 0.0
        %2168 = vmatmul.mubr.f32.gmra.mrb[0].mxu0 %v2101
        %v2169 = vpop.f32.mrb[0].mxu0
        %v2170 = vadd.f32 0.0, %v2169
        %v2171 = vpop.f32.mrb[0].mxu0
        %2172 = vdwg.mxu0
        %v2174 = vrot.slane %v2170, 2
        %v2175 = vsel %vm1392, %v2174, 0
        %2177 = vmatprep.subr.mxu0 0.0
        %2178 = vmatpush1.msra.mxu0 %v1852
        %2179 = vmatprep.subr.mxu0 0.0
        %2180 = vmatpush1.msra.mxu0 %v1853
        %2181 = vmatprep.subr.mxu0 0.0
        %2182 = vmatpush1.msra.mxu0 %v1854
        %2183 = vmatprep.subr.mxu0 0.0
        %2184 = vmatpush1.msra.mxu0 %v1855
        %2185 = vmatprep.subr.mxu0 0.0
        %2186 = vmatpush1.msra.mxu0 0.0
        %2187 = vmatprep.subr.mxu0 0.0
        %2188 = vmatpush1.msra.mxu0 0.0
        %2189 = vmatprep.subr.mxu0 0.0
        %2190 = vmatpush1.msra.mxu0 0.0
        %2191 = vmatprep.subr.mxu0 0.0
        %2192 = vmatpush1.msra.mxu0 0.0
        %2193 = vmatprep.subr.mxu0 0.0
        %2194 = vmatpush1.msra.mxu0 0.0
        %2195 = vmatprep.subr.mxu0 0.0
        %2196 = vmatpush1.msra.mxu0 0.0
        %2197 = vmatprep.subr.mxu0 0.0
        %2198 = vmatpush1.msra.mxu0 0.0
        %2199 = vmatprep.subr.mxu0 0.0
        %2200 = vmatpush1.msra.mxu0 0.0
        %2201 = vmatprep.subr.mxu0 0.0
        %2202 = vmatpush1.msra.mxu0 0.0
        %2203 = vmatprep.subr.mxu0 0.0
        %2204 = vmatpush1.msra.mxu0 0.0
        %2205 = vmatprep.subr.mxu0 0.0
        %2206 = vmatpush1.msra.mxu0 0.0
        %2207 = vmatprep.subr.mxu0 0.0
        %2208 = vmatpush1.msra.mxu0 0.0
        %2209 = vmatprep.subr.mxu0 0.0
        %2210 = vmatpush1.msra.mxu0 0.0
        %2211 = vmatprep.subr.mxu0 0.0
        %2212 = vmatpush1.msra.mxu0 0.0
        %2213 = vmatprep.subr.mxu0 0.0
        %2214 = vmatpush1.msra.mxu0 0.0
        %2215 = vmatprep.subr.mxu0 0.0
        %2216 = vmatpush1.msra.mxu0 0.0
        %2217 = vmatprep.subr.mxu0 0.0
        %2218 = vmatpush1.msra.mxu0 0.0
        %2219 = vmatprep.subr.mxu0 0.0
        %2220 = vmatpush1.msra.mxu0 0.0
        %2221 = vmatprep.subr.mxu0 0.0
        %2222 = vmatpush1.msra.mxu0 0.0
        %2223 = vmatprep.subr.mxu0 0.0
        %2224 = vmatpush1.msra.mxu0 0.0
        %2225 = vmatprep.subr.mxu0 0.0
        %2226 = vmatpush1.msra.mxu0 0.0
        %2227 = vmatprep.subr.mxu0 0.0
        %2228 = vmatpush1.msra.mxu0 0.0
        %2229 = vmatprep.subr.mxu0 0.0
        %2230 = vmatpush1.msra.mxu0 0.0
        %2231 = vmatprep.subr.mxu0 0.0
        %2232 = vmatpush1.msra.mxu0 0.0
        %2233 = vmatprep.subr.mxu0 0.0
        %2234 = vmatpush1.msra.mxu0 0.0
        %2235 = vmatprep.subr.mxu0 0.0
        %2236 = vmatpush1.msra.mxu0 0.0
        %2237 = vmatprep.subr.mxu0 0.0
        %2238 = vmatpush1.msra.mxu0 0.0
        %2239 = vmatprep.subr.mxu0 0.0
        %2240 = vmatpush1.msra.mxu0 0.0
        %2241 = vmatprep.mubr.f32.mxu0 0.0
        %2242 = vmatmul.mubr.f32.gmra.mrb[0].mxu0 %v2175
        %v2243 = vpop.f32.mrb[0].mxu0
        %v2244 = vadd.f32 0.0, %v2243
        %v2245 = vpop.f32.mrb[0].mxu0
        %2246 = vdwg.mxu0
        %v2247 = vsel %vm1392, %v2170, 0
        %2249 = vmatprep.subr.mxu0 0.0
        %2250 = vmatpush1.msra.mxu0 %v1848
        %2251 = vmatprep.subr.mxu0 0.0
        %2252 = vmatpush1.msra.mxu0 %v1849
        %2253 = vmatprep.subr.mxu0 0.0
        %2254 = vmatpush1.msra.mxu0 %v1850
        %2255 = vmatprep.subr.mxu0 0.0
        %2256 = vmatpush1.msra.mxu0 %v1851
        %2257 = vmatprep.subr.mxu0 0.0
        %2258 = vmatpush1.msra.mxu0 0.0
        %2259 = vmatprep.subr.mxu0 0.0
        %2260 = vmatpush1.msra.mxu0 0.0
        %2261 = vmatprep.subr.mxu0 0.0
        %2262 = vmatpush1.msra.mxu0 0.0
        %2263 = vmatprep.subr.mxu0 0.0
        %2264 = vmatpush1.msra.mxu0 0.0
        %2265 = vmatprep.subr.mxu0 0.0
        %2266 = vmatpush1.msra.mxu0 0.0
        %2267 = vmatprep.subr.mxu0 0.0
        %2268 = vmatpush1.msra.mxu0 0.0
        %2269 = vmatprep.subr.mxu0 0.0
        %2270 = vmatpush1.msra.mxu0 0.0
        %2271 = vmatprep.subr.mxu0 0.0
        %2272 = vmatpush1.msra.mxu0 0.0
        %2273 = vmatprep.subr.mxu0 0.0
        %2274 = vmatpush1.msra.mxu0 0.0
        %2275 = vmatprep.subr.mxu0 0.0
        %2276 = vmatpush1.msra.mxu0 0.0
        %2277 = vmatprep.subr.mxu0 0.0
        %2278 = vmatpush1.msra.mxu0 0.0
        %2279 = vmatprep.subr.mxu0 0.0
        %2280 = vmatpush1.msra.mxu0 0.0
        %2281 = vmatprep.subr.mxu0 0.0
        %2282 = vmatpush1.msra.mxu0 0.0
        %2283 = vmatprep.subr.mxu0 0.0
        %2284 = vmatpush1.msra.mxu0 0.0
        %2285 = vmatprep.subr.mxu0 0.0
        %2286 = vmatpush1.msra.mxu0 0.0
        %2287 = vmatprep.subr.mxu0 0.0
        %2288 = vmatpush1.msra.mxu0 0.0
        %2289 = vmatprep.subr.mxu0 0.0
        %2290 = vmatpush1.msra.mxu0 0.0
        %2291 = vmatprep.subr.mxu0 0.0
        %2292 = vmatpush1.msra.mxu0 0.0
        %2293 = vmatprep.subr.mxu0 0.0
        %2294 = vmatpush1.msra.mxu0 0.0
        %2295 = vmatprep.subr.mxu0 0.0
        %2296 = vmatpush1.msra.mxu0 0.0
        %2297 = vmatprep.subr.mxu0 0.0
        %2298 = vmatpush1.msra.mxu0 0.0
        %2299 = vmatprep.subr.mxu0 0.0
        %2300 = vmatpush1.msra.mxu0 0.0
        %2301 = vmatprep.subr.mxu0 0.0
        %2302 = vmatpush1.msra.mxu0 0.0
        %2303 = vmatprep.subr.mxu0 0.0
        %2304 = vmatpush1.msra.mxu0 0.0
        %2305 = vmatprep.subr.mxu0 0.0
        %2306 = vmatpush1.msra.mxu0 0.0
        %2307 = vmatprep.subr.mxu0 0.0
        %2308 = vmatpush1.msra.mxu0 0.0
        %2309 = vmatprep.subr.mxu0 0.0
        %2310 = vmatpush1.msra.mxu0 0.0
        %2311 = vmatprep.subr.mxu0 0.0
        %2312 = vmatpush1.msra.mxu0 0.0
        %2313 = vmatprep.mubr.f32.mxu0 0.0
        %2314 = vmatmul.mubr.f32.gmra.mrb[0].mxu0 %v2247
        %v2315 = vpop.f32.mrb[0].mxu0
        %v2316 = vadd.f32 %v2244, %v2315
        %v2317 = vpop.f32.mrb[0].mxu0
        %2318 = vdwg.mxu0
        %v2319 = vrot.slane %v2170, 4
        %v2320 = vsel %vm1392, %v2319, 0
        %2322 = vmatprep.subr.mxu0 0.0
        %2323 = vmatpush1.msra.mxu0 %v1856
        %2324 = vmatprep.subr.mxu0 0.0
        %2325 = vmatpush1.msra.mxu0 %v1857
        %2326 = vmatprep.subr.mxu0 0.0
        %2327 = vmatpush1.msra.mxu0 %v1858
        %2328 = vmatprep.subr.mxu0 0.0
        %2329 = vmatpush1.msra.mxu0 %v1859
        %2330 = vmatprep.subr.mxu0 0.0
        %2331 = vmatpush1.msra.mxu0 0.0
        %2332 = vmatprep.subr.mxu0 0.0
        %2333 = vmatpush1.msra.mxu0 0.0
        %2334 = vmatprep.subr.mxu0 0.0
        %2335 = vmatpush1.msra.mxu0 0.0
        %2336 = vmatprep.subr.mxu0 0.0
        %2337 = vmatpush1.msra.mxu0 0.0
        %2338 = vmatprep.subr.mxu0 0.0
        %2339 = vmatpush1.msra.mxu0 0.0
        %2340 = vmatprep.subr.mxu0 0.0
        %2341 = vmatpush1.msra.mxu0 0.0
        %2342 = vmatprep.subr.mxu0 0.0
        %2343 = vmatpush1.msra.mxu0 0.0
        %2344 = vmatprep.subr.mxu0 0.0
        %2345 = vmatpush1.msra.mxu0 0.0
        %2346 = vmatprep.subr.mxu0 0.0
        %2347 = vmatpush1.msra.mxu0 0.0
        %2348 = vmatprep.subr.mxu0 0.0
        %2349 = vmatpush1.msra.mxu0 0.0
        %2350 = vmatprep.subr.mxu0 0.0
        %2351 = vmatpush1.msra.mxu0 0.0
        %2352 = vmatprep.subr.mxu0 0.0
        %2353 = vmatpush1.msra.mxu0 0.0
        %2354 = vmatprep.subr.mxu0 0.0
        %2355 = vmatpush1.msra.mxu0 0.0
        %2356 = vmatprep.subr.mxu0 0.0
        %2357 = vmatpush1.msra.mxu0 0.0
        %2358 = vmatprep.subr.mxu0 0.0
        %2359 = vmatpush1.msra.mxu0 0.0
        %2360 = vmatprep.subr.mxu0 0.0
        %2361 = vmatpush1.msra.mxu0 0.0
        %2362 = vmatprep.subr.mxu0 0.0
        %2363 = vmatpush1.msra.mxu0 0.0
        %2364 = vmatprep.subr.mxu0 0.0
        %2365 = vmatpush1.msra.mxu0 0.0
        %2366 = vmatprep.subr.mxu0 0.0
        %2367 = vmatpush1.msra.mxu0 0.0
        %2368 = vmatprep.subr.mxu0 0.0
        %2369 = vmatpush1.msra.mxu0 0.0
        %2370 = vmatprep.subr.mxu0 0.0
        %2371 = vmatpush1.msra.mxu0 0.0
        %2372 = vmatprep.subr.mxu0 0.0
        %2373 = vmatpush1.msra.mxu0 0.0
        %2374 = vmatprep.subr.mxu0 0.0
        %2375 = vmatpush1.msra.mxu0 0.0
        %2376 = vmatprep.subr.mxu0 0.0
        %2377 = vmatpush1.msra.mxu0 0.0
        %2378 = vmatprep.subr.mxu0 0.0
        %2379 = vmatpush1.msra.mxu0 0.0
        %2380 = vmatprep.subr.mxu0 0.0
        %2381 = vmatpush1.msra.mxu0 0.0
        %2382 = vmatprep.subr.mxu0 0.0
        %2383 = vmatpush1.msra.mxu0 0.0
        %2384 = vmatprep.subr.mxu0 0.0
        %2385 = vmatpush1.msra.mxu0 0.0
        %2386 = vmatprep.mubr.f32.mxu0 0.0
        %2387 = vmatmul.mubr.f32.gmra.mrb[0].mxu0 %v2320
        %v2388 = vpop.f32.mrb[0].mxu0
        %v2389 = vadd.f32 0.0, %v2388
        %v2390 = vpop.f32.mrb[0].mxu0
        %2391 = vdwg.mxu0
        %v2392 = vadd.f32 %v2316, %v2389
        %v2393 = vrot.slane %v2170, 6
        %v2394 = vsel %vm1392, %v2393, 0
        %2396 = vmatprep.subr.mxu0 0.0
        %2397 = vmatpush1.msra.mxu0 %v1860
        %2398 = vmatprep.subr.mxu0 0.0
        %2399 = vmatpush1.msra.mxu0 %v1861
        %2400 = vmatprep.subr.mxu0 0.0
        %2401 = vmatpush1.msra.mxu0 %v1862
        %2402 = vmatprep.subr.mxu0 0.0
        %2403 = vmatpush1.msra.mxu0 %v1863
        %2404 = vmatprep.subr.mxu0 0.0
        %2405 = vmatpush1.msra.mxu0 0.0
        %2406 = vmatprep.subr.mxu0 0.0
        %2407 = vmatpush1.msra.mxu0 0.0
        %2408 = vmatprep.subr.mxu0 0.0
        %2409 = vmatpush1.msra.mxu0 0.0
        %2410 = vmatprep.subr.mxu0 0.0
        %2411 = vmatpush1.msra.mxu0 0.0
        %2412 = vmatprep.subr.mxu0 0.0
        %2413 = vmatpush1.msra.mxu0 0.0
        %2414 = vmatprep.subr.mxu0 0.0
        %2415 = vmatpush1.msra.mxu0 0.0
        %2416 = vmatprep.subr.mxu0 0.0
        %2417 = vmatpush1.msra.mxu0 0.0
        %2418 = vmatprep.subr.mxu0 0.0
        %2419 = vmatpush1.msra.mxu0 0.0
        %2420 = vmatprep.subr.mxu0 0.0
        %2421 = vmatpush1.msra.mxu0 0.0
        %2422 = vmatprep.subr.mxu0 0.0
        %2423 = vmatpush1.msra.mxu0 0.0
        %2424 = vmatprep.subr.mxu0 0.0
        %2425 = vmatpush1.msra.mxu0 0.0
        %2426 = vmatprep.subr.mxu0 0.0
        %2427 = vmatpush1.msra.mxu0 0.0
        %2428 = vmatprep.subr.mxu0 0.0
        %2429 = vmatpush1.msra.mxu0 0.0
        %2430 = vmatprep.subr.mxu0 0.0
        %2431 = vmatpush1.msra.mxu0 0.0
        %2432 = vmatprep.subr.mxu0 0.0
        %2433 = vmatpush1.msra.mxu0 0.0
        %2434 = vmatprep.subr.mxu0 0.0
        %2435 = vmatpush1.msra.mxu0 0.0
        %2436 = vmatprep.subr.mxu0 0.0
        %2437 = vmatpush1.msra.mxu0 0.0
        %2438 = vmatprep.subr.mxu0 0.0
        %2439 = vmatpush1.msra.mxu0 0.0
        %2440 = vmatprep.subr.mxu0 0.0
        %2441 = vmatpush1.msra.mxu0 0.0
        %2442 = vmatprep.subr.mxu0 0.0
        %2443 = vmatpush1.msra.mxu0 0.0
        %2444 = vmatprep.subr.mxu0 0.0
        %2445 = vmatpush1.msra.mxu0 0.0
        %2446 = vmatprep.subr.mxu0 0.0
        %2447 = vmatpush1.msra.mxu0 0.0
        %2448 = vmatprep.subr.mxu0 0.0
        %2449 = vmatpush1.msra.mxu0 0.0
        %2450 = vmatprep.subr.mxu0 0.0
        %2451 = vmatpush1.msra.mxu0 0.0
        %2452 = vmatprep.subr.mxu0 0.0
        %2453 = vmatpush1.msra.mxu0 0.0
        %2454 = vmatprep.subr.mxu0 0.0
        %2455 = vmatpush1.msra.mxu0 0.0
        %2456 = vmatprep.subr.mxu0 0.0
        %2457 = vmatpush1.msra.mxu0 0.0
        %2458 = vmatprep.subr.mxu0 0.0
        %2459 = vmatpush1.msra.mxu0 0.0
        %2460 = vmatprep.mubr.f32.mxu0 0.0
        %2461 = vmatmul.mubr.f32.gmra.mrb[0].mxu0 %v2394
        %v2462 = vpop.f32.mrb[0].mxu0
        %v2463 = vadd.f32 0.0, %v2462
        %v2464 = vpop.f32.mrb[0].mxu0
        %2465 = vdwg.mxu0
        %v2466 = vadd.f32 %v2392, %v2463
        %vm2467 = vcmask 254976
        %2468 = vst.msk [vmem:[#allocation2] sm:$0x3] %vm2467, %v2466
        %s2469 = scalar_lea.vmem %s1375, 64
        %v2470 = vld [vmem:[%s2469] sm:$0xff]
        %v2471 = vld [vmem:[%s2469 + $0x8] sm:$0xff]
        %v2472 = vld [vmem:[%s2469 + $0x10] sm:$0xff]
        %v2473 = vld [vmem:[%s2469 + $0x18] sm:$0xff]
        %v2474 = vld [vmem:[%s2469 + $0x20] sm:$0xff]
        %v2475 = vld [vmem:[%s2469 + $0x28] sm:$0xff]
        %v2476 = vld [vmem:[%s2469 + $0x30] sm:$0xff]
        %v2477 = vld [vmem:[%s2469 + $0x38] sm:$0xff]
        %s2478 = scalar_lea.vmem %s1379, 1
        %v2479 = vld [vmem:[%s2478] sm:$0x1]
        %v2481 = vlaneseq
        %v2482 = vshrl.u32 %v2481, 7
        %v2483 = vsub.s32 0, %v2482
        %v2484 = vrot.slane %v2479, %v2483
        %2486 = vmatprep.subr.mxu0 0.0
        %2487 = vmatpush1.msra.mxu0 %v2470
        %2488 = vmatprep.subr.mxu0 0.0
        %2489 = vmatpush1.msra.mxu0 %v2471
        %2490 = vmatprep.subr.mxu0 0.0
        %2491 = vmatpush1.msra.mxu0 %v2472
        %2492 = vmatprep.subr.mxu0 0.0
        %2493 = vmatpush1.msra.mxu0 %v2473
        %2494 = vmatprep.subr.mxu0 0.0
        %2495 = vmatpush1.msra.mxu0 %v2474
        %2496 = vmatprep.subr.mxu0 0.0
        %2497 = vmatpush1.msra.mxu0 %v2475
        %2498 = vmatprep.subr.mxu0 0.0
        %2499 = vmatpush1.msra.mxu0 %v2476
        %2500 = vmatprep.subr.mxu0 0.0
        %2501 = vmatpush1.msra.mxu0 %v2477
        %2502 = vmatprep.subr.mxu0 0.0
        %2503 = vmatpush1.msra.mxu0 0.0
        %2504 = vmatprep.subr.mxu0 0.0
        %2505 = vmatpush1.msra.mxu0 0.0
        %2506 = vmatprep.subr.mxu0 0.0
        %2507 = vmatpush1.msra.mxu0 0.0
        %2508 = vmatprep.subr.mxu0 0.0
        %2509 = vmatpush1.msra.mxu0 0.0
        %2510 = vmatprep.subr.mxu0 0.0
        %2511 = vmatpush1.msra.mxu0 0.0
        %2512 = vmatprep.subr.mxu0 0.0
        %2513 = vmatpush1.msra.mxu0 0.0
        %2514 = vmatprep.subr.mxu0 0.0
        %2515 = vmatpush1.msra.mxu0 0.0
        %2516 = vmatprep.subr.mxu0 0.0
        %2517 = vmatpush1.msra.mxu0 0.0
        %2518 = vmatprep.subr.mxu0 0.0
        %2519 = vmatpush1.msra.mxu0 0.0
        %2520 = vmatprep.subr.mxu0 0.0
        %2521 = vmatpush1.msra.mxu0 0.0
        %2522 = vmatprep.subr.mxu0 0.0
        %2523 = vmatpush1.msra.mxu0 0.0
        %2524 = vmatprep.subr.mxu0 0.0
        %2525 = vmatpush1.msra.mxu0 0.0
        %2526 = vmatprep.subr.mxu0 0.0
        %2527 = vmatpush1.msra.mxu0 0.0
        %2528 = vmatprep.subr.mxu0 0.0
        %2529 = vmatpush1.msra.mxu0 0.0
        %2530 = vmatprep.subr.mxu0 0.0
        %2531 = vmatpush1.msra.mxu0 0.0
        %2532 = vmatprep.subr.mxu0 0.0
        %2533 = vmatpush1.msra.mxu0 0.0
        %2534 = vmatprep.subr.mxu0 0.0
        %2535 = vmatpush1.msra.mxu0 0.0
        %2536 = vmatprep.subr.mxu0 0.0
        %2537 = vmatpush1.msra.mxu0 0.0
        %2538 = vmatprep.subr.mxu0 0.0
        %2539 = vmatpush1.msra.mxu0 0.0
        %2540 = vmatprep.subr.mxu0 0.0
        %2541 = vmatpush1.msra.mxu0 0.0
        %2542 = vmatprep.subr.mxu0 0.0
        %2543 = vmatpush1.msra.mxu0 0.0
        %2544 = vmatprep.subr.mxu0 0.0
        %2545 = vmatpush1.msra.mxu0 0.0
        %2546 = vmatprep.subr.mxu0 0.0
        %2547 = vmatpush1.msra.mxu0 0.0
        %2548 = vmatprep.subr.mxu0 0.0
        %2549 = vmatpush1.msra.mxu0 0.0
        %2550 = vmatprep.mubr.f32.mxu0 0.0
        %2551 = vmatmul.mubr.f32.gmra.mrb[0].mxu0 %v1882
        %v2552 = vpop.f32.mrb[0].mxu0
        %v2553 = vadd.f32 %v2484, %v2552
        %v2554 = vpop.f32.mrb[0].mxu0
        %2555 = vdwg.mxu0
        %v2557 = vsel %vm1392, %v2553, 0
        %2559 = vmatprep.subr.mxu0 0.0
        %2560 = vmatpush1.xpose.msra.mxu0 %v2557
        %2561 = vmatprep.subr.mxu0 0.0
        %2562 = vmatpush1.xpose.msra.mxu0 0.0
        %2563 = vmatprep.subr.mxu0 0.0
        %2564 = vmatpush1.xpose.msra.mxu0 0.0
        %2565 = vmatprep.subr.mxu0 0.0
        %2566 = vmatpush1.xpose.msra.mxu0 0.0
        %2567 = vmatprep.subr.mxu0 0.0
        %2568 = vmatpush1.xpose.msra.mxu0 0.0
        %2569 = vmatprep.subr.mxu0 0.0
        %2570 = vmatpush1.xpose.msra.mxu0 0.0
        %2571 = vmatprep.subr.mxu0 0.0
        %2572 = vmatpush1.xpose.msra.mxu0 0.0
        %2573 = vmatprep.subr.mxu0 0.0
        %2574 = vmatpush1.xpose.msra.mxu0 0.0
        %2575 = vmatprep.subr.mxu0 0.0
        %2576 = vmatpush1.xpose.msra.mxu0 0.0
        %2577 = vmatprep.subr.mxu0 0.0
        %2578 = vmatpush1.xpose.msra.mxu0 0.0
        %2579 = vmatprep.subr.mxu0 0.0
        %2580 = vmatpush1.xpose.msra.mxu0 0.0
        %2581 = vmatprep.subr.mxu0 0.0
        %2582 = vmatpush1.xpose.msra.mxu0 0.0
        %2583 = vmatprep.subr.mxu0 0.0
        %2584 = vmatpush1.xpose.msra.mxu0 0.0
        %2585 = vmatprep.subr.mxu0 0.0
        %2586 = vmatpush1.xpose.msra.mxu0 0.0
        %2587 = vmatprep.subr.mxu0 0.0
        %2588 = vmatpush1.xpose.msra.mxu0 0.0
        %2589 = vmatprep.subr.mxu0 0.0
        %2590 = vmatpush1.xpose.msra.mxu0 0.0
        %2591 = vmatprep.subr.mxu0 0.0
        %2592 = vmatpush1.xpose.msra.mxu0 0.0
        %2593 = vmatprep.subr.mxu0 0.0
        %2594 = vmatpush1.xpose.msra.mxu0 0.0
        %2595 = vmatprep.subr.mxu0 0.0
        %2596 = vmatpush1.xpose.msra.mxu0 0.0
        %2597 = vmatprep.subr.mxu0 0.0
        %2598 = vmatpush1.xpose.msra.mxu0 0.0
        %2599 = vmatprep.subr.mxu0 0.0
        %2600 = vmatpush1.xpose.msra.mxu0 0.0
        %2601 = vmatprep.subr.mxu0 0.0
        %2602 = vmatpush1.xpose.msra.mxu0 0.0
        %2603 = vmatprep.subr.mxu0 0.0
        %2604 = vmatpush1.xpose.msra.mxu0 0.0
        %2605 = vmatprep.subr.mxu0 0.0
        %2606 = vmatpush1.xpose.msra.mxu0 0.0
        %2607 = vmatprep.subr.mxu0 0.0
        %2608 = vmatpush1.xpose.msra.mxu0 0.0
        %2609 = vmatprep.subr.mxu0 0.0
        %2610 = vmatpush1.xpose.msra.mxu0 0.0
        %2611 = vmatprep.subr.mxu0 0.0
        %2612 = vmatpush1.xpose.msra.mxu0 0.0
        %2613 = vmatprep.subr.mxu0 0.0
        %2614 = vmatpush1.xpose.msra.mxu0 0.0
        %2615 = vmatprep.subr.mxu0 0.0
        %2616 = vmatpush1.xpose.msra.mxu0 0.0
        %2617 = vmatprep.subr.mxu0 0.0
        %2618 = vmatpush1.xpose.msra.mxu0 0.0
        %2619 = vmatprep.subr.mxu0 0.0
        %2620 = vmatpush1.xpose.msra.mxu0 0.0
        %2621 = vmatprep.subr.mxu0 0.0
        %2622 = vmatpush1.xpose.msra.mxu0 0.0
        %2623 = vmatprep.mubr.f32.mxu0 0.0
        %2624 = vmatmul.mubr.f32.gmra.mrb[0].mxu0 %v1955
        %v2625 = vpop.f32.mrb[0].mxu0
        %v2626 = vadd.f32 0.0, %v2625
        %v2627 = vpop.f32.mrb[0].mxu0
        %2628 = vmatprep.mubr.f32.mxu0 0.0
        %2629 = vmatmul.mubr.f32.gmra.mrb[0].mxu0 %v1958
        %v2630 = vpop.f32.mrb[0].mxu0
        %v2631 = vadd.f32 0.0, %v2630
        %v2632 = vpop.f32.mrb[0].mxu0
        %2633 = vdwg.mxu0
        %v2634 = vxor.u32 %v2626, 2147483648
        %v2635 = vxor.u32 %v2631, 2147483648
        %v2636 = vmul.f32 %v2634, 1.442695
        %v2637 = vpow.pop %v2636
        %v2638 = vmul.f32 %v2635, 1.442695
        %v2639 = vpow.pop %v2638
        %v2640 = vadd.f32 %v2637, 1.0
        %v2641 = vadd.f32 %v2639, 1.0
        %v2642 = vrcp.pop %v2640
        %v2643 = vmul.f32 1.0, %v2642
        %v2644 = vrcp.pop %v2641
        %v2645 = vmul.f32 1.0, %v2644
        %v2646 = vmul.f32 %v2643, %v2051
        %v2647 = vmul.f32 %v2645, %v2051
        %v2648 = vsel %vm1688, %v2646, 0.0
        %v2649 = vsel %vm1688, %v2647, 0.0
        %v2650 = vadd.f32 %v2648, %v2649
        %v2651 = vrot.slane %v2650, 4
        %v2652 = vadd.f32 %v2650, %v2651
        %v2653 = vrot.slane %v2652, 2
        %v2654 = vadd.f32 %v2652, %v2653
        %v2655 = vrot.slane %v2654, 1
        %v2656 = vadd.f32 %v2654, %v2655
        %v2657 = vmax.f32 %v2656, 1e-06
        %v2658 = vrcp.pop %v2657
        %v2659 = vmul.f32 %v2646, %v2658
        %v2660 = vmul.f32 %v2647, %v2658
        %2661 = vxpose.xlu0.b32.start [1/16] %v2659, 128
        %2662 = vxpose.xlu0.b32.cont [2/16] %v2660, 128
        %2663 = vxpose.xlu0.b32.cont [3/16] 0.0, 128
        %2664 = vxpose.xlu0.b32.cont [4/16] 0.0, 128
        %2665 = vxpose.xlu0.b32.cont [5/16] 0.0, 128
        %2666 = vxpose.xlu0.b32.cont [6/16] 0.0, 128
        %2667 = vxpose.xlu0.b32.cont [7/16] 0.0, 128
        %2668 = vxpose.xlu0.b32.cont [8/16] 0.0, 128
        %2669 = vxpose.xlu0.b32.cont [9/16] 0.0, 128
        %2670 = vxpose.xlu0.b32.cont [10/16] 0.0, 128
        %2671 = vxpose.xlu0.b32.cont [11/16] 0.0, 128
        %2672 = vxpose.xlu0.b32.cont [12/16] 0.0, 128
        %2673 = vxpose.xlu0.b32.cont [13/16] 0.0, 128
        %2674 = vxpose.xlu0.b32.cont [14/16] 0.0, 128
        %2675 = vxpose.xlu0.b32.cont [15/16] 0.0, 128
        %2676 = vxpose.xlu0.b32.end [16/16] 0.0, 128
        %v2677 = vpop.trf.xlu0
        %v2678 = vpop.trf.xlu0
        %v2679 = vpop.trf.xlu0
        %v2680 = vpop.trf.xlu0
        %v2681 = vpop.trf.xlu0
        %v2682 = vpop.trf.xlu0
        %v2683 = vpop.trf.xlu0
        %v2684 = vpop.trf.xlu0
        %v2685 = vpop.trf.xlu0
        %v2686 = vpop.trf.xlu0
        %v2687 = vpop.trf.xlu0
        %v2688 = vpop.trf.xlu0
        %v2689 = vpop.trf.xlu0
        %v2690 = vpop.trf.xlu0
        %v2691 = vpop.trf.xlu0
        %v2692 = vpop.trf.xlu0
        %v2694 = vsel %vm2099, %v2677, 0
        %2696 = vmatprep.subr.mxu0 0.0
        %2697 = vmatpush1.msra.mxu0 %v1685
        %2698 = vmatprep.subr.mxu0 0.0
        %2699 = vmatpush1.msra.mxu0 %v1686
        %2700 = vmatprep.subr.mxu0 0.0
        %2701 = vmatpush1.msra.mxu0 0.0
        %2702 = vmatprep.subr.mxu0 0.0
        %2703 = vmatpush1.msra.mxu0 0.0
        %2704 = vmatprep.subr.mxu0 0.0
        %2705 = vmatpush1.msra.mxu0 0.0
        %2706 = vmatprep.subr.mxu0 0.0
        %2707 = vmatpush1.msra.mxu0 0.0
        %2708 = vmatprep.subr.mxu0 0.0
        %2709 = vmatpush1.msra.mxu0 0.0
        %2710 = vmatprep.subr.mxu0 0.0
        %2711 = vmatpush1.msra.mxu0 0.0
        %2712 = vmatprep.subr.mxu0 0.0
        %2713 = vmatpush1.msra.mxu0 0.0
        %2714 = vmatprep.subr.mxu0 0.0
        %2715 = vmatpush1.msra.mxu0 0.0
        %2716 = vmatprep.subr.mxu0 0.0
        %2717 = vmatpush1.msra.mxu0 0.0
        %2718 = vmatprep.subr.mxu0 0.0
        %2719 = vmatpush1.msra.mxu0 0.0
        %2720 = vmatprep.subr.mxu0 0.0
        %2721 = vmatpush1.msra.mxu0 0.0
        %2722 = vmatprep.subr.mxu0 0.0
        %2723 = vmatpush1.msra.mxu0 0.0
        %2724 = vmatprep.subr.mxu0 0.0
        %2725 = vmatpush1.msra.mxu0 0.0
        %2726 = vmatprep.subr.mxu0 0.0
        %2727 = vmatpush1.msra.mxu0 0.0
        %2728 = vmatprep.subr.mxu0 0.0
        %2729 = vmatpush1.msra.mxu0 0.0
        %2730 = vmatprep.subr.mxu0 0.0
        %2731 = vmatpush1.msra.mxu0 0.0
        %2732 = vmatprep.subr.mxu0 0.0
        %2733 = vmatpush1.msra.mxu0 0.0
        %2734 = vmatprep.subr.mxu0 0.0
        %2735 = vmatpush1.msra.mxu0 0.0
        %2736 = vmatprep.subr.mxu0 0.0
        %2737 = vmatpush1.msra.mxu0 0.0
        %2738 = vmatprep.subr.mxu0 0.0
        %2739 = vmatpush1.msra.mxu0 0.0
        %2740 = vmatprep.subr.mxu0 0.0
        %2741 = vmatpush1.msra.mxu0 0.0
        %2742 = vmatprep.subr.mxu0 0.0
        %2743 = vmatpush1.msra.mxu0 0.0
        %2744 = vmatprep.subr.mxu0 0.0
        %2745 = vmatpush1.msra.mxu0 0.0
        %2746 = vmatprep.subr.mxu0 0.0
        %2747 = vmatpush1.msra.mxu0 0.0
        %2748 = vmatprep.subr.mxu0 0.0
        %2749 = vmatpush1.msra.mxu0 0.0
        %2750 = vmatprep.subr.mxu0 0.0
        %2751 = vmatpush1.msra.mxu0 0.0
        %2752 = vmatprep.subr.mxu0 0.0
        %2753 = vmatpush1.msra.mxu0 0.0
        %2754 = vmatprep.subr.mxu0 0.0
        %2755 = vmatpush1.msra.mxu0 0.0
        %2756 = vmatprep.subr.mxu0 0.0
        %2757 = vmatpush1.msra.mxu0 0.0
        %2758 = vmatprep.subr.mxu0 0.0
        %2759 = vmatpush1.msra.mxu0 0.0
        %2760 = vmatprep.mubr.f32.mxu0 0.0
        %2761 = vmatmul.mubr.f32.gmra.mrb[0].mxu0 %v2694
        %v2762 = vpop.f32.mrb[0].mxu0
        %v2763 = vadd.f32 0.0, %v2762
        %v2764 = vpop.f32.mrb[0].mxu0
        %2765 = vdwg.mxu0
        %v2767 = vrot.slane %v2763, 2
        %v2768 = vsel %vm1392, %v2767, 0
        %2770 = vmatprep.subr.mxu0 0.0
        %2771 = vmatpush1.msra.mxu0 %v1852
        %2772 = vmatprep.subr.mxu0 0.0
        %2773 = vmatpush1.msra.mxu0 %v1853
        %2774 = vmatprep.subr.mxu0 0.0
        %2775 = vmatpush1.msra.mxu0 %v1854
        %2776 = vmatprep.subr.mxu0 0.0
        %2777 = vmatpush1.msra.mxu0 %v1855
        %2778 = vmatprep.subr.mxu0 0.0
        %2779 = vmatpush1.msra.mxu0 0.0
        %2780 = vmatprep.subr.mxu0 0.0
        %2781 = vmatpush1.msra.mxu0 0.0
        %2782 = vmatprep.subr.mxu0 0.0
        %2783 = vmatpush1.msra.mxu0 0.0
        %2784 = vmatprep.subr.mxu0 0.0
        %2785 = vmatpush1.msra.mxu0 0.0
        %2786 = vmatprep.subr.mxu0 0.0
        %2787 = vmatpush1.msra.mxu0 0.0
        %2788 = vmatprep.subr.mxu0 0.0
        %2789 = vmatpush1.msra.mxu0 0.0
        %2790 = vmatprep.subr.mxu0 0.0
        %2791 = vmatpush1.msra.mxu0 0.0
        %2792 = vmatprep.subr.mxu0 0.0
        %2793 = vmatpush1.msra.mxu0 0.0
        %2794 = vmatprep.subr.mxu0 0.0
        %2795 = vmatpush1.msra.mxu0 0.0
        %2796 = vmatprep.subr.mxu0 0.0
        %2797 = vmatpush1.msra.mxu0 0.0
        %2798 = vmatprep.subr.mxu0 0.0
        %2799 = vmatpush1.msra.mxu0 0.0
        %2800 = vmatprep.subr.mxu0 0.0
        %2801 = vmatpush1.msra.mxu0 0.0
        %2802 = vmatprep.subr.mxu0 0.0
        %2803 = vmatpush1.msra.mxu0 0.0
        %2804 = vmatprep.subr.mxu0 0.0
        %2805 = vmatpush1.msra.mxu0 0.0
        %2806 = vmatprep.subr.mxu0 0.0
        %2807 = vmatpush1.msra.mxu0 0.0
        %2808 = vmatprep.subr.mxu0 0.0
        %2809 = vmatpush1.msra.mxu0 0.0
        %2810 = vmatprep.subr.mxu0 0.0
        %2811 = vmatpush1.msra.mxu0 0.0
        %2812 = vmatprep.subr.mxu0 0.0
        %2813 = vmatpush1.msra.mxu0 0.0
        %2814 = vmatprep.subr.mxu0 0.0
        %2815 = vmatpush1.msra.mxu0 0.0
        %2816 = vmatprep.subr.mxu0 0.0
        %2817 = vmatpush1.msra.mxu0 0.0
        %2818 = vmatprep.subr.mxu0 0.0
        %2819 = vmatpush1.msra.mxu0 0.0
        %2820 = vmatprep.subr.mxu0 0.0
        %2821 = vmatpush1.msra.mxu0 0.0
        %2822 = vmatprep.subr.mxu0 0.0
        %2823 = vmatpush1.msra.mxu0 0.0
        %2824 = vmatprep.subr.mxu0 0.0
        %2825 = vmatpush1.msra.mxu0 0.0
        %2826 = vmatprep.subr.mxu0 0.0
        %2827 = vmatpush1.msra.mxu0 0.0
        %2828 = vmatprep.subr.mxu0 0.0
        %2829 = vmatpush1.msra.mxu0 0.0
        %2830 = vmatprep.subr.mxu0 0.0
        %2831 = vmatpush1.msra.mxu0 0.0
        %2832 = vmatprep.subr.mxu0 0.0
        %2833 = vmatpush1.msra.mxu0 0.0
        %2834 = vmatprep.mubr.f32.mxu0 0.0
        %2835 = vmatmul.mubr.f32.gmra.mrb[0].mxu0 %v2768
        %v2836 = vpop.f32.mrb[0].mxu0
        %v2837 = vadd.f32 0.0, %v2836
        %v2838 = vpop.f32.mrb[0].mxu0
        %2839 = vdwg.mxu0
        %v2840 = vsel %vm1392, %v2763, 0
        %2842 = vmatprep.subr.mxu0 0.0
        %2843 = vmatpush1.msra.mxu0 %v1848
        %2844 = vmatprep.subr.mxu0 0.0
        %2845 = vmatpush1.msra.mxu0 %v1849
        %2846 = vmatprep.subr.mxu0 0.0
        %2847 = vmatpush1.msra.mxu0 %v1850
        %2848 = vmatprep.subr.mxu0 0.0
        %2849 = vmatpush1.msra.mxu0 %v1851
        %2850 = vmatprep.subr.mxu0 0.0
        %2851 = vmatpush1.msra.mxu0 0.0
        %2852 = vmatprep.subr.mxu0 0.0
        %2853 = vmatpush1.msra.mxu0 0.0
        %2854 = vmatprep.subr.mxu0 0.0
        %2855 = vmatpush1.msra.mxu0 0.0
        %2856 = vmatprep.subr.mxu0 0.0
        %2857 = vmatpush1.msra.mxu0 0.0
        %2858 = vmatprep.subr.mxu0 0.0
        %2859 = vmatpush1.msra.mxu0 0.0
        %2860 = vmatprep.subr.mxu0 0.0
        %2861 = vmatpush1.msra.mxu0 0.0
        %2862 = vmatprep.subr.mxu0 0.0
        %2863 = vmatpush1.msra.mxu0 0.0
        %2864 = vmatprep.subr.mxu0 0.0
        %2865 = vmatpush1.msra.mxu0 0.0
        %2866 = vmatprep.subr.mxu0 0.0
        %2867 = vmatpush1.msra.mxu0 0.0
        %2868 = vmatprep.subr.mxu0 0.0
        %2869 = vmatpush1.msra.mxu0 0.0
        %2870 = vmatprep.subr.mxu0 0.0
        %2871 = vmatpush1.msra.mxu0 0.0
        %2872 = vmatprep.subr.mxu0 0.0
        %2873 = vmatpush1.msra.mxu0 0.0
        %2874 = vmatprep.subr.mxu0 0.0
        %2875 = vmatpush1.msra.mxu0 0.0
        %2876 = vmatprep.subr.mxu0 0.0
        %2877 = vmatpush1.msra.mxu0 0.0
        %2878 = vmatprep.subr.mxu0 0.0
        %2879 = vmatpush1.msra.mxu0 0.0
        %2880 = vmatprep.subr.mxu0 0.0
        %2881 = vmatpush1.msra.mxu0 0.0
        %2882 = vmatprep.subr.mxu0 0.0
        %2883 = vmatpush1.msra.mxu0 0.0
        %2884 = vmatprep.subr.mxu0 0.0
        %2885 = vmatpush1.msra.mxu0 0.0
        %2886 = vmatprep.subr.mxu0 0.0
        %2887 = vmatpush1.msra.mxu0 0.0
        %2888 = vmatprep.subr.mxu0 0.0
        %2889 = vmatpush1.msra.mxu0 0.0
        %2890 = vmatprep.subr.mxu0 0.0
        %2891 = vmatpush1.msra.mxu0 0.0
        %2892 = vmatprep.subr.mxu0 0.0
        %2893 = vmatpush1.msra.mxu0 0.0
        %2894 = vmatprep.subr.mxu0 0.0
        %2895 = vmatpush1.msra.mxu0 0.0
        %2896 = vmatprep.subr.mxu0 0.0
        %2897 = vmatpush1.msra.mxu0 0.0
        %2898 = vmatprep.subr.mxu0 0.0
        %2899 = vmatpush1.msra.mxu0 0.0
        %2900 = vmatprep.subr.mxu0 0.0
        %2901 = vmatpush1.msra.mxu0 0.0
        %2902 = vmatprep.subr.mxu0 0.0
        %2903 = vmatpush1.msra.mxu0 0.0
        %2904 = vmatprep.subr.mxu0 0.0
        %2905 = vmatpush1.msra.mxu0 0.0
        %2906 = vmatprep.mubr.f32.mxu0 0.0
        %2907 = vmatmul.mubr.f32.gmra.mrb[0].mxu0 %v2840
        %v2908 = vpop.f32.mrb[0].mxu0
        %v2909 = vadd.f32 %v2837, %v2908
        %v2910 = vpop.f32.mrb[0].mxu0
        %2911 = vdwg.mxu0
        %v2912 = vrot.slane %v2763, 4
        %v2913 = vsel %vm1392, %v2912, 0
        %2915 = vmatprep.subr.mxu0 0.0
        %2916 = vmatpush1.msra.mxu0 %v1856
        %2917 = vmatprep.subr.mxu0 0.0
        %2918 = vmatpush1.msra.mxu0 %v1857
        %2919 = vmatprep.subr.mxu0 0.0
        %2920 = vmatpush1.msra.mxu0 %v1858
        %2921 = vmatprep.subr.mxu0 0.0
        %2922 = vmatpush1.msra.mxu0 %v1859
        %2923 = vmatprep.subr.mxu0 0.0
        %2924 = vmatpush1.msra.mxu0 0.0
        %2925 = vmatprep.subr.mxu0 0.0
        %2926 = vmatpush1.msra.mxu0 0.0
        %2927 = vmatprep.subr.mxu0 0.0
        %2928 = vmatpush1.msra.mxu0 0.0
        %2929 = vmatprep.subr.mxu0 0.0
        %2930 = vmatpush1.msra.mxu0 0.0
        %2931 = vmatprep.subr.mxu0 0.0
        %2932 = vmatpush1.msra.mxu0 0.0
        %2933 = vmatprep.subr.mxu0 0.0
        %2934 = vmatpush1.msra.mxu0 0.0
        %2935 = vmatprep.subr.mxu0 0.0
        %2936 = vmatpush1.msra.mxu0 0.0
        %2937 = vmatprep.subr.mxu0 0.0
        %2938 = vmatpush1.msra.mxu0 0.0
        %2939 = vmatprep.subr.mxu0 0.0
        %2940 = vmatpush1.msra.mxu0 0.0
        %2941 = vmatprep.subr.mxu0 0.0
        %2942 = vmatpush1.msra.mxu0 0.0
        %2943 = vmatprep.subr.mxu0 0.0
        %2944 = vmatpush1.msra.mxu0 0.0
        %2945 = vmatprep.subr.mxu0 0.0
        %2946 = vmatpush1.msra.mxu0 0.0
        %2947 = vmatprep.subr.mxu0 0.0
        %2948 = vmatpush1.msra.mxu0 0.0
        %2949 = vmatprep.subr.mxu0 0.0
        %2950 = vmatpush1.msra.mxu0 0.0
        %2951 = vmatprep.subr.mxu0 0.0
        %2952 = vmatpush1.msra.mxu0 0.0
        %2953 = vmatprep.subr.mxu0 0.0
        %2954 = vmatpush1.msra.mxu0 0.0
        %2955 = vmatprep.subr.mxu0 0.0
        %2956 = vmatpush1.msra.mxu0 0.0
        %2957 = vmatprep.subr.mxu0 0.0
        %2958 = vmatpush1.msra.mxu0 0.0
        %2959 = vmatprep.subr.mxu0 0.0
        %2960 = vmatpush1.msra.mxu0 0.0
        %2961 = vmatprep.subr.mxu0 0.0
        %2962 = vmatpush1.msra.mxu0 0.0
        %2963 = vmatprep.subr.mxu0 0.0
        %2964 = vmatpush1.msra.mxu0 0.0
        %2965 = vmatprep.subr.mxu0 0.0
        %2966 = vmatpush1.msra.mxu0 0.0
        %2967 = vmatprep.subr.mxu0 0.0
        %2968 = vmatpush1.msra.mxu0 0.0
        %2969 = vmatprep.subr.mxu0 0.0
        %2970 = vmatpush1.msra.mxu0 0.0
        %2971 = vmatprep.subr.mxu0 0.0
        %2972 = vmatpush1.msra.mxu0 0.0
        %2973 = vmatprep.subr.mxu0 0.0
        %2974 = vmatpush1.msra.mxu0 0.0
        %2975 = vmatprep.subr.mxu0 0.0
        %2976 = vmatpush1.msra.mxu0 0.0
        %2977 = vmatprep.subr.mxu0 0.0
        %2978 = vmatpush1.msra.mxu0 0.0
        %2979 = vmatprep.mubr.f32.mxu0 0.0
        %2980 = vmatmul.mubr.f32.gmra.mrb[0].mxu0 %v2913
        %v2981 = vpop.f32.mrb[0].mxu0
        %v2982 = vadd.f32 0.0, %v2981
        %v2983 = vpop.f32.mrb[0].mxu0
        %2984 = vdwg.mxu0
        %v2985 = vadd.f32 %v2909, %v2982
        %v2986 = vrot.slane %v2763, 6
        %v2987 = vsel %vm1392, %v2986, 0
        %2989 = vmatprep.subr.mxu0 0.0
        %2990 = vmatpush1.msra.mxu0 %v1860
        %2991 = vmatprep.subr.mxu0 0.0
        %2992 = vmatpush1.msra.mxu0 %v1861
        %2993 = vmatprep.subr.mxu0 0.0
        %2994 = vmatpush1.msra.mxu0 %v1862
        %2995 = vmatprep.subr.mxu0 0.0
        %2996 = vmatpush1.msra.mxu0 %v1863
        %2997 = vmatprep.subr.mxu0 0.0
        %2998 = vmatpush1.msra.mxu0 0.0
        %2999 = vmatprep.subr.mxu0 0.0
        %3000 = vmatpush1.msra.mxu0 0.0
        %3001 = vmatprep.subr.mxu0 0.0
        %3002 = vmatpush1.msra.mxu0 0.0
        %3003 = vmatprep.subr.mxu0 0.0
        %3004 = vmatpush1.msra.mxu0 0.0
        %3005 = vmatprep.subr.mxu0 0.0
        %3006 = vmatpush1.msra.mxu0 0.0
        %3007 = vmatprep.subr.mxu0 0.0
        %3008 = vmatpush1.msra.mxu0 0.0
        %3009 = vmatprep.subr.mxu0 0.0
        %3010 = vmatpush1.msra.mxu0 0.0
        %3011 = vmatprep.subr.mxu0 0.0
        %3012 = vmatpush1.msra.mxu0 0.0
        %3013 = vmatprep.subr.mxu0 0.0
        %3014 = vmatpush1.msra.mxu0 0.0
        %3015 = vmatprep.subr.mxu0 0.0
        %3016 = vmatpush1.msra.mxu0 0.0
        %3017 = vmatprep.subr.mxu0 0.0
        %3018 = vmatpush1.msra.mxu0 0.0
        %3019 = vmatprep.subr.mxu0 0.0
        %3020 = vmatpush1.msra.mxu0 0.0
        %3021 = vmatprep.subr.mxu0 0.0
        %3022 = vmatpush1.msra.mxu0 0.0
        %3023 = vmatprep.subr.mxu0 0.0
        %3024 = vmatpush1.msra.mxu0 0.0
        %3025 = vmatprep.subr.mxu0 0.0
        %3026 = vmatpush1.msra.mxu0 0.0
        %3027 = vmatprep.subr.mxu0 0.0
        %3028 = vmatpush1.msra.mxu0 0.0
        %3029 = vmatprep.subr.mxu0 0.0
        %3030 = vmatpush1.msra.mxu0 0.0
        %3031 = vmatprep.subr.mxu0 0.0
        %3032 = vmatpush1.msra.mxu0 0.0
        %3033 = vmatprep.subr.mxu0 0.0
        %3034 = vmatpush1.msra.mxu0 0.0
        %3035 = vmatprep.subr.mxu0 0.0
        %3036 = vmatpush1.msra.mxu0 0.0
        %3037 = vmatprep.subr.mxu0 0.0
        %3038 = vmatpush1.msra.mxu0 0.0
        %3039 = vmatprep.subr.mxu0 0.0
        %3040 = vmatpush1.msra.mxu0 0.0
        %3041 = vmatprep.subr.mxu0 0.0
        %3042 = vmatpush1.msra.mxu0 0.0
        %3043 = vmatprep.subr.mxu0 0.0
        %3044 = vmatpush1.msra.mxu0 0.0
        %3045 = vmatprep.subr.mxu0 0.0
        %3046 = vmatpush1.msra.mxu0 0.0
        %3047 = vmatprep.subr.mxu0 0.0
        %3048 = vmatpush1.msra.mxu0 0.0
        %3049 = vmatprep.subr.mxu0 0.0
        %3050 = vmatpush1.msra.mxu0 0.0
        %3051 = vmatprep.subr.mxu0 0.0
        %3052 = vmatpush1.msra.mxu0 0.0
        %3053 = vmatprep.mubr.f32.mxu0 0.0
        %3054 = vmatmul.mubr.f32.gmra.mrb[0].mxu0 %v2987
        %v3055 = vpop.f32.mrb[0].mxu0
        %v3056 = vadd.f32 0.0, %v3055
        %v3057 = vpop.f32.mrb[0].mxu0
        %3058 = vdwg.mxu0
        %v3059 = vadd.f32 %v2985, %v3056
        %3060 = vst.msk [vmem:[#allocation2 + $0x2] sm:$0x3] %vm2467, %v3059
        %s3061 = scalar_lea.vmem %s1375, 128
        %v3062 = vld [vmem:[%s3061] sm:$0xff]
        %v3063 = vld [vmem:[%s3061 + $0x8] sm:$0xff]
        %v3064 = vld [vmem:[%s3061 + $0x10] sm:$0xff]
        %v3065 = vld [vmem:[%s3061 + $0x18] sm:$0xff]
        %v3066 = vld [vmem:[%s3061 + $0x20] sm:$0xff]
        %v3067 = vld [vmem:[%s3061 + $0x28] sm:$0xff]
        %v3068 = vld [vmem:[%s3061 + $0x30] sm:$0xff]
        %v3069 = vld [vmem:[%s3061 + $0x38] sm:$0xff]
        %s3070 = scalar_lea.vmem %s1379, 2
        %v3071 = vld [vmem:[%s3070] sm:$0x1]
        %v3073 = vlaneseq
        %v3074 = vshrl.u32 %v3073, 7
        %v3075 = vsub.s32 0, %v3074
        %v3076 = vrot.slane %v3071, %v3075
        %3078 = vmatprep.subr.mxu0 0.0
        %3079 = vmatpush1.msra.mxu0 %v3062
        %3080 = vmatprep.subr.mxu0 0.0
        %3081 = vmatpush1.msra.mxu0 %v3063
        %3082 = vmatprep.subr.mxu0 0.0
        %3083 = vmatpush1.msra.mxu0 %v3064
        %3084 = vmatprep.subr.mxu0 0.0
        %3085 = vmatpush1.msra.mxu0 %v3065
        %3086 = vmatprep.subr.mxu0 0.0
        %3087 = vmatpush1.msra.mxu0 %v3066
        %3088 = vmatprep.subr.mxu0 0.0
        %3089 = vmatpush1.msra.mxu0 %v3067
        %3090 = vmatprep.subr.mxu0 0.0
        %3091 = vmatpush1.msra.mxu0 %v3068
        %3092 = vmatprep.subr.mxu0 0.0
        %3093 = vmatpush1.msra.mxu0 %v3069
        %3094 = vmatprep.subr.mxu0 0.0
        %3095 = vmatpush1.msra.mxu0 0.0
        %3096 = vmatprep.subr.mxu0 0.0
        %3097 = vmatpush1.msra.mxu0 0.0
        %3098 = vmatprep.subr.mxu0 0.0
        %3099 = vmatpush1.msra.mxu0 0.0
        %3100 = vmatprep.subr.mxu0 0.0
        %3101 = vmatpush1.msra.mxu0 0.0
        %3102 = vmatprep.subr.mxu0 0.0
        %3103 = vmatpush1.msra.mxu0 0.0
        %3104 = vmatprep.subr.mxu0 0.0
        %3105 = vmatpush1.msra.mxu0 0.0
        %3106 = vmatprep.subr.mxu0 0.0
        %3107 = vmatpush1.msra.mxu0 0.0
        %3108 = vmatprep.subr.mxu0 0.0
        %3109 = vmatpush1.msra.mxu0 0.0
        %3110 = vmatprep.subr.mxu0 0.0
        %3111 = vmatpush1.msra.mxu0 0.0
        %3112 = vmatprep.subr.mxu0 0.0
        %3113 = vmatpush1.msra.mxu0 0.0
        %3114 = vmatprep.subr.mxu0 0.0
        %3115 = vmatpush1.msra.mxu0 0.0
        %3116 = vmatprep.subr.mxu0 0.0
        %3117 = vmatpush1.msra.mxu0 0.0
        %3118 = vmatprep.subr.mxu0 0.0
        %3119 = vmatpush1.msra.mxu0 0.0
        %3120 = vmatprep.subr.mxu0 0.0
        %3121 = vmatpush1.msra.mxu0 0.0
        %3122 = vmatprep.subr.mxu0 0.0
        %3123 = vmatpush1.msra.mxu0 0.0
        %3124 = vmatprep.subr.mxu0 0.0
        %3125 = vmatpush1.msra.mxu0 0.0
        %3126 = vmatprep.subr.mxu0 0.0
        %3127 = vmatpush1.msra.mxu0 0.0
        %3128 = vmatprep.subr.mxu0 0.0
        %3129 = vmatpush1.msra.mxu0 0.0
        %3130 = vmatprep.subr.mxu0 0.0
        %3131 = vmatpush1.msra.mxu0 0.0
        %3132 = vmatprep.subr.mxu0 0.0
        %3133 = vmatpush1.msra.mxu0 0.0
        %3134 = vmatprep.subr.mxu0 0.0
        %3135 = vmatpush1.msra.mxu0 0.0
        %3136 = vmatprep.subr.mxu0 0.0
        %3137 = vmatpush1.msra.mxu0 0.0
        %3138 = vmatprep.subr.mxu0 0.0
        %3139 = vmatpush1.msra.mxu0 0.0
        %3140 = vmatprep.subr.mxu0 0.0
        %3141 = vmatpush1.msra.mxu0 0.0
        %3142 = vmatprep.mubr.f32.mxu0 0.0
        %3143 = vmatmul.mubr.f32.gmra.mrb[0].mxu0 %v1882
        %v3144 = vpop.f32.mrb[0].mxu0
        %v3145 = vadd.f32 %v3076, %v3144
        %v3146 = vpop.f32.mrb[0].mxu0
        %3147 = vdwg.mxu0
        %v3149 = vsel %vm1392, %v3145, 0
        %3151 = vmatprep.subr.mxu0 0.0
        %3152 = vmatpush1.xpose.msra.mxu0 %v3149
        %3153 = vmatprep.subr.mxu0 0.0
        %3154 = vmatpush1.xpose.msra.mxu0 0.0
        %3155 = vmatprep.subr.mxu0 0.0
        %3156 = vmatpush1.xpose.msra.mxu0 0.0
        %3157 = vmatprep.subr.mxu0 0.0
        %3158 = vmatpush1.xpose.msra.mxu0 0.0
        %3159 = vmatprep.subr.mxu0 0.0
        %3160 = vmatpush1.xpose.msra.mxu0 0.0
        %3161 = vmatprep.subr.mxu0 0.0
        %3162 = vmatpush1.xpose.msra.mxu0 0.0
        %3163 = vmatprep.subr.mxu0 0.0
        %3164 = vmatpush1.xpose.msra.mxu0 0.0
        %3165 = vmatprep.subr.mxu0 0.0
        %3166 = vmatpush1.xpose.msra.mxu0 0.0
        %3167 = vmatprep.subr.mxu0 0.0
        %3168 = vmatpush1.xpose.msra.mxu0 0.0
        %3169 = vmatprep.subr.mxu0 0.0
        %3170 = vmatpush1.xpose.msra.mxu0 0.0
        %3171 = vmatprep.subr.mxu0 0.0
        %3172 = vmatpush1.xpose.msra.mxu0 0.0
        %3173 = vmatprep.subr.mxu0 0.0
        %3174 = vmatpush1.xpose.msra.mxu0 0.0
        %3175 = vmatprep.subr.mxu0 0.0
        %3176 = vmatpush1.xpose.msra.mxu0 0.0
        %3177 = vmatprep.subr.mxu0 0.0
        %3178 = vmatpush1.xpose.msra.mxu0 0.0
        %3179 = vmatprep.subr.mxu0 0.0
        %3180 = vmatpush1.xpose.msra.mxu0 0.0
        %3181 = vmatprep.subr.mxu0 0.0
        %3182 = vmatpush1.xpose.msra.mxu0 0.0
        %3183 = vmatprep.subr.mxu0 0.0
        %3184 = vmatpush1.xpose.msra.mxu0 0.0
        %3185 = vmatprep.subr.mxu0 0.0
        %3186 = vmatpush1.xpose.msra.mxu0 0.0
        %3187 = vmatprep.subr.mxu0 0.0
        %3188 = vmatpush1.xpose.msra.mxu0 0.0
        %3189 = vmatprep.subr.mxu0 0.0
        %3190 = vmatpush1.xpose.msra.mxu0 0.0
        %3191 = vmatprep.subr.mxu0 0.0
        %3192 = vmatpush1.xpose.msra.mxu0 0.0
        %3193 = vmatprep.subr.mxu0 0.0
        %3194 = vmatpush1.xpose.msra.mxu0 0.0
        %3195 = vmatprep.subr.mxu0 0.0
        %3196 = vmatpush1.xpose.msra.mxu0 0.0
        %3197 = vmatprep.subr.mxu0 0.0
        %3198 = vmatpush1.xpose.msra.mxu0 0.0
        %3199 = vmatprep.subr.mxu0 0.0
        %3200 = vmatpush1.xpose.msra.mxu0 0.0
        %3201 = vmatprep.subr.mxu0 0.0
        %3202 = vmatpush1.xpose.msra.mxu0 0.0
        %3203 = vmatprep.subr.mxu0 0.0
        %3204 = vmatpush1.xpose.msra.mxu0 0.0
        %3205 = vmatprep.subr.mxu0 0.0
        %3206 = vmatpush1.xpose.msra.mxu0 0.0
        %3207 = vmatprep.subr.mxu0 0.0
        %3208 = vmatpush1.xpose.msra.mxu0 0.0
        %3209 = vmatprep.subr.mxu0 0.0
        %3210 = vmatpush1.xpose.msra.mxu0 0.0
        %3211 = vmatprep.subr.mxu0 0.0
        %3212 = vmatpush1.xpose.msra.mxu0 0.0
        %3213 = vmatprep.subr.mxu0 0.0
        %3214 = vmatpush1.xpose.msra.mxu0 0.0
        %3215 = vmatprep.mubr.f32.mxu0 0.0
        %3216 = vmatmul.mubr.f32.gmra.mrb[0].mxu0 %v1955
        %v3217 = vpop.f32.mrb[0].mxu0
        %v3218 = vadd.f32 0.0, %v3217
        %v3219 = vpop.f32.mrb[0].mxu0
        %3220 = vmatprep.mubr.f32.mxu0 0.0
        %3221 = vmatmul.mubr.f32.gmra.mrb[0].mxu0 %v1958
        %v3222 = vpop.f32.mrb[0].mxu0
        %v3223 = vadd.f32 0.0, %v3222
        %v3224 = vpop.f32.mrb[0].mxu0
        %3225 = vdwg.mxu0
        %v3226 = vxor.u32 %v3218, 2147483648
        %v3227 = vxor.u32 %v3223, 2147483648
        %v3228 = vmul.f32 %v3226, 1.442695
        %v3229 = vpow.pop %v3228
        %v3230 = vmul.f32 %v3227, 1.442695
        %v3231 = vpow.pop %v3230
        %v3232 = vadd.f32 %v3229, 1.0
        %v3233 = vadd.f32 %v3231, 1.0
        %v3234 = vrcp.pop %v3232
        %v3235 = vmul.f32 1.0, %v3234
        %v3236 = vrcp.pop %v3233
        %v3237 = vmul.f32 1.0, %v3236
        %v3238 = vmul.f32 %v3235, %v2051
        %v3239 = vmul.f32 %v3237, %v2051
        %v3240 = vsel %vm1688, %v3238, 0.0
        %v3241 = vsel %vm1688, %v3239, 0.0
        %v3242 = vadd.f32 %v3240, %v3241
        %v3243 = vrot.slane %v3242, 4
        %v3244 = vadd.f32 %v3242, %v3243
        %v3245 = vrot.slane %v3244, 2
        %v3246 = vadd.f32 %v3244, %v3245
        %v3247 = vrot.slane %v3246, 1
        %v3248 = vadd.f32 %v3246, %v3247
        %v3249 = vmax.f32 %v3248, 1e-06
        %v3250 = vrcp.pop %v3249
        %v3251 = vmul.f32 %v3238, %v3250
        %v3252 = vmul.f32 %v3239, %v3250
        %3253 = vxpose.xlu0.b32.start [1/16] %v3251, 128
        %3254 = vxpose.xlu0.b32.cont [2/16] %v3252, 128
        %3255 = vxpose.xlu0.b32.cont [3/16] 0.0, 128
        %3256 = vxpose.xlu0.b32.cont [4/16] 0.0, 128
        %3257 = vxpose.xlu0.b32.cont [5/16] 0.0, 128
        %3258 = vxpose.xlu0.b32.cont [6/16] 0.0, 128
        %3259 = vxpose.xlu0.b32.cont [7/16] 0.0, 128
        %3260 = vxpose.xlu0.b32.cont [8/16] 0.0, 128
        %3261 = vxpose.xlu0.b32.cont [9/16] 0.0, 128
        %3262 = vxpose.xlu0.b32.cont [10/16] 0.0, 128
        %3263 = vxpose.xlu0.b32.cont [11/16] 0.0, 128
        %3264 = vxpose.xlu0.b32.cont [12/16] 0.0, 128
        %3265 = vxpose.xlu0.b32.cont [13/16] 0.0, 128
        %3266 = vxpose.xlu0.b32.cont [14/16] 0.0, 128
        %3267 = vxpose.xlu0.b32.cont [15/16] 0.0, 128
        %3268 = vxpose.xlu0.b32.end [16/16] 0.0, 128
        %v3269 = vpop.trf.xlu0
        %v3270 = vpop.trf.xlu0
        %v3271 = vpop.trf.xlu0
        %v3272 = vpop.trf.xlu0
        %v3273 = vpop.trf.xlu0
        %v3274 = vpop.trf.xlu0
        %v3275 = vpop.trf.xlu0
        %v3276 = vpop.trf.xlu0
        %v3277 = vpop.trf.xlu0
        %v3278 = vpop.trf.xlu0
        %v3279 = vpop.trf.xlu0
        %v3280 = vpop.trf.xlu0
        %v3281 = vpop.trf.xlu0
        %v3282 = vpop.trf.xlu0
        %v3283 = vpop.trf.xlu0
        %v3284 = vpop.trf.xlu0
        %v3286 = vsel %vm2099, %v3269, 0
        %3288 = vmatprep.subr.mxu0 0.0
        %3289 = vmatpush1.msra.mxu0 %v1685
        %3290 = vmatprep.subr.mxu0 0.0
        %3291 = vmatpush1.msra.mxu0 %v1686
        %3292 = vmatprep.subr.mxu0 0.0
        %3293 = vmatpush1.msra.mxu0 0.0
        %3294 = vmatprep.subr.mxu0 0.0
        %3295 = vmatpush1.msra.mxu0 0.0
        %3296 = vmatprep.subr.mxu0 0.0
        %3297 = vmatpush1.msra.mxu0 0.0
        %3298 = vmatprep.subr.mxu0 0.0
        %3299 = vmatpush1.msra.mxu0 0.0
        %3300 = vmatprep.subr.mxu0 0.0
        %3301 = vmatpush1.msra.mxu0 0.0
        %3302 = vmatprep.subr.mxu0 0.0
        %3303 = vmatpush1.msra.mxu0 0.0
        %3304 = vmatprep.subr.mxu0 0.0
        %3305 = vmatpush1.msra.mxu0 0.0
        %3306 = vmatprep.subr.mxu0 0.0
        %3307 = vmatpush1.msra.mxu0 0.0
        %3308 = vmatprep.subr.mxu0 0.0
        %3309 = vmatpush1.msra.mxu0 0.0
        %3310 = vmatprep.subr.mxu0 0.0
        %3311 = vmatpush1.msra.mxu0 0.0
        %3312 = vmatprep.subr.mxu0 0.0
        %3313 = vmatpush1.msra.mxu0 0.0
        %3314 = vmatprep.subr.mxu0 0.0
        %3315 = vmatpush1.msra.mxu0 0.0
        %3316 = vmatprep.subr.mxu0 0.0
        %3317 = vmatpush1.msra.mxu0 0.0
        %3318 = vmatprep.subr.mxu0 0.0
        %3319 = vmatpush1.msra.mxu0 0.0
        %3320 = vmatprep.subr.mxu0 0.0
        %3321 = vmatpush1.msra.mxu0 0.0
        %3322 = vmatprep.subr.mxu0 0.0
        %3323 = vmatpush1.msra.mxu0 0.0
        %3324 = vmatprep.subr.mxu0 0.0
        %3325 = vmatpush1.msra.mxu0 0.0
        %3326 = vmatprep.subr.mxu0 0.0
        %3327 = vmatpush1.msra.mxu0 0.0
        %3328 = vmatprep.subr.mxu0 0.0
        %3329 = vmatpush1.msra.mxu0 0.0
        %3330 = vmatprep.subr.mxu0 0.0
        %3331 = vmatpush1.msra.mxu0 0.0
        %3332 = vmatprep.subr.mxu0 0.0
        %3333 = vmatpush1.msra.mxu0 0.0
        %3334 = vmatprep.subr.mxu0 0.0
        %3335 = vmatpush1.msra.mxu0 0.0
        %3336 = vmatprep.subr.mxu0 0.0
        %3337 = vmatpush1.msra.mxu0 0.0
        %3338 = vmatprep.subr.mxu0 0.0
        %3339 = vmatpush1.msra.mxu0 0.0
        %3340 = vmatprep.subr.mxu0 0.0
        %3341 = vmatpush1.msra.mxu0 0.0
        %3342 = vmatprep.subr.mxu0 0.0
        %3343 = vmatpush1.msra.mxu0 0.0
        %3344 = vmatprep.subr.mxu0 0.0
        %3345 = vmatpush1.msra.mxu0 0.0
        %3346 = vmatprep.subr.mxu0 0.0
        %3347 = vmatpush1.msra.mxu0 0.0
        %3348 = vmatprep.subr.mxu0 0.0
        %3349 = vmatpush1.msra.mxu0 0.0
        %3350 = vmatprep.subr.mxu0 0.0
        %3351 = vmatpush1.msra.mxu0 0.0
        %3352 = vmatprep.mubr.f32.mxu0 0.0
        %3353 = vmatmul.mubr.f32.gmra.mrb[0].mxu0 %v3286
        %v3354 = vpop.f32.mrb[0].mxu0
        %v3355 = vadd.f32 0.0, %v3354
        %v3356 = vpop.f32.mrb[0].mxu0
        %3357 = vdwg.mxu0
        %v3359 = vrot.slane %v3355, 2
        %v3360 = vsel %vm1392, %v3359, 0
        %3362 = vmatprep.subr.mxu0 0.0
        %3363 = vmatpush1.msra.mxu0 %v1852
        %3364 = vmatprep.subr.mxu0 0.0
        %3365 = vmatpush1.msra.mxu0 %v1853
        %3366 = vmatprep.subr.mxu0 0.0
        %3367 = vmatpush1.msra.mxu0 %v1854
        %3368 = vmatprep.subr.mxu0 0.0
        %3369 = vmatpush1.msra.mxu0 %v1855
        %3370 = vmatprep.subr.mxu0 0.0
        %3371 = vmatpush1.msra.mxu0 0.0
        %3372 = vmatprep.subr.mxu0 0.0
        %3373 = vmatpush1.msra.mxu0 0.0
        %3374 = vmatprep.subr.mxu0 0.0
        %3375 = vmatpush1.msra.mxu0 0.0
        %3376 = vmatprep.subr.mxu0 0.0
        %3377 = vmatpush1.msra.mxu0 0.0
        %3378 = vmatprep.subr.mxu0 0.0
        %3379 = vmatpush1.msra.mxu0 0.0
        %3380 = vmatprep.subr.mxu0 0.0
        %3381 = vmatpush1.msra.mxu0 0.0
        %3382 = vmatprep.subr.mxu0 0.0
        %3383 = vmatpush1.msra.mxu0 0.0
        %3384 = vmatprep.subr.mxu0 0.0
        %3385 = vmatpush1.msra.mxu0 0.0
        %3386 = vmatprep.subr.mxu0 0.0
        %3387 = vmatpush1.msra.mxu0 0.0
        %3388 = vmatprep.subr.mxu0 0.0
        %3389 = vmatpush1.msra.mxu0 0.0
        %3390 = vmatprep.subr.mxu0 0.0
        %3391 = vmatpush1.msra.mxu0 0.0
        %3392 = vmatprep.subr.mxu0 0.0
        %3393 = vmatpush1.msra.mxu0 0.0
        %3394 = vmatprep.subr.mxu0 0.0
        %3395 = vmatpush1.msra.mxu0 0.0
        %3396 = vmatprep.subr.mxu0 0.0
        %3397 = vmatpush1.msra.mxu0 0.0
        %3398 = vmatprep.subr.mxu0 0.0
        %3399 = vmatpush1.msra.mxu0 0.0
        %3400 = vmatprep.subr.mxu0 0.0
        %3401 = vmatpush1.msra.mxu0 0.0
        %3402 = vmatprep.subr.mxu0 0.0
        %3403 = vmatpush1.msra.mxu0 0.0
        %3404 = vmatprep.subr.mxu0 0.0
        %3405 = vmatpush1.msra.mxu0 0.0
        %3406 = vmatprep.subr.mxu0 0.0
        %3407 = vmatpush1.msra.mxu0 0.0
        %3408 = vmatprep.subr.mxu0 0.0
        %3409 = vmatpush1.msra.mxu0 0.0
        %3410 = vmatprep.subr.mxu0 0.0
        %3411 = vmatpush1.msra.mxu0 0.0
        %3412 = vmatprep.subr.mxu0 0.0
        %3413 = vmatpush1.msra.mxu0 0.0
        %3414 = vmatprep.subr.mxu0 0.0
        %3415 = vmatpush1.msra.mxu0 0.0
        %3416 = vmatprep.subr.mxu0 0.0
        %3417 = vmatpush1.msra.mxu0 0.0
        %3418 = vmatprep.subr.mxu0 0.0
        %3419 = vmatpush1.msra.mxu0 0.0
        %3420 = vmatprep.subr.mxu0 0.0
        %3421 = vmatpush1.msra.mxu0 0.0
        %3422 = vmatprep.subr.mxu0 0.0
        %3423 = vmatpush1.msra.mxu0 0.0
        %3424 = vmatprep.subr.mxu0 0.0
        %3425 = vmatpush1.msra.mxu0 0.0
        %3426 = vmatprep.mubr.f32.mxu0 0.0
        %3427 = vmatmul.mubr.f32.gmra.mrb[0].mxu0 %v3360
        %v3428 = vpop.f32.mrb[0].mxu0
        %v3429 = vadd.f32 0.0, %v3428
        %v3430 = vpop.f32.mrb[0].mxu0
        %3431 = vdwg.mxu0
        %v3432 = vsel %vm1392, %v3355, 0
        %3434 = vmatprep.subr.mxu0 0.0
        %3435 = vmatpush1.msra.mxu0 %v1848
        %3436 = vmatprep.subr.mxu0 0.0
        %3437 = vmatpush1.msra.mxu0 %v1849
        %3438 = vmatprep.subr.mxu0 0.0
        %3439 = vmatpush1.msra.mxu0 %v1850
        %3440 = vmatprep.subr.mxu0 0.0
        %3441 = vmatpush1.msra.mxu0 %v1851
        %3442 = vmatprep.subr.mxu0 0.0
        %3443 = vmatpush1.msra.mxu0 0.0
        %3444 = vmatprep.subr.mxu0 0.0
        %3445 = vmatpush1.msra.mxu0 0.0
        %3446 = vmatprep.subr.mxu0 0.0
        %3447 = vmatpush1.msra.mxu0 0.0
        %3448 = vmatprep.subr.mxu0 0.0
        %3449 = vmatpush1.msra.mxu0 0.0
        %3450 = vmatprep.subr.mxu0 0.0
        %3451 = vmatpush1.msra.mxu0 0.0
        %3452 = vmatprep.subr.mxu0 0.0
        %3453 = vmatpush1.msra.mxu0 0.0
        %3454 = vmatprep.subr.mxu0 0.0
        %3455 = vmatpush1.msra.mxu0 0.0
        %3456 = vmatprep.subr.mxu0 0.0
        %3457 = vmatpush1.msra.mxu0 0.0
        %3458 = vmatprep.subr.mxu0 0.0
        %3459 = vmatpush1.msra.mxu0 0.0
        %3460 = vmatprep.subr.mxu0 0.0
        %3461 = vmatpush1.msra.mxu0 0.0
        %3462 = vmatprep.subr.mxu0 0.0
        %3463 = vmatpush1.msra.mxu0 0.0
        %3464 = vmatprep.subr.mxu0 0.0
        %3465 = vmatpush1.msra.mxu0 0.0
        %3466 = vmatprep.subr.mxu0 0.0
        %3467 = vmatpush1.msra.mxu0 0.0
        %3468 = vmatprep.subr.mxu0 0.0
        %3469 = vmatpush1.msra.mxu0 0.0
        %3470 = vmatprep.subr.mxu0 0.0
        %3471 = vmatpush1.msra.mxu0 0.0
        %3472 = vmatprep.subr.mxu0 0.0
        %3473 = vmatpush1.msra.mxu0 0.0
        %3474 = vmatprep.subr.mxu0 0.0
        %3475 = vmatpush1.msra.mxu0 0.0
        %3476 = vmatprep.subr.mxu0 0.0
        %3477 = vmatpush1.msra.mxu0 0.0
        %3478 = vmatprep.subr.mxu0 0.0
        %3479 = vmatpush1.msra.mxu0 0.0
        %3480 = vmatprep.subr.mxu0 0.0
        %3481 = vmatpush1.msra.mxu0 0.0
        %3482 = vmatprep.subr.mxu0 0.0
        %3483 = vmatpush1.msra.mxu0 0.0
        %3484 = vmatprep.subr.mxu0 0.0
        %3485 = vmatpush1.msra.mxu0 0.0
        %3486 = vmatprep.subr.mxu0 0.0
        %3487 = vmatpush1.msra.mxu0 0.0
        %3488 = vmatprep.subr.mxu0 0.0
        %3489 = vmatpush1.msra.mxu0 0.0
        %3490 = vmatprep.subr.mxu0 0.0
        %3491 = vmatpush1.msra.mxu0 0.0
        %3492 = vmatprep.subr.mxu0 0.0
        %3493 = vmatpush1.msra.mxu0 0.0
        %3494 = vmatprep.subr.mxu0 0.0
        %3495 = vmatpush1.msra.mxu0 0.0
        %3496 = vmatprep.subr.mxu0 0.0
        %3497 = vmatpush1.msra.mxu0 0.0
        %3498 = vmatprep.mubr.f32.mxu0 0.0
        %3499 = vmatmul.mubr.f32.gmra.mrb[0].mxu0 %v3432
        %v3500 = vpop.f32.mrb[0].mxu0
        %v3501 = vadd.f32 %v3429, %v3500
        %v3502 = vpop.f32.mrb[0].mxu0
        %3503 = vdwg.mxu0
        %v3504 = vrot.slane %v3355, 4
        %v3505 = vsel %vm1392, %v3504, 0
        %3507 = vmatprep.subr.mxu0 0.0
        %3508 = vmatpush1.msra.mxu0 %v1856
        %3509 = vmatprep.subr.mxu0 0.0
        %3510 = vmatpush1.msra.mxu0 %v1857
        %3511 = vmatprep.subr.mxu0 0.0
        %3512 = vmatpush1.msra.mxu0 %v1858
        %3513 = vmatprep.subr.mxu0 0.0
        %3514 = vmatpush1.msra.mxu0 %v1859
        %3515 = vmatprep.subr.mxu0 0.0
        %3516 = vmatpush1.msra.mxu0 0.0
        %3517 = vmatprep.subr.mxu0 0.0
        %3518 = vmatpush1.msra.mxu0 0.0
        %3519 = vmatprep.subr.mxu0 0.0
        %3520 = vmatpush1.msra.mxu0 0.0
        %3521 = vmatprep.subr.mxu0 0.0
        %3522 = vmatpush1.msra.mxu0 0.0
        %3523 = vmatprep.subr.mxu0 0.0
        %3524 = vmatpush1.msra.mxu0 0.0
        %3525 = vmatprep.subr.mxu0 0.0
        %3526 = vmatpush1.msra.mxu0 0.0
        %3527 = vmatprep.subr.mxu0 0.0
        %3528 = vmatpush1.msra.mxu0 0.0
        %3529 = vmatprep.subr.mxu0 0.0
        %3530 = vmatpush1.msra.mxu0 0.0
        %3531 = vmatprep.subr.mxu0 0.0
        %3532 = vmatpush1.msra.mxu0 0.0
        %3533 = vmatprep.subr.mxu0 0.0
        %3534 = vmatpush1.msra.mxu0 0.0
        %3535 = vmatprep.subr.mxu0 0.0
        %3536 = vmatpush1.msra.mxu0 0.0
        %3537 = vmatprep.subr.mxu0 0.0
        %3538 = vmatpush1.msra.mxu0 0.0
        %3539 = vmatprep.subr.mxu0 0.0
        %3540 = vmatpush1.msra.mxu0 0.0
        %3541 = vmatprep.subr.mxu0 0.0
        %3542 = vmatpush1.msra.mxu0 0.0
        %3543 = vmatprep.subr.mxu0 0.0
        %3544 = vmatpush1.msra.mxu0 0.0
        %3545 = vmatprep.subr.mxu0 0.0
        %3546 = vmatpush1.msra.mxu0 0.0
        %3547 = vmatprep.subr.mxu0 0.0
        %3548 = vmatpush1.msra.mxu0 0.0
        %3549 = vmatprep.subr.mxu0 0.0
        %3550 = vmatpush1.msra.mxu0 0.0
        %3551 = vmatprep.subr.mxu0 0.0
        %3552 = vmatpush1.msra.mxu0 0.0
        %3553 = vmatprep.subr.mxu0 0.0
        %3554 = vmatpush1.msra.mxu0 0.0
        %3555 = vmatprep.subr.mxu0 0.0
        %3556 = vmatpush1.msra.mxu0 0.0
        %3557 = vmatprep.subr.mxu0 0.0
        %3558 = vmatpush1.msra.mxu0 0.0
        %3559 = vmatprep.subr.mxu0 0.0
        %3560 = vmatpush1.msra.mxu0 0.0
        %3561 = vmatprep.subr.mxu0 0.0
        %3562 = vmatpush1.msra.mxu0 0.0
        %3563 = vmatprep.subr.mxu0 0.0
        %3564 = vmatpush1.msra.mxu0 0.0
        %3565 = vmatprep.subr.mxu0 0.0
        %3566 = vmatpush1.msra.mxu0 0.0
        %3567 = vmatprep.subr.mxu0 0.0
        %3568 = vmatpush1.msra.mxu0 0.0
        %3569 = vmatprep.subr.mxu0 0.0
        %3570 = vmatpush1.msra.mxu0 0.0
        %3571 = vmatprep.mubr.f32.mxu0 0.0
        %3572 = vmatmul.mubr.f32.gmra.mrb[0].mxu0 %v3505
        %v3573 = vpop.f32.mrb[0].mxu0
        %v3574 = vadd.f32 0.0, %v3573
        %v3575 = vpop.f32.mrb[0].mxu0
        %3576 = vdwg.mxu0
        %v3577 = vadd.f32 %v3501, %v3574
        %v3578 = vrot.slane %v3355, 6
        %v3579 = vsel %vm1392, %v3578, 0
        %3581 = vmatprep.subr.mxu0 0.0
        %3582 = vmatpush1.msra.mxu0 %v1860
        %3583 = vmatprep.subr.mxu0 0.0
        %3584 = vmatpush1.msra.mxu0 %v1861
        %3585 = vmatprep.subr.mxu0 0.0
        %3586 = vmatpush1.msra.mxu0 %v1862
        %3587 = vmatprep.subr.mxu0 0.0
        %3588 = vmatpush1.msra.mxu0 %v1863
        %3589 = vmatprep.subr.mxu0 0.0
        %3590 = vmatpush1.msra.mxu0 0.0
        %3591 = vmatprep.subr.mxu0 0.0
        %3592 = vmatpush1.msra.mxu0 0.0
        %3593 = vmatprep.subr.mxu0 0.0
        %3594 = vmatpush1.msra.mxu0 0.0
        %3595 = vmatprep.subr.mxu0 0.0
        %3596 = vmatpush1.msra.mxu0 0.0
        %3597 = vmatprep.subr.mxu0 0.0
        %3598 = vmatpush1.msra.mxu0 0.0
        %3599 = vmatprep.subr.mxu0 0.0
        %3600 = vmatpush1.msra.mxu0 0.0
        %3601 = vmatprep.subr.mxu0 0.0
        %3602 = vmatpush1.msra.mxu0 0.0
        %3603 = vmatprep.subr.mxu0 0.0
        %3604 = vmatpush1.msra.mxu0 0.0
        %3605 = vmatprep.subr.mxu0 0.0
        %3606 = vmatpush1.msra.mxu0 0.0
        %3607 = vmatprep.subr.mxu0 0.0
        %3608 = vmatpush1.msra.mxu0 0.0
        %3609 = vmatprep.subr.mxu0 0.0
        %3610 = vmatpush1.msra.mxu0 0.0
        %3611 = vmatprep.subr.mxu0 0.0
        %3612 = vmatpush1.msra.mxu0 0.0
        %3613 = vmatprep.subr.mxu0 0.0
        %3614 = vmatpush1.msra.mxu0 0.0
        %3615 = vmatprep.subr.mxu0 0.0
        %3616 = vmatpush1.msra.mxu0 0.0
        %3617 = vmatprep.subr.mxu0 0.0
        %3618 = vmatpush1.msra.mxu0 0.0
        %3619 = vmatprep.subr.mxu0 0.0
        %3620 = vmatpush1.msra.mxu0 0.0
        %3621 = vmatprep.subr.mxu0 0.0
        %3622 = vmatpush1.msra.mxu0 0.0
        %3623 = vmatprep.subr.mxu0 0.0
        %3624 = vmatpush1.msra.mxu0 0.0
        %3625 = vmatprep.subr.mxu0 0.0
        %3626 = vmatpush1.msra.mxu0 0.0
        %3627 = vmatprep.subr.mxu0 0.0
        %3628 = vmatpush1.msra.mxu0 0.0
        %3629 = vmatprep.subr.mxu0 0.0
        %3630 = vmatpush1.msra.mxu0 0.0
        %3631 = vmatprep.subr.mxu0 0.0
        %3632 = vmatpush1.msra.mxu0 0.0
        %3633 = vmatprep.subr.mxu0 0.0
        %3634 = vmatpush1.msra.mxu0 0.0
        %3635 = vmatprep.subr.mxu0 0.0
        %3636 = vmatpush1.msra.mxu0 0.0
        %3637 = vmatprep.subr.mxu0 0.0
        %3638 = vmatpush1.msra.mxu0 0.0
        %3639 = vmatprep.subr.mxu0 0.0
        %3640 = vmatpush1.msra.mxu0 0.0
        %3641 = vmatprep.subr.mxu0 0.0
        %3642 = vmatpush1.msra.mxu0 0.0
        %3643 = vmatprep.subr.mxu0 0.0
        %3644 = vmatpush1.msra.mxu0 0.0
        %3645 = vmatprep.mubr.f32.mxu0 0.0
        %3646 = vmatmul.mubr.f32.gmra.mrb[0].mxu0 %v3579
        %v3647 = vpop.f32.mrb[0].mxu0
        %v3648 = vadd.f32 0.0, %v3647
        %v3649 = vpop.f32.mrb[0].mxu0
        %3650 = vdwg.mxu0
        %v3651 = vadd.f32 %v3577, %v3648
        %3652 = vst.msk [vmem:[#allocation2 + $0x4] sm:$0x3] %vm2467, %v3651
        %s3653 = scalar_lea.vmem %s1375, 192
        %v3654 = vld [vmem:[%s3653] sm:$0xff]
        %v3655 = vld [vmem:[%s3653 + $0x8] sm:$0xff]
        %v3656 = vld [vmem:[%s3653 + $0x10] sm:$0xff]
        %v3657 = vld [vmem:[%s3653 + $0x18] sm:$0xff]
        %v3658 = vld [vmem:[%s3653 + $0x20] sm:$0xff]
        %v3659 = vld [vmem:[%s3653 + $0x28] sm:$0xff]
        %v3660 = vld [vmem:[%s3653 + $0x30] sm:$0xff]
        %v3661 = vld [vmem:[%s3653 + $0x38] sm:$0xff]
        %s3662 = scalar_lea.vmem %s1379, 3
        %v3663 = vld [vmem:[%s3662] sm:$0x1]
        %v3665 = vlaneseq
        %v3666 = vshrl.u32 %v3665, 7
        %v3667 = vsub.s32 0, %v3666
        %v3668 = vrot.slane %v3663, %v3667
        %3670 = vmatprep.subr.mxu0 0.0
        %3671 = vmatpush1.msra.mxu0 %v3654
        %3672 = vmatprep.subr.mxu0 0.0
        %3673 = vmatpush1.msra.mxu0 %v3655
        %3674 = vmatprep.subr.mxu0 0.0
        %3675 = vmatpush1.msra.mxu0 %v3656
        %3676 = vmatprep.subr.mxu0 0.0
        %3677 = vmatpush1.msra.mxu0 %v3657
        %3678 = vmatprep.subr.mxu0 0.0
        %3679 = vmatpush1.msra.mxu0 %v3658
        %3680 = vmatprep.subr.mxu0 0.0
        %3681 = vmatpush1.msra.mxu0 %v3659
        %3682 = vmatprep.subr.mxu0 0.0
        %3683 = vmatpush1.msra.mxu0 %v3660
        %3684 = vmatprep.subr.mxu0 0.0
        %3685 = vmatpush1.msra.mxu0 %v3661
        %3686 = vmatprep.subr.mxu0 0.0
        %3687 = vmatpush1.msra.mxu0 0.0
        %3688 = vmatprep.subr.mxu0 0.0
        %3689 = vmatpush1.msra.mxu0 0.0
        %3690 = vmatprep.subr.mxu0 0.0
        %3691 = vmatpush1.msra.mxu0 0.0
        %3692 = vmatprep.subr.mxu0 0.0
        %3693 = vmatpush1.msra.mxu0 0.0
        %3694 = vmatprep.subr.mxu0 0.0
        %3695 = vmatpush1.msra.mxu0 0.0
        %3696 = vmatprep.subr.mxu0 0.0
        %3697 = vmatpush1.msra.mxu0 0.0
        %3698 = vmatprep.subr.mxu0 0.0
        %3699 = vmatpush1.msra.mxu0 0.0
        %3700 = vmatprep.subr.mxu0 0.0
        %3701 = vmatpush1.msra.mxu0 0.0
        %3702 = vmatprep.subr.mxu0 0.0
        %3703 = vmatpush1.msra.mxu0 0.0
        %3704 = vmatprep.subr.mxu0 0.0
        %3705 = vmatpush1.msra.mxu0 0.0
        %3706 = vmatprep.subr.mxu0 0.0
        %3707 = vmatpush1.msra.mxu0 0.0
        %3708 = vmatprep.subr.mxu0 0.0
        %3709 = vmatpush1.msra.mxu0 0.0
        %3710 = vmatprep.subr.mxu0 0.0
        %3711 = vmatpush1.msra.mxu0 0.0
        %3712 = vmatprep.subr.mxu0 0.0
        %3713 = vmatpush1.msra.mxu0 0.0
        %3714 = vmatprep.subr.mxu0 0.0
        %3715 = vmatpush1.msra.mxu0 0.0
        %3716 = vmatprep.subr.mxu0 0.0
        %3717 = vmatpush1.msra.mxu0 0.0
        %3718 = vmatprep.subr.mxu0 0.0
        %3719 = vmatpush1.msra.mxu0 0.0
        %3720 = vmatprep.subr.mxu0 0.0
        %3721 = vmatpush1.msra.mxu0 0.0
        %3722 = vmatprep.subr.mxu0 0.0
        %3723 = vmatpush1.msra.mxu0 0.0
        %3724 = vmatprep.subr.mxu0 0.0
        %3725 = vmatpush1.msra.mxu0 0.0
        %3726 = vmatprep.subr.mxu0 0.0
        %3727 = vmatpush1.msra.mxu0 0.0
        %3728 = vmatprep.subr.mxu0 0.0
        %3729 = vmatpush1.msra.mxu0 0.0
        %3730 = vmatprep.subr.mxu0 0.0
        %3731 = vmatpush1.msra.mxu0 0.0
        %3732 = vmatprep.subr.mxu0 0.0
        %3733 = vmatpush1.msra.mxu0 0.0
        %3734 = vmatprep.mubr.f32.mxu0 0.0
        %3735 = vmatmul.mubr.f32.gmra.mrb[0].mxu0 %v1882
        %v3736 = vpop.f32.mrb[0].mxu0
        %v3737 = vadd.f32 %v3668, %v3736
        %v3738 = vpop.f32.mrb[0].mxu0
        %3739 = vdwg.mxu0
        %v3741 = vsel %vm1392, %v3737, 0
        %3743 = vmatprep.subr.mxu0 0.0
        %3744 = vmatpush1.xpose.msra.mxu0 %v3741
        %3745 = vmatprep.subr.mxu0 0.0
        %3746 = vmatpush1.xpose.msra.mxu0 0.0
        %3747 = vmatprep.subr.mxu0 0.0
        %3748 = vmatpush1.xpose.msra.mxu0 0.0
        %3749 = vmatprep.subr.mxu0 0.0
        %3750 = vmatpush1.xpose.msra.mxu0 0.0
        %3751 = vmatprep.subr.mxu0 0.0
        %3752 = vmatpush1.xpose.msra.mxu0 0.0
        %3753 = vmatprep.subr.mxu0 0.0
        %3754 = vmatpush1.xpose.msra.mxu0 0.0
        %3755 = vmatprep.subr.mxu0 0.0
        %3756 = vmatpush1.xpose.msra.mxu0 0.0
        %3757 = vmatprep.subr.mxu0 0.0
        %3758 = vmatpush1.xpose.msra.mxu0 0.0
        %3759 = vmatprep.subr.mxu0 0.0
        %3760 = vmatpush1.xpose.msra.mxu0 0.0
        %3761 = vmatprep.subr.mxu0 0.0
        %3762 = vmatpush1.xpose.msra.mxu0 0.0
        %3763 = vmatprep.subr.mxu0 0.0
        %3764 = vmatpush1.xpose.msra.mxu0 0.0
        %3765 = vmatprep.subr.mxu0 0.0
        %3766 = vmatpush1.xpose.msra.mxu0 0.0
        %3767 = vmatprep.subr.mxu0 0.0
        %3768 = vmatpush1.xpose.msra.mxu0 0.0
        %3769 = vmatprep.subr.mxu0 0.0
        %3770 = vmatpush1.xpose.msra.mxu0 0.0
        %3771 = vmatprep.subr.mxu0 0.0
        %3772 = vmatpush1.xpose.msra.mxu0 0.0
        %3773 = vmatprep.subr.mxu0 0.0
        %3774 = vmatpush1.xpose.msra.mxu0 0.0
        %3775 = vmatprep.subr.mxu0 0.0
        %3776 = vmatpush1.xpose.msra.mxu0 0.0
        %3777 = vmatprep.subr.mxu0 0.0
        %3778 = vmatpush1.xpose.msra.mxu0 0.0
        %3779 = vmatprep.subr.mxu0 0.0
        %3780 = vmatpush1.xpose.msra.mxu0 0.0
        %3781 = vmatprep.subr.mxu0 0.0
        %3782 = vmatpush1.xpose.msra.mxu0 0.0
        %3783 = vmatprep.subr.mxu0 0.0
        %3784 = vmatpush1.xpose.msra.mxu0 0.0
        %3785 = vmatprep.subr.mxu0 0.0
        %3786 = vmatpush1.xpose.msra.mxu0 0.0
        %3787 = vmatprep.subr.mxu0 0.0
        %3788 = vmatpush1.xpose.msra.mxu0 0.0
        %3789 = vmatprep.subr.mxu0 0.0
        %3790 = vmatpush1.xpose.msra.mxu0 0.0
        %3791 = vmatprep.subr.mxu0 0.0
        %3792 = vmatpush1.xpose.msra.mxu0 0.0
        %3793 = vmatprep.subr.mxu0 0.0
        %3794 = vmatpush1.xpose.msra.mxu0 0.0
        %3795 = vmatprep.subr.mxu0 0.0
        %3796 = vmatpush1.xpose.msra.mxu0 0.0
        %3797 = vmatprep.subr.mxu0 0.0
        %3798 = vmatpush1.xpose.msra.mxu0 0.0
        %3799 = vmatprep.subr.mxu0 0.0
        %3800 = vmatpush1.xpose.msra.mxu0 0.0
        %3801 = vmatprep.subr.mxu0 0.0
        %3802 = vmatpush1.xpose.msra.mxu0 0.0
        %3803 = vmatprep.subr.mxu0 0.0
        %3804 = vmatpush1.xpose.msra.mxu0 0.0
        %3805 = vmatprep.subr.mxu0 0.0
        %3806 = vmatpush1.xpose.msra.mxu0 0.0
        %3807 = vmatprep.mubr.f32.mxu0 0.0
        %3808 = vmatmul.mubr.f32.gmra.mrb[0].mxu0 %v1955
        %v3809 = vpop.f32.mrb[0].mxu0
        %v3810 = vadd.f32 0.0, %v3809
        %v3811 = vpop.f32.mrb[0].mxu0
        %3812 = vmatprep.mubr.f32.mxu0 0.0
        %3813 = vmatmul.mubr.f32.gmra.mrb[0].mxu0 %v1958
        %v3814 = vpop.f32.mrb[0].mxu0
        %v3815 = vadd.f32 0.0, %v3814
        %v3816 = vpop.f32.mrb[0].mxu0
        %3817 = vdwg.mxu0
        %v3818 = vxor.u32 %v3810, 2147483648
        %v3819 = vxor.u32 %v3815, 2147483648
        %v3820 = vmul.f32 %v3818, 1.442695
        %v3821 = vpow.pop %v3820
        %v3822 = vmul.f32 %v3819, 1.442695
        %v3823 = vpow.pop %v3822
        %v3824 = vadd.f32 %v3821, 1.0
        %v3825 = vadd.f32 %v3823, 1.0
        %v3826 = vrcp.pop %v3824
        %v3827 = vmul.f32 1.0, %v3826
        %v3828 = vrcp.pop %v3825
        %v3829 = vmul.f32 1.0, %v3828
        %v3830 = vmul.f32 %v3827, %v2051
        %v3831 = vmul.f32 %v3829, %v2051
        %v3832 = vsel %vm1688, %v3830, 0.0
        %v3833 = vsel %vm1688, %v3831, 0.0
        %v3834 = vadd.f32 %v3832, %v3833
        %v3835 = vrot.slane %v3834, 4
        %v3836 = vadd.f32 %v3834, %v3835
        %v3837 = vrot.slane %v3836, 2
        %v3838 = vadd.f32 %v3836, %v3837
        %v3839 = vrot.slane %v3838, 1
        %v3840 = vadd.f32 %v3838, %v3839
        %v3841 = vmax.f32 %v3840, 1e-06
        %v3842 = vrcp.pop %v3841
        %v3843 = vmul.f32 %v3830, %v3842
        %v3844 = vmul.f32 %v3831, %v3842
        %3845 = vxpose.xlu0.b32.start [1/16] %v3843, 128
        %3846 = vxpose.xlu0.b32.cont [2/16] %v3844, 128
        %3847 = vxpose.xlu0.b32.cont [3/16] 0.0, 128
        %3848 = vxpose.xlu0.b32.cont [4/16] 0.0, 128
        %3849 = vxpose.xlu0.b32.cont [5/16] 0.0, 128
        %3850 = vxpose.xlu0.b32.cont [6/16] 0.0, 128
        %3851 = vxpose.xlu0.b32.cont [7/16] 0.0, 128
        %3852 = vxpose.xlu0.b32.cont [8/16] 0.0, 128
        %3853 = vxpose.xlu0.b32.cont [9/16] 0.0, 128
        %3854 = vxpose.xlu0.b32.cont [10/16] 0.0, 128
        %3855 = vxpose.xlu0.b32.cont [11/16] 0.0, 128
        %3856 = vxpose.xlu0.b32.cont [12/16] 0.0, 128
        %3857 = vxpose.xlu0.b32.cont [13/16] 0.0, 128
        %3858 = vxpose.xlu0.b32.cont [14/16] 0.0, 128
        %3859 = vxpose.xlu0.b32.cont [15/16] 0.0, 128
        %3860 = vxpose.xlu0.b32.end [16/16] 0.0, 128
        %v3861 = vpop.trf.xlu0
        %v3862 = vpop.trf.xlu0
        %v3863 = vpop.trf.xlu0
        %v3864 = vpop.trf.xlu0
        %v3865 = vpop.trf.xlu0
        %v3866 = vpop.trf.xlu0
        %v3867 = vpop.trf.xlu0
        %v3868 = vpop.trf.xlu0
        %v3869 = vpop.trf.xlu0
        %v3870 = vpop.trf.xlu0
        %v3871 = vpop.trf.xlu0
        %v3872 = vpop.trf.xlu0
        %v3873 = vpop.trf.xlu0
        %v3874 = vpop.trf.xlu0
        %v3875 = vpop.trf.xlu0
        %v3876 = vpop.trf.xlu0
        %v3878 = vsel %vm2099, %v3861, 0
        %3880 = vmatprep.subr.mxu0 0.0
        %3881 = vmatpush1.msra.mxu0 %v1685
        %3882 = vmatprep.subr.mxu0 0.0
        %3883 = vmatpush1.msra.mxu0 %v1686
        %3884 = vmatprep.subr.mxu0 0.0
        %3885 = vmatpush1.msra.mxu0 0.0
        %3886 = vmatprep.subr.mxu0 0.0
        %3887 = vmatpush1.msra.mxu0 0.0
        %3888 = vmatprep.subr.mxu0 0.0
        %3889 = vmatpush1.msra.mxu0 0.0
        %3890 = vmatprep.subr.mxu0 0.0
        %3891 = vmatpush1.msra.mxu0 0.0
        %3892 = vmatprep.subr.mxu0 0.0
        %3893 = vmatpush1.msra.mxu0 0.0
        %3894 = vmatprep.subr.mxu0 0.0
        %3895 = vmatpush1.msra.mxu0 0.0
        %3896 = vmatprep.subr.mxu0 0.0
        %3897 = vmatpush1.msra.mxu0 0.0
        %3898 = vmatprep.subr.mxu0 0.0
        %3899 = vmatpush1.msra.mxu0 0.0
        %3900 = vmatprep.subr.mxu0 0.0
        %3901 = vmatpush1.msra.mxu0 0.0
        %3902 = vmatprep.subr.mxu0 0.0
        %3903 = vmatpush1.msra.mxu0 0.0
        %3904 = vmatprep.subr.mxu0 0.0
        %3905 = vmatpush1.msra.mxu0 0.0
        %3906 = vmatprep.subr.mxu0 0.0
        %3907 = vmatpush1.msra.mxu0 0.0
        %3908 = vmatprep.subr.mxu0 0.0
        %3909 = vmatpush1.msra.mxu0 0.0
        %3910 = vmatprep.subr.mxu0 0.0
        %3911 = vmatpush1.msra.mxu0 0.0
        %3912 = vmatprep.subr.mxu0 0.0
        %3913 = vmatpush1.msra.mxu0 0.0
        %3914 = vmatprep.subr.mxu0 0.0
        %3915 = vmatpush1.msra.mxu0 0.0
        %3916 = vmatprep.subr.mxu0 0.0
        %3917 = vmatpush1.msra.mxu0 0.0
        %3918 = vmatprep.subr.mxu0 0.0
        %3919 = vmatpush1.msra.mxu0 0.0
        %3920 = vmatprep.subr.mxu0 0.0
        %3921 = vmatpush1.msra.mxu0 0.0
        %3922 = vmatprep.subr.mxu0 0.0
        %3923 = vmatpush1.msra.mxu0 0.0
        %3924 = vmatprep.subr.mxu0 0.0
        %3925 = vmatpush1.msra.mxu0 0.0
        %3926 = vmatprep.subr.mxu0 0.0
        %3927 = vmatpush1.msra.mxu0 0.0
        %3928 = vmatprep.subr.mxu0 0.0
        %3929 = vmatpush1.msra.mxu0 0.0
        %3930 = vmatprep.subr.mxu0 0.0
        %3931 = vmatpush1.msra.mxu0 0.0
        %3932 = vmatprep.subr.mxu0 0.0
        %3933 = vmatpush1.msra.mxu0 0.0
        %3934 = vmatprep.subr.mxu0 0.0
        %3935 = vmatpush1.msra.mxu0 0.0
        %3936 = vmatprep.subr.mxu0 0.0
        %3937 = vmatpush1.msra.mxu0 0.0
        %3938 = vmatprep.subr.mxu0 0.0
        %3939 = vmatpush1.msra.mxu0 0.0
        %3940 = vmatprep.subr.mxu0 0.0
        %3941 = vmatpush1.msra.mxu0 0.0
        %3942 = vmatprep.subr.mxu0 0.0
        %3943 = vmatpush1.msra.mxu0 0.0
        %3944 = vmatprep.mubr.f32.mxu0 0.0
        %3945 = vmatmul.mubr.f32.gmra.mrb[0].mxu0 %v3878
        %v3946 = vpop.f32.mrb[0].mxu0
        %v3947 = vadd.f32 0.0, %v3946
        %v3948 = vpop.f32.mrb[0].mxu0
        %3949 = vdwg.mxu0
        %v3951 = vrot.slane %v3947, 2
        %v3952 = vsel %vm1392, %v3951, 0
        %3954 = vmatprep.subr.mxu0 0.0
        %3955 = vmatpush1.msra.mxu0 %v1852
        %3956 = vmatprep.subr.mxu0 0.0
        %3957 = vmatpush1.msra.mxu0 %v1853
        %3958 = vmatprep.subr.mxu0 0.0
        %3959 = vmatpush1.msra.mxu0 %v1854
        %3960 = vmatprep.subr.mxu0 0.0
        %3961 = vmatpush1.msra.mxu0 %v1855
        %3962 = vmatprep.subr.mxu0 0.0
        %3963 = vmatpush1.msra.mxu0 0.0
        %3964 = vmatprep.subr.mxu0 0.0
        %3965 = vmatpush1.msra.mxu0 0.0
        %3966 = vmatprep.subr.mxu0 0.0
        %3967 = vmatpush1.msra.mxu0 0.0
        %3968 = vmatprep.subr.mxu0 0.0
        %3969 = vmatpush1.msra.mxu0 0.0
        %3970 = vmatprep.subr.mxu0 0.0
        %3971 = vmatpush1.msra.mxu0 0.0
        %3972 = vmatprep.subr.mxu0 0.0
        %3973 = vmatpush1.msra.mxu0 0.0
        %3974 = vmatprep.subr.mxu0 0.0
        %3975 = vmatpush1.msra.mxu0 0.0
        %3976 = vmatprep.subr.mxu0 0.0
        %3977 = vmatpush1.msra.mxu0 0.0
        %3978 = vmatprep.subr.mxu0 0.0
        %3979 = vmatpush1.msra.mxu0 0.0
        %3980 = vmatprep.subr.mxu0 0.0
        %3981 = vmatpush1.msra.mxu0 0.0
        %3982 = vmatprep.subr.mxu0 0.0
        %3983 = vmatpush1.msra.mxu0 0.0
        %3984 = vmatprep.subr.mxu0 0.0
        %3985 = vmatpush1.msra.mxu0 0.0
        %3986 = vmatprep.subr.mxu0 0.0
        %3987 = vmatpush1.msra.mxu0 0.0
        %3988 = vmatprep.subr.mxu0 0.0
        %3989 = vmatpush1.msra.mxu0 0.0
        %3990 = vmatprep.subr.mxu0 0.0
        %3991 = vmatpush1.msra.mxu0 0.0
        %3992 = vmatprep.subr.mxu0 0.0
        %3993 = vmatpush1.msra.mxu0 0.0
        %3994 = vmatprep.subr.mxu0 0.0
        %3995 = vmatpush1.msra.mxu0 0.0
        %3996 = vmatprep.subr.mxu0 0.0
        %3997 = vmatpush1.msra.mxu0 0.0
        %3998 = vmatprep.subr.mxu0 0.0
        %3999 = vmatpush1.msra.mxu0 0.0
        %4000 = vmatprep.subr.mxu0 0.0
        %4001 = vmatpush1.msra.mxu0 0.0
        %4002 = vmatprep.subr.mxu0 0.0
        %4003 = vmatpush1.msra.mxu0 0.0
        %4004 = vmatprep.subr.mxu0 0.0
        %4005 = vmatpush1.msra.mxu0 0.0
        %4006 = vmatprep.subr.mxu0 0.0
        %4007 = vmatpush1.msra.mxu0 0.0
        %4008 = vmatprep.subr.mxu0 0.0
        %4009 = vmatpush1.msra.mxu0 0.0
        %4010 = vmatprep.subr.mxu0 0.0
        %4011 = vmatpush1.msra.mxu0 0.0
        %4012 = vmatprep.subr.mxu0 0.0
        %4013 = vmatpush1.msra.mxu0 0.0
        %4014 = vmatprep.subr.mxu0 0.0
        %4015 = vmatpush1.msra.mxu0 0.0
        %4016 = vmatprep.subr.mxu0 0.0
        %4017 = vmatpush1.msra.mxu0 0.0
        %4018 = vmatprep.mubr.f32.mxu0 0.0
        %4019 = vmatmul.mubr.f32.gmra.mrb[0].mxu0 %v3952
        %v4020 = vpop.f32.mrb[0].mxu0
        %v4021 = vadd.f32 0.0, %v4020
        %v4022 = vpop.f32.mrb[0].mxu0
        %4023 = vdwg.mxu0
        %v4024 = vsel %vm1392, %v3947, 0
        %4026 = vmatprep.subr.mxu0 0.0
        %4027 = vmatpush1.msra.mxu0 %v1848
        %4028 = vmatprep.subr.mxu0 0.0
        %4029 = vmatpush1.msra.mxu0 %v1849
        %4030 = vmatprep.subr.mxu0 0.0
        %4031 = vmatpush1.msra.mxu0 %v1850
        %4032 = vmatprep.subr.mxu0 0.0
        %4033 = vmatpush1.msra.mxu0 %v1851
        %4034 = vmatprep.subr.mxu0 0.0
        %4035 = vmatpush1.msra.mxu0 0.0
        %4036 = vmatprep.subr.mxu0 0.0
        %4037 = vmatpush1.msra.mxu0 0.0
        %4038 = vmatprep.subr.mxu0 0.0
        %4039 = vmatpush1.msra.mxu0 0.0
        %4040 = vmatprep.subr.mxu0 0.0
        %4041 = vmatpush1.msra.mxu0 0.0
        %4042 = vmatprep.subr.mxu0 0.0
        %4043 = vmatpush1.msra.mxu0 0.0
        %4044 = vmatprep.subr.mxu0 0.0
        %4045 = vmatpush1.msra.mxu0 0.0
        %4046 = vmatprep.subr.mxu0 0.0
        %4047 = vmatpush1.msra.mxu0 0.0
        %4048 = vmatprep.subr.mxu0 0.0
        %4049 = vmatpush1.msra.mxu0 0.0
        %4050 = vmatprep.subr.mxu0 0.0
        %4051 = vmatpush1.msra.mxu0 0.0
        %4052 = vmatprep.subr.mxu0 0.0
        %4053 = vmatpush1.msra.mxu0 0.0
        %4054 = vmatprep.subr.mxu0 0.0
        %4055 = vmatpush1.msra.mxu0 0.0
        %4056 = vmatprep.subr.mxu0 0.0
        %4057 = vmatpush1.msra.mxu0 0.0
        %4058 = vmatprep.subr.mxu0 0.0
        %4059 = vmatpush1.msra.mxu0 0.0
        %4060 = vmatprep.subr.mxu0 0.0
        %4061 = vmatpush1.msra.mxu0 0.0
        %4062 = vmatprep.subr.mxu0 0.0
        %4063 = vmatpush1.msra.mxu0 0.0
        %4064 = vmatprep.subr.mxu0 0.0
        %4065 = vmatpush1.msra.mxu0 0.0
        %4066 = vmatprep.subr.mxu0 0.0
        %4067 = vmatpush1.msra.mxu0 0.0
        %4068 = vmatprep.subr.mxu0 0.0
        %4069 = vmatpush1.msra.mxu0 0.0
        %4070 = vmatprep.subr.mxu0 0.0
        %4071 = vmatpush1.msra.mxu0 0.0
        %4072 = vmatprep.subr.mxu0 0.0
        %4073 = vmatpush1.msra.mxu0 0.0
        %4074 = vmatprep.subr.mxu0 0.0
        %4075 = vmatpush1.msra.mxu0 0.0
        %4076 = vmatprep.subr.mxu0 0.0
        %4077 = vmatpush1.msra.mxu0 0.0
        %4078 = vmatprep.subr.mxu0 0.0
        %4079 = vmatpush1.msra.mxu0 0.0
        %4080 = vmatprep.subr.mxu0 0.0
        %4081 = vmatpush1.msra.mxu0 0.0
        %4082 = vmatprep.subr.mxu0 0.0
        %4083 = vmatpush1.msra.mxu0 0.0
        %4084 = vmatprep.subr.mxu0 0.0
        %4085 = vmatpush1.msra.mxu0 0.0
        %4086 = vmatprep.subr.mxu0 0.0
        %4087 = vmatpush1.msra.mxu0 0.0
        %4088 = vmatprep.subr.mxu0 0.0
        %4089 = vmatpush1.msra.mxu0 0.0
        %4090 = vmatprep.mubr.f32.mxu0 0.0
        %4091 = vmatmul.mubr.f32.gmra.mrb[0].mxu0 %v4024
        %v4092 = vpop.f32.mrb[0].mxu0
        %v4093 = vadd.f32 %v4021, %v4092
        %v4094 = vpop.f32.mrb[0].mxu0
        %4095 = vdwg.mxu0
        %v4096 = vrot.slane %v3947, 4
        %v4097 = vsel %vm1392, %v4096, 0
        %4099 = vmatprep.subr.mxu0 0.0
        %4100 = vmatpush1.msra.mxu0 %v1856
        %4101 = vmatprep.subr.mxu0 0.0
        %4102 = vmatpush1.msra.mxu0 %v1857
        %4103 = vmatprep.subr.mxu0 0.0
        %4104 = vmatpush1.msra.mxu0 %v1858
        %4105 = vmatprep.subr.mxu0 0.0
        %4106 = vmatpush1.msra.mxu0 %v1859
        %4107 = vmatprep.subr.mxu0 0.0
        %4108 = vmatpush1.msra.mxu0 0.0
        %4109 = vmatprep.subr.mxu0 0.0
        %4110 = vmatpush1.msra.mxu0 0.0
        %4111 = vmatprep.subr.mxu0 0.0
        %4112 = vmatpush1.msra.mxu0 0.0
        %4113 = vmatprep.subr.mxu0 0.0
        %4114 = vmatpush1.msra.mxu0 0.0
        %4115 = vmatprep.subr.mxu0 0.0
        %4116 = vmatpush1.msra.mxu0 0.0
        %4117 = vmatprep.subr.mxu0 0.0
        %4118 = vmatpush1.msra.mxu0 0.0
        %4119 = vmatprep.subr.mxu0 0.0
        %4120 = vmatpush1.msra.mxu0 0.0
        %4121 = vmatprep.subr.mxu0 0.0
        %4122 = vmatpush1.msra.mxu0 0.0
        %4123 = vmatprep.subr.mxu0 0.0
        %4124 = vmatpush1.msra.mxu0 0.0
        %4125 = vmatprep.subr.mxu0 0.0
        %4126 = vmatpush1.msra.mxu0 0.0
        %4127 = vmatprep.subr.mxu0 0.0
        %4128 = vmatpush1.msra.mxu0 0.0
        %4129 = vmatprep.subr.mxu0 0.0
        %4130 = vmatpush1.msra.mxu0 0.0
        %4131 = vmatprep.subr.mxu0 0.0
        %4132 = vmatpush1.msra.mxu0 0.0
        %4133 = vmatprep.subr.mxu0 0.0
        %4134 = vmatpush1.msra.mxu0 0.0
        %4135 = vmatprep.subr.mxu0 0.0
        %4136 = vmatpush1.msra.mxu0 0.0
        %4137 = vmatprep.subr.mxu0 0.0
        %4138 = vmatpush1.msra.mxu0 0.0
        %4139 = vmatprep.subr.mxu0 0.0
        %4140 = vmatpush1.msra.mxu0 0.0
        %4141 = vmatprep.subr.mxu0 0.0
        %4142 = vmatpush1.msra.mxu0 0.0
        %4143 = vmatprep.subr.mxu0 0.0
        %4144 = vmatpush1.msra.mxu0 0.0
        %4145 = vmatprep.subr.mxu0 0.0
        %4146 = vmatpush1.msra.mxu0 0.0
        %4147 = vmatprep.subr.mxu0 0.0
        %4148 = vmatpush1.msra.mxu0 0.0
        %4149 = vmatprep.subr.mxu0 0.0
        %4150 = vmatpush1.msra.mxu0 0.0
        %4151 = vmatprep.subr.mxu0 0.0
        %4152 = vmatpush1.msra.mxu0 0.0
        %4153 = vmatprep.subr.mxu0 0.0
        %4154 = vmatpush1.msra.mxu0 0.0
        %4155 = vmatprep.subr.mxu0 0.0
        %4156 = vmatpush1.msra.mxu0 0.0
        %4157 = vmatprep.subr.mxu0 0.0
        %4158 = vmatpush1.msra.mxu0 0.0
        %4159 = vmatprep.subr.mxu0 0.0
        %4160 = vmatpush1.msra.mxu0 0.0
        %4161 = vmatprep.subr.mxu0 0.0
        %4162 = vmatpush1.msra.mxu0 0.0
        %4163 = vmatprep.mubr.f32.mxu0 0.0
        %4164 = vmatmul.mubr.f32.gmra.mrb[0].mxu0 %v4097
        %v4165 = vpop.f32.mrb[0].mxu0
        %v4166 = vadd.f32 0.0, %v4165
        %v4167 = vpop.f32.mrb[0].mxu0
        %4168 = vdwg.mxu0
        %v4169 = vadd.f32 %v4093, %v4166
        %v4170 = vrot.slane %v3947, 6
        %v4171 = vsel %vm1392, %v4170, 0
        %4173 = vmatprep.subr.mxu0 0.0
        %4174 = vmatpush1.msra.mxu0 %v1860
        %4175 = vmatprep.subr.mxu0 0.0
        %4176 = vmatpush1.msra.mxu0 %v1861
        %4177 = vmatprep.subr.mxu0 0.0
        %4178 = vmatpush1.msra.mxu0 %v1862
        %4179 = vmatprep.subr.mxu0 0.0
        %4180 = vmatpush1.msra.mxu0 %v1863
        %4181 = vmatprep.subr.mxu0 0.0
        %4182 = vmatpush1.msra.mxu0 0.0
        %4183 = vmatprep.subr.mxu0 0.0
        %4184 = vmatpush1.msra.mxu0 0.0
        %4185 = vmatprep.subr.mxu0 0.0
        %4186 = vmatpush1.msra.mxu0 0.0
        %4187 = vmatprep.subr.mxu0 0.0
        %4188 = vmatpush1.msra.mxu0 0.0
        %4189 = vmatprep.subr.mxu0 0.0
        %4190 = vmatpush1.msra.mxu0 0.0
        %4191 = vmatprep.subr.mxu0 0.0
        %4192 = vmatpush1.msra.mxu0 0.0
        %4193 = vmatprep.subr.mxu0 0.0
        %4194 = vmatpush1.msra.mxu0 0.0
        %4195 = vmatprep.subr.mxu0 0.0
        %4196 = vmatpush1.msra.mxu0 0.0
        %4197 = vmatprep.subr.mxu0 0.0
        %4198 = vmatpush1.msra.mxu0 0.0
        %4199 = vmatprep.subr.mxu0 0.0
        %4200 = vmatpush1.msra.mxu0 0.0
        %4201 = vmatprep.subr.mxu0 0.0
        %4202 = vmatpush1.msra.mxu0 0.0
        %4203 = vmatprep.subr.mxu0 0.0
        %4204 = vmatpush1.msra.mxu0 0.0
        %4205 = vmatprep.subr.mxu0 0.0
        %4206 = vmatpush1.msra.mxu0 0.0
        %4207 = vmatprep.subr.mxu0 0.0
        %4208 = vmatpush1.msra.mxu0 0.0
        %4209 = vmatprep.subr.mxu0 0.0
        %4210 = vmatpush1.msra.mxu0 0.0
        %4211 = vmatprep.subr.mxu0 0.0
        %4212 = vmatpush1.msra.mxu0 0.0
        %4213 = vmatprep.subr.mxu0 0.0
        %4214 = vmatpush1.msra.mxu0 0.0
        %4215 = vmatprep.subr.mxu0 0.0
        %4216 = vmatpush1.msra.mxu0 0.0
        %4217 = vmatprep.subr.mxu0 0.0
        %4218 = vmatpush1.msra.mxu0 0.0
        %4219 = vmatprep.subr.mxu0 0.0
        %4220 = vmatpush1.msra.mxu0 0.0
        %4221 = vmatprep.subr.mxu0 0.0
        %4222 = vmatpush1.msra.mxu0 0.0
        %4223 = vmatprep.subr.mxu0 0.0
        %4224 = vmatpush1.msra.mxu0 0.0
        %4225 = vmatprep.subr.mxu0 0.0
        %4226 = vmatpush1.msra.mxu0 0.0
        %4227 = vmatprep.subr.mxu0 0.0
        %4228 = vmatpush1.msra.mxu0 0.0
        %4229 = vmatprep.subr.mxu0 0.0
        %4230 = vmatpush1.msra.mxu0 0.0
        %4231 = vmatprep.subr.mxu0 0.0
        %4232 = vmatpush1.msra.mxu0 0.0
        %4233 = vmatprep.subr.mxu0 0.0
        %4234 = vmatpush1.msra.mxu0 0.0
        %4235 = vmatprep.subr.mxu0 0.0
        %4236 = vmatpush1.msra.mxu0 0.0
        %4237 = vmatprep.mubr.f32.mxu0 0.0
        %4238 = vmatmul.mubr.f32.gmra.mrb[0].mxu0 %v4171
        %v4239 = vpop.f32.mrb[0].mxu0
        %v4240 = vadd.f32 0.0, %v4239
        %v4241 = vpop.f32.mrb[0].mxu0
        %4242 = vdwg.mxu0
        %v4243 = vadd.f32 %v4169, %v4240
        %4244 = vst.msk [vmem:[#allocation2 + $0x6] sm:$0x3] %vm2467, %v4243
        %v4245 = vld [vmem:[#allocation2] sm:$0xff]
        %v4246 = vld [vmem:[%s39] sm:$0x1]
        %v4248 = vlaneseq
        %v4249 = vshrl.u32 %v4248, 7
        %v4250 = vsub.s32 0, %v4249
        %v4251 = vrot.slane %v4246, %v4250
        %v4253 = vadd.f32 %v4245, %v4251
        %v4254 = vadd.f32 %v1529, %v4253
        %v4255 = vld [vmem:[%s45] sm:$0xff]
        %v4256 = vld [vmem:[%s45 + $0x8] sm:$0xff]
        %v4257 = vld [vmem:[%s45 + $0x10] sm:$0xff]
        %v4258 = vld [vmem:[%s45 + $0x18] sm:$0xff]
        %v4259 = vld [vmem:[%s47] sm:$0x1]
        %v4261 = vlaneseq
        %v4262 = vshrl.u32 %v4261, 7
        %v4263 = vsub.s32 0, %v4262
        %v4264 = vrot.slane %v4259, %v4263
        %v4267 = vsel %vm1392, %v4254, 0
        %4269 = vmatprep.subr.mxu0 0.0
        %4270 = vmatpush1.msra.mxu0 %v4255
        %4271 = vmatprep.subr.mxu0 0.0
        %4272 = vmatpush1.msra.mxu0 %v4256
        %4273 = vmatprep.subr.mxu0 0.0
        %4274 = vmatpush1.msra.mxu0 %v4257
        %4275 = vmatprep.subr.mxu0 0.0
        %4276 = vmatpush1.msra.mxu0 %v4258
        %4277 = vmatprep.subr.mxu0 0.0
        %4278 = vmatpush1.msra.mxu0 0.0
        %4279 = vmatprep.subr.mxu0 0.0
        %4280 = vmatpush1.msra.mxu0 0.0
        %4281 = vmatprep.subr.mxu0 0.0
        %4282 = vmatpush1.msra.mxu0 0.0
        %4283 = vmatprep.subr.mxu0 0.0
        %4284 = vmatpush1.msra.mxu0 0.0
        %4285 = vmatprep.subr.mxu0 0.0
        %4286 = vmatpush1.msra.mxu0 0.0
        %4287 = vmatprep.subr.mxu0 0.0
        %4288 = vmatpush1.msra.mxu0 0.0
        %4289 = vmatprep.subr.mxu0 0.0
        %4290 = vmatpush1.msra.mxu0 0.0
        %4291 = vmatprep.subr.mxu0 0.0
        %4292 = vmatpush1.msra.mxu0 0.0
        %4293 = vmatprep.subr.mxu0 0.0
        %4294 = vmatpush1.msra.mxu0 0.0
        %4295 = vmatprep.subr.mxu0 0.0
        %4296 = vmatpush1.msra.mxu0 0.0
        %4297 = vmatprep.subr.mxu0 0.0
        %4298 = vmatpush1.msra.mxu0 0.0
        %4299 = vmatprep.subr.mxu0 0.0
        %4300 = vmatpush1.msra.mxu0 0.0
        %4301 = vmatprep.subr.mxu0 0.0
        %4302 = vmatpush1.msra.mxu0 0.0
        %4303 = vmatprep.subr.mxu0 0.0
        %4304 = vmatpush1.msra.mxu0 0.0
        %4305 = vmatprep.subr.mxu0 0.0
        %4306 = vmatpush1.msra.mxu0 0.0
        %4307 = vmatprep.subr.mxu0 0.0
        %4308 = vmatpush1.msra.mxu0 0.0
        %4309 = vmatprep.subr.mxu0 0.0
        %4310 = vmatpush1.msra.mxu0 0.0
        %4311 = vmatprep.subr.mxu0 0.0
        %4312 = vmatpush1.msra.mxu0 0.0
        %4313 = vmatprep.subr.mxu0 0.0
        %4314 = vmatpush1.msra.mxu0 0.0
        %4315 = vmatprep.subr.mxu0 0.0
        %4316 = vmatpush1.msra.mxu0 0.0
        %4317 = vmatprep.subr.mxu0 0.0
        %4318 = vmatpush1.msra.mxu0 0.0
        %4319 = vmatprep.subr.mxu0 0.0
        %4320 = vmatpush1.msra.mxu0 0.0
        %4321 = vmatprep.subr.mxu0 0.0
        %4322 = vmatpush1.msra.mxu0 0.0
        %4323 = vmatprep.subr.mxu0 0.0
        %4324 = vmatpush1.msra.mxu0 0.0
        %4325 = vmatprep.subr.mxu0 0.0
        %4326 = vmatpush1.msra.mxu0 0.0
        %4327 = vmatprep.subr.mxu0 0.0
        %4328 = vmatpush1.msra.mxu0 0.0
        %4329 = vmatprep.subr.mxu0 0.0
        %4330 = vmatpush1.msra.mxu0 0.0
        %4331 = vmatprep.subr.mxu0 0.0
        %4332 = vmatpush1.msra.mxu0 0.0
        %4333 = vmatprep.mubr.f32.mxu0 0.0
        %4334 = vmatmul.mubr.f32.gmra.mrb[0].mxu0 %v4267
        %v4335 = vpop.f32.mrb[0].mxu0
        %v4336 = vadd.f32 %v4264, %v4335
        %v4337 = vpop.f32.mrb[0].mxu0
        %4338 = vdwg.mxu0
        %v4339 = vmax.f32 %v4336, 0.0
        %v4340 = vld [vmem:[%s49] sm:$0xff]
        %v4341 = vld [vmem:[%s49 + $0x8] sm:$0xff]
        %v4342 = vld [vmem:[%s49 + $0x10] sm:$0xff]
        %v4343 = vld [vmem:[%s49 + $0x18] sm:$0xff]
        %v4344 = vld [vmem:[%s49 + $0x20] sm:$0xff]
        %v4345 = vld [vmem:[%s49 + $0x28] sm:$0xff]
        %v4346 = vld [vmem:[%s49 + $0x30] sm:$0xff]
        %v4347 = vld [vmem:[%s49 + $0x38] sm:$0xff]
        %v4348 = vld [vmem:[%s51] sm:$0x1]
        %v4350 = vlaneseq
        %v4351 = vshrl.u32 %v4350, 7
        %v4352 = vsub.s32 0, %v4351
        %v4353 = vrot.slane %v4348, %v4352
        %v4356 = vsel %vm1880, %v4339, 0
        %4358 = vmatprep.subr.mxu0 0.0
        %4359 = vmatpush1.msra.mxu0 %v4340
        %4360 = vmatprep.subr.mxu0 0.0
        %4361 = vmatpush1.msra.mxu0 %v4341
        %4362 = vmatprep.subr.mxu0 0.0
        %4363 = vmatpush1.msra.mxu0 %v4342
        %4364 = vmatprep.subr.mxu0 0.0
        %4365 = vmatpush1.msra.mxu0 %v4343
        %4366 = vmatprep.subr.mxu0 0.0
        %4367 = vmatpush1.msra.mxu0 %v4344
        %4368 = vmatprep.subr.mxu0 0.0
        %4369 = vmatpush1.msra.mxu0 %v4345
        %4370 = vmatprep.subr.mxu0 0.0
        %4371 = vmatpush1.msra.mxu0 %v4346
        %4372 = vmatprep.subr.mxu0 0.0
        %4373 = vmatpush1.msra.mxu0 %v4347
        %4374 = vmatprep.subr.mxu0 0.0
        %4375 = vmatpush1.msra.mxu0 0.0
        %4376 = vmatprep.subr.mxu0 0.0
        %4377 = vmatpush1.msra.mxu0 0.0
        %4378 = vmatprep.subr.mxu0 0.0
        %4379 = vmatpush1.msra.mxu0 0.0
        %4380 = vmatprep.subr.mxu0 0.0
        %4381 = vmatpush1.msra.mxu0 0.0
        %4382 = vmatprep.subr.mxu0 0.0
        %4383 = vmatpush1.msra.mxu0 0.0
        %4384 = vmatprep.subr.mxu0 0.0
        %4385 = vmatpush1.msra.mxu0 0.0
        %4386 = vmatprep.subr.mxu0 0.0
        %4387 = vmatpush1.msra.mxu0 0.0
        %4388 = vmatprep.subr.mxu0 0.0
        %4389 = vmatpush1.msra.mxu0 0.0
        %4390 = vmatprep.subr.mxu0 0.0
        %4391 = vmatpush1.msra.mxu0 0.0
        %4392 = vmatprep.subr.mxu0 0.0
        %4393 = vmatpush1.msra.mxu0 0.0
        %4394 = vmatprep.subr.mxu0 0.0
        %4395 = vmatpush1.msra.mxu0 0.0
        %4396 = vmatprep.subr.mxu0 0.0
        %4397 = vmatpush1.msra.mxu0 0.0
        %4398 = vmatprep.subr.mxu0 0.0
        %4399 = vmatpush1.msra.mxu0 0.0
        %4400 = vmatprep.subr.mxu0 0.0
        %4401 = vmatpush1.msra.mxu0 0.0
        %4402 = vmatprep.subr.mxu0 0.0
        %4403 = vmatpush1.msra.mxu0 0.0
        %4404 = vmatprep.subr.mxu0 0.0
        %4405 = vmatpush1.msra.mxu0 0.0
        %4406 = vmatprep.subr.mxu0 0.0
        %4407 = vmatpush1.msra.mxu0 0.0
        %4408 = vmatprep.subr.mxu0 0.0
        %4409 = vmatpush1.msra.mxu0 0.0
        %4410 = vmatprep.subr.mxu0 0.0
        %4411 = vmatpush1.msra.mxu0 0.0
        %4412 = vmatprep.subr.mxu0 0.0
        %4413 = vmatpush1.msra.mxu0 0.0
        %4414 = vmatprep.subr.mxu0 0.0
        %4415 = vmatpush1.msra.mxu0 0.0
        %4416 = vmatprep.subr.mxu0 0.0
        %4417 = vmatpush1.msra.mxu0 0.0
        %4418 = vmatprep.subr.mxu0 0.0
        %4419 = vmatpush1.msra.mxu0 0.0
        %4420 = vmatprep.subr.mxu0 0.0
        %4421 = vmatpush1.msra.mxu0 0.0
        %4422 = vmatprep.mubr.f32.mxu0 0.0
        %4423 = vmatmul.mubr.f32.gmra.mrb[0].mxu0 %v4356
        %v4424 = vpop.f32.mrb[0].mxu0
        %v4425 = vadd.f32 %v4353, %v4424
        %v4426 = vpop.f32.mrb[0].mxu0
        %4427 = vdwg.mxu0
        %v4428 = vadd.f32 %v4254, %v4425
        %s4429 = sld [smem:[#allocation5 + $0x4]]
        %s4430 = sld [smem:[#allocation5 + $0x5]]
        %v4431 = vsel %vm1392, %v4428, 0.0
        %v4432 = vrot.slane %v4431, 4
        %v4433 = vadd.f32 %v4431, %v4432
        %v4434 = vrot.slane %v4433, 2
        %v4435 = vadd.f32 %v4433, %v4434
        %v4436 = vrot.slane %v4435, 1
        %v4437 = vadd.f32 %v4435, %v4436
        %v4438 = vmul.f32 %v4437, %v1400
        %v4439 = vld [vmem:[%s25] sm:$0xff]
        %v4440 = vld [vmem:[%s25 + $0x8] sm:$0xff]
        %v4441 = vld [vmem:[%s25 + $0x10] sm:$0xff]
        %v4442 = vld [vmem:[%s25 + $0x18] sm:$0xff]
        %v4444 = vsel %vm1392, %v4438, 0
        %4446 = vmatprep.subr.mxu0 0.0
        %4447 = vmatpush1.msra.mxu0 %v4439
        %4448 = vmatprep.subr.mxu0 0.0
        %4449 = vmatpush1.msra.mxu0 %v4440
        %4450 = vmatprep.subr.mxu0 0.0
        %4451 = vmatpush1.msra.mxu0 %v4441
        %4452 = vmatprep.subr.mxu0 0.0
        %4453 = vmatpush1.msra.mxu0 %v4442
        %4454 = vmatprep.subr.mxu0 0.0
        %4455 = vmatpush1.msra.mxu0 0.0
        %4456 = vmatprep.subr.mxu0 0.0
        %4457 = vmatpush1.msra.mxu0 0.0
        %4458 = vmatprep.subr.mxu0 0.0
        %4459 = vmatpush1.msra.mxu0 0.0
        %4460 = vmatprep.subr.mxu0 0.0
        %4461 = vmatpush1.msra.mxu0 0.0
        %4462 = vmatprep.subr.mxu0 0.0
        %4463 = vmatpush1.msra.mxu0 0.0
        %4464 = vmatprep.subr.mxu0 0.0
        %4465 = vmatpush1.msra.mxu0 0.0
        %4466 = vmatprep.subr.mxu0 0.0
        %4467 = vmatpush1.msra.mxu0 0.0
        %4468 = vmatprep.subr.mxu0 0.0
        %4469 = vmatpush1.msra.mxu0 0.0
        %4470 = vmatprep.subr.mxu0 0.0
        %4471 = vmatpush1.msra.mxu0 0.0
        %4472 = vmatprep.subr.mxu0 0.0
        %4473 = vmatpush1.msra.mxu0 0.0
        %4474 = vmatprep.subr.mxu0 0.0
        %4475 = vmatpush1.msra.mxu0 0.0
        %4476 = vmatprep.subr.mxu0 0.0
        %4477 = vmatpush1.msra.mxu0 0.0
        %4478 = vmatprep.subr.mxu0 0.0
        %4479 = vmatpush1.msra.mxu0 0.0
        %4480 = vmatprep.subr.mxu0 0.0
        %4481 = vmatpush1.msra.mxu0 0.0
        %4482 = vmatprep.subr.mxu0 0.0
        %4483 = vmatpush1.msra.mxu0 0.0
        %4484 = vmatprep.subr.mxu0 0.0
        %4485 = vmatpush1.msra.mxu0 0.0
        %4486 = vmatprep.subr.mxu0 0.0
        %4487 = vmatpush1.msra.mxu0 0.0
        %4488 = vmatprep.subr.mxu0 0.0
        %4489 = vmatpush1.msra.mxu0 0.0
        %4490 = vmatprep.subr.mxu0 0.0
        %4491 = vmatpush1.msra.mxu0 0.0
        %4492 = vmatprep.subr.mxu0 0.0
        %4493 = vmatpush1.msra.mxu0 0.0
        %4494 = vmatprep.subr.mxu0 0.0
        %4495 = vmatpush1.msra.mxu0 0.0
        %4496 = vmatprep.subr.mxu0 0.0
        %4497 = vmatpush1.msra.mxu0 0.0
        %4498 = vmatprep.subr.mxu0 0.0
        %4499 = vmatpush1.msra.mxu0 0.0
        %4500 = vmatprep.subr.mxu0 0.0
        %4501 = vmatpush1.msra.mxu0 0.0
        %4502 = vmatprep.subr.mxu0 0.0
        %4503 = vmatpush1.msra.mxu0 0.0
        %4504 = vmatprep.subr.mxu0 0.0
        %4505 = vmatpush1.msra.mxu0 0.0
        %4506 = vmatprep.subr.mxu0 0.0
        %4507 = vmatpush1.msra.mxu0 0.0
        %4508 = vmatprep.subr.mxu0 0.0
        %4509 = vmatpush1.msra.mxu0 0.0
        %4510 = vmatprep.mubr.f32.mxu0 0.0
        %4511 = vmatmul.mubr.f32.gmra.mrb[0].mxu0 %v4444
        %v4512 = vpop.f32.mrb[0].mxu0
        %v4513 = vadd.f32 0.0, %v4512
        %v4514 = vpop.f32.mrb[0].mxu0
        %4515 = vdwg.mxu0
        %v4516 = vlaneseq
        %v4517 = vshrl.u32 %v4516, 7
        %v4518 = vsub.s32 0, %v4517
        %v4519 = vrot.slane %v4513, %v4518
        %v4520 = vmul.f32 %v4428, %v4519
        %v4521 = vsel %vm1392, %v4520, 0.0
        %4522 = vadd.xlane.f32.xlu0 %v4521
        %v4523 = vpop.xlane.xlu0 %4522
        %v4524 = vsel %vm1487, %v4523, 0.0
        %4525 = vadd.xlane.f32.xlu0 %v4524
        %v4526 = vpop.xlane.xlu0 %4525
        %v4527 = vrot.slane %v4526, 4
        %v4528 = vadd.f32 %v4526, %v4527
        %v4529 = vrot.slane %v4528, 2
        %v4530 = vadd.f32 %v4528, %v4529
        %v4531 = vrot.slane %v4530, 1
        %v4532 = vadd.f32 %v4530, %v4531
        %s4533 = vtos %v4532
        %v4534 = vstv %s4533
        %v4535 = vmul.f32 %v4534, %v1400
        %v4536 = vsub.f32 %v4523, %v4535
        %v4537 = vmul.f32 %v4536, %v4536
        %v4538 = vsel %vm1487, %v4537, 0.0
        %4539 = vadd.xlane.f32.xlu0 %v4538
        %v4540 = vpop.xlane.xlu0 %4539
        %v4541 = vrot.slane %v4540, 4
        %v4542 = vadd.f32 %v4540, %v4541
        %v4543 = vrot.slane %v4542, 2
        %v4544 = vadd.f32 %v4542, %v4543
        %v4545 = vrot.slane %v4544, 1
        %v4546 = vadd.f32 %v4544, %v4545
        %s4547 = vtos %v4546
        %v4548 = vstv %s4547
        %v4549 = vmul.f32 %v4548, %v1400
        %v4550 = vrsqrt.pop %v4549
        %v4551 = vmul.f32 %v4549, %v4550
        %vm4552 = vcmp.eq.f32.partialorder %v4549, inf
        %v4553 = vsel %vm4552, %v4549, %v4551
        %vm4554 = vcmp.eq.f32.partialorder %v4549, 0.0
        %v4555 = vand.u32 %v4549, 2147483648
        %v4556 = vsel %vm4554, %v4555, %v4553
        %v4557 = vstv %s4429
        %v4558 = vmul.f32 %v4557, %v4536
        %v4559 = vadd.f32 %v4556, 1e-05
        %v4560 = vrcp.pop %v4559
        %v4561 = vmul.f32 %v4558, %v4560
        %v4562 = vstv %s4430
        %v4563 = vadd.f32 %v4561, %v4562
        %v4564 = vmul.f32 %v4563, %v4519
        %v4565 = vadd.f32 %v4428, %v4564
        %v4566 = vld [vmem:[%s53] sm:$0xff]
        %v4567 = vld [vmem:[%s53 + $0x8] sm:$0xff]
        %v4568 = vld [vmem:[%s53 + $0x10] sm:$0xff]
        %v4569 = vld [vmem:[%s53 + $0x18] sm:$0xff]
        %v4570 = vld [vmem:[%s55] sm:$0x1]
        %v4572 = vlaneseq
        %v4573 = vshrl.u32 %v4572, 7
        %v4574 = vsub.s32 0, %v4573
        %v4575 = vrot.slane %v4570, %v4574
        %v4578 = vsel %vm1392, %v4565, 0
        %4580 = vmatprep.subr.mxu0 0.0
        %4581 = vmatpush1.msra.mxu0 %v4566
        %4582 = vmatprep.subr.mxu0 0.0
        %4583 = vmatpush1.msra.mxu0 %v4567
        %4584 = vmatprep.subr.mxu0 0.0
        %4585 = vmatpush1.msra.mxu0 %v4568
        %4586 = vmatprep.subr.mxu0 0.0
        %4587 = vmatpush1.msra.mxu0 %v4569
        %4588 = vmatprep.subr.mxu0 0.0
        %4589 = vmatpush1.msra.mxu0 0.0
        %4590 = vmatprep.subr.mxu0 0.0
        %4591 = vmatpush1.msra.mxu0 0.0
        %4592 = vmatprep.subr.mxu0 0.0
        %4593 = vmatpush1.msra.mxu0 0.0
        %4594 = vmatprep.subr.mxu0 0.0
        %4595 = vmatpush1.msra.mxu0 0.0
        %4596 = vmatprep.subr.mxu0 0.0
        %4597 = vmatpush1.msra.mxu0 0.0
        %4598 = vmatprep.subr.mxu0 0.0
        %4599 = vmatpush1.msra.mxu0 0.0
        %4600 = vmatprep.subr.mxu0 0.0
        %4601 = vmatpush1.msra.mxu0 0.0
        %4602 = vmatprep.subr.mxu0 0.0
        %4603 = vmatpush1.msra.mxu0 0.0
        %4604 = vmatprep.subr.mxu0 0.0
        %4605 = vmatpush1.msra.mxu0 0.0
        %4606 = vmatprep.subr.mxu0 0.0
        %4607 = vmatpush1.msra.mxu0 0.0
        %4608 = vmatprep.subr.mxu0 0.0
        %4609 = vmatpush1.msra.mxu0 0.0
        %4610 = vmatprep.subr.mxu0 0.0
        %4611 = vmatpush1.msra.mxu0 0.0
        %4612 = vmatprep.subr.mxu0 0.0
        %4613 = vmatpush1.msra.mxu0 0.0
        %4614 = vmatprep.subr.mxu0 0.0
        %4615 = vmatpush1.msra.mxu0 0.0
        %4616 = vmatprep.subr.mxu0 0.0
        %4617 = vmatpush1.msra.mxu0 0.0
        %4618 = vmatprep.subr.mxu0 0.0
        %4619 = vmatpush1.msra.mxu0 0.0
        %4620 = vmatprep.subr.mxu0 0.0
        %4621 = vmatpush1.msra.mxu0 0.0
        %4622 = vmatprep.subr.mxu0 0.0
        %4623 = vmatpush1.msra.mxu0 0.0
        %4624 = vmatprep.subr.mxu0 0.0
        %4625 = vmatpush1.msra.mxu0 0.0
        %4626 = vmatprep.subr.mxu0 0.0
        %4627 = vmatpush1.msra.mxu0 0.0
        %4628 = vmatprep.subr.mxu0 0.0
        %4629 = vmatpush1.msra.mxu0 0.0
        %4630 = vmatprep.subr.mxu0 0.0
        %4631 = vmatpush1.msra.mxu0 0.0
        %4632 = vmatprep.subr.mxu0 0.0
        %4633 = vmatpush1.msra.mxu0 0.0
        %4634 = vmatprep.subr.mxu0 0.0
        %4635 = vmatpush1.msra.mxu0 0.0
        %4636 = vmatprep.subr.mxu0 0.0
        %4637 = vmatpush1.msra.mxu0 0.0
        %4638 = vmatprep.subr.mxu0 0.0
        %4639 = vmatpush1.msra.mxu0 0.0
        %4640 = vmatprep.subr.mxu0 0.0
        %4641 = vmatpush1.msra.mxu0 0.0
        %4642 = vmatprep.subr.mxu0 0.0
        %4643 = vmatpush1.msra.mxu0 0.0
        %4644 = vmatprep.mubr.f32.mxu0 0.0
        %4645 = vmatmul.mubr.f32.gmra.mrb[0].mxu0 %v4578
        %v4646 = vpop.f32.mrb[0].mxu0
        %v4647 = vadd.f32 %v4575, %v4646
        %v4648 = vpop.f32.mrb[0].mxu0
        %4649 = vdwg.mxu0
        %v4650 = vmax.f32 %v4647, 0.0
        %v4651 = vld [vmem:[%s57] sm:$0xff]
        %v4652 = vld [vmem:[%s57 + $0x8] sm:$0xff]
        %v4653 = vld [vmem:[%s57 + $0x10] sm:$0xff]
        %v4654 = vld [vmem:[%s57 + $0x18] sm:$0xff]
        %v4655 = vld [vmem:[%s57 + $0x20] sm:$0xff]
        %v4656 = vld [vmem:[%s57 + $0x28] sm:$0xff]
        %v4657 = vld [vmem:[%s57 + $0x30] sm:$0xff]
        %v4658 = vld [vmem:[%s57 + $0x38] sm:$0xff]
        %v4659 = vld [vmem:[%s59] sm:$0x1]
        %v4661 = vlaneseq
        %v4662 = vshrl.u32 %v4661, 7
        %v4663 = vsub.s32 0, %v4662
        %v4664 = vrot.slane %v4659, %v4663
        %v4667 = vsel %vm1880, %v4650, 0
        %4669 = vmatprep.subr.mxu0 0.0
        %4670 = vmatpush1.msra.mxu0 %v4651
        %4671 = vmatprep.subr.mxu0 0.0
        %4672 = vmatpush1.msra.mxu0 %v4652
        %4673 = vmatprep.subr.mxu0 0.0
        %4674 = vmatpush1.msra.mxu0 %v4653
        %4675 = vmatprep.subr.mxu0 0.0
        %4676 = vmatpush1.msra.mxu0 %v4654
        %4677 = vmatprep.subr.mxu0 0.0
        %4678 = vmatpush1.msra.mxu0 %v4655
        %4679 = vmatprep.subr.mxu0 0.0
        %4680 = vmatpush1.msra.mxu0 %v4656
        %4681 = vmatprep.subr.mxu0 0.0
        %4682 = vmatpush1.msra.mxu0 %v4657
        %4683 = vmatprep.subr.mxu0 0.0
        %4684 = vmatpush1.msra.mxu0 %v4658
        %4685 = vmatprep.subr.mxu0 0.0
        %4686 = vmatpush1.msra.mxu0 0.0
        %4687 = vmatprep.subr.mxu0 0.0
        %4688 = vmatpush1.msra.mxu0 0.0
        %4689 = vmatprep.subr.mxu0 0.0
        %4690 = vmatpush1.msra.mxu0 0.0
        %4691 = vmatprep.subr.mxu0 0.0
        %4692 = vmatpush1.msra.mxu0 0.0
        %4693 = vmatprep.subr.mxu0 0.0
        %4694 = vmatpush1.msra.mxu0 0.0
        %4695 = vmatprep.subr.mxu0 0.0
        %4696 = vmatpush1.msra.mxu0 0.0
        %4697 = vmatprep.subr.mxu0 0.0
        %4698 = vmatpush1.msra.mxu0 0.0
        %4699 = vmatprep.subr.mxu0 0.0
        %4700 = vmatpush1.msra.mxu0 0.0
        %4701 = vmatprep.subr.mxu0 0.0
        %4702 = vmatpush1.msra.mxu0 0.0
        %4703 = vmatprep.subr.mxu0 0.0
        %4704 = vmatpush1.msra.mxu0 0.0
        %4705 = vmatprep.subr.mxu0 0.0
        %4706 = vmatpush1.msra.mxu0 0.0
        %4707 = vmatprep.subr.mxu0 0.0
        %4708 = vmatpush1.msra.mxu0 0.0
        %4709 = vmatprep.subr.mxu0 0.0
        %4710 = vmatpush1.msra.mxu0 0.0
        %4711 = vmatprep.subr.mxu0 0.0
        %4712 = vmatpush1.msra.mxu0 0.0
        %4713 = vmatprep.subr.mxu0 0.0
        %4714 = vmatpush1.msra.mxu0 0.0
        %4715 = vmatprep.subr.mxu0 0.0
        %4716 = vmatpush1.msra.mxu0 0.0
        %4717 = vmatprep.subr.mxu0 0.0
        %4718 = vmatpush1.msra.mxu0 0.0
        %4719 = vmatprep.subr.mxu0 0.0
        %4720 = vmatpush1.msra.mxu0 0.0
        %4721 = vmatprep.subr.mxu0 0.0
        %4722 = vmatpush1.msra.mxu0 0.0
        %4723 = vmatprep.subr.mxu0 0.0
        %4724 = vmatpush1.msra.mxu0 0.0
        %4725 = vmatprep.subr.mxu0 0.0
        %4726 = vmatpush1.msra.mxu0 0.0
        %4727 = vmatprep.subr.mxu0 0.0
        %4728 = vmatpush1.msra.mxu0 0.0
        %4729 = vmatprep.subr.mxu0 0.0
        %4730 = vmatpush1.msra.mxu0 0.0
        %4731 = vmatprep.subr.mxu0 0.0
        %4732 = vmatpush1.msra.mxu0 0.0
        %4733 = vmatprep.mubr.f32.mxu0 0.0
        %4734 = vmatmul.mubr.f32.gmra.mrb[0].mxu0 %v4667
        %v4735 = vpop.f32.mrb[0].mxu0
        %v4736 = vadd.f32 %v4664, %v4735
        %v4737 = vpop.f32.mrb[0].mxu0
        %4738 = vdwg.mxu0
        %v4739 = vadd.f32 %v4565, %v4736
        %v4740 = vld [vmem:[%s19] sm:$0xff]
        %v4741 = vld [vmem:[%s19 + $0x8] sm:$0xff]
        %v4743 = vsel %vm2099, %v4740, 0
        %v4746 = vsel %vm2099, %v4741, 0
        %4748 = vmatprep.subr.mxu0 0.0
        %4749 = vmatpush1.msra.mxu0 %v1685
        %4750 = vmatprep.subr.mxu0 0.0
        %4751 = vmatpush1.msra.mxu0 %v1686
        %4752 = vmatprep.subr.mxu0 0.0
        %4753 = vmatpush1.msra.mxu0 0.0
        %4754 = vmatprep.subr.mxu0 0.0
        %4755 = vmatpush1.msra.mxu0 0.0
        %4756 = vmatprep.subr.mxu0 0.0
        %4757 = vmatpush1.msra.mxu0 0.0
        %4758 = vmatprep.subr.mxu0 0.0
        %4759 = vmatpush1.msra.mxu0 0.0
        %4760 = vmatprep.subr.mxu0 0.0
        %4761 = vmatpush1.msra.mxu0 0.0
        %4762 = vmatprep.subr.mxu0 0.0
        %4763 = vmatpush1.msra.mxu0 0.0
        %4764 = vmatprep.subr.mxu0 0.0
        %4765 = vmatpush1.msra.mxu0 0.0
        %4766 = vmatprep.subr.mxu0 0.0
        %4767 = vmatpush1.msra.mxu0 0.0
        %4768 = vmatprep.subr.mxu0 0.0
        %4769 = vmatpush1.msra.mxu0 0.0
        %4770 = vmatprep.subr.mxu0 0.0
        %4771 = vmatpush1.msra.mxu0 0.0
        %4772 = vmatprep.subr.mxu0 0.0
        %4773 = vmatpush1.msra.mxu0 0.0
        %4774 = vmatprep.subr.mxu0 0.0
        %4775 = vmatpush1.msra.mxu0 0.0
        %4776 = vmatprep.subr.mxu0 0.0
        %4777 = vmatpush1.msra.mxu0 0.0
        %4778 = vmatprep.subr.mxu0 0.0
        %4779 = vmatpush1.msra.mxu0 0.0
        %4780 = vmatprep.subr.mxu0 0.0
        %4781 = vmatpush1.msra.mxu0 0.0
        %4782 = vmatprep.subr.mxu0 0.0
        %4783 = vmatpush1.msra.mxu0 0.0
        %4784 = vmatprep.subr.mxu0 0.0
        %4785 = vmatpush1.msra.mxu0 0.0
        %4786 = vmatprep.subr.mxu0 0.0
        %4787 = vmatpush1.msra.mxu0 0.0
        %4788 = vmatprep.subr.mxu0 0.0
        %4789 = vmatpush1.msra.mxu0 0.0
        %4790 = vmatprep.subr.mxu0 0.0
        %4791 = vmatpush1.msra.mxu0 0.0
        %4792 = vmatprep.subr.mxu0 0.0
        %4793 = vmatpush1.msra.mxu0 0.0
        %4794 = vmatprep.subr.mxu0 0.0
        %4795 = vmatpush1.msra.mxu0 0.0
        %4796 = vmatprep.subr.mxu0 0.0
        %4797 = vmatpush1.msra.mxu0 0.0
        %4798 = vmatprep.subr.mxu0 0.0
        %4799 = vmatpush1.msra.mxu0 0.0
        %4800 = vmatprep.subr.mxu0 0.0
        %4801 = vmatpush1.msra.mxu0 0.0
        %4802 = vmatprep.subr.mxu0 0.0
        %4803 = vmatpush1.msra.mxu0 0.0
        %4804 = vmatprep.subr.mxu0 0.0
        %4805 = vmatpush1.msra.mxu0 0.0
        %4806 = vmatprep.subr.mxu0 0.0
        %4807 = vmatpush1.msra.mxu0 0.0
        %4808 = vmatprep.subr.mxu0 0.0
        %4809 = vmatpush1.msra.mxu0 0.0
        %4810 = vmatprep.subr.mxu0 0.0
        %4811 = vmatpush1.msra.mxu0 0.0
        %4812 = vmatprep.mubr.f32.mxu0 0.0
        %4813 = vmatmul.mubr.f32.gmra.mrb[0].mxu0 %v4743
        %v4814 = vpop.f32.mrb[0].mxu0
        %v4815 = vadd.f32 0.0, %v4814
        %v4816 = vpop.f32.mrb[0].mxu0
        %4817 = vmatprep.mubr.f32.mxu0 0.0
        %4818 = vmatmul.mubr.f32.gmra.mrb[0].mxu0 %v4746
        %v4819 = vpop.f32.mrb[0].mxu0
        %v4820 = vadd.f32 0.0, %v4819
        %v4821 = vpop.f32.mrb[0].mxu0
        %4822 = vdwg.mxu0
        %v4823 = vld [vmem:[%s33] sm:$0xff]
        %v4824 = vld [vmem:[%s33 + $0x8] sm:$0xff]
        %v4825 = vld [vmem:[%s33 + $0x10] sm:$0xff]
        %v4826 = vld [vmem:[%s33 + $0x18] sm:$0xff]
        %v4827 = vld [vmem:[%s35] sm:$0x1]
        %v4829 = vlaneseq
        %v4830 = vshrl.u32 %v4829, 7
        %v4831 = vsub.s32 0, %v4830
        %v4832 = vrot.slane %v4827, %v4831
        %v4835 = vsel %vm1392, %v4815, 0
        %v4838 = vsel %vm1392, %v4820, 0
        %4840 = vmatprep.subr.mxu0 0.0
        %4841 = vmatpush1.msra.mxu0 %v4823
        %4842 = vmatprep.subr.mxu0 0.0
        %4843 = vmatpush1.msra.mxu0 %v4824
        %4844 = vmatprep.subr.mxu0 0.0
        %4845 = vmatpush1.msra.mxu0 %v4825
        %4846 = vmatprep.subr.mxu0 0.0
        %4847 = vmatpush1.msra.mxu0 %v4826
        %4848 = vmatprep.subr.mxu0 0.0
        %4849 = vmatpush1.msra.mxu0 0.0
        %4850 = vmatprep.subr.mxu0 0.0
        %4851 = vmatpush1.msra.mxu0 0.0
        %4852 = vmatprep.subr.mxu0 0.0
        %4853 = vmatpush1.msra.mxu0 0.0
        %4854 = vmatprep.subr.mxu0 0.0
        %4855 = vmatpush1.msra.mxu0 0.0
        %4856 = vmatprep.subr.mxu0 0.0
        %4857 = vmatpush1.msra.mxu0 0.0
        %4858 = vmatprep.subr.mxu0 0.0
        %4859 = vmatpush1.msra.mxu0 0.0
        %4860 = vmatprep.subr.mxu0 0.0
        %4861 = vmatpush1.msra.mxu0 0.0
        %4862 = vmatprep.subr.mxu0 0.0
        %4863 = vmatpush1.msra.mxu0 0.0
        %4864 = vmatprep.subr.mxu0 0.0
        %4865 = vmatpush1.msra.mxu0 0.0
        %4866 = vmatprep.subr.mxu0 0.0
        %4867 = vmatpush1.msra.mxu0 0.0
        %4868 = vmatprep.subr.mxu0 0.0
        %4869 = vmatpush1.msra.mxu0 0.0
        %4870 = vmatprep.subr.mxu0 0.0
        %4871 = vmatpush1.msra.mxu0 0.0
        %4872 = vmatprep.subr.mxu0 0.0
        %4873 = vmatpush1.msra.mxu0 0.0
        %4874 = vmatprep.subr.mxu0 0.0
        %4875 = vmatpush1.msra.mxu0 0.0
        %4876 = vmatprep.subr.mxu0 0.0
        %4877 = vmatpush1.msra.mxu0 0.0
        %4878 = vmatprep.subr.mxu0 0.0
        %4879 = vmatpush1.msra.mxu0 0.0
        %4880 = vmatprep.subr.mxu0 0.0
        %4881 = vmatpush1.msra.mxu0 0.0
        %4882 = vmatprep.subr.mxu0 0.0
        %4883 = vmatpush1.msra.mxu0 0.0
        %4884 = vmatprep.subr.mxu0 0.0
        %4885 = vmatpush1.msra.mxu0 0.0
        %4886 = vmatprep.subr.mxu0 0.0
        %4887 = vmatpush1.msra.mxu0 0.0
        %4888 = vmatprep.subr.mxu0 0.0
        %4889 = vmatpush1.msra.mxu0 0.0
        %4890 = vmatprep.subr.mxu0 0.0
        %4891 = vmatpush1.msra.mxu0 0.0
        %4892 = vmatprep.subr.mxu0 0.0
        %4893 = vmatpush1.msra.mxu0 0.0
        %4894 = vmatprep.subr.mxu0 0.0
        %4895 = vmatpush1.msra.mxu0 0.0
        %4896 = vmatprep.subr.mxu0 0.0
        %4897 = vmatpush1.msra.mxu0 0.0
        %4898 = vmatprep.subr.mxu0 0.0
        %4899 = vmatpush1.msra.mxu0 0.0
        %4900 = vmatprep.subr.mxu0 0.0
        %4901 = vmatpush1.msra.mxu0 0.0
        %4902 = vmatprep.subr.mxu0 0.0
        %4903 = vmatpush1.msra.mxu0 0.0
        %4904 = vmatprep.mubr.f32.mxu0 0.0
        %4905 = vmatmul.mubr.f32.gmra.mrb[0].mxu0 %v4835
        %v4906 = vpop.f32.mrb[0].mxu0
        %v4907 = vadd.f32 %v4832, %v4906
        %v4908 = vpop.f32.mrb[0].mxu0
        %4909 = vmatprep.mubr.f32.mxu0 0.0
        %4910 = vmatmul.mubr.f32.gmra.mrb[0].mxu0 %v4838
        %v4911 = vpop.f32.mrb[0].mxu0
        %v4912 = vadd.f32 %v4832, %v4911
        %v4913 = vpop.f32.mrb[0].mxu0
        %4914 = vdwg.mxu0
        %v4915 = vmax.f32 %v4907, 0.0
        %v4916 = vmax.f32 %v4912, 0.0
        %s4917 = sld [smem:[#allocation5 + $0x9]]
        %v4918 = vld [vmem:[%s41] sm:$0xff]
        %v4919 = vld [vmem:[%s41 + $0x8] sm:$0xff]
        %v4920 = vld [vmem:[%s41 + $0x10] sm:$0xff]
        %v4921 = vld [vmem:[%s41 + $0x18] sm:$0xff]
        %v4922 = vld [vmem:[%s41 + $0x20] sm:$0xff]
        %v4923 = vld [vmem:[%s41 + $0x28] sm:$0xff]
        %v4924 = vld [vmem:[%s41 + $0x30] sm:$0xff]
        %v4925 = vld [vmem:[%s41 + $0x38] sm:$0xff]
        %v4926 = vld [vmem:[%s41 + $0x40] sm:$0xff]
        %v4927 = vld [vmem:[%s41 + $0x48] sm:$0xff]
        %v4928 = vld [vmem:[%s41 + $0x50] sm:$0xff]
        %v4929 = vld [vmem:[%s41 + $0x58] sm:$0xff]
        %v4930 = vld [vmem:[%s41 + $0x60] sm:$0xff]
        %v4931 = vld [vmem:[%s41 + $0x68] sm:$0xff]
        %v4932 = vld [vmem:[%s41 + $0x70] sm:$0xff]
        %v4933 = vld [vmem:[%s41 + $0x78] sm:$0xff]
        %s4934 = smax.f32 %s4917, 1e-05
        %v4935 = vld [vmem:[%s1384] sm:$0xff]
        %v4936 = vld [vmem:[%s1384 + $0x8] sm:$0xff]
        %v4937 = vld [vmem:[%s1384 + $0x10] sm:$0xff]
        %v4938 = vld [vmem:[%s1384 + $0x18] sm:$0xff]
        %v4939 = vld [vmem:[%s1384 + $0x20] sm:$0xff]
        %v4940 = vld [vmem:[%s1384 + $0x28] sm:$0xff]
        %v4941 = vld [vmem:[%s1384 + $0x30] sm:$0xff]
        %v4942 = vld [vmem:[%s1384 + $0x38] sm:$0xff]
        %v4943 = vld [vmem:[%s1388] sm:$0x1]
        %v4945 = vlaneseq
        %v4946 = vshrl.u32 %v4945, 7
        %v4947 = vsub.s32 0, %v4946
        %v4948 = vrot.slane %v4943, %v4947
        %v4951 = vsel %vm1880, %v4915, 0
        %v4954 = vsel %vm1880, %v4916, 0
        %4956 = vmatprep.subr.mxu0 0.0
        %4957 = vmatpush1.msra.mxu0 %v4935
        %4958 = vmatprep.subr.mxu0 0.0
        %4959 = vmatpush1.msra.mxu0 %v4936
        %4960 = vmatprep.subr.mxu0 0.0
        %4961 = vmatpush1.msra.mxu0 %v4937
        %4962 = vmatprep.subr.mxu0 0.0
        %4963 = vmatpush1.msra.mxu0 %v4938
        %4964 = vmatprep.subr.mxu0 0.0
        %4965 = vmatpush1.msra.mxu0 %v4939
        %4966 = vmatprep.subr.mxu0 0.0
        %4967 = vmatpush1.msra.mxu0 %v4940
        %4968 = vmatprep.subr.mxu0 0.0
        %4969 = vmatpush1.msra.mxu0 %v4941
        %4970 = vmatprep.subr.mxu0 0.0
        %4971 = vmatpush1.msra.mxu0 %v4942
        %4972 = vmatprep.subr.mxu0 0.0
        %4973 = vmatpush1.msra.mxu0 0.0
        %4974 = vmatprep.subr.mxu0 0.0
        %4975 = vmatpush1.msra.mxu0 0.0
        %4976 = vmatprep.subr.mxu0 0.0
        %4977 = vmatpush1.msra.mxu0 0.0
        %4978 = vmatprep.subr.mxu0 0.0
        %4979 = vmatpush1.msra.mxu0 0.0
        %4980 = vmatprep.subr.mxu0 0.0
        %4981 = vmatpush1.msra.mxu0 0.0
        %4982 = vmatprep.subr.mxu0 0.0
        %4983 = vmatpush1.msra.mxu0 0.0
        %4984 = vmatprep.subr.mxu0 0.0
        %4985 = vmatpush1.msra.mxu0 0.0
        %4986 = vmatprep.subr.mxu0 0.0
        %4987 = vmatpush1.msra.mxu0 0.0
        %4988 = vmatprep.subr.mxu0 0.0
        %4989 = vmatpush1.msra.mxu0 0.0
        %4990 = vmatprep.subr.mxu0 0.0
        %4991 = vmatpush1.msra.mxu0 0.0
        %4992 = vmatprep.subr.mxu0 0.0
        %4993 = vmatpush1.msra.mxu0 0.0
        %4994 = vmatprep.subr.mxu0 0.0
        %4995 = vmatpush1.msra.mxu0 0.0
        %4996 = vmatprep.subr.mxu0 0.0
        %4997 = vmatpush1.msra.mxu0 0.0
        %4998 = vmatprep.subr.mxu0 0.0
        %4999 = vmatpush1.msra.mxu0 0.0
        %5000 = vmatprep.subr.mxu0 0.0
        %5001 = vmatpush1.msra.mxu0 0.0
        %5002 = vmatprep.subr.mxu0 0.0
        %5003 = vmatpush1.msra.mxu0 0.0
        %5004 = vmatprep.subr.mxu0 0.0
        %5005 = vmatpush1.msra.mxu0 0.0
        %5006 = vmatprep.subr.mxu0 0.0
        %5007 = vmatpush1.msra.mxu0 0.0
        %5008 = vmatprep.subr.mxu0 0.0
        %5009 = vmatpush1.msra.mxu0 0.0
        %5010 = vmatprep.subr.mxu0 0.0
        %5011 = vmatpush1.msra.mxu0 0.0
        %5012 = vmatprep.subr.mxu0 0.0
        %5013 = vmatpush1.msra.mxu0 0.0
        %5014 = vmatprep.subr.mxu0 0.0
        %5015 = vmatpush1.msra.mxu0 0.0
        %5016 = vmatprep.subr.mxu0 0.0
        %5017 = vmatpush1.msra.mxu0 0.0
        %5018 = vmatprep.subr.mxu0 0.0
        %5019 = vmatpush1.msra.mxu0 0.0
        %5020 = vmatprep.mubr.f32.mxu0 0.0
        %5021 = vmatmul.mubr.f32.gmra.mrb[0].mxu0 %v4951
        %v5022 = vpop.f32.mrb[0].mxu0
        %v5023 = vadd.f32 %v4948, %v5022
        %v5024 = vpop.f32.mrb[0].mxu0
        %5025 = vmatprep.mubr.f32.mxu0 0.0
        %5026 = vmatmul.mubr.f32.gmra.mrb[0].mxu0 %v4954
        %v5027 = vpop.f32.mrb[0].mxu0
        %v5028 = vadd.f32 %v4948, %v5027
        %v5029 = vpop.f32.mrb[0].mxu0
        %5030 = vdwg.mxu0
        %v5032 = vsel %vm1392, %v4739, 0
        %v5035 = vsel %vm1392, %v5023, 0
        %v5038 = vsel %vm1392, %v5028, 0
        %5040 = vmatprep.subr.mxu0 0.0
        %5041 = vmatpush1.xpose.msra.mxu0 %v5035
        %5042 = vmatprep.subr.mxu0 0.0
        %5043 = vmatpush1.xpose.msra.mxu0 %v5038
        %5044 = vmatprep.subr.mxu0 0.0
        %5045 = vmatpush1.xpose.msra.mxu0 0.0
        %5046 = vmatprep.subr.mxu0 0.0
        %5047 = vmatpush1.xpose.msra.mxu0 0.0
        %5048 = vmatprep.subr.mxu0 0.0
        %5049 = vmatpush1.xpose.msra.mxu0 0.0
        %5050 = vmatprep.subr.mxu0 0.0
        %5051 = vmatpush1.xpose.msra.mxu0 0.0
        %5052 = vmatprep.subr.mxu0 0.0
        %5053 = vmatpush1.xpose.msra.mxu0 0.0
        %5054 = vmatprep.subr.mxu0 0.0
        %5055 = vmatpush1.xpose.msra.mxu0 0.0
        %5056 = vmatprep.subr.mxu0 0.0
        %5057 = vmatpush1.xpose.msra.mxu0 0.0
        %5058 = vmatprep.subr.mxu0 0.0
        %5059 = vmatpush1.xpose.msra.mxu0 0.0
        %5060 = vmatprep.subr.mxu0 0.0
        %5061 = vmatpush1.xpose.msra.mxu0 0.0
        %5062 = vmatprep.subr.mxu0 0.0
        %5063 = vmatpush1.xpose.msra.mxu0 0.0
        %5064 = vmatprep.subr.mxu0 0.0
        %5065 = vmatpush1.xpose.msra.mxu0 0.0
        %5066 = vmatprep.subr.mxu0 0.0
        %5067 = vmatpush1.xpose.msra.mxu0 0.0
        %5068 = vmatprep.subr.mxu0 0.0
        %5069 = vmatpush1.xpose.msra.mxu0 0.0
        %5070 = vmatprep.subr.mxu0 0.0
        %5071 = vmatpush1.xpose.msra.mxu0 0.0
        %5072 = vmatprep.subr.mxu0 0.0
        %5073 = vmatpush1.xpose.msra.mxu0 0.0
        %5074 = vmatprep.subr.mxu0 0.0
        %5075 = vmatpush1.xpose.msra.mxu0 0.0
        %5076 = vmatprep.subr.mxu0 0.0
        %5077 = vmatpush1.xpose.msra.mxu0 0.0
        %5078 = vmatprep.subr.mxu0 0.0
        %5079 = vmatpush1.xpose.msra.mxu0 0.0
        %5080 = vmatprep.subr.mxu0 0.0
        %5081 = vmatpush1.xpose.msra.mxu0 0.0
        %5082 = vmatprep.subr.mxu0 0.0
        %5083 = vmatpush1.xpose.msra.mxu0 0.0
        %5084 = vmatprep.subr.mxu0 0.0
        %5085 = vmatpush1.xpose.msra.mxu0 0.0
        %5086 = vmatprep.subr.mxu0 0.0
        %5087 = vmatpush1.xpose.msra.mxu0 0.0
        %5088 = vmatprep.subr.mxu0 0.0
        %5089 = vmatpush1.xpose.msra.mxu0 0.0
        %5090 = vmatprep.subr.mxu0 0.0
        %5091 = vmatpush1.xpose.msra.mxu0 0.0
        %5092 = vmatprep.subr.mxu0 0.0
        %5093 = vmatpush1.xpose.msra.mxu0 0.0
        %5094 = vmatprep.subr.mxu0 0.0
        %5095 = vmatpush1.xpose.msra.mxu0 0.0
        %5096 = vmatprep.subr.mxu0 0.0
        %5097 = vmatpush1.xpose.msra.mxu0 0.0
        %5098 = vmatprep.subr.mxu0 0.0
        %5099 = vmatpush1.xpose.msra.mxu0 0.0
        %5100 = vmatprep.subr.mxu0 0.0
        %5101 = vmatpush1.xpose.msra.mxu0 0.0
        %5102 = vmatprep.subr.mxu0 0.0
        %5103 = vmatpush1.xpose.msra.mxu0 0.0
        %5104 = vmatprep.mubr.f32.mxu0 0.0
        %5105 = vmatmul.mubr.f32.gmra.mrb[0].mxu0 %v5032
        %v5106 = vpop.f32.mrb[0].mxu0
        %v5107 = vadd.f32 0.0, %v5106
        %v5108 = vpop.f32.mrb[0].mxu0
        %5109 = vdwg.mxu0
        %v5110 = vxor.u32 %v5107, 2147483648
        %v5111 = vmul.f32 %v5110, 1.442695
        %v5112 = vpow.pop %v5111
        %v5113 = vadd.f32 %v5112, 1.0
        %v5114 = vrcp.pop %v5113
        %v5115 = vmul.f32 1.0, %v5114
        %v5116 = vstv %s4934
        %v5117 = vrcp.pop %v5116
        %v5118 = vmul.f32 %v5115, %v5117
        %v5119 = vsel %vm2099, %v5118, 0.0
        %v5120 = vrot.slane %v5119, 4
        %v5121 = vadd.f32 %v5119, %v5120
        %v5122 = vrot.slane %v5121, 2
        %v5123 = vadd.f32 %v5121, %v5122
        %v5124 = vrot.slane %v5123, 1
        %v5125 = vadd.f32 %v5123, %v5124
        %v5126 = vmax.f32 %v5125, 1e-06
        %v5127 = vrcp.pop %v5126
        %v5128 = vmul.f32 %v5118, %v5127
        %5129 = vxpose.xlu0.b32.start [1/16] %v5128, 128
        %5130 = vxpose.xlu0.b32.cont [2/16] 0.0, 128
        %5131 = vxpose.xlu0.b32.cont [3/16] 0.0, 128
        %5132 = vxpose.xlu0.b32.cont [4/16] 0.0, 128
        %5133 = vxpose.xlu0.b32.cont [5/16] 0.0, 128
        %5134 = vxpose.xlu0.b32.cont [6/16] 0.0, 128
        %5135 = vxpose.xlu0.b32.cont [7/16] 0.0, 128
        %5136 = vxpose.xlu0.b32.cont [8/16] 0.0, 128
        %5137 = vxpose.xlu0.b32.cont [9/16] 0.0, 128
        %5138 = vxpose.xlu0.b32.cont [10/16] 0.0, 128
        %5139 = vxpose.xlu0.b32.cont [11/16] 0.0, 128
        %5140 = vxpose.xlu0.b32.cont [12/16] 0.0, 128
        %5141 = vxpose.xlu0.b32.cont [13/16] 0.0, 128
        %5142 = vxpose.xlu0.b32.cont [14/16] 0.0, 128
        %5143 = vxpose.xlu0.b32.cont [15/16] 0.0, 128
        %5144 = vxpose.xlu0.b32.end [16/16] 0.0, 128
        %v5145 = vpop.trf.xlu0
        %v5146 = vpop.trf.xlu0
        %v5147 = vpop.trf.xlu0
        %v5148 = vpop.trf.xlu0
        %v5149 = vpop.trf.xlu0
        %v5150 = vpop.trf.xlu0
        %v5151 = vpop.trf.xlu0
        %v5152 = vpop.trf.xlu0
        %v5153 = vpop.trf.xlu0
        %v5154 = vpop.trf.xlu0
        %v5155 = vpop.trf.xlu0
        %v5156 = vpop.trf.xlu0
        %v5157 = vpop.trf.xlu0
        %v5158 = vpop.trf.xlu0
        %v5159 = vpop.trf.xlu0
        %v5160 = vpop.trf.xlu0
        %v5162 = vsel %vm1688, %v5145, 0
        %v5165 = vsel %vm1688, %v5146, 0
        %5167 = vmatprep.subr.mxu0 0.0
        %5168 = vmatpush1.msra.mxu0 %v4739
        %5169 = vmatprep.subr.mxu0 0.0
        %5170 = vmatpush1.msra.mxu0 0.0
        %5171 = vmatprep.subr.mxu0 0.0
        %5172 = vmatpush1.msra.mxu0 0.0
        %5173 = vmatprep.subr.mxu0 0.0
        %5174 = vmatpush1.msra.mxu0 0.0
        %5175 = vmatprep.subr.mxu0 0.0
        %5176 = vmatpush1.msra.mxu0 0.0
        %5177 = vmatprep.subr.mxu0 0.0
        %5178 = vmatpush1.msra.mxu0 0.0
        %5179 = vmatprep.subr.mxu0 0.0
        %5180 = vmatpush1.msra.mxu0 0.0
        %5181 = vmatprep.subr.mxu0 0.0
        %5182 = vmatpush1.msra.mxu0 0.0
        %5183 = vmatprep.subr.mxu0 0.0
        %5184 = vmatpush1.msra.mxu0 0.0
        %5185 = vmatprep.subr.mxu0 0.0
        %5186 = vmatpush1.msra.mxu0 0.0
        %5187 = vmatprep.subr.mxu0 0.0
        %5188 = vmatpush1.msra.mxu0 0.0
        %5189 = vmatprep.subr.mxu0 0.0
        %5190 = vmatpush1.msra.mxu0 0.0
        %5191 = vmatprep.subr.mxu0 0.0
        %5192 = vmatpush1.msra.mxu0 0.0
        %5193 = vmatprep.subr.mxu0 0.0
        %5194 = vmatpush1.msra.mxu0 0.0
        %5195 = vmatprep.subr.mxu0 0.0
        %5196 = vmatpush1.msra.mxu0 0.0
        %5197 = vmatprep.subr.mxu0 0.0
        %5198 = vmatpush1.msra.mxu0 0.0
        %5199 = vmatprep.subr.mxu0 0.0
        %5200 = vmatpush1.msra.mxu0 0.0
        %5201 = vmatprep.subr.mxu0 0.0
        %5202 = vmatpush1.msra.mxu0 0.0
        %5203 = vmatprep.subr.mxu0 0.0
        %5204 = vmatpush1.msra.mxu0 0.0
        %5205 = vmatprep.subr.mxu0 0.0
        %5206 = vmatpush1.msra.mxu0 0.0
        %5207 = vmatprep.subr.mxu0 0.0
        %5208 = vmatpush1.msra.mxu0 0.0
        %5209 = vmatprep.subr.mxu0 0.0
        %5210 = vmatpush1.msra.mxu0 0.0
        %5211 = vmatprep.subr.mxu0 0.0
        %5212 = vmatpush1.msra.mxu0 0.0
        %5213 = vmatprep.subr.mxu0 0.0
        %5214 = vmatpush1.msra.mxu0 0.0
        %5215 = vmatprep.subr.mxu0 0.0
        %5216 = vmatpush1.msra.mxu0 0.0
        %5217 = vmatprep.subr.mxu0 0.0
        %5218 = vmatpush1.msra.mxu0 0.0
        %5219 = vmatprep.subr.mxu0 0.0
        %5220 = vmatpush1.msra.mxu0 0.0
        %5221 = vmatprep.subr.mxu0 0.0
        %5222 = vmatpush1.msra.mxu0 0.0
        %5223 = vmatprep.subr.mxu0 0.0
        %5224 = vmatpush1.msra.mxu0 0.0
        %5225 = vmatprep.subr.mxu0 0.0
        %5226 = vmatpush1.msra.mxu0 0.0
        %5227 = vmatprep.subr.mxu0 0.0
        %5228 = vmatpush1.msra.mxu0 0.0
        %5229 = vmatprep.subr.mxu0 0.0
        %5230 = vmatpush1.msra.mxu0 0.0
        %5231 = vmatprep.mubr.f32.mxu0 0.0
        %5232 = vmatmul.mubr.f32.gmra.mrb[0].mxu0 %v5162
        %v5233 = vpop.f32.mrb[0].mxu0
        %v5234 = vadd.f32 0.0, %v5233
        %v5235 = vpop.f32.mrb[0].mxu0
        %5236 = vmatprep.mubr.f32.mxu0 0.0
        %5237 = vmatmul.mubr.f32.gmra.mrb[0].mxu0 %v5165
        %v5238 = vpop.f32.mrb[0].mxu0
        %v5239 = vadd.f32 0.0, %v5238
        %v5240 = vpop.f32.mrb[0].mxu0
        %5241 = vdwg.mxu0
        %v5243 = vrot.slane %v5234, 4
        %v5244 = vsel %vm1392, %v5243, 0
        %5246 = vmatprep.subr.mxu0 0.0
        %5247 = vmatpush1.msra.mxu0 %v4922
        %5248 = vmatprep.subr.mxu0 0.0
        %5249 = vmatpush1.msra.mxu0 %v4923
        %5250 = vmatprep.subr.mxu0 0.0
        %5251 = vmatpush1.msra.mxu0 %v4924
        %5252 = vmatprep.subr.mxu0 0.0
        %5253 = vmatpush1.msra.mxu0 %v4925
        %5254 = vmatprep.subr.mxu0 0.0
        %5255 = vmatpush1.msra.mxu0 0.0
        %5256 = vmatprep.subr.mxu0 0.0
        %5257 = vmatpush1.msra.mxu0 0.0
        %5258 = vmatprep.subr.mxu0 0.0
        %5259 = vmatpush1.msra.mxu0 0.0
        %5260 = vmatprep.subr.mxu0 0.0
        %5261 = vmatpush1.msra.mxu0 0.0
        %5262 = vmatprep.subr.mxu0 0.0
        %5263 = vmatpush1.msra.mxu0 0.0
        %5264 = vmatprep.subr.mxu0 0.0
        %5265 = vmatpush1.msra.mxu0 0.0
        %5266 = vmatprep.subr.mxu0 0.0
        %5267 = vmatpush1.msra.mxu0 0.0
        %5268 = vmatprep.subr.mxu0 0.0
        %5269 = vmatpush1.msra.mxu0 0.0
        %5270 = vmatprep.subr.mxu0 0.0
        %5271 = vmatpush1.msra.mxu0 0.0
        %5272 = vmatprep.subr.mxu0 0.0
        %5273 = vmatpush1.msra.mxu0 0.0
        %5274 = vmatprep.subr.mxu0 0.0
        %5275 = vmatpush1.msra.mxu0 0.0
        %5276 = vmatprep.subr.mxu0 0.0
        %5277 = vmatpush1.msra.mxu0 0.0
        %5278 = vmatprep.subr.mxu0 0.0
        %5279 = vmatpush1.msra.mxu0 0.0
        %5280 = vmatprep.subr.mxu0 0.0
        %5281 = vmatpush1.msra.mxu0 0.0
        %5282 = vmatprep.subr.mxu0 0.0
        %5283 = vmatpush1.msra.mxu0 0.0
        %5284 = vmatprep.subr.mxu0 0.0
        %5285 = vmatpush1.msra.mxu0 0.0
        %5286 = vmatprep.subr.mxu0 0.0
        %5287 = vmatpush1.msra.mxu0 0.0
        %5288 = vmatprep.subr.mxu0 0.0
        %5289 = vmatpush1.msra.mxu0 0.0
        %5290 = vmatprep.subr.mxu0 0.0
        %5291 = vmatpush1.msra.mxu0 0.0
        %5292 = vmatprep.subr.mxu0 0.0
        %5293 = vmatpush1.msra.mxu0 0.0
        %5294 = vmatprep.subr.mxu0 0.0
        %5295 = vmatpush1.msra.mxu0 0.0
        %5296 = vmatprep.subr.mxu0 0.0
        %5297 = vmatpush1.msra.mxu0 0.0
        %5298 = vmatprep.subr.mxu0 0.0
        %5299 = vmatpush1.msra.mxu0 0.0
        %5300 = vmatprep.subr.mxu0 0.0
        %5301 = vmatpush1.msra.mxu0 0.0
        %5302 = vmatprep.subr.mxu0 0.0
        %5303 = vmatpush1.msra.mxu0 0.0
        %5304 = vmatprep.subr.mxu0 0.0
        %5305 = vmatpush1.msra.mxu0 0.0
        %5306 = vmatprep.subr.mxu0 0.0
        %5307 = vmatpush1.msra.mxu0 0.0
        %5308 = vmatprep.subr.mxu0 0.0
        %5309 = vmatpush1.msra.mxu0 0.0
        %5310 = vmatprep.mubr.f32.mxu0 0.0
        %5311 = vmatmul.mubr.f32.gmra.mrb[0].mxu0 %v5244
        %v5312 = vpop.f32.mrb[0].mxu0
        %v5313 = vadd.f32 0.0, %v5312
        %v5314 = vpop.f32.mrb[0].mxu0
        %5315 = vdwg.mxu0
        %v5316 = vsel %vm1392, %v5234, 0
        %5318 = vmatprep.subr.mxu0 0.0
        %5319 = vmatpush1.msra.mxu0 %v4918
        %5320 = vmatprep.subr.mxu0 0.0
        %5321 = vmatpush1.msra.mxu0 %v4919
        %5322 = vmatprep.subr.mxu0 0.0
        %5323 = vmatpush1.msra.mxu0 %v4920
        %5324 = vmatprep.subr.mxu0 0.0
        %5325 = vmatpush1.msra.mxu0 %v4921
        %5326 = vmatprep.subr.mxu0 0.0
        %5327 = vmatpush1.msra.mxu0 0.0
        %5328 = vmatprep.subr.mxu0 0.0
        %5329 = vmatpush1.msra.mxu0 0.0
        %5330 = vmatprep.subr.mxu0 0.0
        %5331 = vmatpush1.msra.mxu0 0.0
        %5332 = vmatprep.subr.mxu0 0.0
        %5333 = vmatpush1.msra.mxu0 0.0
        %5334 = vmatprep.subr.mxu0 0.0
        %5335 = vmatpush1.msra.mxu0 0.0
        %5336 = vmatprep.subr.mxu0 0.0
        %5337 = vmatpush1.msra.mxu0 0.0
        %5338 = vmatprep.subr.mxu0 0.0
        %5339 = vmatpush1.msra.mxu0 0.0
        %5340 = vmatprep.subr.mxu0 0.0
        %5341 = vmatpush1.msra.mxu0 0.0
        %5342 = vmatprep.subr.mxu0 0.0
        %5343 = vmatpush1.msra.mxu0 0.0
        %5344 = vmatprep.subr.mxu0 0.0
        %5345 = vmatpush1.msra.mxu0 0.0
        %5346 = vmatprep.subr.mxu0 0.0
        %5347 = vmatpush1.msra.mxu0 0.0
        %5348 = vmatprep.subr.mxu0 0.0
        %5349 = vmatpush1.msra.mxu0 0.0
        %5350 = vmatprep.subr.mxu0 0.0
        %5351 = vmatpush1.msra.mxu0 0.0
        %5352 = vmatprep.subr.mxu0 0.0
        %5353 = vmatpush1.msra.mxu0 0.0
        %5354 = vmatprep.subr.mxu0 0.0
        %5355 = vmatpush1.msra.mxu0 0.0
        %5356 = vmatprep.subr.mxu0 0.0
        %5357 = vmatpush1.msra.mxu0 0.0
        %5358 = vmatprep.subr.mxu0 0.0
        %5359 = vmatpush1.msra.mxu0 0.0
        %5360 = vmatprep.subr.mxu0 0.0
        %5361 = vmatpush1.msra.mxu0 0.0
        %5362 = vmatprep.subr.mxu0 0.0
        %5363 = vmatpush1.msra.mxu0 0.0
        %5364 = vmatprep.subr.mxu0 0.0
        %5365 = vmatpush1.msra.mxu0 0.0
        %5366 = vmatprep.subr.mxu0 0.0
        %5367 = vmatpush1.msra.mxu0 0.0
        %5368 = vmatprep.subr.mxu0 0.0
        %5369 = vmatpush1.msra.mxu0 0.0
        %5370 = vmatprep.subr.mxu0 0.0
        %5371 = vmatpush1.msra.mxu0 0.0
        %5372 = vmatprep.subr.mxu0 0.0
        %5373 = vmatpush1.msra.mxu0 0.0
        %5374 = vmatprep.subr.mxu0 0.0
        %5375 = vmatpush1.msra.mxu0 0.0
        %5376 = vmatprep.subr.mxu0 0.0
        %5377 = vmatpush1.msra.mxu0 0.0
        %5378 = vmatprep.subr.mxu0 0.0
        %5379 = vmatpush1.msra.mxu0 0.0
        %5380 = vmatprep.subr.mxu0 0.0
        %5381 = vmatpush1.msra.mxu0 0.0
        %5382 = vmatprep.mubr.f32.mxu0 0.0
        %5383 = vmatmul.mubr.f32.gmra.mrb[0].mxu0 %v5316
        %v5384 = vpop.f32.mrb[0].mxu0
        %v5385 = vadd.f32 %v5313, %v5384
        %v5386 = vpop.f32.mrb[0].mxu0
        %5387 = vdwg.mxu0
        %v5389 = vsel %vm1392, %v5239, 0
        %5391 = vmatprep.subr.mxu0 0.0
        %5392 = vmatpush1.msra.mxu0 %v4926
        %5393 = vmatprep.subr.mxu0 0.0
        %5394 = vmatpush1.msra.mxu0 %v4927
        %5395 = vmatprep.subr.mxu0 0.0
        %5396 = vmatpush1.msra.mxu0 %v4928
        %5397 = vmatprep.subr.mxu0 0.0
        %5398 = vmatpush1.msra.mxu0 %v4929
        %5399 = vmatprep.subr.mxu0 0.0
        %5400 = vmatpush1.msra.mxu0 0.0
        %5401 = vmatprep.subr.mxu0 0.0
        %5402 = vmatpush1.msra.mxu0 0.0
        %5403 = vmatprep.subr.mxu0 0.0
        %5404 = vmatpush1.msra.mxu0 0.0
        %5405 = vmatprep.subr.mxu0 0.0
        %5406 = vmatpush1.msra.mxu0 0.0
        %5407 = vmatprep.subr.mxu0 0.0
        %5408 = vmatpush1.msra.mxu0 0.0
        %5409 = vmatprep.subr.mxu0 0.0
        %5410 = vmatpush1.msra.mxu0 0.0
        %5411 = vmatprep.subr.mxu0 0.0
        %5412 = vmatpush1.msra.mxu0 0.0
        %5413 = vmatprep.subr.mxu0 0.0
        %5414 = vmatpush1.msra.mxu0 0.0
        %5415 = vmatprep.subr.mxu0 0.0
        %5416 = vmatpush1.msra.mxu0 0.0
        %5417 = vmatprep.subr.mxu0 0.0
        %5418 = vmatpush1.msra.mxu0 0.0
        %5419 = vmatprep.subr.mxu0 0.0
        %5420 = vmatpush1.msra.mxu0 0.0
        %5421 = vmatprep.subr.mxu0 0.0
        %5422 = vmatpush1.msra.mxu0 0.0
        %5423 = vmatprep.subr.mxu0 0.0
        %5424 = vmatpush1.msra.mxu0 0.0
        %5425 = vmatprep.subr.mxu0 0.0
        %5426 = vmatpush1.msra.mxu0 0.0
        %5427 = vmatprep.subr.mxu0 0.0
        %5428 = vmatpush1.msra.mxu0 0.0
        %5429 = vmatprep.subr.mxu0 0.0
        %5430 = vmatpush1.msra.mxu0 0.0
        %5431 = vmatprep.subr.mxu0 0.0
        %5432 = vmatpush1.msra.mxu0 0.0
        %5433 = vmatprep.subr.mxu0 0.0
        %5434 = vmatpush1.msra.mxu0 0.0
        %5435 = vmatprep.subr.mxu0 0.0
        %5436 = vmatpush1.msra.mxu0 0.0
        %5437 = vmatprep.subr.mxu0 0.0
        %5438 = vmatpush1.msra.mxu0 0.0
        %5439 = vmatprep.subr.mxu0 0.0
        %5440 = vmatpush1.msra.mxu0 0.0
        %5441 = vmatprep.subr.mxu0 0.0
        %5442 = vmatpush1.msra.mxu0 0.0
        %5443 = vmatprep.subr.mxu0 0.0
        %5444 = vmatpush1.msra.mxu0 0.0
        %5445 = vmatprep.subr.mxu0 0.0
        %5446 = vmatpush1.msra.mxu0 0.0
        %5447 = vmatprep.subr.mxu0 0.0
        %5448 = vmatpush1.msra.mxu0 0.0
        %5449 = vmatprep.subr.mxu0 0.0
        %5450 = vmatpush1.msra.mxu0 0.0
        %5451 = vmatprep.subr.mxu0 0.0
        %5452 = vmatpush1.msra.mxu0 0.0
        %5453 = vmatprep.subr.mxu0 0.0
        %5454 = vmatpush1.msra.mxu0 0.0
        %5455 = vmatprep.mubr.f32.mxu0 0.0
        %5456 = vmatmul.mubr.f32.gmra.mrb[0].mxu0 %v5389
        %v5457 = vpop.f32.mrb[0].mxu0
        %v5458 = vadd.f32 0.0, %v5457
        %v5459 = vpop.f32.mrb[0].mxu0
        %5460 = vdwg.mxu0
        %v5461 = vadd.f32 %v5385, %v5458
        %v5462 = vrot.slane %v5239, 4
        %v5463 = vsel %vm1392, %v5462, 0
        %5465 = vmatprep.subr.mxu0 0.0
        %5466 = vmatpush1.msra.mxu0 %v4930
        %5467 = vmatprep.subr.mxu0 0.0
        %5468 = vmatpush1.msra.mxu0 %v4931
        %5469 = vmatprep.subr.mxu0 0.0
        %5470 = vmatpush1.msra.mxu0 %v4932
        %5471 = vmatprep.subr.mxu0 0.0
        %5472 = vmatpush1.msra.mxu0 %v4933
        %5473 = vmatprep.subr.mxu0 0.0
        %5474 = vmatpush1.msra.mxu0 0.0
        %5475 = vmatprep.subr.mxu0 0.0
        %5476 = vmatpush1.msra.mxu0 0.0
        %5477 = vmatprep.subr.mxu0 0.0
        %5478 = vmatpush1.msra.mxu0 0.0
        %5479 = vmatprep.subr.mxu0 0.0
        %5480 = vmatpush1.msra.mxu0 0.0
        %5481 = vmatprep.subr.mxu0 0.0
        %5482 = vmatpush1.msra.mxu0 0.0
        %5483 = vmatprep.subr.mxu0 0.0
        %5484 = vmatpush1.msra.mxu0 0.0
        %5485 = vmatprep.subr.mxu0 0.0
        %5486 = vmatpush1.msra.mxu0 0.0
        %5487 = vmatprep.subr.mxu0 0.0
        %5488 = vmatpush1.msra.mxu0 0.0
        %5489 = vmatprep.subr.mxu0 0.0
        %5490 = vmatpush1.msra.mxu0 0.0
        %5491 = vmatprep.subr.mxu0 0.0
        %5492 = vmatpush1.msra.mxu0 0.0
        %5493 = vmatprep.subr.mxu0 0.0
        %5494 = vmatpush1.msra.mxu0 0.0
        %5495 = vmatprep.subr.mxu0 0.0
        %5496 = vmatpush1.msra.mxu0 0.0
        %5497 = vmatprep.subr.mxu0 0.0
        %5498 = vmatpush1.msra.mxu0 0.0
        %5499 = vmatprep.subr.mxu0 0.0
        %5500 = vmatpush1.msra.mxu0 0.0
        %5501 = vmatprep.subr.mxu0 0.0
        %5502 = vmatpush1.msra.mxu0 0.0
        %5503 = vmatprep.subr.mxu0 0.0
        %5504 = vmatpush1.msra.mxu0 0.0
        %5505 = vmatprep.subr.mxu0 0.0
        %5506 = vmatpush1.msra.mxu0 0.0
        %5507 = vmatprep.subr.mxu0 0.0
        %5508 = vmatpush1.msra.mxu0 0.0
        %5509 = vmatprep.subr.mxu0 0.0
        %5510 = vmatpush1.msra.mxu0 0.0
        %5511 = vmatprep.subr.mxu0 0.0
        %5512 = vmatpush1.msra.mxu0 0.0
        %5513 = vmatprep.subr.mxu0 0.0
        %5514 = vmatpush1.msra.mxu0 0.0
        %5515 = vmatprep.subr.mxu0 0.0
        %5516 = vmatpush1.msra.mxu0 0.0
        %5517 = vmatprep.subr.mxu0 0.0
        %5518 = vmatpush1.msra.mxu0 0.0
        %5519 = vmatprep.subr.mxu0 0.0
        %5520 = vmatpush1.msra.mxu0 0.0
        %5521 = vmatprep.subr.mxu0 0.0
        %5522 = vmatpush1.msra.mxu0 0.0
        %5523 = vmatprep.subr.mxu0 0.0
        %5524 = vmatpush1.msra.mxu0 0.0
        %5525 = vmatprep.subr.mxu0 0.0
        %5526 = vmatpush1.msra.mxu0 0.0
        %5527 = vmatprep.subr.mxu0 0.0
        %5528 = vmatpush1.msra.mxu0 0.0
        %5529 = vmatprep.mubr.f32.mxu0 0.0
        %5530 = vmatmul.mubr.f32.gmra.mrb[0].mxu0 %v5463
        %v5531 = vpop.f32.mrb[0].mxu0
        %v5532 = vadd.f32 0.0, %v5531
        %v5533 = vpop.f32.mrb[0].mxu0
        %5534 = vdwg.mxu0
        %v5535 = vadd.f32 %v5461, %v5532
        %vm5536 = vcmask 257024
        %5537 = vst.msk [vmem:[#allocation3] sm:$0xf] %vm5536, %v5535
        %s5538 = scalar_lea.vmem %s1384, 64
        %v5539 = vld [vmem:[%s5538] sm:$0xff]
        %v5540 = vld [vmem:[%s5538 + $0x8] sm:$0xff]
        %v5541 = vld [vmem:[%s5538 + $0x10] sm:$0xff]
        %v5542 = vld [vmem:[%s5538 + $0x18] sm:$0xff]
        %v5543 = vld [vmem:[%s5538 + $0x20] sm:$0xff]
        %v5544 = vld [vmem:[%s5538 + $0x28] sm:$0xff]
        %v5545 = vld [vmem:[%s5538 + $0x30] sm:$0xff]
        %v5546 = vld [vmem:[%s5538 + $0x38] sm:$0xff]
        %s5547 = scalar_lea.vmem %s1388, 1
        %v5548 = vld [vmem:[%s5547] sm:$0x1]
        %v5550 = vlaneseq
        %v5551 = vshrl.u32 %v5550, 7
        %v5552 = vsub.s32 0, %v5551
        %v5553 = vrot.slane %v5548, %v5552
        %5555 = vmatprep.subr.mxu0 0.0
        %5556 = vmatpush1.msra.mxu0 %v5539
        %5557 = vmatprep.subr.mxu0 0.0
        %5558 = vmatpush1.msra.mxu0 %v5540
        %5559 = vmatprep.subr.mxu0 0.0
        %5560 = vmatpush1.msra.mxu0 %v5541
        %5561 = vmatprep.subr.mxu0 0.0
        %5562 = vmatpush1.msra.mxu0 %v5542
        %5563 = vmatprep.subr.mxu0 0.0
        %5564 = vmatpush1.msra.mxu0 %v5543
        %5565 = vmatprep.subr.mxu0 0.0
        %5566 = vmatpush1.msra.mxu0 %v5544
        %5567 = vmatprep.subr.mxu0 0.0
        %5568 = vmatpush1.msra.mxu0 %v5545
        %5569 = vmatprep.subr.mxu0 0.0
        %5570 = vmatpush1.msra.mxu0 %v5546
        %5571 = vmatprep.subr.mxu0 0.0
        %5572 = vmatpush1.msra.mxu0 0.0
        %5573 = vmatprep.subr.mxu0 0.0
        %5574 = vmatpush1.msra.mxu0 0.0
        %5575 = vmatprep.subr.mxu0 0.0
        %5576 = vmatpush1.msra.mxu0 0.0
        %5577 = vmatprep.subr.mxu0 0.0
        %5578 = vmatpush1.msra.mxu0 0.0
        %5579 = vmatprep.subr.mxu0 0.0
        %5580 = vmatpush1.msra.mxu0 0.0
        %5581 = vmatprep.subr.mxu0 0.0
        %5582 = vmatpush1.msra.mxu0 0.0
        %5583 = vmatprep.subr.mxu0 0.0
        %5584 = vmatpush1.msra.mxu0 0.0
        %5585 = vmatprep.subr.mxu0 0.0
        %5586 = vmatpush1.msra.mxu0 0.0
        %5587 = vmatprep.subr.mxu0 0.0
        %5588 = vmatpush1.msra.mxu0 0.0
        %5589 = vmatprep.subr.mxu0 0.0
        %5590 = vmatpush1.msra.mxu0 0.0
        %5591 = vmatprep.subr.mxu0 0.0
        %5592 = vmatpush1.msra.mxu0 0.0
        %5593 = vmatprep.subr.mxu0 0.0
        %5594 = vmatpush1.msra.mxu0 0.0
        %5595 = vmatprep.subr.mxu0 0.0
        %5596 = vmatpush1.msra.mxu0 0.0
        %5597 = vmatprep.subr.mxu0 0.0
        %5598 = vmatpush1.msra.mxu0 0.0
        %5599 = vmatprep.subr.mxu0 0.0
        %5600 = vmatpush1.msra.mxu0 0.0
        %5601 = vmatprep.subr.mxu0 0.0
        %5602 = vmatpush1.msra.mxu0 0.0
        %5603 = vmatprep.subr.mxu0 0.0
        %5604 = vmatpush1.msra.mxu0 0.0
        %5605 = vmatprep.subr.mxu0 0.0
        %5606 = vmatpush1.msra.mxu0 0.0
        %5607 = vmatprep.subr.mxu0 0.0
        %5608 = vmatpush1.msra.mxu0 0.0
        %5609 = vmatprep.subr.mxu0 0.0
        %5610 = vmatpush1.msra.mxu0 0.0
        %5611 = vmatprep.subr.mxu0 0.0
        %5612 = vmatpush1.msra.mxu0 0.0
        %5613 = vmatprep.subr.mxu0 0.0
        %5614 = vmatpush1.msra.mxu0 0.0
        %5615 = vmatprep.subr.mxu0 0.0
        %5616 = vmatpush1.msra.mxu0 0.0
        %5617 = vmatprep.subr.mxu0 0.0
        %5618 = vmatpush1.msra.mxu0 0.0
        %5619 = vmatprep.mubr.f32.mxu0 0.0
        %5620 = vmatmul.mubr.f32.gmra.mrb[0].mxu0 %v4951
        %v5621 = vpop.f32.mrb[0].mxu0
        %v5622 = vadd.f32 %v5553, %v5621
        %v5623 = vpop.f32.mrb[0].mxu0
        %5624 = vmatprep.mubr.f32.mxu0 0.0
        %5625 = vmatmul.mubr.f32.gmra.mrb[0].mxu0 %v4954
        %v5626 = vpop.f32.mrb[0].mxu0
        %v5627 = vadd.f32 %v5553, %v5626
        %v5628 = vpop.f32.mrb[0].mxu0
        %5629 = vdwg.mxu0
        %v5631 = vsel %vm1392, %v5622, 0
        %v5634 = vsel %vm1392, %v5627, 0
        %5636 = vmatprep.subr.mxu0 0.0
        %5637 = vmatpush1.xpose.msra.mxu0 %v5631
        %5638 = vmatprep.subr.mxu0 0.0
        %5639 = vmatpush1.xpose.msra.mxu0 %v5634
        %5640 = vmatprep.subr.mxu0 0.0
        %5641 = vmatpush1.xpose.msra.mxu0 0.0
        %5642 = vmatprep.subr.mxu0 0.0
        %5643 = vmatpush1.xpose.msra.mxu0 0.0
        %5644 = vmatprep.subr.mxu0 0.0
        %5645 = vmatpush1.xpose.msra.mxu0 0.0
        %5646 = vmatprep.subr.mxu0 0.0
        %5647 = vmatpush1.xpose.msra.mxu0 0.0
        %5648 = vmatprep.subr.mxu0 0.0
        %5649 = vmatpush1.xpose.msra.mxu0 0.0
        %5650 = vmatprep.subr.mxu0 0.0
        %5651 = vmatpush1.xpose.msra.mxu0 0.0
        %5652 = vmatprep.subr.mxu0 0.0
        %5653 = vmatpush1.xpose.msra.mxu0 0.0
        %5654 = vmatprep.subr.mxu0 0.0
        %5655 = vmatpush1.xpose.msra.mxu0 0.0
        %5656 = vmatprep.subr.mxu0 0.0
        %5657 = vmatpush1.xpose.msra.mxu0 0.0
        %5658 = vmatprep.subr.mxu0 0.0
        %5659 = vmatpush1.xpose.msra.mxu0 0.0
        %5660 = vmatprep.subr.mxu0 0.0
        %5661 = vmatpush1.xpose.msra.mxu0 0.0
        %5662 = vmatprep.subr.mxu0 0.0
        %5663 = vmatpush1.xpose.msra.mxu0 0.0
        %5664 = vmatprep.subr.mxu0 0.0
        %5665 = vmatpush1.xpose.msra.mxu0 0.0
        %5666 = vmatprep.subr.mxu0 0.0
        %5667 = vmatpush1.xpose.msra.mxu0 0.0
        %5668 = vmatprep.subr.mxu0 0.0
        %5669 = vmatpush1.xpose.msra.mxu0 0.0
        %5670 = vmatprep.subr.mxu0 0.0
        %5671 = vmatpush1.xpose.msra.mxu0 0.0
        %5672 = vmatprep.subr.mxu0 0.0
        %5673 = vmatpush1.xpose.msra.mxu0 0.0
        %5674 = vmatprep.subr.mxu0 0.0
        %5675 = vmatpush1.xpose.msra.mxu0 0.0
        %5676 = vmatprep.subr.mxu0 0.0
        %5677 = vmatpush1.xpose.msra.mxu0 0.0
        %5678 = vmatprep.subr.mxu0 0.0
        %5679 = vmatpush1.xpose.msra.mxu0 0.0
        %5680 = vmatprep.subr.mxu0 0.0
        %5681 = vmatpush1.xpose.msra.mxu0 0.0
        %5682 = vmatprep.subr.mxu0 0.0
        %5683 = vmatpush1.xpose.msra.mxu0 0.0
        %5684 = vmatprep.subr.mxu0 0.0
        %5685 = vmatpush1.xpose.msra.mxu0 0.0
        %5686 = vmatprep.subr.mxu0 0.0
        %5687 = vmatpush1.xpose.msra.mxu0 0.0
        %5688 = vmatprep.subr.mxu0 0.0
        %5689 = vmatpush1.xpose.msra.mxu0 0.0
        %5690 = vmatprep.subr.mxu0 0.0
        %5691 = vmatpush1.xpose.msra.mxu0 0.0
        %5692 = vmatprep.subr.mxu0 0.0
        %5693 = vmatpush1.xpose.msra.mxu0 0.0
        %5694 = vmatprep.subr.mxu0 0.0
        %5695 = vmatpush1.xpose.msra.mxu0 0.0
        %5696 = vmatprep.subr.mxu0 0.0
        %5697 = vmatpush1.xpose.msra.mxu0 0.0
        %5698 = vmatprep.subr.mxu0 0.0
        %5699 = vmatpush1.xpose.msra.mxu0 0.0
        %5700 = vmatprep.mubr.f32.mxu0 0.0
        %5701 = vmatmul.mubr.f32.gmra.mrb[0].mxu0 %v5032
        %v5702 = vpop.f32.mrb[0].mxu0
        %v5703 = vadd.f32 0.0, %v5702
        %v5704 = vpop.f32.mrb[0].mxu0
        %5705 = vdwg.mxu0
        %v5706 = vxor.u32 %v5703, 2147483648
        %v5707 = vmul.f32 %v5706, 1.442695
        %v5708 = vpow.pop %v5707
        %v5709 = vadd.f32 %v5708, 1.0
        %v5710 = vrcp.pop %v5709
        %v5711 = vmul.f32 1.0, %v5710
        %v5712 = vmul.f32 %v5711, %v5117
        %v5713 = vsel %vm2099, %v5712, 0.0
        %v5714 = vrot.slane %v5713, 4
        %v5715 = vadd.f32 %v5713, %v5714
        %v5716 = vrot.slane %v5715, 2
        %v5717 = vadd.f32 %v5715, %v5716
        %v5718 = vrot.slane %v5717, 1
        %v5719 = vadd.f32 %v5717, %v5718
        %v5720 = vmax.f32 %v5719, 1e-06
        %v5721 = vrcp.pop %v5720
        %v5722 = vmul.f32 %v5712, %v5721
        %5723 = vxpose.xlu0.b32.start [1/16] %v5722, 128
        %5724 = vxpose.xlu0.b32.cont [2/16] 0.0, 128
        %5725 = vxpose.xlu0.b32.cont [3/16] 0.0, 128
        %5726 = vxpose.xlu0.b32.cont [4/16] 0.0, 128
        %5727 = vxpose.xlu0.b32.cont [5/16] 0.0, 128
        %5728 = vxpose.xlu0.b32.cont [6/16] 0.0, 128
        %5729 = vxpose.xlu0.b32.cont [7/16] 0.0, 128
        %5730 = vxpose.xlu0.b32.cont [8/16] 0.0, 128
        %5731 = vxpose.xlu0.b32.cont [9/16] 0.0, 128
        %5732 = vxpose.xlu0.b32.cont [10/16] 0.0, 128
        %5733 = vxpose.xlu0.b32.cont [11/16] 0.0, 128
        %5734 = vxpose.xlu0.b32.cont [12/16] 0.0, 128
        %5735 = vxpose.xlu0.b32.cont [13/16] 0.0, 128
        %5736 = vxpose.xlu0.b32.cont [14/16] 0.0, 128
        %5737 = vxpose.xlu0.b32.cont [15/16] 0.0, 128
        %5738 = vxpose.xlu0.b32.end [16/16] 0.0, 128
        %v5739 = vpop.trf.xlu0
        %v5740 = vpop.trf.xlu0
        %v5741 = vpop.trf.xlu0
        %v5742 = vpop.trf.xlu0
        %v5743 = vpop.trf.xlu0
        %v5744 = vpop.trf.xlu0
        %v5745 = vpop.trf.xlu0
        %v5746 = vpop.trf.xlu0
        %v5747 = vpop.trf.xlu0
        %v5748 = vpop.trf.xlu0
        %v5749 = vpop.trf.xlu0
        %v5750 = vpop.trf.xlu0
        %v5751 = vpop.trf.xlu0
        %v5752 = vpop.trf.xlu0
        %v5753 = vpop.trf.xlu0
        %v5754 = vpop.trf.xlu0
        %v5756 = vsel %vm1688, %v5739, 0
        %v5759 = vsel %vm1688, %v5740, 0
        %5761 = vmatprep.subr.mxu0 0.0
        %5762 = vmatpush1.msra.mxu0 %v4739
        %5763 = vmatprep.subr.mxu0 0.0
        %5764 = vmatpush1.msra.mxu0 0.0
        %5765 = vmatprep.subr.mxu0 0.0
        %5766 = vmatpush1.msra.mxu0 0.0
        %5767 = vmatprep.subr.mxu0 0.0
        %5768 = vmatpush1.msra.mxu0 0.0
        %5769 = vmatprep.subr.mxu0 0.0
        %5770 = vmatpush1.msra.mxu0 0.0
        %5771 = vmatprep.subr.mxu0 0.0
        %5772 = vmatpush1.msra.mxu0 0.0
        %5773 = vmatprep.subr.mxu0 0.0
        %5774 = vmatpush1.msra.mxu0 0.0
        %5775 = vmatprep.subr.mxu0 0.0
        %5776 = vmatpush1.msra.mxu0 0.0
        %5777 = vmatprep.subr.mxu0 0.0
        %5778 = vmatpush1.msra.mxu0 0.0
        %5779 = vmatprep.subr.mxu0 0.0
        %5780 = vmatpush1.msra.mxu0 0.0
        %5781 = vmatprep.subr.mxu0 0.0
        %5782 = vmatpush1.msra.mxu0 0.0
        %5783 = vmatprep.subr.mxu0 0.0
        %5784 = vmatpush1.msra.mxu0 0.0
        %5785 = vmatprep.subr.mxu0 0.0
        %5786 = vmatpush1.msra.mxu0 0.0
        %5787 = vmatprep.subr.mxu0 0.0
        %5788 = vmatpush1.msra.mxu0 0.0
        %5789 = vmatprep.subr.mxu0 0.0
        %5790 = vmatpush1.msra.mxu0 0.0
        %5791 = vmatprep.subr.mxu0 0.0
        %5792 = vmatpush1.msra.mxu0 0.0
        %5793 = vmatprep.subr.mxu0 0.0
        %5794 = vmatpush1.msra.mxu0 0.0
        %5795 = vmatprep.subr.mxu0 0.0
        %5796 = vmatpush1.msra.mxu0 0.0
        %5797 = vmatprep.subr.mxu0 0.0
        %5798 = vmatpush1.msra.mxu0 0.0
        %5799 = vmatprep.subr.mxu0 0.0
        %5800 = vmatpush1.msra.mxu0 0.0
        %5801 = vmatprep.subr.mxu0 0.0
        %5802 = vmatpush1.msra.mxu0 0.0
        %5803 = vmatprep.subr.mxu0 0.0
        %5804 = vmatpush1.msra.mxu0 0.0
        %5805 = vmatprep.subr.mxu0 0.0
        %5806 = vmatpush1.msra.mxu0 0.0
        %5807 = vmatprep.subr.mxu0 0.0
        %5808 = vmatpush1.msra.mxu0 0.0
        %5809 = vmatprep.subr.mxu0 0.0
        %5810 = vmatpush1.msra.mxu0 0.0
        %5811 = vmatprep.subr.mxu0 0.0
        %5812 = vmatpush1.msra.mxu0 0.0
        %5813 = vmatprep.subr.mxu0 0.0
        %5814 = vmatpush1.msra.mxu0 0.0
        %5815 = vmatprep.subr.mxu0 0.0
        %5816 = vmatpush1.msra.mxu0 0.0
        %5817 = vmatprep.subr.mxu0 0.0
        %5818 = vmatpush1.msra.mxu0 0.0
        %5819 = vmatprep.subr.mxu0 0.0
        %5820 = vmatpush1.msra.mxu0 0.0
        %5821 = vmatprep.subr.mxu0 0.0
        %5822 = vmatpush1.msra.mxu0 0.0
        %5823 = vmatprep.subr.mxu0 0.0
        %5824 = vmatpush1.msra.mxu0 0.0
        %5825 = vmatprep.mubr.f32.mxu0 0.0
        %5826 = vmatmul.mubr.f32.gmra.mrb[0].mxu0 %v5756
        %v5827 = vpop.f32.mrb[0].mxu0
        %v5828 = vadd.f32 0.0, %v5827
        %v5829 = vpop.f32.mrb[0].mxu0
        %5830 = vmatprep.mubr.f32.mxu0 0.0
        %5831 = vmatmul.mubr.f32.gmra.mrb[0].mxu0 %v5759
        %v5832 = vpop.f32.mrb[0].mxu0
        %v5833 = vadd.f32 0.0, %v5832
        %v5834 = vpop.f32.mrb[0].mxu0
        %5835 = vdwg.mxu0
        %v5837 = vrot.slane %v5828, 4
        %v5838 = vsel %vm1392, %v5837, 0
        %5840 = vmatprep.subr.mxu0 0.0
        %5841 = vmatpush1.msra.mxu0 %v4922
        %5842 = vmatprep.subr.mxu0 0.0
        %5843 = vmatpush1.msra.mxu0 %v4923
        %5844 = vmatprep.subr.mxu0 0.0
        %5845 = vmatpush1.msra.mxu0 %v4924
        %5846 = vmatprep.subr.mxu0 0.0
        %5847 = vmatpush1.msra.mxu0 %v4925
        %5848 = vmatprep.subr.mxu0 0.0
        %5849 = vmatpush1.msra.mxu0 0.0
        %5850 = vmatprep.subr.mxu0 0.0
        %5851 = vmatpush1.msra.mxu0 0.0
        %5852 = vmatprep.subr.mxu0 0.0
        %5853 = vmatpush1.msra.mxu0 0.0
        %5854 = vmatprep.subr.mxu0 0.0
        %5855 = vmatpush1.msra.mxu0 0.0
        %5856 = vmatprep.subr.mxu0 0.0
        %5857 = vmatpush1.msra.mxu0 0.0
        %5858 = vmatprep.subr.mxu0 0.0
        %5859 = vmatpush1.msra.mxu0 0.0
        %5860 = vmatprep.subr.mxu0 0.0
        %5861 = vmatpush1.msra.mxu0 0.0
        %5862 = vmatprep.subr.mxu0 0.0
        %5863 = vmatpush1.msra.mxu0 0.0
        %5864 = vmatprep.subr.mxu0 0.0
        %5865 = vmatpush1.msra.mxu0 0.0
        %5866 = vmatprep.subr.mxu0 0.0
        %5867 = vmatpush1.msra.mxu0 0.0
        %5868 = vmatprep.subr.mxu0 0.0
        %5869 = vmatpush1.msra.mxu0 0.0
        %5870 = vmatprep.subr.mxu0 0.0
        %5871 = vmatpush1.msra.mxu0 0.0
        %5872 = vmatprep.subr.mxu0 0.0
        %5873 = vmatpush1.msra.mxu0 0.0
        %5874 = vmatprep.subr.mxu0 0.0
        %5875 = vmatpush1.msra.mxu0 0.0
        %5876 = vmatprep.subr.mxu0 0.0
        %5877 = vmatpush1.msra.mxu0 0.0
        %5878 = vmatprep.subr.mxu0 0.0
        %5879 = vmatpush1.msra.mxu0 0.0
        %5880 = vmatprep.subr.mxu0 0.0
        %5881 = vmatpush1.msra.mxu0 0.0
        %5882 = vmatprep.subr.mxu0 0.0
        %5883 = vmatpush1.msra.mxu0 0.0
        %5884 = vmatprep.subr.mxu0 0.0
        %5885 = vmatpush1.msra.mxu0 0.0
        %5886 = vmatprep.subr.mxu0 0.0
        %5887 = vmatpush1.msra.mxu0 0.0
        %5888 = vmatprep.subr.mxu0 0.0
        %5889 = vmatpush1.msra.mxu0 0.0
        %5890 = vmatprep.subr.mxu0 0.0
        %5891 = vmatpush1.msra.mxu0 0.0
        %5892 = vmatprep.subr.mxu0 0.0
        %5893 = vmatpush1.msra.mxu0 0.0
        %5894 = vmatprep.subr.mxu0 0.0
        %5895 = vmatpush1.msra.mxu0 0.0
        %5896 = vmatprep.subr.mxu0 0.0
        %5897 = vmatpush1.msra.mxu0 0.0
        %5898 = vmatprep.subr.mxu0 0.0
        %5899 = vmatpush1.msra.mxu0 0.0
        %5900 = vmatprep.subr.mxu0 0.0
        %5901 = vmatpush1.msra.mxu0 0.0
        %5902 = vmatprep.subr.mxu0 0.0
        %5903 = vmatpush1.msra.mxu0 0.0
        %5904 = vmatprep.mubr.f32.mxu0 0.0
        %5905 = vmatmul.mubr.f32.gmra.mrb[0].mxu0 %v5838
        %v5906 = vpop.f32.mrb[0].mxu0
        %v5907 = vadd.f32 0.0, %v5906
        %v5908 = vpop.f32.mrb[0].mxu0
        %5909 = vdwg.mxu0
        %v5910 = vsel %vm1392, %v5828, 0
        %5912 = vmatprep.subr.mxu0 0.0
        %5913 = vmatpush1.msra.mxu0 %v4918
        %5914 = vmatprep.subr.mxu0 0.0
        %5915 = vmatpush1.msra.mxu0 %v4919
        %5916 = vmatprep.subr.mxu0 0.0
        %5917 = vmatpush1.msra.mxu0 %v4920
        %5918 = vmatprep.subr.mxu0 0.0
        %5919 = vmatpush1.msra.mxu0 %v4921
        %5920 = vmatprep.subr.mxu0 0.0
        %5921 = vmatpush1.msra.mxu0 0.0
        %5922 = vmatprep.subr.mxu0 0.0
        %5923 = vmatpush1.msra.mxu0 0.0
        %5924 = vmatprep.subr.mxu0 0.0
        %5925 = vmatpush1.msra.mxu0 0.0
        %5926 = vmatprep.subr.mxu0 0.0
        %5927 = vmatpush1.msra.mxu0 0.0
        %5928 = vmatprep.subr.mxu0 0.0
        %5929 = vmatpush1.msra.mxu0 0.0
        %5930 = vmatprep.subr.mxu0 0.0
        %5931 = vmatpush1.msra.mxu0 0.0
        %5932 = vmatprep.subr.mxu0 0.0
        %5933 = vmatpush1.msra.mxu0 0.0
        %5934 = vmatprep.subr.mxu0 0.0
        %5935 = vmatpush1.msra.mxu0 0.0
        %5936 = vmatprep.subr.mxu0 0.0
        %5937 = vmatpush1.msra.mxu0 0.0
        %5938 = vmatprep.subr.mxu0 0.0
        %5939 = vmatpush1.msra.mxu0 0.0
        %5940 = vmatprep.subr.mxu0 0.0
        %5941 = vmatpush1.msra.mxu0 0.0
        %5942 = vmatprep.subr.mxu0 0.0
        %5943 = vmatpush1.msra.mxu0 0.0
        %5944 = vmatprep.subr.mxu0 0.0
        %5945 = vmatpush1.msra.mxu0 0.0
        %5946 = vmatprep.subr.mxu0 0.0
        %5947 = vmatpush1.msra.mxu0 0.0
        %5948 = vmatprep.subr.mxu0 0.0
        %5949 = vmatpush1.msra.mxu0 0.0
        %5950 = vmatprep.subr.mxu0 0.0
        %5951 = vmatpush1.msra.mxu0 0.0
        %5952 = vmatprep.subr.mxu0 0.0
        %5953 = vmatpush1.msra.mxu0 0.0
        %5954 = vmatprep.subr.mxu0 0.0
        %5955 = vmatpush1.msra.mxu0 0.0
        %5956 = vmatprep.subr.mxu0 0.0
        %5957 = vmatpush1.msra.mxu0 0.0
        %5958 = vmatprep.subr.mxu0 0.0
        %5959 = vmatpush1.msra.mxu0 0.0
        %5960 = vmatprep.subr.mxu0 0.0
        %5961 = vmatpush1.msra.mxu0 0.0
        %5962 = vmatprep.subr.mxu0 0.0
        %5963 = vmatpush1.msra.mxu0 0.0
        %5964 = vmatprep.subr.mxu0 0.0
        %5965 = vmatpush1.msra.mxu0 0.0
        %5966 = vmatprep.subr.mxu0 0.0
        %5967 = vmatpush1.msra.mxu0 0.0
        %5968 = vmatprep.subr.mxu0 0.0
        %5969 = vmatpush1.msra.mxu0 0.0
        %5970 = vmatprep.subr.mxu0 0.0
        %5971 = vmatpush1.msra.mxu0 0.0
        %5972 = vmatprep.subr.mxu0 0.0
        %5973 = vmatpush1.msra.mxu0 0.0
        %5974 = vmatprep.subr.mxu0 0.0
        %5975 = vmatpush1.msra.mxu0 0.0
        %5976 = vmatprep.mubr.f32.mxu0 0.0
        %5977 = vmatmul.mubr.f32.gmra.mrb[0].mxu0 %v5910
        %v5978 = vpop.f32.mrb[0].mxu0
        %v5979 = vadd.f32 %v5907, %v5978
        %v5980 = vpop.f32.mrb[0].mxu0
        %5981 = vdwg.mxu0
        %v5983 = vsel %vm1392, %v5833, 0
        %5985 = vmatprep.subr.mxu0 0.0
        %5986 = vmatpush1.msra.mxu0 %v4926
        %5987 = vmatprep.subr.mxu0 0.0
        %5988 = vmatpush1.msra.mxu0 %v4927
        %5989 = vmatprep.subr.mxu0 0.0
        %5990 = vmatpush1.msra.mxu0 %v4928
        %5991 = vmatprep.subr.mxu0 0.0
        %5992 = vmatpush1.msra.mxu0 %v4929
        %5993 = vmatprep.subr.mxu0 0.0
        %5994 = vmatpush1.msra.mxu0 0.0
        %5995 = vmatprep.subr.mxu0 0.0
        %5996 = vmatpush1.msra.mxu0 0.0
        %5997 = vmatprep.subr.mxu0 0.0
        %5998 = vmatpush1.msra.mxu0 0.0
        %5999 = vmatprep.subr.mxu0 0.0
        %6000 = vmatpush1.msra.mxu0 0.0
        %6001 = vmatprep.subr.mxu0 0.0
        %6002 = vmatpush1.msra.mxu0 0.0
        %6003 = vmatprep.subr.mxu0 0.0
        %6004 = vmatpush1.msra.mxu0 0.0
        %6005 = vmatprep.subr.mxu0 0.0
        %6006 = vmatpush1.msra.mxu0 0.0
        %6007 = vmatprep.subr.mxu0 0.0
        %6008 = vmatpush1.msra.mxu0 0.0
        %6009 = vmatprep.subr.mxu0 0.0
        %6010 = vmatpush1.msra.mxu0 0.0
        %6011 = vmatprep.subr.mxu0 0.0
        %6012 = vmatpush1.msra.mxu0 0.0
        %6013 = vmatprep.subr.mxu0 0.0
        %6014 = vmatpush1.msra.mxu0 0.0
        %6015 = vmatprep.subr.mxu0 0.0
        %6016 = vmatpush1.msra.mxu0 0.0
        %6017 = vmatprep.subr.mxu0 0.0
        %6018 = vmatpush1.msra.mxu0 0.0
        %6019 = vmatprep.subr.mxu0 0.0
        %6020 = vmatpush1.msra.mxu0 0.0
        %6021 = vmatprep.subr.mxu0 0.0
        %6022 = vmatpush1.msra.mxu0 0.0
        %6023 = vmatprep.subr.mxu0 0.0
        %6024 = vmatpush1.msra.mxu0 0.0
        %6025 = vmatprep.subr.mxu0 0.0
        %6026 = vmatpush1.msra.mxu0 0.0
        %6027 = vmatprep.subr.mxu0 0.0
        %6028 = vmatpush1.msra.mxu0 0.0
        %6029 = vmatprep.subr.mxu0 0.0
        %6030 = vmatpush1.msra.mxu0 0.0
        %6031 = vmatprep.subr.mxu0 0.0
        %6032 = vmatpush1.msra.mxu0 0.0
        %6033 = vmatprep.subr.mxu0 0.0
        %6034 = vmatpush1.msra.mxu0 0.0
        %6035 = vmatprep.subr.mxu0 0.0
        %6036 = vmatpush1.msra.mxu0 0.0
        %6037 = vmatprep.subr.mxu0 0.0
        %6038 = vmatpush1.msra.mxu0 0.0
        %6039 = vmatprep.subr.mxu0 0.0
        %6040 = vmatpush1.msra.mxu0 0.0
        %6041 = vmatprep.subr.mxu0 0.0
        %6042 = vmatpush1.msra.mxu0 0.0
        %6043 = vmatprep.subr.mxu0 0.0
        %6044 = vmatpush1.msra.mxu0 0.0
        %6045 = vmatprep.subr.mxu0 0.0
        %6046 = vmatpush1.msra.mxu0 0.0
        %6047 = vmatprep.subr.mxu0 0.0
        %6048 = vmatpush1.msra.mxu0 0.0
        %6049 = vmatprep.mubr.f32.mxu0 0.0
        %6050 = vmatmul.mubr.f32.gmra.mrb[0].mxu0 %v5983
        %v6051 = vpop.f32.mrb[0].mxu0
        %v6052 = vadd.f32 0.0, %v6051
        %v6053 = vpop.f32.mrb[0].mxu0
        %6054 = vdwg.mxu0
        %v6055 = vadd.f32 %v5979, %v6052
        %v6056 = vrot.slane %v5833, 4
        %v6057 = vsel %vm1392, %v6056, 0
        %6059 = vmatprep.subr.mxu0 0.0
        %6060 = vmatpush1.msra.mxu0 %v4930
        %6061 = vmatprep.subr.mxu0 0.0
        %6062 = vmatpush1.msra.mxu0 %v4931
        %6063 = vmatprep.subr.mxu0 0.0
        %6064 = vmatpush1.msra.mxu0 %v4932
        %6065 = vmatprep.subr.mxu0 0.0
        %6066 = vmatpush1.msra.mxu0 %v4933
        %6067 = vmatprep.subr.mxu0 0.0
        %6068 = vmatpush1.msra.mxu0 0.0
        %6069 = vmatprep.subr.mxu0 0.0
        %6070 = vmatpush1.msra.mxu0 0.0
        %6071 = vmatprep.subr.mxu0 0.0
        %6072 = vmatpush1.msra.mxu0 0.0
        %6073 = vmatprep.subr.mxu0 0.0
        %6074 = vmatpush1.msra.mxu0 0.0
        %6075 = vmatprep.subr.mxu0 0.0
        %6076 = vmatpush1.msra.mxu0 0.0
        %6077 = vmatprep.subr.mxu0 0.0
        %6078 = vmatpush1.msra.mxu0 0.0
        %6079 = vmatprep.subr.mxu0 0.0
        %6080 = vmatpush1.msra.mxu0 0.0
        %6081 = vmatprep.subr.mxu0 0.0
        %6082 = vmatpush1.msra.mxu0 0.0
        %6083 = vmatprep.subr.mxu0 0.0
        %6084 = vmatpush1.msra.mxu0 0.0
        %6085 = vmatprep.subr.mxu0 0.0
        %6086 = vmatpush1.msra.mxu0 0.0
        %6087 = vmatprep.subr.mxu0 0.0
        %6088 = vmatpush1.msra.mxu0 0.0
        %6089 = vmatprep.subr.mxu0 0.0
        %6090 = vmatpush1.msra.mxu0 0.0
        %6091 = vmatprep.subr.mxu0 0.0
        %6092 = vmatpush1.msra.mxu0 0.0
        %6093 = vmatprep.subr.mxu0 0.0
        %6094 = vmatpush1.msra.mxu0 0.0
        %6095 = vmatprep.subr.mxu0 0.0
        %6096 = vmatpush1.msra.mxu0 0.0
        %6097 = vmatprep.subr.mxu0 0.0
        %6098 = vmatpush1.msra.mxu0 0.0
        %6099 = vmatprep.subr.mxu0 0.0
        %6100 = vmatpush1.msra.mxu0 0.0
        %6101 = vmatprep.subr.mxu0 0.0
        %6102 = vmatpush1.msra.mxu0 0.0
        %6103 = vmatprep.subr.mxu0 0.0
        %6104 = vmatpush1.msra.mxu0 0.0
        %6105 = vmatprep.subr.mxu0 0.0
        %6106 = vmatpush1.msra.mxu0 0.0
        %6107 = vmatprep.subr.mxu0 0.0
        %6108 = vmatpush1.msra.mxu0 0.0
        %6109 = vmatprep.subr.mxu0 0.0
        %6110 = vmatpush1.msra.mxu0 0.0
        %6111 = vmatprep.subr.mxu0 0.0
        %6112 = vmatpush1.msra.mxu0 0.0
        %6113 = vmatprep.subr.mxu0 0.0
        %6114 = vmatpush1.msra.mxu0 0.0
        %6115 = vmatprep.subr.mxu0 0.0
        %6116 = vmatpush1.msra.mxu0 0.0
        %6117 = vmatprep.subr.mxu0 0.0
        %6118 = vmatpush1.msra.mxu0 0.0
        %6119 = vmatprep.subr.mxu0 0.0
        %6120 = vmatpush1.msra.mxu0 0.0
        %6121 = vmatprep.subr.mxu0 0.0
        %6122 = vmatpush1.msra.mxu0 0.0
        %6123 = vmatprep.mubr.f32.mxu0 0.0
        %6124 = vmatmul.mubr.f32.gmra.mrb[0].mxu0 %v6057
        %v6125 = vpop.f32.mrb[0].mxu0
        %v6126 = vadd.f32 0.0, %v6125
        %v6127 = vpop.f32.mrb[0].mxu0
        %6128 = vdwg.mxu0
        %v6129 = vadd.f32 %v6055, %v6126
        %6130 = vst.msk [vmem:[#allocation3 + $0x4] sm:$0xf] %vm5536, %v6129
        %s6131 = scalar_lea.vmem %s1384, 128
        %v6132 = vld [vmem:[%s6131] sm:$0xff]
        %v6133 = vld [vmem:[%s6131 + $0x8] sm:$0xff]
        %v6134 = vld [vmem:[%s6131 + $0x10] sm:$0xff]
        %v6135 = vld [vmem:[%s6131 + $0x18] sm:$0xff]
        %v6136 = vld [vmem:[%s6131 + $0x20] sm:$0xff]
        %v6137 = vld [vmem:[%s6131 + $0x28] sm:$0xff]
        %v6138 = vld [vmem:[%s6131 + $0x30] sm:$0xff]
        %v6139 = vld [vmem:[%s6131 + $0x38] sm:$0xff]
        %s6140 = scalar_lea.vmem %s1388, 2
        %v6141 = vld [vmem:[%s6140] sm:$0x1]
        %v6143 = vlaneseq
        %v6144 = vshrl.u32 %v6143, 7
        %v6145 = vsub.s32 0, %v6144
        %v6146 = vrot.slane %v6141, %v6145
        %6148 = vmatprep.subr.mxu0 0.0
        %6149 = vmatpush1.msra.mxu0 %v6132
        %6150 = vmatprep.subr.mxu0 0.0
        %6151 = vmatpush1.msra.mxu0 %v6133
        %6152 = vmatprep.subr.mxu0 0.0
        %6153 = vmatpush1.msra.mxu0 %v6134
        %6154 = vmatprep.subr.mxu0 0.0
        %6155 = vmatpush1.msra.mxu0 %v6135
        %6156 = vmatprep.subr.mxu0 0.0
        %6157 = vmatpush1.msra.mxu0 %v6136
        %6158 = vmatprep.subr.mxu0 0.0
        %6159 = vmatpush1.msra.mxu0 %v6137
        %6160 = vmatprep.subr.mxu0 0.0
        %6161 = vmatpush1.msra.mxu0 %v6138
        %6162 = vmatprep.subr.mxu0 0.0
        %6163 = vmatpush1.msra.mxu0 %v6139
        %6164 = vmatprep.subr.mxu0 0.0
        %6165 = vmatpush1.msra.mxu0 0.0
        %6166 = vmatprep.subr.mxu0 0.0
        %6167 = vmatpush1.msra.mxu0 0.0
        %6168 = vmatprep.subr.mxu0 0.0
        %6169 = vmatpush1.msra.mxu0 0.0
        %6170 = vmatprep.subr.mxu0 0.0
        %6171 = vmatpush1.msra.mxu0 0.0
        %6172 = vmatprep.subr.mxu0 0.0
        %6173 = vmatpush1.msra.mxu0 0.0
        %6174 = vmatprep.subr.mxu0 0.0
        %6175 = vmatpush1.msra.mxu0 0.0
        %6176 = vmatprep.subr.mxu0 0.0
        %6177 = vmatpush1.msra.mxu0 0.0
        %6178 = vmatprep.subr.mxu0 0.0
        %6179 = vmatpush1.msra.mxu0 0.0
        %6180 = vmatprep.subr.mxu0 0.0
        %6181 = vmatpush1.msra.mxu0 0.0
        %6182 = vmatprep.subr.mxu0 0.0
        %6183 = vmatpush1.msra.mxu0 0.0
        %6184 = vmatprep.subr.mxu0 0.0
        %6185 = vmatpush1.msra.mxu0 0.0
        %6186 = vmatprep.subr.mxu0 0.0
        %6187 = vmatpush1.msra.mxu0 0.0
        %6188 = vmatprep.subr.mxu0 0.0
        %6189 = vmatpush1.msra.mxu0 0.0
        %6190 = vmatprep.subr.mxu0 0.0
        %6191 = vmatpush1.msra.mxu0 0.0
        %6192 = vmatprep.subr.mxu0 0.0
        %6193 = vmatpush1.msra.mxu0 0.0
        %6194 = vmatprep.subr.mxu0 0.0
        %6195 = vmatpush1.msra.mxu0 0.0
        %6196 = vmatprep.subr.mxu0 0.0
        %6197 = vmatpush1.msra.mxu0 0.0
        %6198 = vmatprep.subr.mxu0 0.0
        %6199 = vmatpush1.msra.mxu0 0.0
        %6200 = vmatprep.subr.mxu0 0.0
        %6201 = vmatpush1.msra.mxu0 0.0
        %6202 = vmatprep.subr.mxu0 0.0
        %6203 = vmatpush1.msra.mxu0 0.0
        %6204 = vmatprep.subr.mxu0 0.0
        %6205 = vmatpush1.msra.mxu0 0.0
        %6206 = vmatprep.subr.mxu0 0.0
        %6207 = vmatpush1.msra.mxu0 0.0
        %6208 = vmatprep.subr.mxu0 0.0
        %6209 = vmatpush1.msra.mxu0 0.0
        %6210 = vmatprep.subr.mxu0 0.0
        %6211 = vmatpush1.msra.mxu0 0.0
        %6212 = vmatprep.mubr.f32.mxu0 0.0
        %6213 = vmatmul.mubr.f32.gmra.mrb[0].mxu0 %v4951
        %v6214 = vpop.f32.mrb[0].mxu0
        %v6215 = vadd.f32 %v6146, %v6214
        %v6216 = vpop.f32.mrb[0].mxu0
        %6217 = vmatprep.mubr.f32.mxu0 0.0
        %6218 = vmatmul.mubr.f32.gmra.mrb[0].mxu0 %v4954
        %v6219 = vpop.f32.mrb[0].mxu0
        %v6220 = vadd.f32 %v6146, %v6219
        %v6221 = vpop.f32.mrb[0].mxu0
        %6222 = vdwg.mxu0
        %v6224 = vsel %vm1392, %v6215, 0
        %v6227 = vsel %vm1392, %v6220, 0
        %6229 = vmatprep.subr.mxu0 0.0
        %6230 = vmatpush1.xpose.msra.mxu0 %v6224
        %6231 = vmatprep.subr.mxu0 0.0
        %6232 = vmatpush1.xpose.msra.mxu0 %v6227
        %6233 = vmatprep.subr.mxu0 0.0
        %6234 = vmatpush1.xpose.msra.mxu0 0.0
        %6235 = vmatprep.subr.mxu0 0.0
        %6236 = vmatpush1.xpose.msra.mxu0 0.0
        %6237 = vmatprep.subr.mxu0 0.0
        %6238 = vmatpush1.xpose.msra.mxu0 0.0
        %6239 = vmatprep.subr.mxu0 0.0
        %6240 = vmatpush1.xpose.msra.mxu0 0.0
        %6241 = vmatprep.subr.mxu0 0.0
        %6242 = vmatpush1.xpose.msra.mxu0 0.0
        %6243 = vmatprep.subr.mxu0 0.0
        %6244 = vmatpush1.xpose.msra.mxu0 0.0
        %6245 = vmatprep.subr.mxu0 0.0
        %6246 = vmatpush1.xpose.msra.mxu0 0.0
        %6247 = vmatprep.subr.mxu0 0.0
        %6248 = vmatpush1.xpose.msra.mxu0 0.0
        %6249 = vmatprep.subr.mxu0 0.0
        %6250 = vmatpush1.xpose.msra.mxu0 0.0
        %6251 = vmatprep.subr.mxu0 0.0
        %6252 = vmatpush1.xpose.msra.mxu0 0.0
        %6253 = vmatprep.subr.mxu0 0.0
        %6254 = vmatpush1.xpose.msra.mxu0 0.0
        %6255 = vmatprep.subr.mxu0 0.0
        %6256 = vmatpush1.xpose.msra.mxu0 0.0
        %6257 = vmatprep.subr.mxu0 0.0
        %6258 = vmatpush1.xpose.msra.mxu0 0.0
        %6259 = vmatprep.subr.mxu0 0.0
        %6260 = vmatpush1.xpose.msra.mxu0 0.0
        %6261 = vmatprep.subr.mxu0 0.0
        %6262 = vmatpush1.xpose.msra.mxu0 0.0
        %6263 = vmatprep.subr.mxu0 0.0
        %6264 = vmatpush1.xpose.msra.mxu0 0.0
        %6265 = vmatprep.subr.mxu0 0.0
        %6266 = vmatpush1.xpose.msra.mxu0 0.0
        %6267 = vmatprep.subr.mxu0 0.0
        %6268 = vmatpush1.xpose.msra.mxu0 0.0
        %6269 = vmatprep.subr.mxu0 0.0
        %6270 = vmatpush1.xpose.msra.mxu0 0.0
        %6271 = vmatprep.subr.mxu0 0.0
        %6272 = vmatpush1.xpose.msra.mxu0 0.0
        %6273 = vmatprep.subr.mxu0 0.0
        %6274 = vmatpush1.xpose.msra.mxu0 0.0
        %6275 = vmatprep.subr.mxu0 0.0
        %6276 = vmatpush1.xpose.msra.mxu0 0.0
        %6277 = vmatprep.subr.mxu0 0.0
        %6278 = vmatpush1.xpose.msra.mxu0 0.0
        %6279 = vmatprep.subr.mxu0 0.0
        %6280 = vmatpush1.xpose.msra.mxu0 0.0
        %6281 = vmatprep.subr.mxu0 0.0
        %6282 = vmatpush1.xpose.msra.mxu0 0.0
        %6283 = vmatprep.subr.mxu0 0.0
        %6284 = vmatpush1.xpose.msra.mxu0 0.0
        %6285 = vmatprep.subr.mxu0 0.0
        %6286 = vmatpush1.xpose.msra.mxu0 0.0
        %6287 = vmatprep.subr.mxu0 0.0
        %6288 = vmatpush1.xpose.msra.mxu0 0.0
        %6289 = vmatprep.subr.mxu0 0.0
        %6290 = vmatpush1.xpose.msra.mxu0 0.0
        %6291 = vmatprep.subr.mxu0 0.0
        %6292 = vmatpush1.xpose.msra.mxu0 0.0
        %6293 = vmatprep.mubr.f32.mxu0 0.0
        %6294 = vmatmul.mubr.f32.gmra.mrb[0].mxu0 %v5032
        %v6295 = vpop.f32.mrb[0].mxu0
        %v6296 = vadd.f32 0.0, %v6295
        %v6297 = vpop.f32.mrb[0].mxu0
        %6298 = vdwg.mxu0
        %v6299 = vxor.u32 %v6296, 2147483648
        %v6300 = vmul.f32 %v6299, 1.442695
        %v6301 = vpow.pop %v6300
        %v6302 = vadd.f32 %v6301, 1.0
        %v6303 = vrcp.pop %v6302
        %v6304 = vmul.f32 1.0, %v6303
        %v6305 = vmul.f32 %v6304, %v5117
        %v6306 = vsel %vm2099, %v6305, 0.0
        %v6307 = vrot.slane %v6306, 4
        %v6308 = vadd.f32 %v6306, %v6307
        %v6309 = vrot.slane %v6308, 2
        %v6310 = vadd.f32 %v6308, %v6309
        %v6311 = vrot.slane %v6310, 1
        %v6312 = vadd.f32 %v6310, %v6311
        %v6313 = vmax.f32 %v6312, 1e-06
        %v6314 = vrcp.pop %v6313
        %v6315 = vmul.f32 %v6305, %v6314
        %6316 = vxpose.xlu0.b32.start [1/16] %v6315, 128
        %6317 = vxpose.xlu0.b32.cont [2/16] 0.0, 128
        %6318 = vxpose.xlu0.b32.cont [3/16] 0.0, 128
        %6319 = vxpose.xlu0.b32.cont [4/16] 0.0, 128
        %6320 = vxpose.xlu0.b32.cont [5/16] 0.0, 128
        %6321 = vxpose.xlu0.b32.cont [6/16] 0.0, 128
        %6322 = vxpose.xlu0.b32.cont [7/16] 0.0, 128
        %6323 = vxpose.xlu0.b32.cont [8/16] 0.0, 128
        %6324 = vxpose.xlu0.b32.cont [9/16] 0.0, 128
        %6325 = vxpose.xlu0.b32.cont [10/16] 0.0, 128
        %6326 = vxpose.xlu0.b32.cont [11/16] 0.0, 128
        %6327 = vxpose.xlu0.b32.cont [12/16] 0.0, 128
        %6328 = vxpose.xlu0.b32.cont [13/16] 0.0, 128
        %6329 = vxpose.xlu0.b32.cont [14/16] 0.0, 128
        %6330 = vxpose.xlu0.b32.cont [15/16] 0.0, 128
        %6331 = vxpose.xlu0.b32.end [16/16] 0.0, 128
        %v6332 = vpop.trf.xlu0
        %v6333 = vpop.trf.xlu0
        %v6334 = vpop.trf.xlu0
        %v6335 = vpop.trf.xlu0
        %v6336 = vpop.trf.xlu0
        %v6337 = vpop.trf.xlu0
        %v6338 = vpop.trf.xlu0
        %v6339 = vpop.trf.xlu0
        %v6340 = vpop.trf.xlu0
        %v6341 = vpop.trf.xlu0
        %v6342 = vpop.trf.xlu0
        %v6343 = vpop.trf.xlu0
        %v6344 = vpop.trf.xlu0
        %v6345 = vpop.trf.xlu0
        %v6346 = vpop.trf.xlu0
        %v6347 = vpop.trf.xlu0
        %v6349 = vsel %vm1688, %v6332, 0
        %v6352 = vsel %vm1688, %v6333, 0
        %6354 = vmatprep.subr.mxu0 0.0
        %6355 = vmatpush1.msra.mxu0 %v4739
        %6356 = vmatprep.subr.mxu0 0.0
        %6357 = vmatpush1.msra.mxu0 0.0
        %6358 = vmatprep.subr.mxu0 0.0
        %6359 = vmatpush1.msra.mxu0 0.0
        %6360 = vmatprep.subr.mxu0 0.0
        %6361 = vmatpush1.msra.mxu0 0.0
        %6362 = vmatprep.subr.mxu0 0.0
        %6363 = vmatpush1.msra.mxu0 0.0
        %6364 = vmatprep.subr.mxu0 0.0
        %6365 = vmatpush1.msra.mxu0 0.0
        %6366 = vmatprep.subr.mxu0 0.0
        %6367 = vmatpush1.msra.mxu0 0.0
        %6368 = vmatprep.subr.mxu0 0.0
        %6369 = vmatpush1.msra.mxu0 0.0
        %6370 = vmatprep.subr.mxu0 0.0
        %6371 = vmatpush1.msra.mxu0 0.0
        %6372 = vmatprep.subr.mxu0 0.0
        %6373 = vmatpush1.msra.mxu0 0.0
        %6374 = vmatprep.subr.mxu0 0.0
        %6375 = vmatpush1.msra.mxu0 0.0
        %6376 = vmatprep.subr.mxu0 0.0
        %6377 = vmatpush1.msra.mxu0 0.0
        %6378 = vmatprep.subr.mxu0 0.0
        %6379 = vmatpush1.msra.mxu0 0.0
        %6380 = vmatprep.subr.mxu0 0.0
        %6381 = vmatpush1.msra.mxu0 0.0
        %6382 = vmatprep.subr.mxu0 0.0
        %6383 = vmatpush1.msra.mxu0 0.0
        %6384 = vmatprep.subr.mxu0 0.0
        %6385 = vmatpush1.msra.mxu0 0.0
        %6386 = vmatprep.subr.mxu0 0.0
        %6387 = vmatpush1.msra.mxu0 0.0
        %6388 = vmatprep.subr.mxu0 0.0
        %6389 = vmatpush1.msra.mxu0 0.0
        %6390 = vmatprep.subr.mxu0 0.0
        %6391 = vmatpush1.msra.mxu0 0.0
        %6392 = vmatprep.subr.mxu0 0.0
        %6393 = vmatpush1.msra.mxu0 0.0
        %6394 = vmatprep.subr.mxu0 0.0
        %6395 = vmatpush1.msra.mxu0 0.0
        %6396 = vmatprep.subr.mxu0 0.0
        %6397 = vmatpush1.msra.mxu0 0.0
        %6398 = vmatprep.subr.mxu0 0.0
        %6399 = vmatpush1.msra.mxu0 0.0
        %6400 = vmatprep.subr.mxu0 0.0
        %6401 = vmatpush1.msra.mxu0 0.0
        %6402 = vmatprep.subr.mxu0 0.0
        %6403 = vmatpush1.msra.mxu0 0.0
        %6404 = vmatprep.subr.mxu0 0.0
        %6405 = vmatpush1.msra.mxu0 0.0
        %6406 = vmatprep.subr.mxu0 0.0
        %6407 = vmatpush1.msra.mxu0 0.0
        %6408 = vmatprep.subr.mxu0 0.0
        %6409 = vmatpush1.msra.mxu0 0.0
        %6410 = vmatprep.subr.mxu0 0.0
        %6411 = vmatpush1.msra.mxu0 0.0
        %6412 = vmatprep.subr.mxu0 0.0
        %6413 = vmatpush1.msra.mxu0 0.0
        %6414 = vmatprep.subr.mxu0 0.0
        %6415 = vmatpush1.msra.mxu0 0.0
        %6416 = vmatprep.subr.mxu0 0.0
        %6417 = vmatpush1.msra.mxu0 0.0
        %6418 = vmatprep.mubr.f32.mxu0 0.0
        %6419 = vmatmul.mubr.f32.gmra.mrb[0].mxu0 %v6349
        %v6420 = vpop.f32.mrb[0].mxu0
        %v6421 = vadd.f32 0.0, %v6420
        %v6422 = vpop.f32.mrb[0].mxu0
        %6423 = vmatprep.mubr.f32.mxu0 0.0
        %6424 = vmatmul.mubr.f32.gmra.mrb[0].mxu0 %v6352
        %v6425 = vpop.f32.mrb[0].mxu0
        %v6426 = vadd.f32 0.0, %v6425
        %v6427 = vpop.f32.mrb[0].mxu0
        %6428 = vdwg.mxu0
        %v6430 = vrot.slane %v6421, 4
        %v6431 = vsel %vm1392, %v6430, 0
        %6433 = vmatprep.subr.mxu0 0.0
        %6434 = vmatpush1.msra.mxu0 %v4922
        %6435 = vmatprep.subr.mxu0 0.0
        %6436 = vmatpush1.msra.mxu0 %v4923
        %6437 = vmatprep.subr.mxu0 0.0
        %6438 = vmatpush1.msra.mxu0 %v4924
        %6439 = vmatprep.subr.mxu0 0.0
        %6440 = vmatpush1.msra.mxu0 %v4925
        %6441 = vmatprep.subr.mxu0 0.0
        %6442 = vmatpush1.msra.mxu0 0.0
        %6443 = vmatprep.subr.mxu0 0.0
        %6444 = vmatpush1.msra.mxu0 0.0
        %6445 = vmatprep.subr.mxu0 0.0
        %6446 = vmatpush1.msra.mxu0 0.0
        %6447 = vmatprep.subr.mxu0 0.0
        %6448 = vmatpush1.msra.mxu0 0.0
        %6449 = vmatprep.subr.mxu0 0.0
        %6450 = vmatpush1.msra.mxu0 0.0
        %6451 = vmatprep.subr.mxu0 0.0
        %6452 = vmatpush1.msra.mxu0 0.0
        %6453 = vmatprep.subr.mxu0 0.0
        %6454 = vmatpush1.msra.mxu0 0.0
        %6455 = vmatprep.subr.mxu0 0.0
        %6456 = vmatpush1.msra.mxu0 0.0
        %6457 = vmatprep.subr.mxu0 0.0
        %6458 = vmatpush1.msra.mxu0 0.0
        %6459 = vmatprep.subr.mxu0 0.0
        %6460 = vmatpush1.msra.mxu0 0.0
        %6461 = vmatprep.subr.mxu0 0.0
        %6462 = vmatpush1.msra.mxu0 0.0
        %6463 = vmatprep.subr.mxu0 0.0
        %6464 = vmatpush1.msra.mxu0 0.0
        %6465 = vmatprep.subr.mxu0 0.0
        %6466 = vmatpush1.msra.mxu0 0.0
        %6467 = vmatprep.subr.mxu0 0.0
        %6468 = vmatpush1.msra.mxu0 0.0
        %6469 = vmatprep.subr.mxu0 0.0
        %6470 = vmatpush1.msra.mxu0 0.0
        %6471 = vmatprep.subr.mxu0 0.0
        %6472 = vmatpush1.msra.mxu0 0.0
        %6473 = vmatprep.subr.mxu0 0.0
        %6474 = vmatpush1.msra.mxu0 0.0
        %6475 = vmatprep.subr.mxu0 0.0
        %6476 = vmatpush1.msra.mxu0 0.0
        %6477 = vmatprep.subr.mxu0 0.0
        %6478 = vmatpush1.msra.mxu0 0.0
        %6479 = vmatprep.subr.mxu0 0.0
        %6480 = vmatpush1.msra.mxu0 0.0
        %6481 = vmatprep.subr.mxu0 0.0
        %6482 = vmatpush1.msra.mxu0 0.0
        %6483 = vmatprep.subr.mxu0 0.0
        %6484 = vmatpush1.msra.mxu0 0.0
        %6485 = vmatprep.subr.mxu0 0.0
        %6486 = vmatpush1.msra.mxu0 0.0
        %6487 = vmatprep.subr.mxu0 0.0
        %6488 = vmatpush1.msra.mxu0 0.0
        %6489 = vmatprep.subr.mxu0 0.0
        %6490 = vmatpush1.msra.mxu0 0.0
        %6491 = vmatprep.subr.mxu0 0.0
        %6492 = vmatpush1.msra.mxu0 0.0
        %6493 = vmatprep.subr.mxu0 0.0
        %6494 = vmatpush1.msra.mxu0 0.0
        %6495 = vmatprep.subr.mxu0 0.0
        %6496 = vmatpush1.msra.mxu0 0.0
        %6497 = vmatprep.mubr.f32.mxu0 0.0
        %6498 = vmatmul.mubr.f32.gmra.mrb[0].mxu0 %v6431
        %v6499 = vpop.f32.mrb[0].mxu0
        %v6500 = vadd.f32 0.0, %v6499
        %v6501 = vpop.f32.mrb[0].mxu0
        %6502 = vdwg.mxu0
        %v6503 = vsel %vm1392, %v6421, 0
        %6505 = vmatprep.subr.mxu0 0.0
        %6506 = vmatpush1.msra.mxu0 %v4918
        %6507 = vmatprep.subr.mxu0 0.0
        %6508 = vmatpush1.msra.mxu0 %v4919
        %6509 = vmatprep.subr.mxu0 0.0
        %6510 = vmatpush1.msra.mxu0 %v4920
        %6511 = vmatprep.subr.mxu0 0.0
        %6512 = vmatpush1.msra.mxu0 %v4921
        %6513 = vmatprep.subr.mxu0 0.0
        %6514 = vmatpush1.msra.mxu0 0.0
        %6515 = vmatprep.subr.mxu0 0.0
        %6516 = vmatpush1.msra.mxu0 0.0
        %6517 = vmatprep.subr.mxu0 0.0
        %6518 = vmatpush1.msra.mxu0 0.0
        %6519 = vmatprep.subr.mxu0 0.0
        %6520 = vmatpush1.msra.mxu0 0.0
        %6521 = vmatprep.subr.mxu0 0.0
        %6522 = vmatpush1.msra.mxu0 0.0
        %6523 = vmatprep.subr.mxu0 0.0
        %6524 = vmatpush1.msra.mxu0 0.0
        %6525 = vmatprep.subr.mxu0 0.0
        %6526 = vmatpush1.msra.mxu0 0.0
        %6527 = vmatprep.subr.mxu0 0.0
        %6528 = vmatpush1.msra.mxu0 0.0
        %6529 = vmatprep.subr.mxu0 0.0
        %6530 = vmatpush1.msra.mxu0 0.0
        %6531 = vmatprep.subr.mxu0 0.0
        %6532 = vmatpush1.msra.mxu0 0.0
        %6533 = vmatprep.subr.mxu0 0.0
        %6534 = vmatpush1.msra.mxu0 0.0
        %6535 = vmatprep.subr.mxu0 0.0
        %6536 = vmatpush1.msra.mxu0 0.0
        %6537 = vmatprep.subr.mxu0 0.0
        %6538 = vmatpush1.msra.mxu0 0.0
        %6539 = vmatprep.subr.mxu0 0.0
        %6540 = vmatpush1.msra.mxu0 0.0
        %6541 = vmatprep.subr.mxu0 0.0
        %6542 = vmatpush1.msra.mxu0 0.0
        %6543 = vmatprep.subr.mxu0 0.0
        %6544 = vmatpush1.msra.mxu0 0.0
        %6545 = vmatprep.subr.mxu0 0.0
        %6546 = vmatpush1.msra.mxu0 0.0
        %6547 = vmatprep.subr.mxu0 0.0
        %6548 = vmatpush1.msra.mxu0 0.0
        %6549 = vmatprep.subr.mxu0 0.0
        %6550 = vmatpush1.msra.mxu0 0.0
        %6551 = vmatprep.subr.mxu0 0.0
        %6552 = vmatpush1.msra.mxu0 0.0
        %6553 = vmatprep.subr.mxu0 0.0
        %6554 = vmatpush1.msra.mxu0 0.0
        %6555 = vmatprep.subr.mxu0 0.0
        %6556 = vmatpush1.msra.mxu0 0.0
        %6557 = vmatprep.subr.mxu0 0.0
        %6558 = vmatpush1.msra.mxu0 0.0
        %6559 = vmatprep.subr.mxu0 0.0
        %6560 = vmatpush1.msra.mxu0 0.0
        %6561 = vmatprep.subr.mxu0 0.0
        %6562 = vmatpush1.msra.mxu0 0.0
        %6563 = vmatprep.subr.mxu0 0.0
        %6564 = vmatpush1.msra.mxu0 0.0
        %6565 = vmatprep.subr.mxu0 0.0
        %6566 = vmatpush1.msra.mxu0 0.0
        %6567 = vmatprep.subr.mxu0 0.0
        %6568 = vmatpush1.msra.mxu0 0.0
        %6569 = vmatprep.mubr.f32.mxu0 0.0
        %6570 = vmatmul.mubr.f32.gmra.mrb[0].mxu0 %v6503
        %v6571 = vpop.f32.mrb[0].mxu0
        %v6572 = vadd.f32 %v6500, %v6571
        %v6573 = vpop.f32.mrb[0].mxu0
        %6574 = vdwg.mxu0
        %v6576 = vsel %vm1392, %v6426, 0
        %6578 = vmatprep.subr.mxu0 0.0
        %6579 = vmatpush1.msra.mxu0 %v4926
        %6580 = vmatprep.subr.mxu0 0.0
        %6581 = vmatpush1.msra.mxu0 %v4927
        %6582 = vmatprep.subr.mxu0 0.0
        %6583 = vmatpush1.msra.mxu0 %v4928
        %6584 = vmatprep.subr.mxu0 0.0
        %6585 = vmatpush1.msra.mxu0 %v4929
        %6586 = vmatprep.subr.mxu0 0.0
        %6587 = vmatpush1.msra.mxu0 0.0
        %6588 = vmatprep.subr.mxu0 0.0
        %6589 = vmatpush1.msra.mxu0 0.0
        %6590 = vmatprep.subr.mxu0 0.0
        %6591 = vmatpush1.msra.mxu0 0.0
        %6592 = vmatprep.subr.mxu0 0.0
        %6593 = vmatpush1.msra.mxu0 0.0
        %6594 = vmatprep.subr.mxu0 0.0
        %6595 = vmatpush1.msra.mxu0 0.0
        %6596 = vmatprep.subr.mxu0 0.0
        %6597 = vmatpush1.msra.mxu0 0.0
        %6598 = vmatprep.subr.mxu0 0.0
        %6599 = vmatpush1.msra.mxu0 0.0
        %6600 = vmatprep.subr.mxu0 0.0
        %6601 = vmatpush1.msra.mxu0 0.0
        %6602 = vmatprep.subr.mxu0 0.0
        %6603 = vmatpush1.msra.mxu0 0.0
        %6604 = vmatprep.subr.mxu0 0.0
        %6605 = vmatpush1.msra.mxu0 0.0
        %6606 = vmatprep.subr.mxu0 0.0
        %6607 = vmatpush1.msra.mxu0 0.0
        %6608 = vmatprep.subr.mxu0 0.0
        %6609 = vmatpush1.msra.mxu0 0.0
        %6610 = vmatprep.subr.mxu0 0.0
        %6611 = vmatpush1.msra.mxu0 0.0
        %6612 = vmatprep.subr.mxu0 0.0
        %6613 = vmatpush1.msra.mxu0 0.0
        %6614 = vmatprep.subr.mxu0 0.0
        %6615 = vmatpush1.msra.mxu0 0.0
        %6616 = vmatprep.subr.mxu0 0.0
        %6617 = vmatpush1.msra.mxu0 0.0
        %6618 = vmatprep.subr.mxu0 0.0
        %6619 = vmatpush1.msra.mxu0 0.0
        %6620 = vmatprep.subr.mxu0 0.0
        %6621 = vmatpush1.msra.mxu0 0.0
        %6622 = vmatprep.subr.mxu0 0.0
        %6623 = vmatpush1.msra.mxu0 0.0
        %6624 = vmatprep.subr.mxu0 0.0
        %6625 = vmatpush1.msra.mxu0 0.0
        %6626 = vmatprep.subr.mxu0 0.0
        %6627 = vmatpush1.msra.mxu0 0.0
        %6628 = vmatprep.subr.mxu0 0.0
        %6629 = vmatpush1.msra.mxu0 0.0
        %6630 = vmatprep.subr.mxu0 0.0
        %6631 = vmatpush1.msra.mxu0 0.0
        %6632 = vmatprep.subr.mxu0 0.0
        %6633 = vmatpush1.msra.mxu0 0.0
        %6634 = vmatprep.subr.mxu0 0.0
        %6635 = vmatpush1.msra.mxu0 0.0
        %6636 = vmatprep.subr.mxu0 0.0
        %6637 = vmatpush1.msra.mxu0 0.0
        %6638 = vmatprep.subr.mxu0 0.0
        %6639 = vmatpush1.msra.mxu0 0.0
        %6640 = vmatprep.subr.mxu0 0.0
        %6641 = vmatpush1.msra.mxu0 0.0
        %6642 = vmatprep.mubr.f32.mxu0 0.0
        %6643 = vmatmul.mubr.f32.gmra.mrb[0].mxu0 %v6576
        %v6644 = vpop.f32.mrb[0].mxu0
        %v6645 = vadd.f32 0.0, %v6644
        %v6646 = vpop.f32.mrb[0].mxu0
        %6647 = vdwg.mxu0
        %v6648 = vadd.f32 %v6572, %v6645
        %v6649 = vrot.slane %v6426, 4
        %v6650 = vsel %vm1392, %v6649, 0
        %6652 = vmatprep.subr.mxu0 0.0
        %6653 = vmatpush1.msra.mxu0 %v4930
        %6654 = vmatprep.subr.mxu0 0.0
        %6655 = vmatpush1.msra.mxu0 %v4931
        %6656 = vmatprep.subr.mxu0 0.0
        %6657 = vmatpush1.msra.mxu0 %v4932
        %6658 = vmatprep.subr.mxu0 0.0
        %6659 = vmatpush1.msra.mxu0 %v4933
        %6660 = vmatprep.subr.mxu0 0.0
        %6661 = vmatpush1.msra.mxu0 0.0
        %6662 = vmatprep.subr.mxu0 0.0
        %6663 = vmatpush1.msra.mxu0 0.0
        %6664 = vmatprep.subr.mxu0 0.0
        %6665 = vmatpush1.msra.mxu0 0.0
        %6666 = vmatprep.subr.mxu0 0.0
        %6667 = vmatpush1.msra.mxu0 0.0
        %6668 = vmatprep.subr.mxu0 0.0
        %6669 = vmatpush1.msra.mxu0 0.0
        %6670 = vmatprep.subr.mxu0 0.0
        %6671 = vmatpush1.msra.mxu0 0.0
        %6672 = vmatprep.subr.mxu0 0.0
        %6673 = vmatpush1.msra.mxu0 0.0
        %6674 = vmatprep.subr.mxu0 0.0
        %6675 = vmatpush1.msra.mxu0 0.0
        %6676 = vmatprep.subr.mxu0 0.0
        %6677 = vmatpush1.msra.mxu0 0.0
        %6678 = vmatprep.subr.mxu0 0.0
        %6679 = vmatpush1.msra.mxu0 0.0
        %6680 = vmatprep.subr.mxu0 0.0
        %6681 = vmatpush1.msra.mxu0 0.0
        %6682 = vmatprep.subr.mxu0 0.0
        %6683 = vmatpush1.msra.mxu0 0.0
        %6684 = vmatprep.subr.mxu0 0.0
        %6685 = vmatpush1.msra.mxu0 0.0
        %6686 = vmatprep.subr.mxu0 0.0
        %6687 = vmatpush1.msra.mxu0 0.0
        %6688 = vmatprep.subr.mxu0 0.0
        %6689 = vmatpush1.msra.mxu0 0.0
        %6690 = vmatprep.subr.mxu0 0.0
        %6691 = vmatpush1.msra.mxu0 0.0
        %6692 = vmatprep.subr.mxu0 0.0
        %6693 = vmatpush1.msra.mxu0 0.0
        %6694 = vmatprep.subr.mxu0 0.0
        %6695 = vmatpush1.msra.mxu0 0.0
        %6696 = vmatprep.subr.mxu0 0.0
        %6697 = vmatpush1.msra.mxu0 0.0
        %6698 = vmatprep.subr.mxu0 0.0
        %6699 = vmatpush1.msra.mxu0 0.0
        %6700 = vmatprep.subr.mxu0 0.0
        %6701 = vmatpush1.msra.mxu0 0.0
        %6702 = vmatprep.subr.mxu0 0.0
        %6703 = vmatpush1.msra.mxu0 0.0
        %6704 = vmatprep.subr.mxu0 0.0
        %6705 = vmatpush1.msra.mxu0 0.0
        %6706 = vmatprep.subr.mxu0 0.0
        %6707 = vmatpush1.msra.mxu0 0.0
        %6708 = vmatprep.subr.mxu0 0.0
        %6709 = vmatpush1.msra.mxu0 0.0
        %6710 = vmatprep.subr.mxu0 0.0
        %6711 = vmatpush1.msra.mxu0 0.0
        %6712 = vmatprep.subr.mxu0 0.0
        %6713 = vmatpush1.msra.mxu0 0.0
        %6714 = vmatprep.subr.mxu0 0.0
        %6715 = vmatpush1.msra.mxu0 0.0
        %6716 = vmatprep.mubr.f32.mxu0 0.0
        %6717 = vmatmul.mubr.f32.gmra.mrb[0].mxu0 %v6650
        %v6718 = vpop.f32.mrb[0].mxu0
        %v6719 = vadd.f32 0.0, %v6718
        %v6720 = vpop.f32.mrb[0].mxu0
        %6721 = vdwg.mxu0
        %v6722 = vadd.f32 %v6648, %v6719
        %6723 = vst.msk [vmem:[#allocation3 + $0x8] sm:$0xf] %vm5536, %v6722
        %s6724 = scalar_lea.vmem %s1384, 192
        %v6725 = vld [vmem:[%s6724] sm:$0xff]
        %v6726 = vld [vmem:[%s6724 + $0x8] sm:$0xff]
        %v6727 = vld [vmem:[%s6724 + $0x10] sm:$0xff]
        %v6728 = vld [vmem:[%s6724 + $0x18] sm:$0xff]
        %v6729 = vld [vmem:[%s6724 + $0x20] sm:$0xff]
        %v6730 = vld [vmem:[%s6724 + $0x28] sm:$0xff]
        %v6731 = vld [vmem:[%s6724 + $0x30] sm:$0xff]
        %v6732 = vld [vmem:[%s6724 + $0x38] sm:$0xff]
        %s6733 = scalar_lea.vmem %s1388, 3
        %v6734 = vld [vmem:[%s6733] sm:$0x1]
        %v6736 = vlaneseq
        %v6737 = vshrl.u32 %v6736, 7
        %v6738 = vsub.s32 0, %v6737
        %v6739 = vrot.slane %v6734, %v6738
        %6741 = vmatprep.subr.mxu0 0.0
        %6742 = vmatpush1.msra.mxu0 %v6725
        %6743 = vmatprep.subr.mxu0 0.0
        %6744 = vmatpush1.msra.mxu0 %v6726
        %6745 = vmatprep.subr.mxu0 0.0
        %6746 = vmatpush1.msra.mxu0 %v6727
        %6747 = vmatprep.subr.mxu0 0.0
        %6748 = vmatpush1.msra.mxu0 %v6728
        %6749 = vmatprep.subr.mxu0 0.0
        %6750 = vmatpush1.msra.mxu0 %v6729
        %6751 = vmatprep.subr.mxu0 0.0
        %6752 = vmatpush1.msra.mxu0 %v6730
        %6753 = vmatprep.subr.mxu0 0.0
        %6754 = vmatpush1.msra.mxu0 %v6731
        %6755 = vmatprep.subr.mxu0 0.0
        %6756 = vmatpush1.msra.mxu0 %v6732
        %6757 = vmatprep.subr.mxu0 0.0
        %6758 = vmatpush1.msra.mxu0 0.0
        %6759 = vmatprep.subr.mxu0 0.0
        %6760 = vmatpush1.msra.mxu0 0.0
        %6761 = vmatprep.subr.mxu0 0.0
        %6762 = vmatpush1.msra.mxu0 0.0
        %6763 = vmatprep.subr.mxu0 0.0
        %6764 = vmatpush1.msra.mxu0 0.0
        %6765 = vmatprep.subr.mxu0 0.0
        %6766 = vmatpush1.msra.mxu0 0.0
        %6767 = vmatprep.subr.mxu0 0.0
        %6768 = vmatpush1.msra.mxu0 0.0
        %6769 = vmatprep.subr.mxu0 0.0
        %6770 = vmatpush1.msra.mxu0 0.0
        %6771 = vmatprep.subr.mxu0 0.0
        %6772 = vmatpush1.msra.mxu0 0.0
        %6773 = vmatprep.subr.mxu0 0.0
        %6774 = vmatpush1.msra.mxu0 0.0
        %6775 = vmatprep.subr.mxu0 0.0
        %6776 = vmatpush1.msra.mxu0 0.0
        %6777 = vmatprep.subr.mxu0 0.0
        %6778 = vmatpush1.msra.mxu0 0.0
        %6779 = vmatprep.subr.mxu0 0.0
        %6780 = vmatpush1.msra.mxu0 0.0
        %6781 = vmatprep.subr.mxu0 0.0
        %6782 = vmatpush1.msra.mxu0 0.0
        %6783 = vmatprep.subr.mxu0 0.0
        %6784 = vmatpush1.msra.mxu0 0.0
        %6785 = vmatprep.subr.mxu0 0.0
        %6786 = vmatpush1.msra.mxu0 0.0
        %6787 = vmatprep.subr.mxu0 0.0
        %6788 = vmatpush1.msra.mxu0 0.0
        %6789 = vmatprep.subr.mxu0 0.0
        %6790 = vmatpush1.msra.mxu0 0.0
        %6791 = vmatprep.subr.mxu0 0.0
        %6792 = vmatpush1.msra.mxu0 0.0
        %6793 = vmatprep.subr.mxu0 0.0
        %6794 = vmatpush1.msra.mxu0 0.0
        %6795 = vmatprep.subr.mxu0 0.0
        %6796 = vmatpush1.msra.mxu0 0.0
        %6797 = vmatprep.subr.mxu0 0.0
        %6798 = vmatpush1.msra.mxu0 0.0
        %6799 = vmatprep.subr.mxu0 0.0
        %6800 = vmatpush1.msra.mxu0 0.0
        %6801 = vmatprep.subr.mxu0 0.0
        %6802 = vmatpush1.msra.mxu0 0.0
        %6803 = vmatprep.subr.mxu0 0.0
        %6804 = vmatpush1.msra.mxu0 0.0
        %6805 = vmatprep.mubr.f32.mxu0 0.0
        %6806 = vmatmul.mubr.f32.gmra.mrb[0].mxu0 %v4951
        %v6807 = vpop.f32.mrb[0].mxu0
        %v6808 = vadd.f32 %v6739, %v6807
        %v6809 = vpop.f32.mrb[0].mxu0
        %6810 = vmatprep.mubr.f32.mxu0 0.0
        %6811 = vmatmul.mubr.f32.gmra.mrb[0].mxu0 %v4954
        %v6812 = vpop.f32.mrb[0].mxu0
        %v6813 = vadd.f32 %v6739, %v6812
        %v6814 = vpop.f32.mrb[0].mxu0
        %6815 = vdwg.mxu0
        %v6817 = vsel %vm1392, %v6808, 0
        %v6820 = vsel %vm1392, %v6813, 0
        %6822 = vmatprep.subr.mxu0 0.0
        %6823 = vmatpush1.xpose.msra.mxu0 %v6817
        %6824 = vmatprep.subr.mxu0 0.0
        %6825 = vmatpush1.xpose.msra.mxu0 %v6820
        %6826 = vmatprep.subr.mxu0 0.0
        %6827 = vmatpush1.xpose.msra.mxu0 0.0
        %6828 = vmatprep.subr.mxu0 0.0
        %6829 = vmatpush1.xpose.msra.mxu0 0.0
        %6830 = vmatprep.subr.mxu0 0.0
        %6831 = vmatpush1.xpose.msra.mxu0 0.0
        %6832 = vmatprep.subr.mxu0 0.0
        %6833 = vmatpush1.xpose.msra.mxu0 0.0
        %6834 = vmatprep.subr.mxu0 0.0
        %6835 = vmatpush1.xpose.msra.mxu0 0.0
        %6836 = vmatprep.subr.mxu0 0.0
        %6837 = vmatpush1.xpose.msra.mxu0 0.0
        %6838 = vmatprep.subr.mxu0 0.0
        %6839 = vmatpush1.xpose.msra.mxu0 0.0
        %6840 = vmatprep.subr.mxu0 0.0
        %6841 = vmatpush1.xpose.msra.mxu0 0.0
        %6842 = vmatprep.subr.mxu0 0.0
        %6843 = vmatpush1.xpose.msra.mxu0 0.0
        %6844 = vmatprep.subr.mxu0 0.0
        %6845 = vmatpush1.xpose.msra.mxu0 0.0
        %6846 = vmatprep.subr.mxu0 0.0
        %6847 = vmatpush1.xpose.msra.mxu0 0.0
        %6848 = vmatprep.subr.mxu0 0.0
        %6849 = vmatpush1.xpose.msra.mxu0 0.0
        %6850 = vmatprep.subr.mxu0 0.0
        %6851 = vmatpush1.xpose.msra.mxu0 0.0
        %6852 = vmatprep.subr.mxu0 0.0
        %6853 = vmatpush1.xpose.msra.mxu0 0.0
        %6854 = vmatprep.subr.mxu0 0.0
        %6855 = vmatpush1.xpose.msra.mxu0 0.0
        %6856 = vmatprep.subr.mxu0 0.0
        %6857 = vmatpush1.xpose.msra.mxu0 0.0
        %6858 = vmatprep.subr.mxu0 0.0
        %6859 = vmatpush1.xpose.msra.mxu0 0.0
        %6860 = vmatprep.subr.mxu0 0.0
        %6861 = vmatpush1.xpose.msra.mxu0 0.0
        %6862 = vmatprep.subr.mxu0 0.0
        %6863 = vmatpush1.xpose.msra.mxu0 0.0
        %6864 = vmatprep.subr.mxu0 0.0
        %6865 = vmatpush1.xpose.msra.mxu0 0.0
        %6866 = vmatprep.subr.mxu0 0.0
        %6867 = vmatpush1.xpose.msra.mxu0 0.0
        %6868 = vmatprep.subr.mxu0 0.0
        %6869 = vmatpush1.xpose.msra.mxu0 0.0
        %6870 = vmatprep.subr.mxu0 0.0
        %6871 = vmatpush1.xpose.msra.mxu0 0.0
        %6872 = vmatprep.subr.mxu0 0.0
        %6873 = vmatpush1.xpose.msra.mxu0 0.0
        %6874 = vmatprep.subr.mxu0 0.0
        %6875 = vmatpush1.xpose.msra.mxu0 0.0
        %6876 = vmatprep.subr.mxu0 0.0
        %6877 = vmatpush1.xpose.msra.mxu0 0.0
        %6878 = vmatprep.subr.mxu0 0.0
        %6879 = vmatpush1.xpose.msra.mxu0 0.0
        %6880 = vmatprep.subr.mxu0 0.0
        %6881 = vmatpush1.xpose.msra.mxu0 0.0
        %6882 = vmatprep.subr.mxu0 0.0
        %6883 = vmatpush1.xpose.msra.mxu0 0.0
        %6884 = vmatprep.subr.mxu0 0.0
        %6885 = vmatpush1.xpose.msra.mxu0 0.0
        %6886 = vmatprep.mubr.f32.mxu0 0.0
        %6887 = vmatmul.mubr.f32.gmra.mrb[0].mxu0 %v5032
        %v6888 = vpop.f32.mrb[0].mxu0
        %v6889 = vadd.f32 0.0, %v6888
        %v6890 = vpop.f32.mrb[0].mxu0
        %6891 = vdwg.mxu0
        %v6892 = vxor.u32 %v6889, 2147483648
        %v6893 = vmul.f32 %v6892, 1.442695
        %v6894 = vpow.pop %v6893
        %v6895 = vadd.f32 %v6894, 1.0
        %v6896 = vrcp.pop %v6895
        %v6897 = vmul.f32 1.0, %v6896
        %v6898 = vmul.f32 %v6897, %v5117
        %v6899 = vsel %vm2099, %v6898, 0.0
        %v6900 = vrot.slane %v6899, 4
        %v6901 = vadd.f32 %v6899, %v6900
        %v6902 = vrot.slane %v6901, 2
        %v6903 = vadd.f32 %v6901, %v6902
        %v6904 = vrot.slane %v6903, 1
        %v6905 = vadd.f32 %v6903, %v6904
        %v6906 = vmax.f32 %v6905, 1e-06
        %v6907 = vrcp.pop %v6906
        %v6908 = vmul.f32 %v6898, %v6907
        %6909 = vxpose.xlu0.b32.start [1/16] %v6908, 128
        %6910 = vxpose.xlu0.b32.cont [2/16] 0.0, 128
        %6911 = vxpose.xlu0.b32.cont [3/16] 0.0, 128
        %6912 = vxpose.xlu0.b32.cont [4/16] 0.0, 128
        %6913 = vxpose.xlu0.b32.cont [5/16] 0.0, 128
        %6914 = vxpose.xlu0.b32.cont [6/16] 0.0, 128
        %6915 = vxpose.xlu0.b32.cont [7/16] 0.0, 128
        %6916 = vxpose.xlu0.b32.cont [8/16] 0.0, 128
        %6917 = vxpose.xlu0.b32.cont [9/16] 0.0, 128
        %6918 = vxpose.xlu0.b32.cont [10/16] 0.0, 128
        %6919 = vxpose.xlu0.b32.cont [11/16] 0.0, 128
        %6920 = vxpose.xlu0.b32.cont [12/16] 0.0, 128
        %6921 = vxpose.xlu0.b32.cont [13/16] 0.0, 128
        %6922 = vxpose.xlu0.b32.cont [14/16] 0.0, 128
        %6923 = vxpose.xlu0.b32.cont [15/16] 0.0, 128
        %6924 = vxpose.xlu0.b32.end [16/16] 0.0, 128
        %v6925 = vpop.trf.xlu0
        %v6926 = vpop.trf.xlu0
        %v6927 = vpop.trf.xlu0
        %v6928 = vpop.trf.xlu0
        %v6929 = vpop.trf.xlu0
        %v6930 = vpop.trf.xlu0
        %v6931 = vpop.trf.xlu0
        %v6932 = vpop.trf.xlu0
        %v6933 = vpop.trf.xlu0
        %v6934 = vpop.trf.xlu0
        %v6935 = vpop.trf.xlu0
        %v6936 = vpop.trf.xlu0
        %v6937 = vpop.trf.xlu0
        %v6938 = vpop.trf.xlu0
        %v6939 = vpop.trf.xlu0
        %v6940 = vpop.trf.xlu0
        %v6942 = vsel %vm1688, %v6925, 0
        %v6945 = vsel %vm1688, %v6926, 0
        %6947 = vmatprep.subr.mxu0 0.0
        %6948 = vmatpush1.msra.mxu0 %v4739
        %6949 = vmatprep.subr.mxu0 0.0
        %6950 = vmatpush1.msra.mxu0 0.0
        %6951 = vmatprep.subr.mxu0 0.0
        %6952 = vmatpush1.msra.mxu0 0.0
        %6953 = vmatprep.subr.mxu0 0.0
        %6954 = vmatpush1.msra.mxu0 0.0
        %6955 = vmatprep.subr.mxu0 0.0
        %6956 = vmatpush1.msra.mxu0 0.0
        %6957 = vmatprep.subr.mxu0 0.0
        %6958 = vmatpush1.msra.mxu0 0.0
        %6959 = vmatprep.subr.mxu0 0.0
        %6960 = vmatpush1.msra.mxu0 0.0
        %6961 = vmatprep.subr.mxu0 0.0
        %6962 = vmatpush1.msra.mxu0 0.0
        %6963 = vmatprep.subr.mxu0 0.0
        %6964 = vmatpush1.msra.mxu0 0.0
        %6965 = vmatprep.subr.mxu0 0.0
        %6966 = vmatpush1.msra.mxu0 0.0
        %6967 = vmatprep.subr.mxu0 0.0
        %6968 = vmatpush1.msra.mxu0 0.0
        %6969 = vmatprep.subr.mxu0 0.0
        %6970 = vmatpush1.msra.mxu0 0.0
        %6971 = vmatprep.subr.mxu0 0.0
        %6972 = vmatpush1.msra.mxu0 0.0
        %6973 = vmatprep.subr.mxu0 0.0
        %6974 = vmatpush1.msra.mxu0 0.0
        %6975 = vmatprep.subr.mxu0 0.0
        %6976 = vmatpush1.msra.mxu0 0.0
        %6977 = vmatprep.subr.mxu0 0.0
        %6978 = vmatpush1.msra.mxu0 0.0
        %6979 = vmatprep.subr.mxu0 0.0
        %6980 = vmatpush1.msra.mxu0 0.0
        %6981 = vmatprep.subr.mxu0 0.0
        %6982 = vmatpush1.msra.mxu0 0.0
        %6983 = vmatprep.subr.mxu0 0.0
        %6984 = vmatpush1.msra.mxu0 0.0
        %6985 = vmatprep.subr.mxu0 0.0
        %6986 = vmatpush1.msra.mxu0 0.0
        %6987 = vmatprep.subr.mxu0 0.0
        %6988 = vmatpush1.msra.mxu0 0.0
        %6989 = vmatprep.subr.mxu0 0.0
        %6990 = vmatpush1.msra.mxu0 0.0
        %6991 = vmatprep.subr.mxu0 0.0
        %6992 = vmatpush1.msra.mxu0 0.0
        %6993 = vmatprep.subr.mxu0 0.0
        %6994 = vmatpush1.msra.mxu0 0.0
        %6995 = vmatprep.subr.mxu0 0.0
        %6996 = vmatpush1.msra.mxu0 0.0
        %6997 = vmatprep.subr.mxu0 0.0
        %6998 = vmatpush1.msra.mxu0 0.0
        %6999 = vmatprep.subr.mxu0 0.0
        %7000 = vmatpush1.msra.mxu0 0.0
        %7001 = vmatprep.subr.mxu0 0.0
        %7002 = vmatpush1.msra.mxu0 0.0
        %7003 = vmatprep.subr.mxu0 0.0
        %7004 = vmatpush1.msra.mxu0 0.0
        %7005 = vmatprep.subr.mxu0 0.0
        %7006 = vmatpush1.msra.mxu0 0.0
        %7007 = vmatprep.subr.mxu0 0.0
        %7008 = vmatpush1.msra.mxu0 0.0
        %7009 = vmatprep.subr.mxu0 0.0
        %7010 = vmatpush1.msra.mxu0 0.0
        %7011 = vmatprep.mubr.f32.mxu0 0.0
        %7012 = vmatmul.mubr.f32.gmra.mrb[0].mxu0 %v6942
        %v7013 = vpop.f32.mrb[0].mxu0
        %v7014 = vadd.f32 0.0, %v7013
        %v7015 = vpop.f32.mrb[0].mxu0
        %7016 = vmatprep.mubr.f32.mxu0 0.0
        %7017 = vmatmul.mubr.f32.gmra.mrb[0].mxu0 %v6945
        %v7018 = vpop.f32.mrb[0].mxu0
        %v7019 = vadd.f32 0.0, %v7018
        %v7020 = vpop.f32.mrb[0].mxu0
        %7021 = vdwg.mxu0
        %v7023 = vrot.slane %v7014, 4
        %v7024 = vsel %vm1392, %v7023, 0
        %7026 = vmatprep.subr.mxu0 0.0
        %7027 = vmatpush1.msra.mxu0 %v4922
        %7028 = vmatprep.subr.mxu0 0.0
        %7029 = vmatpush1.msra.mxu0 %v4923
        %7030 = vmatprep.subr.mxu0 0.0
        %7031 = vmatpush1.msra.mxu0 %v4924
        %7032 = vmatprep.subr.mxu0 0.0
        %7033 = vmatpush1.msra.mxu0 %v4925
        %7034 = vmatprep.subr.mxu0 0.0
        %7035 = vmatpush1.msra.mxu0 0.0
        %7036 = vmatprep.subr.mxu0 0.0
        %7037 = vmatpush1.msra.mxu0 0.0
        %7038 = vmatprep.subr.mxu0 0.0
        %7039 = vmatpush1.msra.mxu0 0.0
        %7040 = vmatprep.subr.mxu0 0.0
        %7041 = vmatpush1.msra.mxu0 0.0
        %7042 = vmatprep.subr.mxu0 0.0
        %7043 = vmatpush1.msra.mxu0 0.0
        %7044 = vmatprep.subr.mxu0 0.0
        %7045 = vmatpush1.msra.mxu0 0.0
        %7046 = vmatprep.subr.mxu0 0.0
        %7047 = vmatpush1.msra.mxu0 0.0
        %7048 = vmatprep.subr.mxu0 0.0
        %7049 = vmatpush1.msra.mxu0 0.0
        %7050 = vmatprep.subr.mxu0 0.0
        %7051 = vmatpush1.msra.mxu0 0.0
        %7052 = vmatprep.subr.mxu0 0.0
        %7053 = vmatpush1.msra.mxu0 0.0
        %7054 = vmatprep.subr.mxu0 0.0
        %7055 = vmatpush1.msra.mxu0 0.0
        %7056 = vmatprep.subr.mxu0 0.0
        %7057 = vmatpush1.msra.mxu0 0.0
        %7058 = vmatprep.subr.mxu0 0.0
        %7059 = vmatpush1.msra.mxu0 0.0
        %7060 = vmatprep.subr.mxu0 0.0
        %7061 = vmatpush1.msra.mxu0 0.0
        %7062 = vmatprep.subr.mxu0 0.0
        %7063 = vmatpush1.msra.mxu0 0.0
        %7064 = vmatprep.subr.mxu0 0.0
        %7065 = vmatpush1.msra.mxu0 0.0
        %7066 = vmatprep.subr.mxu0 0.0
        %7067 = vmatpush1.msra.mxu0 0.0
        %7068 = vmatprep.subr.mxu0 0.0
        %7069 = vmatpush1.msra.mxu0 0.0
        %7070 = vmatprep.subr.mxu0 0.0
        %7071 = vmatpush1.msra.mxu0 0.0
        %7072 = vmatprep.subr.mxu0 0.0
        %7073 = vmatpush1.msra.mxu0 0.0
        %7074 = vmatprep.subr.mxu0 0.0
        %7075 = vmatpush1.msra.mxu0 0.0
        %7076 = vmatprep.subr.mxu0 0.0
        %7077 = vmatpush1.msra.mxu0 0.0
        %7078 = vmatprep.subr.mxu0 0.0
        %7079 = vmatpush1.msra.mxu0 0.0
        %7080 = vmatprep.subr.mxu0 0.0
        %7081 = vmatpush1.msra.mxu0 0.0
        %7082 = vmatprep.subr.mxu0 0.0
        %7083 = vmatpush1.msra.mxu0 0.0
        %7084 = vmatprep.subr.mxu0 0.0
        %7085 = vmatpush1.msra.mxu0 0.0
        %7086 = vmatprep.subr.mxu0 0.0
        %7087 = vmatpush1.msra.mxu0 0.0
        %7088 = vmatprep.subr.mxu0 0.0
        %7089 = vmatpush1.msra.mxu0 0.0
        %7090 = vmatprep.mubr.f32.mxu0 0.0
        %7091 = vmatmul.mubr.f32.gmra.mrb[0].mxu0 %v7024
        %v7092 = vpop.f32.mrb[0].mxu0
        %v7093 = vadd.f32 0.0, %v7092
        %v7094 = vpop.f32.mrb[0].mxu0
        %7095 = vdwg.mxu0
        %v7096 = vsel %vm1392, %v7014, 0
        %7098 = vmatprep.subr.mxu0 0.0
        %7099 = vmatpush1.msra.mxu0 %v4918
        %7100 = vmatprep.subr.mxu0 0.0
        %7101 = vmatpush1.msra.mxu0 %v4919
        %7102 = vmatprep.subr.mxu0 0.0
        %7103 = vmatpush1.msra.mxu0 %v4920
        %7104 = vmatprep.subr.mxu0 0.0
        %7105 = vmatpush1.msra.mxu0 %v4921
        %7106 = vmatprep.subr.mxu0 0.0
        %7107 = vmatpush1.msra.mxu0 0.0
        %7108 = vmatprep.subr.mxu0 0.0
        %7109 = vmatpush1.msra.mxu0 0.0
        %7110 = vmatprep.subr.mxu0 0.0
        %7111 = vmatpush1.msra.mxu0 0.0
        %7112 = vmatprep.subr.mxu0 0.0
        %7113 = vmatpush1.msra.mxu0 0.0
        %7114 = vmatprep.subr.mxu0 0.0
        %7115 = vmatpush1.msra.mxu0 0.0
        %7116 = vmatprep.subr.mxu0 0.0
        %7117 = vmatpush1.msra.mxu0 0.0
        %7118 = vmatprep.subr.mxu0 0.0
        %7119 = vmatpush1.msra.mxu0 0.0
        %7120 = vmatprep.subr.mxu0 0.0
        %7121 = vmatpush1.msra.mxu0 0.0
        %7122 = vmatprep.subr.mxu0 0.0
        %7123 = vmatpush1.msra.mxu0 0.0
        %7124 = vmatprep.subr.mxu0 0.0
        %7125 = vmatpush1.msra.mxu0 0.0
        %7126 = vmatprep.subr.mxu0 0.0
        %7127 = vmatpush1.msra.mxu0 0.0
        %7128 = vmatprep.subr.mxu0 0.0
        %7129 = vmatpush1.msra.mxu0 0.0
        %7130 = vmatprep.subr.mxu0 0.0
        %7131 = vmatpush1.msra.mxu0 0.0
        %7132 = vmatprep.subr.mxu0 0.0
        %7133 = vmatpush1.msra.mxu0 0.0
        %7134 = vmatprep.subr.mxu0 0.0
        %7135 = vmatpush1.msra.mxu0 0.0
        %7136 = vmatprep.subr.mxu0 0.0
        %7137 = vmatpush1.msra.mxu0 0.0
        %7138 = vmatprep.subr.mxu0 0.0
        %7139 = vmatpush1.msra.mxu0 0.0
        %7140 = vmatprep.subr.mxu0 0.0
        %7141 = vmatpush1.msra.mxu0 0.0
        %7142 = vmatprep.subr.mxu0 0.0
        %7143 = vmatpush1.msra.mxu0 0.0
        %7144 = vmatprep.subr.mxu0 0.0
        %7145 = vmatpush1.msra.mxu0 0.0
        %7146 = vmatprep.subr.mxu0 0.0
        %7147 = vmatpush1.msra.mxu0 0.0
        %7148 = vmatprep.subr.mxu0 0.0
        %7149 = vmatpush1.msra.mxu0 0.0
        %7150 = vmatprep.subr.mxu0 0.0
        %7151 = vmatpush1.msra.mxu0 0.0
        %7152 = vmatprep.subr.mxu0 0.0
        %7153 = vmatpush1.msra.mxu0 0.0
        %7154 = vmatprep.subr.mxu0 0.0
        %7155 = vmatpush1.msra.mxu0 0.0
        %7156 = vmatprep.subr.mxu0 0.0
        %7157 = vmatpush1.msra.mxu0 0.0
        %7158 = vmatprep.subr.mxu0 0.0
        %7159 = vmatpush1.msra.mxu0 0.0
        %7160 = vmatprep.subr.mxu0 0.0
        %7161 = vmatpush1.msra.mxu0 0.0
        %7162 = vmatprep.mubr.f32.mxu0 0.0
        %7163 = vmatmul.mubr.f32.gmra.mrb[0].mxu0 %v7096
        %v7164 = vpop.f32.mrb[0].mxu0
        %v7165 = vadd.f32 %v7093, %v7164
        %v7166 = vpop.f32.mrb[0].mxu0
        %7167 = vdwg.mxu0
        %v7169 = vsel %vm1392, %v7019, 0
        %7171 = vmatprep.subr.mxu0 0.0
        %7172 = vmatpush1.msra.mxu0 %v4926
        %7173 = vmatprep.subr.mxu0 0.0
        %7174 = vmatpush1.msra.mxu0 %v4927
        %7175 = vmatprep.subr.mxu0 0.0
        %7176 = vmatpush1.msra.mxu0 %v4928
        %7177 = vmatprep.subr.mxu0 0.0
        %7178 = vmatpush1.msra.mxu0 %v4929
        %7179 = vmatprep.subr.mxu0 0.0
        %7180 = vmatpush1.msra.mxu0 0.0
        %7181 = vmatprep.subr.mxu0 0.0
        %7182 = vmatpush1.msra.mxu0 0.0
        %7183 = vmatprep.subr.mxu0 0.0
        %7184 = vmatpush1.msra.mxu0 0.0
        %7185 = vmatprep.subr.mxu0 0.0
        %7186 = vmatpush1.msra.mxu0 0.0
        %7187 = vmatprep.subr.mxu0 0.0
        %7188 = vmatpush1.msra.mxu0 0.0
        %7189 = vmatprep.subr.mxu0 0.0
        %7190 = vmatpush1.msra.mxu0 0.0
        %7191 = vmatprep.subr.mxu0 0.0
        %7192 = vmatpush1.msra.mxu0 0.0
        %7193 = vmatprep.subr.mxu0 0.0
        %7194 = vmatpush1.msra.mxu0 0.0
        %7195 = vmatprep.subr.mxu0 0.0
        %7196 = vmatpush1.msra.mxu0 0.0
        %7197 = vmatprep.subr.mxu0 0.0
        %7198 = vmatpush1.msra.mxu0 0.0
        %7199 = vmatprep.subr.mxu0 0.0
        %7200 = vmatpush1.msra.mxu0 0.0
        %7201 = vmatprep.subr.mxu0 0.0
        %7202 = vmatpush1.msra.mxu0 0.0
        %7203 = vmatprep.subr.mxu0 0.0
        %7204 = vmatpush1.msra.mxu0 0.0
        %7205 = vmatprep.subr.mxu0 0.0
        %7206 = vmatpush1.msra.mxu0 0.0
        %7207 = vmatprep.subr.mxu0 0.0
        %7208 = vmatpush1.msra.mxu0 0.0
        %7209 = vmatprep.subr.mxu0 0.0
        %7210 = vmatpush1.msra.mxu0 0.0
        %7211 = vmatprep.subr.mxu0 0.0
        %7212 = vmatpush1.msra.mxu0 0.0
        %7213 = vmatprep.subr.mxu0 0.0
        %7214 = vmatpush1.msra.mxu0 0.0
        %7215 = vmatprep.subr.mxu0 0.0
        %7216 = vmatpush1.msra.mxu0 0.0
        %7217 = vmatprep.subr.mxu0 0.0
        %7218 = vmatpush1.msra.mxu0 0.0
        %7219 = vmatprep.subr.mxu0 0.0
        %7220 = vmatpush1.msra.mxu0 0.0
        %7221 = vmatprep.subr.mxu0 0.0
        %7222 = vmatpush1.msra.mxu0 0.0
        %7223 = vmatprep.subr.mxu0 0.0
        %7224 = vmatpush1.msra.mxu0 0.0
        %7225 = vmatprep.subr.mxu0 0.0
        %7226 = vmatpush1.msra.mxu0 0.0
        %7227 = vmatprep.subr.mxu0 0.0
        %7228 = vmatpush1.msra.mxu0 0.0
        %7229 = vmatprep.subr.mxu0 0.0
        %7230 = vmatpush1.msra.mxu0 0.0
        %7231 = vmatprep.subr.mxu0 0.0
        %7232 = vmatpush1.msra.mxu0 0.0
        %7233 = vmatprep.subr.mxu0 0.0
        %7234 = vmatpush1.msra.mxu0 0.0
        %7235 = vmatprep.mubr.f32.mxu0 0.0
        %7236 = vmatmul.mubr.f32.gmra.mrb[0].mxu0 %v7169
        %v7237 = vpop.f32.mrb[0].mxu0
        %v7238 = vadd.f32 0.0, %v7237
        %v7239 = vpop.f32.mrb[0].mxu0
        %7240 = vdwg.mxu0
        %v7241 = vadd.f32 %v7165, %v7238
        %v7242 = vrot.slane %v7019, 4
        %v7243 = vsel %vm1392, %v7242, 0
        %7245 = vmatprep.subr.mxu0 0.0
        %7246 = vmatpush1.msra.mxu0 %v4930
        %7247 = vmatprep.subr.mxu0 0.0
        %7248 = vmatpush1.msra.mxu0 %v4931
        %7249 = vmatprep.subr.mxu0 0.0
        %7250 = vmatpush1.msra.mxu0 %v4932
        %7251 = vmatprep.subr.mxu0 0.0
        %7252 = vmatpush1.msra.mxu0 %v4933
        %7253 = vmatprep.subr.mxu0 0.0
        %7254 = vmatpush1.msra.mxu0 0.0
        %7255 = vmatprep.subr.mxu0 0.0
        %7256 = vmatpush1.msra.mxu0 0.0
        %7257 = vmatprep.subr.mxu0 0.0
        %7258 = vmatpush1.msra.mxu0 0.0
        %7259 = vmatprep.subr.mxu0 0.0
        %7260 = vmatpush1.msra.mxu0 0.0
        %7261 = vmatprep.subr.mxu0 0.0
        %7262 = vmatpush1.msra.mxu0 0.0
        %7263 = vmatprep.subr.mxu0 0.0
        %7264 = vmatpush1.msra.mxu0 0.0
        %7265 = vmatprep.subr.mxu0 0.0
        %7266 = vmatpush1.msra.mxu0 0.0
        %7267 = vmatprep.subr.mxu0 0.0
        %7268 = vmatpush1.msra.mxu0 0.0
        %7269 = vmatprep.subr.mxu0 0.0
        %7270 = vmatpush1.msra.mxu0 0.0
        %7271 = vmatprep.subr.mxu0 0.0
        %7272 = vmatpush1.msra.mxu0 0.0
        %7273 = vmatprep.subr.mxu0 0.0
        %7274 = vmatpush1.msra.mxu0 0.0
        %7275 = vmatprep.subr.mxu0 0.0
        %7276 = vmatpush1.msra.mxu0 0.0
        %7277 = vmatprep.subr.mxu0 0.0
        %7278 = vmatpush1.msra.mxu0 0.0
        %7279 = vmatprep.subr.mxu0 0.0
        %7280 = vmatpush1.msra.mxu0 0.0
        %7281 = vmatprep.subr.mxu0 0.0
        %7282 = vmatpush1.msra.mxu0 0.0
        %7283 = vmatprep.subr.mxu0 0.0
        %7284 = vmatpush1.msra.mxu0 0.0
        %7285 = vmatprep.subr.mxu0 0.0
        %7286 = vmatpush1.msra.mxu0 0.0
        %7287 = vmatprep.subr.mxu0 0.0
        %7288 = vmatpush1.msra.mxu0 0.0
        %7289 = vmatprep.subr.mxu0 0.0
        %7290 = vmatpush1.msra.mxu0 0.0
        %7291 = vmatprep.subr.mxu0 0.0
        %7292 = vmatpush1.msra.mxu0 0.0
        %7293 = vmatprep.subr.mxu0 0.0
        %7294 = vmatpush1.msra.mxu0 0.0
        %7295 = vmatprep.subr.mxu0 0.0
        %7296 = vmatpush1.msra.mxu0 0.0
        %7297 = vmatprep.subr.mxu0 0.0
        %7298 = vmatpush1.msra.mxu0 0.0
        %7299 = vmatprep.subr.mxu0 0.0
        %7300 = vmatpush1.msra.mxu0 0.0
        %7301 = vmatprep.subr.mxu0 0.0
        %7302 = vmatpush1.msra.mxu0 0.0
        %7303 = vmatprep.subr.mxu0 0.0
        %7304 = vmatpush1.msra.mxu0 0.0
        %7305 = vmatprep.subr.mxu0 0.0
        %7306 = vmatpush1.msra.mxu0 0.0
        %7307 = vmatprep.subr.mxu0 0.0
        %7308 = vmatpush1.msra.mxu0 0.0
        %7309 = vmatprep.mubr.f32.mxu0 0.0
        %7310 = vmatmul.mubr.f32.gmra.mrb[0].mxu0 %v7243
        %v7311 = vpop.f32.mrb[0].mxu0
        %v7312 = vadd.f32 0.0, %v7311
        %v7313 = vpop.f32.mrb[0].mxu0
        %7314 = vdwg.mxu0
        %v7315 = vadd.f32 %v7241, %v7312
        %7316 = vst.msk [vmem:[#allocation3 + $0xc] sm:$0xf] %vm5536, %v7315
        %v7317 = vld [vmem:[#allocation3] sm:$0xff]
        %v7318 = vld [vmem:[#allocation3 + $0x8] sm:$0xff]
        %v7319 = vld [vmem:[%s43] sm:$0x1]
        %v7321 = vlaneseq
        %v7322 = vshrl.u32 %v7321, 7
        %v7323 = vsub.s32 0, %v7322
        %v7324 = vrot.slane %v7319, %v7323
        %v7326 = vadd.f32 %v7317, %v7324
        %v7327 = vadd.f32 %v7318, %v7324
        %v7328 = vadd.f32 %v1685, %v7326
        %v7329 = vadd.f32 %v1686, %v7327
        %v7330 = vld [vmem:[%s1370] sm:$0xff]
        %v7331 = vld [vmem:[%s1370 + $0x8] sm:$0xff]
        %v7332 = vld [vmem:[%s61] sm:$0x7]
        %v7333 = vld [vmem:[%s63] sm:$0x1]
        %v7335 = vlaneseq
        %v7336 = vshrl.u32 %v7335, 7
        %v7337 = vsub.s32 0, %v7336
        %v7338 = vrot.slane %v7333, %v7337
        %vm7340 = vcmask 23552
        %v7342 = vsel %vm7340, %v7330, 0
        %v7345 = vsel %vm7340, %v7331, 0
        %vm7347 = vcmask 1042432
        %v7349 = vsel %vm7347, %v7332, 0
        %7351 = vmatprep.subr.mxu0 0.0
        %7352 = vmatpush1.msra.mxu0 %v7349
        %7353 = vmatprep.subr.mxu0 0.0
        %7354 = vmatpush1.msra.mxu0 0.0
        %7355 = vmatprep.subr.mxu0 0.0
        %7356 = vmatpush1.msra.mxu0 0.0
        %7357 = vmatprep.subr.mxu0 0.0
        %7358 = vmatpush1.msra.mxu0 0.0
        %7359 = vmatprep.subr.mxu0 0.0
        %7360 = vmatpush1.msra.mxu0 0.0
        %7361 = vmatprep.subr.mxu0 0.0
        %7362 = vmatpush1.msra.mxu0 0.0
        %7363 = vmatprep.subr.mxu0 0.0
        %7364 = vmatpush1.msra.mxu0 0.0
        %7365 = vmatprep.subr.mxu0 0.0
        %7366 = vmatpush1.msra.mxu0 0.0
        %7367 = vmatprep.subr.mxu0 0.0
        %7368 = vmatpush1.msra.mxu0 0.0
        %7369 = vmatprep.subr.mxu0 0.0
        %7370 = vmatpush1.msra.mxu0 0.0
        %7371 = vmatprep.subr.mxu0 0.0
        %7372 = vmatpush1.msra.mxu0 0.0
        %7373 = vmatprep.subr.mxu0 0.0
        %7374 = vmatpush1.msra.mxu0 0.0
        %7375 = vmatprep.subr.mxu0 0.0
        %7376 = vmatpush1.msra.mxu0 0.0
        %7377 = vmatprep.subr.mxu0 0.0
        %7378 = vmatpush1.msra.mxu0 0.0
        %7379 = vmatprep.subr.mxu0 0.0
        %7380 = vmatpush1.msra.mxu0 0.0
        %7381 = vmatprep.subr.mxu0 0.0
        %7382 = vmatpush1.msra.mxu0 0.0
        %7383 = vmatprep.subr.mxu0 0.0
        %7384 = vmatpush1.msra.mxu0 0.0
        %7385 = vmatprep.subr.mxu0 0.0
        %7386 = vmatpush1.msra.mxu0 0.0
        %7387 = vmatprep.subr.mxu0 0.0
        %7388 = vmatpush1.msra.mxu0 0.0
        %7389 = vmatprep.subr.mxu0 0.0
        %7390 = vmatpush1.msra.mxu0 0.0
        %7391 = vmatprep.subr.mxu0 0.0
        %7392 = vmatpush1.msra.mxu0 0.0
        %7393 = vmatprep.subr.mxu0 0.0
        %7394 = vmatpush1.msra.mxu0 0.0
        %7395 = vmatprep.subr.mxu0 0.0
        %7396 = vmatpush1.msra.mxu0 0.0
        %7397 = vmatprep.subr.mxu0 0.0
        %7398 = vmatpush1.msra.mxu0 0.0
        %7399 = vmatprep.subr.mxu0 0.0
        %7400 = vmatpush1.msra.mxu0 0.0
        %7401 = vmatprep.subr.mxu0 0.0
        %7402 = vmatpush1.msra.mxu0 0.0
        %7403 = vmatprep.subr.mxu0 0.0
        %7404 = vmatpush1.msra.mxu0 0.0
        %7405 = vmatprep.subr.mxu0 0.0
        %7406 = vmatpush1.msra.mxu0 0.0
        %7407 = vmatprep.subr.mxu0 0.0
        %7408 = vmatpush1.msra.mxu0 0.0
        %7409 = vmatprep.subr.mxu0 0.0
        %7410 = vmatpush1.msra.mxu0 0.0
        %7411 = vmatprep.subr.mxu0 0.0
        %7412 = vmatpush1.msra.mxu0 0.0
        %7413 = vmatprep.subr.mxu0 0.0
        %7414 = vmatpush1.msra.mxu0 0.0
        %7415 = vmatprep.mubr.f32.mxu0 0.0
        %7416 = vmatmul.mubr.f32.gmra.mrb[0].mxu0 %v7342
        %v7417 = vpop.f32.mrb[0].mxu0
        %v7418 = vadd.f32 %v7338, %v7417
        %v7419 = vpop.f32.mrb[0].mxu0
        %7420 = vmatprep.mubr.f32.mxu0 0.0
        %7421 = vmatmul.mubr.f32.gmra.mrb[0].mxu0 %v7345
        %v7422 = vpop.f32.mrb[0].mxu0
        %v7423 = vadd.f32 %v7338, %v7422
        %v7424 = vpop.f32.mrb[0].mxu0
        %7425 = vdwg.mxu0
        %v7426 = vmax.f32 %v7418, 0.0
        %v7427 = vmax.f32 %v7423, 0.0
        %v7428 = vld [vmem:[%s65] sm:$0xff]
        %v7429 = vld [vmem:[%s65 + $0x8] sm:$0xff]
        %v7430 = vld [vmem:[%s65 + $0x10] sm:$0xff]
        %v7431 = vld [vmem:[%s65 + $0x18] sm:$0xff]
        %v7432 = vld [vmem:[%s67] sm:$0x1]
        %v7434 = vlaneseq
        %v7435 = vshrl.u32 %v7434, 7
        %v7436 = vsub.s32 0, %v7435
        %v7437 = vrot.slane %v7432, %v7436
        %v7440 = vsel %vm1392, %v7426, 0
        %v7443 = vsel %vm1392, %v7427, 0
        %7445 = vmatprep.subr.mxu0 0.0
        %7446 = vmatpush1.msra.mxu0 %v7428
        %7447 = vmatprep.subr.mxu0 0.0
        %7448 = vmatpush1.msra.mxu0 %v7429
        %7449 = vmatprep.subr.mxu0 0.0
        %7450 = vmatpush1.msra.mxu0 %v7430
        %7451 = vmatprep.subr.mxu0 0.0
        %7452 = vmatpush1.msra.mxu0 %v7431
        %7453 = vmatprep.subr.mxu0 0.0
        %7454 = vmatpush1.msra.mxu0 0.0
        %7455 = vmatprep.subr.mxu0 0.0
        %7456 = vmatpush1.msra.mxu0 0.0
        %7457 = vmatprep.subr.mxu0 0.0
        %7458 = vmatpush1.msra.mxu0 0.0
        %7459 = vmatprep.subr.mxu0 0.0
        %7460 = vmatpush1.msra.mxu0 0.0
        %7461 = vmatprep.subr.mxu0 0.0
        %7462 = vmatpush1.msra.mxu0 0.0
        %7463 = vmatprep.subr.mxu0 0.0
        %7464 = vmatpush1.msra.mxu0 0.0
        %7465 = vmatprep.subr.mxu0 0.0
        %7466 = vmatpush1.msra.mxu0 0.0
        %7467 = vmatprep.subr.mxu0 0.0
        %7468 = vmatpush1.msra.mxu0 0.0
        %7469 = vmatprep.subr.mxu0 0.0
        %7470 = vmatpush1.msra.mxu0 0.0
        %7471 = vmatprep.subr.mxu0 0.0
        %7472 = vmatpush1.msra.mxu0 0.0
        %7473 = vmatprep.subr.mxu0 0.0
        %7474 = vmatpush1.msra.mxu0 0.0
        %7475 = vmatprep.subr.mxu0 0.0
        %7476 = vmatpush1.msra.mxu0 0.0
        %7477 = vmatprep.subr.mxu0 0.0
        %7478 = vmatpush1.msra.mxu0 0.0
        %7479 = vmatprep.subr.mxu0 0.0
        %7480 = vmatpush1.msra.mxu0 0.0
        %7481 = vmatprep.subr.mxu0 0.0
        %7482 = vmatpush1.msra.mxu0 0.0
        %7483 = vmatprep.subr.mxu0 0.0
        %7484 = vmatpush1.msra.mxu0 0.0
        %7485 = vmatprep.subr.mxu0 0.0
        %7486 = vmatpush1.msra.mxu0 0.0
        %7487 = vmatprep.subr.mxu0 0.0
        %7488 = vmatpush1.msra.mxu0 0.0
        %7489 = vmatprep.subr.mxu0 0.0
        %7490 = vmatpush1.msra.mxu0 0.0
        %7491 = vmatprep.subr.mxu0 0.0
        %7492 = vmatpush1.msra.mxu0 0.0
        %7493 = vmatprep.subr.mxu0 0.0
        %7494 = vmatpush1.msra.mxu0 0.0
        %7495 = vmatprep.subr.mxu0 0.0
        %7496 = vmatpush1.msra.mxu0 0.0
        %7497 = vmatprep.subr.mxu0 0.0
        %7498 = vmatpush1.msra.mxu0 0.0
        %7499 = vmatprep.subr.mxu0 0.0
        %7500 = vmatpush1.msra.mxu0 0.0
        %7501 = vmatprep.subr.mxu0 0.0
        %7502 = vmatpush1.msra.mxu0 0.0
        %7503 = vmatprep.subr.mxu0 0.0
        %7504 = vmatpush1.msra.mxu0 0.0
        %7505 = vmatprep.subr.mxu0 0.0
        %7506 = vmatpush1.msra.mxu0 0.0
        %7507 = vmatprep.subr.mxu0 0.0
        %7508 = vmatpush1.msra.mxu0 0.0
        %7509 = vmatprep.mubr.f32.mxu0 0.0
        %7510 = vmatmul.mubr.f32.gmra.mrb[0].mxu0 %v7440
        %v7511 = vpop.f32.mrb[0].mxu0
        %v7512 = vadd.f32 %v7437, %v7511
        %v7513 = vpop.f32.mrb[0].mxu0
        %7514 = vmatprep.mubr.f32.mxu0 0.0
        %7515 = vmatmul.mubr.f32.gmra.mrb[0].mxu0 %v7443
        %v7516 = vpop.f32.mrb[0].mxu0
        %v7517 = vadd.f32 %v7437, %v7516
        %v7518 = vpop.f32.mrb[0].mxu0
        %7519 = vdwg.mxu0
        %7520 = vst.msk [vmem:[#allocation4] sm:$0xff] %vm1392, %v7328
        %7521 = vst.msk [vmem:[#allocation4 + $0x8] sm:$0xff] %vm1392, %v7329
        %7524 = vrot.lane.b32.xlu0 %v7512, 32
        %v7525 = vpop.permute.xlu0 %7524
        %7526 = vrot.lane.b32.xlu0 %v7517, 32
        %v7527 = vpop.permute.xlu0 %7526
        %vm7530 = vcmask 785664
        %7531 = vst.msk [vmem:[#allocation4] sm:$0xff] %vm7530, %v7525
        %7532 = vst.msk [vmem:[#allocation4 + $0x8] sm:$0xff] %vm7530, %v7527
        %v7533 = vld [vmem:[#allocation4] sm:$0xff]
        %v7534 = vld [vmem:[#allocation4 + $0x8] sm:$0xff]
        %v7535 = vld [vmem:[%s69] sm:$0xff]
        %v7536 = vld [vmem:[%s69 + $0x8] sm:$0xff]
        %v7537 = vld [vmem:[%s69 + $0x10] sm:$0xff]
        %v7538 = vld [vmem:[%s69 + $0x18] sm:$0xff]
        %v7539 = vld [vmem:[%s69 + $0x20] sm:$0xff]
        %v7540 = vld [vmem:[%s69 + $0x28] sm:$0xff]
        %v7541 = vld [vmem:[%s69 + $0x30] sm:$0xff]
        %v7542 = vld [vmem:[%s69 + $0x38] sm:$0xff]
        %v7543 = vld [vmem:[%s69 + $0x40] sm:$0xff]
        %v7544 = vld [vmem:[%s69 + $0x48] sm:$0xff]
        %v7545 = vld [vmem:[%s69 + $0x50] sm:$0xff]
        %v7546 = vld [vmem:[%s69 + $0x58] sm:$0xff]
        %v7547 = vld [vmem:[%s71] sm:$0x1]
        %v7549 = vlaneseq
        %v7550 = vshrl.u32 %v7549, 7
        %v7551 = vsub.s32 0, %v7550
        %v7552 = vrot.slane %v7547, %v7551
        %vm7554 = vcmask 785408
        %v7556 = vsel %vm7554, %v7533, 0
        %v7559 = vsel %vm7554, %v7534, 0
        %7561 = vmatprep.subr.mxu0 0.0
        %7562 = vmatpush1.msra.mxu0 %v7535
        %7563 = vmatprep.subr.mxu0 0.0
        %7564 = vmatpush1.msra.mxu0 %v7536
        %7565 = vmatprep.subr.mxu0 0.0
        %7566 = vmatpush1.msra.mxu0 %v7537
        %7567 = vmatprep.subr.mxu0 0.0
        %7568 = vmatpush1.msra.mxu0 %v7538
        %7569 = vmatprep.subr.mxu0 0.0
        %7570 = vmatpush1.msra.mxu0 %v7539
        %7571 = vmatprep.subr.mxu0 0.0
        %7572 = vmatpush1.msra.mxu0 %v7540
        %7573 = vmatprep.subr.mxu0 0.0
        %7574 = vmatpush1.msra.mxu0 %v7541
        %7575 = vmatprep.subr.mxu0 0.0
        %7576 = vmatpush1.msra.mxu0 %v7542
        %7577 = vmatprep.subr.mxu0 0.0
        %7578 = vmatpush1.msra.mxu0 %v7543
        %7579 = vmatprep.subr.mxu0 0.0
        %7580 = vmatpush1.msra.mxu0 %v7544
        %7581 = vmatprep.subr.mxu0 0.0
        %7582 = vmatpush1.msra.mxu0 %v7545
        %7583 = vmatprep.subr.mxu0 0.0
        %7584 = vmatpush1.msra.mxu0 %v7546
        %7585 = vmatprep.subr.mxu0 0.0
        %7586 = vmatpush1.msra.mxu0 0.0
        %7587 = vmatprep.subr.mxu0 0.0
        %7588 = vmatpush1.msra.mxu0 0.0
        %7589 = vmatprep.subr.mxu0 0.0
        %7590 = vmatpush1.msra.mxu0 0.0
        %7591 = vmatprep.subr.mxu0 0.0
        %7592 = vmatpush1.msra.mxu0 0.0
        %7593 = vmatprep.subr.mxu0 0.0
        %7594 = vmatpush1.msra.mxu0 0.0
        %7595 = vmatprep.subr.mxu0 0.0
        %7596 = vmatpush1.msra.mxu0 0.0
        %7597 = vmatprep.subr.mxu0 0.0
        %7598 = vmatpush1.msra.mxu0 0.0
        %7599 = vmatprep.subr.mxu0 0.0
        %7600 = vmatpush1.msra.mxu0 0.0
        %7601 = vmatprep.subr.mxu0 0.0
        %7602 = vmatpush1.msra.mxu0 0.0
        %7603 = vmatprep.subr.mxu0 0.0
        %7604 = vmatpush1.msra.mxu0 0.0
        %7605 = vmatprep.subr.mxu0 0.0
        %7606 = vmatpush1.msra.mxu0 0.0
        %7607 = vmatprep.subr.mxu0 0.0
        %7608 = vmatpush1.msra.mxu0 0.0
        %7609 = vmatprep.subr.mxu0 0.0
        %7610 = vmatpush1.msra.mxu0 0.0
        %7611 = vmatprep.subr.mxu0 0.0
        %7612 = vmatpush1.msra.mxu0 0.0
        %7613 = vmatprep.subr.mxu0 0.0
        %7614 = vmatpush1.msra.mxu0 0.0
        %7615 = vmatprep.subr.mxu0 0.0
        %7616 = vmatpush1.msra.mxu0 0.0
        %7617 = vmatprep.subr.mxu0 0.0
        %7618 = vmatpush1.msra.mxu0 0.0
        %7619 = vmatprep.subr.mxu0 0.0
        %7620 = vmatpush1.msra.mxu0 0.0
        %7621 = vmatprep.subr.mxu0 0.0
        %7622 = vmatpush1.msra.mxu0 0.0
        %7623 = vmatprep.subr.mxu0 0.0
        %7624 = vmatpush1.msra.mxu0 0.0
        %7625 = vmatprep.mubr.f32.mxu0 0.0
        %7626 = vmatmul.mubr.f32.gmra.mrb[0].mxu0 %v7556
        %v7627 = vpop.f32.mrb[0].mxu0
        %v7628 = vadd.f32 %v7552, %v7627
        %v7629 = vpop.f32.mrb[0].mxu0
        %7630 = vmatprep.mubr.f32.mxu0 0.0
        %7631 = vmatmul.mubr.f32.gmra.mrb[0].mxu0 %v7559
        %v7632 = vpop.f32.mrb[0].mxu0
        %v7633 = vadd.f32 %v7552, %v7632
        %v7634 = vpop.f32.mrb[0].mxu0
        %7635 = vdwg.mxu0
        %v7636 = vmax.f32 %v7628, 0.0
        %v7637 = vmax.f32 %v7633, 0.0
        %v7638 = vld [vmem:[%s73] sm:$0xff]
        %v7639 = vld [vmem:[%s73 + $0x8] sm:$0xff]
        %v7640 = vld [vmem:[%s73 + $0x10] sm:$0xff]
        %v7641 = vld [vmem:[%s73 + $0x18] sm:$0xff]
        %v7642 = vld [vmem:[%s73 + $0x20] sm:$0xff]
        %v7643 = vld [vmem:[%s73 + $0x28] sm:$0xff]
        %v7644 = vld [vmem:[%s73 + $0x30] sm:$0xff]
        %v7645 = vld [vmem:[%s73 + $0x38] sm:$0xff]
        %v7646 = vld [vmem:[%s75] sm:$0x1]
        %v7648 = vlaneseq
        %v7649 = vshrl.u32 %v7648, 7
        %v7650 = vsub.s32 0, %v7649
        %v7651 = vrot.slane %v7646, %v7650
        %v7654 = vsel %vm1880, %v7636, 0
        %v7657 = vsel %vm1880, %v7637, 0
        %7659 = vmatprep.subr.mxu0 0.0
        %7660 = vmatpush1.msra.mxu0 %v7638
        %7661 = vmatprep.subr.mxu0 0.0
        %7662 = vmatpush1.msra.mxu0 %v7639
        %7663 = vmatprep.subr.mxu0 0.0
        %7664 = vmatpush1.msra.mxu0 %v7640
        %7665 = vmatprep.subr.mxu0 0.0
        %7666 = vmatpush1.msra.mxu0 %v7641
        %7667 = vmatprep.subr.mxu0 0.0
        %7668 = vmatpush1.msra.mxu0 %v7642
        %7669 = vmatprep.subr.mxu0 0.0
        %7670 = vmatpush1.msra.mxu0 %v7643
        %7671 = vmatprep.subr.mxu0 0.0
        %7672 = vmatpush1.msra.mxu0 %v7644
        %7673 = vmatprep.subr.mxu0 0.0
        %7674 = vmatpush1.msra.mxu0 %v7645
        %7675 = vmatprep.subr.mxu0 0.0
        %7676 = vmatpush1.msra.mxu0 0.0
        %7677 = vmatprep.subr.mxu0 0.0
        %7678 = vmatpush1.msra.mxu0 0.0
        %7679 = vmatprep.subr.mxu0 0.0
        %7680 = vmatpush1.msra.mxu0 0.0
        %7681 = vmatprep.subr.mxu0 0.0
        %7682 = vmatpush1.msra.mxu0 0.0
        %7683 = vmatprep.subr.mxu0 0.0
        %7684 = vmatpush1.msra.mxu0 0.0
        %7685 = vmatprep.subr.mxu0 0.0
        %7686 = vmatpush1.msra.mxu0 0.0
        %7687 = vmatprep.subr.mxu0 0.0
        %7688 = vmatpush1.msra.mxu0 0.0
        %7689 = vmatprep.subr.mxu0 0.0
        %7690 = vmatpush1.msra.mxu0 0.0
        %7691 = vmatprep.subr.mxu0 0.0
        %7692 = vmatpush1.msra.mxu0 0.0
        %7693 = vmatprep.subr.mxu0 0.0
        %7694 = vmatpush1.msra.mxu0 0.0
        %7695 = vmatprep.subr.mxu0 0.0
        %7696 = vmatpush1.msra.mxu0 0.0
        %7697 = vmatprep.subr.mxu0 0.0
        %7698 = vmatpush1.msra.mxu0 0.0
        %7699 = vmatprep.subr.mxu0 0.0
        %7700 = vmatpush1.msra.mxu0 0.0
        %7701 = vmatprep.subr.mxu0 0.0
        %7702 = vmatpush1.msra.mxu0 0.0
        %7703 = vmatprep.subr.mxu0 0.0
        %7704 = vmatpush1.msra.mxu0 0.0
        %7705 = vmatprep.subr.mxu0 0.0
        %7706 = vmatpush1.msra.mxu0 0.0
        %7707 = vmatprep.subr.mxu0 0.0
        %7708 = vmatpush1.msra.mxu0 0.0
        %7709 = vmatprep.subr.mxu0 0.0
        %7710 = vmatpush1.msra.mxu0 0.0
        %7711 = vmatprep.subr.mxu0 0.0
        %7712 = vmatpush1.msra.mxu0 0.0
        %7713 = vmatprep.subr.mxu0 0.0
        %7714 = vmatpush1.msra.mxu0 0.0
        %7715 = vmatprep.subr.mxu0 0.0
        %7716 = vmatpush1.msra.mxu0 0.0
        %7717 = vmatprep.subr.mxu0 0.0
        %7718 = vmatpush1.msra.mxu0 0.0
        %7719 = vmatprep.subr.mxu0 0.0
        %7720 = vmatpush1.msra.mxu0 0.0
        %7721 = vmatprep.subr.mxu0 0.0
        %7722 = vmatpush1.msra.mxu0 0.0
        %7723 = vmatprep.mubr.f32.mxu0 0.0
        %7724 = vmatmul.mubr.f32.gmra.mrb[0].mxu0 %v7654
        %v7725 = vpop.f32.mrb[0].mxu0
        %v7726 = vadd.f32 %v7651, %v7725
        %v7727 = vpop.f32.mrb[0].mxu0
        %7728 = vmatprep.mubr.f32.mxu0 0.0
        %7729 = vmatmul.mubr.f32.gmra.mrb[0].mxu0 %v7657
        %v7730 = vpop.f32.mrb[0].mxu0
        %v7731 = vadd.f32 %v7651, %v7730
        %v7732 = vpop.f32.mrb[0].mxu0
        %7733 = vdwg.mxu0
        %v7734 = vadd.f32 %v7533, %v7726
        %v7735 = vadd.f32 %v7534, %v7731
        %s7736 = sld [smem:[#allocation5 + $0x6]]
        %s7737 = sld [smem:[#allocation5 + $0x7]]
        %v7738 = vsel %vm7554, %v7734, 0.0
        %v7739 = vsel %vm7554, %v7735, 0.0
        %v7740 = vadd.f32 %v7738, %v7739
        %v7741 = vrot.slane %v7740, 4
        %v7742 = vadd.f32 %v7740, %v7741
        %v7743 = vrot.slane %v7742, 2
        %v7744 = vadd.f32 %v7742, %v7743
        %v7745 = vrot.slane %v7744, 1
        %v7746 = vadd.f32 %v7744, %v7745
        %v7747 = vmul.f32 %v7746, %v1543
        %v7748 = vld [vmem:[%s27] sm:$0xff]
        %v7749 = vld [vmem:[%s27 + $0x8] sm:$0xff]
        %v7750 = vld [vmem:[%s27 + $0x10] sm:$0xff]
        %v7751 = vld [vmem:[%s27 + $0x18] sm:$0xff]
        %v7752 = vld [vmem:[%s27 + $0x20] sm:$0xff]
        %v7753 = vld [vmem:[%s27 + $0x28] sm:$0xff]
        %v7754 = vld [vmem:[%s27 + $0x30] sm:$0xff]
        %v7755 = vld [vmem:[%s27 + $0x38] sm:$0xff]
        %v7756 = vld [vmem:[%s27 + $0x40] sm:$0xff]
        %v7757 = vld [vmem:[%s27 + $0x48] sm:$0xff]
        %v7758 = vld [vmem:[%s27 + $0x50] sm:$0xff]
        %v7759 = vld [vmem:[%s27 + $0x58] sm:$0xff]
        %v7761 = vsel %vm7554, %v7747, 0
        %7763 = vmatprep.subr.mxu0 0.0
        %7764 = vmatpush1.msra.mxu0 %v7748
        %7765 = vmatprep.subr.mxu0 0.0
        %7766 = vmatpush1.msra.mxu0 %v7749
        %7767 = vmatprep.subr.mxu0 0.0
        %7768 = vmatpush1.msra.mxu0 %v7750
        %7769 = vmatprep.subr.mxu0 0.0
        %7770 = vmatpush1.msra.mxu0 %v7751
        %7771 = vmatprep.subr.mxu0 0.0
        %7772 = vmatpush1.msra.mxu0 %v7752
        %7773 = vmatprep.subr.mxu0 0.0
        %7774 = vmatpush1.msra.mxu0 %v7753
        %7775 = vmatprep.subr.mxu0 0.0
        %7776 = vmatpush1.msra.mxu0 %v7754
        %7777 = vmatprep.subr.mxu0 0.0
        %7778 = vmatpush1.msra.mxu0 %v7755
        %7779 = vmatprep.subr.mxu0 0.0
        %7780 = vmatpush1.msra.mxu0 %v7756
        %7781 = vmatprep.subr.mxu0 0.0
        %7782 = vmatpush1.msra.mxu0 %v7757
        %7783 = vmatprep.subr.mxu0 0.0
        %7784 = vmatpush1.msra.mxu0 %v7758
        %7785 = vmatprep.subr.mxu0 0.0
        %7786 = vmatpush1.msra.mxu0 %v7759
        %7787 = vmatprep.subr.mxu0 0.0
        %7788 = vmatpush1.msra.mxu0 0.0
        %7789 = vmatprep.subr.mxu0 0.0
        %7790 = vmatpush1.msra.mxu0 0.0
        %7791 = vmatprep.subr.mxu0 0.0
        %7792 = vmatpush1.msra.mxu0 0.0
        %7793 = vmatprep.subr.mxu0 0.0
        %7794 = vmatpush1.msra.mxu0 0.0
        %7795 = vmatprep.subr.mxu0 0.0
        %7796 = vmatpush1.msra.mxu0 0.0
        %7797 = vmatprep.subr.mxu0 0.0
        %7798 = vmatpush1.msra.mxu0 0.0
        %7799 = vmatprep.subr.mxu0 0.0
        %7800 = vmatpush1.msra.mxu0 0.0
        %7801 = vmatprep.subr.mxu0 0.0
        %7802 = vmatpush1.msra.mxu0 0.0
        %7803 = vmatprep.subr.mxu0 0.0
        %7804 = vmatpush1.msra.mxu0 0.0
        %7805 = vmatprep.subr.mxu0 0.0
        %7806 = vmatpush1.msra.mxu0 0.0
        %7807 = vmatprep.subr.mxu0 0.0
        %7808 = vmatpush1.msra.mxu0 0.0
        %7809 = vmatprep.subr.mxu0 0.0
        %7810 = vmatpush1.msra.mxu0 0.0
        %7811 = vmatprep.subr.mxu0 0.0
        %7812 = vmatpush1.msra.mxu0 0.0
        %7813 = vmatprep.subr.mxu0 0.0
        %7814 = vmatpush1.msra.mxu0 0.0
        %7815 = vmatprep.subr.mxu0 0.0
        %7816 = vmatpush1.msra.mxu0 0.0
        %7817 = vmatprep.subr.mxu0 0.0
        %7818 = vmatpush1.msra.mxu0 0.0
        %7819 = vmatprep.subr.mxu0 0.0
        %7820 = vmatpush1.msra.mxu0 0.0
        %7821 = vmatprep.subr.mxu0 0.0
        %7822 = vmatpush1.msra.mxu0 0.0
        %7823 = vmatprep.subr.mxu0 0.0
        %7824 = vmatpush1.msra.mxu0 0.0
        %7825 = vmatprep.subr.mxu0 0.0
        %7826 = vmatpush1.msra.mxu0 0.0
        %7827 = vmatprep.mubr.f32.mxu0 0.0
        %7828 = vmatmul.mubr.f32.gmra.mrb[0].mxu0 %v7761
        %v7829 = vpop.f32.mrb[0].mxu0
        %v7830 = vadd.f32 0.0, %v7829
        %v7831 = vpop.f32.mrb[0].mxu0
        %7832 = vdwg.mxu0
        %v7833 = vlaneseq
        %v7834 = vshrl.u32 %v7833, 7
        %v7835 = vsub.s32 0, %v7834
        %v7836 = vrot.slane %v7830, %v7835
        %v7837 = vmul.f32 %v7734, %v7836
        %v7838 = vmul.f32 %v7735, %v7836
        %v7839 = vsel %vm7554, %v7837, 0.0
        %7840 = vadd.xlane.f32.xlu0 %v7839
        %v7841 = vpop.xlane.xlu0 %7840
        %v7842 = vsel %vm7554, %v7838, 0.0
        %7843 = vadd.xlane.f32.xlu0 %v7842
        %v7844 = vpop.xlane.xlu0 %7843
        %v7845 = vsel %vm1487, %v7841, 0.0
        %v7846 = vsel %vm1487, %v7844, 0.0
        %v7847 = vadd.f32 %v7845, %v7846
        %7848 = vadd.xlane.f32.xlu0 %v7847
        %v7849 = vpop.xlane.xlu0 %7848
        %v7850 = vrot.slane %v7849, 4
        %v7851 = vadd.f32 %v7849, %v7850
        %v7852 = vrot.slane %v7851, 2
        %v7853 = vadd.f32 %v7851, %v7852
        %v7854 = vrot.slane %v7853, 1
        %v7855 = vadd.f32 %v7853, %v7854
        %s7856 = vtos %v7855
        %v7857 = vstv %s7856
        %v7858 = vmul.f32 %v7857, %v1543
        %v7859 = vsub.f32 %v7841, %v7858
        %v7860 = vsub.f32 %v7844, %v7858
        %v7861 = vmul.f32 %v7859, %v7859
        %v7862 = vmul.f32 %v7860, %v7860
        %v7863 = vsel %vm1487, %v7861, 0.0
        %v7864 = vsel %vm1487, %v7862, 0.0
        %v7865 = vadd.f32 %v7863, %v7864
        %7866 = vadd.xlane.f32.xlu0 %v7865
        %v7867 = vpop.xlane.xlu0 %7866
        %v7868 = vrot.slane %v7867, 4
        %v7869 = vadd.f32 %v7867, %v7868
        %v7870 = vrot.slane %v7869, 2
        %v7871 = vadd.f32 %v7869, %v7870
        %v7872 = vrot.slane %v7871, 1
        %v7873 = vadd.f32 %v7871, %v7872
        %s7874 = vtos %v7873
        %v7875 = vstv %s7874
        %v7876 = vmul.f32 %v7875, %v1543
        %v7877 = vrsqrt.pop %v7876
        %v7878 = vmul.f32 %v7876, %v7877
        %vm7879 = vcmp.eq.f32.partialorder %v7876, inf
        %v7880 = vsel %vm7879, %v7876, %v7878
        %vm7881 = vcmp.eq.f32.partialorder %v7876, 0.0
        %v7882 = vand.u32 %v7876, 2147483648
        %v7883 = vsel %vm7881, %v7882, %v7880
        %v7884 = vstv %s7736
        %v7885 = vmul.f32 %v7884, %v7859
        %v7886 = vmul.f32 %v7884, %v7860
        %v7887 = vadd.f32 %v7883, 1e-05
        %v7888 = vrcp.pop %v7887
        %v7889 = vmul.f32 %v7885, %v7888
        %v7890 = vmul.f32 %v7886, %v7888
        %v7891 = vstv %s7737
        %v7892 = vadd.f32 %v7889, %v7891
        %v7893 = vadd.f32 %v7890, %v7891
        %v7894 = vmul.f32 %v7892, %v7836
        %v7895 = vmul.f32 %v7893, %v7836
        %v7896 = vadd.f32 %v7734, %v7894
        %v7897 = vadd.f32 %v7735, %v7895
        %v7898 = vld [vmem:[%s77] sm:$0xff]
        %v7899 = vld [vmem:[%s77 + $0x8] sm:$0xff]
        %v7900 = vld [vmem:[%s77 + $0x10] sm:$0xff]
        %v7901 = vld [vmem:[%s77 + $0x18] sm:$0xff]
        %v7902 = vld [vmem:[%s77 + $0x20] sm:$0xff]
        %v7903 = vld [vmem:[%s77 + $0x28] sm:$0xff]
        %v7904 = vld [vmem:[%s77 + $0x30] sm:$0xff]
        %v7905 = vld [vmem:[%s77 + $0x38] sm:$0xff]
        %v7906 = vld [vmem:[%s77 + $0x40] sm:$0xff]
        %v7907 = vld [vmem:[%s77 + $0x48] sm:$0xff]
        %v7908 = vld [vmem:[%s77 + $0x50] sm:$0xff]
        %v7909 = vld [vmem:[%s77 + $0x58] sm:$0xff]
        %v7910 = vld [vmem:[%s79] sm:$0x1]
        %v7912 = vlaneseq
        %v7913 = vshrl.u32 %v7912, 7
        %v7914 = vsub.s32 0, %v7913
        %v7915 = vrot.slane %v7910, %v7914
        %v7918 = vsel %vm7554, %v7896, 0
        %v7921 = vsel %vm7554, %v7897, 0
        %7923 = vmatprep.subr.mxu0 0.0
        %7924 = vmatpush1.msra.mxu0 %v7898
        %7925 = vmatprep.subr.mxu0 0.0
        %7926 = vmatpush1.msra.mxu0 %v7899
        %7927 = vmatprep.subr.mxu0 0.0
        %7928 = vmatpush1.msra.mxu0 %v7900
        %7929 = vmatprep.subr.mxu0 0.0
        %7930 = vmatpush1.msra.mxu0 %v7901
        %7931 = vmatprep.subr.mxu0 0.0
        %7932 = vmatpush1.msra.mxu0 %v7902
        %7933 = vmatprep.subr.mxu0 0.0
        %7934 = vmatpush1.msra.mxu0 %v7903
        %7935 = vmatprep.subr.mxu0 0.0
        %7936 = vmatpush1.msra.mxu0 %v7904
        %7937 = vmatprep.subr.mxu0 0.0
        %7938 = vmatpush1.msra.mxu0 %v7905
        %7939 = vmatprep.subr.mxu0 0.0
        %7940 = vmatpush1.msra.mxu0 %v7906
        %7941 = vmatprep.subr.mxu0 0.0
        %7942 = vmatpush1.msra.mxu0 %v7907
        %7943 = vmatprep.subr.mxu0 0.0
        %7944 = vmatpush1.msra.mxu0 %v7908
        %7945 = vmatprep.subr.mxu0 0.0
        %7946 = vmatpush1.msra.mxu0 %v7909
        %7947 = vmatprep.subr.mxu0 0.0
        %7948 = vmatpush1.msra.mxu0 0.0
        %7949 = vmatprep.subr.mxu0 0.0
        %7950 = vmatpush1.msra.mxu0 0.0
        %7951 = vmatprep.subr.mxu0 0.0
        %7952 = vmatpush1.msra.mxu0 0.0
        %7953 = vmatprep.subr.mxu0 0.0
        %7954 = vmatpush1.msra.mxu0 0.0
        %7955 = vmatprep.subr.mxu0 0.0
        %7956 = vmatpush1.msra.mxu0 0.0
        %7957 = vmatprep.subr.mxu0 0.0
        %7958 = vmatpush1.msra.mxu0 0.0
        %7959 = vmatprep.subr.mxu0 0.0
        %7960 = vmatpush1.msra.mxu0 0.0
        %7961 = vmatprep.subr.mxu0 0.0
        %7962 = vmatpush1.msra.mxu0 0.0
        %7963 = vmatprep.subr.mxu0 0.0
        %7964 = vmatpush1.msra.mxu0 0.0
        %7965 = vmatprep.subr.mxu0 0.0
        %7966 = vmatpush1.msra.mxu0 0.0
        %7967 = vmatprep.subr.mxu0 0.0
        %7968 = vmatpush1.msra.mxu0 0.0
        %7969 = vmatprep.subr.mxu0 0.0
        %7970 = vmatpush1.msra.mxu0 0.0
        %7971 = vmatprep.subr.mxu0 0.0
        %7972 = vmatpush1.msra.mxu0 0.0
        %7973 = vmatprep.subr.mxu0 0.0
        %7974 = vmatpush1.msra.mxu0 0.0
        %7975 = vmatprep.subr.mxu0 0.0
        %7976 = vmatpush1.msra.mxu0 0.0
        %7977 = vmatprep.subr.mxu0 0.0
        %7978 = vmatpush1.msra.mxu0 0.0
        %7979 = vmatprep.subr.mxu0 0.0
        %7980 = vmatpush1.msra.mxu0 0.0
        %7981 = vmatprep.subr.mxu0 0.0
        %7982 = vmatpush1.msra.mxu0 0.0
        %7983 = vmatprep.subr.mxu0 0.0
        %7984 = vmatpush1.msra.mxu0 0.0
        %7985 = vmatprep.subr.mxu0 0.0
        %7986 = vmatpush1.msra.mxu0 0.0
        %7987 = vmatprep.mubr.f32.mxu0 0.0
        %7988 = vmatmul.mubr.f32.gmra.mrb[0].mxu0 %v7918
        %v7989 = vpop.f32.mrb[0].mxu0
        %v7990 = vadd.f32 %v7915, %v7989
        %v7991 = vpop.f32.mrb[0].mxu0
        %7992 = vmatprep.mubr.f32.mxu0 0.0
        %7993 = vmatmul.mubr.f32.gmra.mrb[0].mxu0 %v7921
        %v7994 = vpop.f32.mrb[0].mxu0
        %v7995 = vadd.f32 %v7915, %v7994
        %v7996 = vpop.f32.mrb[0].mxu0
        %7997 = vdwg.mxu0
        %v7998 = vmax.f32 %v7990, 0.0
        %v7999 = vmax.f32 %v7995, 0.0
        %v8000 = vld [vmem:[%s81] sm:$0xff]
        %v8001 = vld [vmem:[%s81 + $0x8] sm:$0xff]
        %v8002 = vld [vmem:[%s81 + $0x10] sm:$0xff]
        %v8003 = vld [vmem:[%s81 + $0x18] sm:$0xff]
        %v8004 = vld [vmem:[%s81 + $0x20] sm:$0xff]
        %v8005 = vld [vmem:[%s81 + $0x28] sm:$0xff]
        %v8006 = vld [vmem:[%s81 + $0x30] sm:$0xff]
        %v8007 = vld [vmem:[%s81 + $0x38] sm:$0xff]
        %v8008 = vld [vmem:[%s83] sm:$0x1]
        %v8010 = vlaneseq
        %v8011 = vshrl.u32 %v8010, 7
        %v8012 = vsub.s32 0, %v8011
        %v8013 = vrot.slane %v8008, %v8012
        %v8016 = vsel %vm1880, %v7998, 0
        %v8019 = vsel %vm1880, %v7999, 0
        %8021 = vmatprep.subr.mxu0 0.0
        %8022 = vmatpush1.msra.mxu0 %v8000
        %8023 = vmatprep.subr.mxu0 0.0
        %8024 = vmatpush1.msra.mxu0 %v8001
        %8025 = vmatprep.subr.mxu0 0.0
        %8026 = vmatpush1.msra.mxu0 %v8002
        %8027 = vmatprep.subr.mxu0 0.0
        %8028 = vmatpush1.msra.mxu0 %v8003
        %8029 = vmatprep.subr.mxu0 0.0
        %8030 = vmatpush1.msra.mxu0 %v8004
        %8031 = vmatprep.subr.mxu0 0.0
        %8032 = vmatpush1.msra.mxu0 %v8005
        %8033 = vmatprep.subr.mxu0 0.0
        %8034 = vmatpush1.msra.mxu0 %v8006
        %8035 = vmatprep.subr.mxu0 0.0
        %8036 = vmatpush1.msra.mxu0 %v8007
        %8037 = vmatprep.subr.mxu0 0.0
        %8038 = vmatpush1.msra.mxu0 0.0
        %8039 = vmatprep.subr.mxu0 0.0
        %8040 = vmatpush1.msra.mxu0 0.0
        %8041 = vmatprep.subr.mxu0 0.0
        %8042 = vmatpush1.msra.mxu0 0.0
        %8043 = vmatprep.subr.mxu0 0.0
        %8044 = vmatpush1.msra.mxu0 0.0
        %8045 = vmatprep.subr.mxu0 0.0
        %8046 = vmatpush1.msra.mxu0 0.0
        %8047 = vmatprep.subr.mxu0 0.0
        %8048 = vmatpush1.msra.mxu0 0.0
        %8049 = vmatprep.subr.mxu0 0.0
        %8050 = vmatpush1.msra.mxu0 0.0
        %8051 = vmatprep.subr.mxu0 0.0
        %8052 = vmatpush1.msra.mxu0 0.0
        %8053 = vmatprep.subr.mxu0 0.0
        %8054 = vmatpush1.msra.mxu0 0.0
        %8055 = vmatprep.subr.mxu0 0.0
        %8056 = vmatpush1.msra.mxu0 0.0
        %8057 = vmatprep.subr.mxu0 0.0
        %8058 = vmatpush1.msra.mxu0 0.0
        %8059 = vmatprep.subr.mxu0 0.0
        %8060 = vmatpush1.msra.mxu0 0.0
        %8061 = vmatprep.subr.mxu0 0.0
        %8062 = vmatpush1.msra.mxu0 0.0
        %8063 = vmatprep.subr.mxu0 0.0
        %8064 = vmatpush1.msra.mxu0 0.0
        %8065 = vmatprep.subr.mxu0 0.0
        %8066 = vmatpush1.msra.mxu0 0.0
        %8067 = vmatprep.subr.mxu0 0.0
        %8068 = vmatpush1.msra.mxu0 0.0
        %8069 = vmatprep.subr.mxu0 0.0
        %8070 = vmatpush1.msra.mxu0 0.0
        %8071 = vmatprep.subr.mxu0 0.0
        %8072 = vmatpush1.msra.mxu0 0.0
        %8073 = vmatprep.subr.mxu0 0.0
        %8074 = vmatpush1.msra.mxu0 0.0
        %8075 = vmatprep.subr.mxu0 0.0
        %8076 = vmatpush1.msra.mxu0 0.0
        %8077 = vmatprep.subr.mxu0 0.0
        %8078 = vmatpush1.msra.mxu0 0.0
        %8079 = vmatprep.subr.mxu0 0.0
        %8080 = vmatpush1.msra.mxu0 0.0
        %8081 = vmatprep.subr.mxu0 0.0
        %8082 = vmatpush1.msra.mxu0 0.0
        %8083 = vmatprep.subr.mxu0 0.0
        %8084 = vmatpush1.msra.mxu0 0.0
        %8085 = vmatprep.mubr.f32.mxu0 0.0
        %8086 = vmatmul.mubr.f32.gmra.mrb[0].mxu0 %v8016
        %v8087 = vpop.f32.mrb[0].mxu0
        %v8088 = vadd.f32 %v8013, %v8087
        %v8089 = vpop.f32.mrb[0].mxu0
        %8090 = vmatprep.mubr.f32.mxu0 0.0
        %8091 = vmatmul.mubr.f32.gmra.mrb[0].mxu0 %v8019
        %v8092 = vpop.f32.mrb[0].mxu0
        %v8093 = vadd.f32 %v8013, %v8092
        %v8094 = vpop.f32.mrb[0].mxu0
        %8095 = vdwg.mxu0
        %v8096 = vsel %vm1880, %v8088, 0.0
        %v8097 = vsel %vm1880, %v8093, 0.0
        %v8098 = vadd.f32 %v8096, %v8097
        %v8099 = vrot.slane %v8098, 4
        %v8100 = vadd.f32 %v8098, %v8099
        %v8101 = vrot.slane %v8100, 2
        %v8102 = vadd.f32 %v8100, %v8101
        %v8103 = vrot.slane %v8102, 1
        %v8104 = vadd.f32 %v8102, %v8103
        %v8105 = vmul.f32 %v8104, %v1543
        %vm8106 = vcmask 516096
        %8107 = vst.msk [vmem:[%s1356] sm:$0x1] %vm8106, %v8105
        %s8108 = sand.u32 %s1025, 1
        %s8109 = scalar_lea.sflag [#allocation6], %s8108
        %s8110 = sand.u32 %s1025, 1
        %s8111 = scalar_lea.vmem [#allocation8], %s8110
        // Predicated region
        $region193: #{decoder_forward_fused.1} parent=187 // pred_check
          %p8112 = pneg %p1035
        $region194: #{decoder_forward_fused.1} parent=187 // pred_check_branch
          %8114 = sbr.rel (%p8112) target = $region196
        $region195: #{decoder_forward_fused.1} parent=187 // pred_region
          %s8116 = ssub.s32 16, 16
          %8117 = vsyncadd %s8109, %s8116
          %s8118 = smul.addr %s100, 16
          %s8119 = scalar_lea.hbm %s85, %s8118
          %s8121 = sshll.u32 %s8111, 4
          %s8122 = int_to_ptr.vmem [resolvable:$true] %s8121
          %8124 = dma.vmem_to_hbm [thread:$0]  %s8122, 16, %s8119, %s8109
        $region196: #{decoder_forward_fused.1} parent=187 // pred_fallthru
          _
      $region188: #{decoder_forward_fused.1} parent=5 // pred_fallthru
        _
      %p8125 = scmp.le.s32.totalorder 2, %s95
      // Predicated region
      $region197: #{decoder_forward_fused.1} parent=5 // pred_check
        %p8126 = pneg %p8125
      $region198: #{decoder_forward_fused.1} parent=5 // pred_check_branch
        %8128 = sbr.rel (%p8126) target = $region200
      $region199: #{decoder_forward_fused.1} parent=5 // pred_region
        %s8129 = ssub.s32 %s95, 2
        // Predicated region
        $region201: #{decoder_forward_fused.1} parent=199 // pred_check
          %p8130 = pneg %p1041
        $region202: #{decoder_forward_fused.1} parent=199 // pred_check_branch
          %8132 = sbr.rel (%p8130) target = $region204
        $region203: #{decoder_forward_fused.1} parent=199 // pred_region
          %s8133 = sand.u32 %s1026, 1
          %s8134 = scalar_lea.sflag [#allocation6], %s8133
          %s8135 = sand.u32 %s1026, 1
          %s8136 = scalar_lea.vmem [#allocation8], %s8135
          %8137 = dma.done %s8134, 16
        $region204: #{decoder_forward_fused.1} parent=199 // pred_fallthru
          _
      $region200: #{decoder_forward_fused.1} parent=5 // pred_fallthru
        _
    $region6: #{decoder_forward_fused.1} parent=1 // loop_footer
      %s99 = sadd.s32 1, %s95
    $region7: #{decoder_forward_fused.1} parent=1 // loop_footer_branch
      %94 = sbr.rel target = $region3
    $region8: #{decoder_forward_fused.1} parent=1 // loop_exit
      _
    %8138 = vsyncpa [#allocation6], 1
    %s8139 = scalar_lea.sflag [#allocation6], 1
    %8140 = vsyncpa %s8139, 1
    %8141 = vsyncpa [#allocation7], 1
    %s8142 = scalar_lea.sflag [#allocation7], 1
    %8143 = vsyncpa %s8142, 1

</llo_original>
